<compile_context>
chip_gen: v7x
topology: tpu7x:2x2x1
jax: 0.10.0
libtpu: 0.0.40
codegen_flags: <defaults>
</compile_context>

<pallas_src>
import jax
import jax.numpy as jnp
from jax import lax
from jax.experimental import pallas as pl
from jax.experimental.pallas import tpu as pltpu

# ----------------------------- config (small, consistent with the module) ----
B = 2
IMG_C, IMG_H, IMG_W = 3, 16, 16
PATCH = 4
S_IMG = (IMG_H // PATCH) * (IMG_W // PATCH)   # 16 image tokens
PATCH_DIM = IMG_C * PATCH * PATCH             # 48
VIT_EMBED = 64                                # surrogate ViT embed_dim
S_TXT = 8
VOCAB = 50
BERT_HIDDEN = 64                              # surrogate BERT hidden_size
D = 128                                       # CFG.projection_dim
NH = 4                                        # CFG.num_head
HD = D // NH
FFN = 256                                     # transformer dim_feedforward (small)
NUM_LAYERS = 2                                # CFG.num_layers
CTX_DIM = 16                                  # CFG.context_input_dim
LN_EPS = 1e-5                                 # PyTorch LayerNorm default

M_IMG = B * S_IMG                             # 32 stacked image rows
M_TXT = B * S_TXT                             # 16 stacked text rows
M_TOT = M_IMG + M_TXT                         # 48 total fusion rows

BF16 = jnp.bfloat16
NEG_INF = -1e30

# ----------------------------- packed-slab layouts ----------------------------
# w_proj slab [576, 128]: all matrices whose output width is D.
WP_IMG_W1 = 0                                 # [VIT_EMBED, D]
WP_IMG_W2 = WP_IMG_W1 + VIT_EMBED             # [D, D]
WP_TXT_W1 = WP_IMG_W2 + D                     # [BERT_HIDDEN, D]
WP_TXT_W2 = WP_TXT_W1 + BERT_HIDDEN           # [D, D]
WP_CTX_W2 = WP_TXT_W2 + D                     # [64, D]
WP_CTX_W3 = WP_CTX_W2 + 64                    # [D, D]
WP_ROWS = WP_CTX_W3 + D                       # 576

# w_small slab [64, 64]: matrices with 64-wide output.
WS_VIT = 0                                    # [PATCH_DIM, 64]
WS_CTX1 = PATCH_DIM                           # [CTX_DIM, 64]
WS_ROWS = PATCH_DIM + CTX_DIM                 # 64

# vec slab [32, 128]: every bias / LayerNorm row vector (f32).
(V_IMG_B1, V_IMG_B2, V_IMG_G, V_IMG_BE,
 V_TXT_B1, V_TXT_B2, V_TXT_G, V_TXT_BE,
 V_CTX_B2, V_CTX_B3, V_CTX_G, V_CTX_BE,
 V_VIT_B, V_CTX_B1, V_FUS_G, V_FUS_BE) = range(16)
V_LAYER0 = 16                                 # per layer: bo, g1, be1, b2, g2, be2
VEC_ROWS_RAW = V_LAYER0 + 6 * NUM_LAYERS      # 28
VEC_ROWS = 32                                 # padded to a sublane multiple


# ----------------------------- in-kernel math helpers -------------------------
def _mxu_dot(a, b):
    # bf16 MXU operands, f32 accumulation.
    return jnp.dot(a.astype(BF16), b.astype(BF16), preferred_element_type=jnp.float32)


def _mxu_dot_nt(a, b):
    # a @ b.T with bf16 MXU operands, f32 accumulation.
    return lax.dot_general(a.astype(BF16), b.astype(BF16),
                           (((1,), (1,)), ((), ())),
                           preferred_element_type=jnp.float32)


def _layernorm(x, gamma, beta):
    mu = jnp.mean(x, axis=-1, keepdims=True)
    var = jnp.mean((x - mu) ** 2, axis=-1, keepdims=True)
    return (x - mu) * lax.rsqrt(var + LN_EPS) * gamma + beta


def _gelu(x):
    # tanh-approx GELU: one EUP op + a few VPU ops.
    c = 0.7978845608028654
    return 0.5 * x * (1.0 + jnp.tanh(c * (x + 0.044715 * x * x * x)))


def _projection_head(x, w1, b1, w2, b2, g, be):
    h = _mxu_dot(x, w1) + b1
    h = _gelu(h)
    h = _mxu_dot(h, w2) + b2
    # dropout: eval-mode identity
    return _layernorm(h, g, be)


def _l2_normalize(x):
    ss = jnp.sum(x * x, axis=-1, keepdims=True)
    return x * lax.rsqrt(jnp.maximum(ss, 1e-24))     # F.normalize(eps=1e-12)


# ----------------------------- fused forward + loss kernel --------------------
def _fused_kernel(patches_ref, tok_ref, ctx_ref,
                  w_small_ref, w_proj_ref, wqkv_ref, wo_ref,
                  ffn1_ref, ffn2_ref, bqkv_ref, ffnb1_ref, vec_ref,
                  t_ref, loss_ref):
    f32 = jnp.float32

    def row(i):
        return vec_ref[i:i + 1, :]                   # [1, 128] f32 bias / LN row

    # --- ImageEncoder: surrogate patch embedding + ProjectionHead ------------
    vit_w = w_small_ref[WS_VIT:WS_VIT + PATCH_DIM, :]            # [48, 64] bf16
    vit_b = row(V_VIT_B)[:, :VIT_EMBED]                          # [1, 64]
    vit_feat = _mxu_dot(patches_ref[...], vit_w) + vit_b         # [32, 64] f32
    img_x = _projection_head(
        vit_feat,
        w_proj_ref[WP_IMG_W1:WP_IMG_W1 + VIT_EMBED, :], row(V_IMG_B1),
        w_proj_ref[WP_IMG_W2:WP_IMG_W2 + D, :], row(V_IMG_B2),
        row(V_IMG_G), row(V_IMG_BE))                             # [32, 128]

    # --- TextEncoder: ProjectionHead on (masked) token embeddings ------------
    txt_x = _projection_head(
        tok_ref[...],
        w_proj_ref[WP_TXT_W1:WP_TXT_W1 + BERT_HIDDEN, :], row(V_TXT_B1),
        w_proj_ref[WP_TXT_W2:WP_TXT_W2 + D, :], row(V_TXT_B2),
        row(V_TXT_G), row(V_TXT_BE))                             # [16, 128]

    # --- ContextEncoder MLP (row 0: image context, row 1: text context) ------
    ctx_w1 = w_small_ref[WS_CTX1:WS_CTX1 + CTX_DIM, :]           # [16, 64] bf16
    c = _mxu_dot(ctx_ref[...], ctx_w1) + row(V_CTX_B1)[:, :64]   # [2, 64]
    c = jnp.maximum(c, 0.0)
    c = _mxu_dot(c, w_proj_ref[WP_CTX_W2:WP_CTX_W2 + 64, :]) + row(V_CTX_B2)
    c = jnp.maximum(c, 0.0)
    c = _mxu_dot(c, w_proj_ref[WP_CTX_W3:WP_CTX_W3 + D, :]) + row(V_CTX_B3)
    c = _layernorm(c, row(V_CTX_G), row(V_CTX_BE))               # [2, 128]

    # --- Stack both modalities / all batch elements into one M=48 slab -------
    x_all = jnp.concatenate([img_x, txt_x], axis=0)              # [48, 128]
    r = lax.broadcasted_iota(jnp.int32, (M_TOT, 1), 0)
    is_img = r < M_IMG
    ctx_rows = jnp.where(is_img, c[0:1, :], c[1:2, :])           # [48, 128]
    addition = x_all + ctx_rows                                  # x + ctx.unsqueeze(1)
    h = _layernorm(addition, row(V_FUS_G), row(V_FUS_BE))

    # --- Block-diagonal attention bias (each sample attends only to itself) --
    bounds = []
    off = 0
    for _ in range(B):
        bounds.append((off, off + S_IMG)); off += S_IMG
    for _ in range(B):
        bounds.append((off, off + S_TXT)); off += S_TXT

    def seg_of(idx):
        s = jnp.zeros_like(idx)
        for sid, (lo, hi) in enumerate(bounds):
            s = jnp.where((idx >= lo) & (idx < hi), sid, s)
        return s

    rr = lax.broadcasted_iota(jnp.int32, (M_TOT, M_TOT), 0)
    cc = lax.broadcasted_iota(jnp.int32, (M_TOT, M_TOT), 1)
    attn_bias = jnp.where(seg_of(rr) == seg_of(cc), 0.0, NEG_INF).astype(f32)

    # --- TransformerEncoder: NUM_LAYERS layers, shared stacked slab ----------
    scale = 1.0 / (HD ** 0.5)
    for l in range(NUM_LAYERS):
        base = V_LAYER0 + 6 * l
        bo, g1, be1 = row(base), row(base + 1), row(base + 2)
        b2_ffn, g2, be2 = row(base + 3), row(base + 4), row(base + 5)
        wqkv_l = wqkv_ref[l]                                     # [128, 384] bf16
        wo_l = wo_ref[l]                                         # [128, 128] bf16
        w1_l = ffn1_ref[l]                                       # [128, 256] bf16
        w2_l = ffn2_ref[l]                                       # [256, 128] bf16
        bqkv_l = bqkv_ref[l:l + 1, :]                            # [1, 384] f32
        b1_l = ffnb1_ref[l:l + 1, :]                             # [1, 256] f32

        qkv = _mxu_dot(h, wqkv_l) + bqkv_l                       # [48, 384]
        attn_out = jnp.zeros((M_TOT, D), f32)
        for hi in range(NH):                                     # per-head, no concat
            qh = qkv[:, hi * HD:(hi + 1) * HD]
            kh = qkv[:, D + hi * HD:D + (hi + 1) * HD]
            vh = qkv[:, 2 * D + hi * HD:2 * D + (hi + 1) * HD]
            s = _mxu_dot_nt(qh, kh) * scale + attn_bias          # [48, 48]
            s = s - jnp.max(s, axis=-1, keepdims=True)
            p = jnp.exp(s)
            p = p * pl.reciprocal(jnp.sum(p, axis=-1, keepdims=True), approx=True)
            hv = _mxu_dot(p, vh)                                 # [48, 32]
            attn_out = attn_out + _mxu_dot(hv, wo_l[hi * HD:(hi + 1) * HD, :])
        attn_out = attn_out + bo

        src = _layernorm(h + attn_out, g1, be1)
        ff = jnp.maximum(_mxu_dot(src, w1_l) + b1_l, 0.0)        # relu FFN
        ff = _mxu_dot(ff, w2_l) + b2_ffn
        h = _layernorm(src + ff, g2, be2)

    resid = addition + h                                         # [48, 128]

    # --- Per-sample means (Fusion.average_outputs), per segment --------------
    img_avg = jnp.concatenate(
        [jnp.mean(resid[b * S_IMG:(b + 1) * S_IMG, :], axis=0, keepdims=True)
         for b in range(B)], axis=0)                             # [B, 128]
    txt_avg = jnp.concatenate(
        [jnp.mean(resid[M_IMG + b * S_TXT:M_IMG + (b + 1) * S_TXT, :],
                  axis=0, keepdims=True)
         for b in range(B)], axis=0)                             # [B, 128]

    # --- CLIP loss epilogue ---------------------------------------------------
    img_n = _l2_normalize(img_avg)
    txt_n = _l2_normalize(txt_avg)
    raw = lax.dot_general(img_n, txt_n, (((1,), (1,)), ((), ())),
                          preferred_element_type=f32)            # [B, B] (f32 matmul)
    t = jnp.clip(t_ref[0, 0], 0.01, 20.0)                        # scalar from SMEM
    logits = raw * jnp.exp(jnp.full((1, 1), t, f32))             # sim * exp(clamp(T))

    row_i = lax.broadcasted_iota(jnp.int32, (B, B), 0)
    col_i = lax.broadcasted_iota(jnp.int32, (B, B), 1)
    diag = jnp.where(row_i == col_i, logits, 0.0)
    diag_col = jnp.sum(diag, axis=1, keepdims=True)              # [B, 1]
    diag_row = jnp.sum(diag, axis=0, keepdims=True)              # [1, B]
    m_r = jnp.max(logits, axis=1, keepdims=True)
    lse_r = jnp.log(jnp.sum(jnp.exp(logits - m_r), axis=1, keepdims=True)) + m_r
    m_c = jnp.max(logits, axis=0, keepdims=True)
    lse_c = jnp.log(jnp.sum(jnp.exp(logits - m_c), axis=0, keepdims=True)) + m_c
    li = lse_r - diag_col                                        # per-row CE terms
    lt = lse_c - diag_row                                        # per-col CE terms
    s_i = jnp.sum(li, axis=0, keepdims=True)                     # (1,1)
    s_t = jnp.sum(lt, axis=1, keepdims=True)                     # (1,1)
    loss_ref[...] = (s_i + s_t) / (2.0 * B)


def fused_forward(params, patches, tok, ctx_sel):
    """One pallas_call: encoders + contexts + fusion + CLIP loss."""
    args = [patches, tok, ctx_sel,
            params['w_small'], params['w_proj'], params['wqkv'], params['wo'],
            params['ffn1'], params['ffn2'], params['bqkv'], params['ffn_b1'],
            params['vec'], params['temperature']]

    in_specs = []
    for a in args[:-1]:                       # everything but temperature -> VMEM
        in_specs.append(pl.BlockSpec(a.shape, lambda i, n=a.ndim: (0,) * n))
    in_specs.append(pl.BlockSpec(memory_space=pltpu.MemorySpace.SMEM))  # temperature

    out = pl.pallas_call(
        _fused_kernel,
        out_shape=jax.ShapeDtypeStruct((1, 1), jnp.float32),
        grid=(1,),
        in_specs=in_specs,
        out_specs=pl.BlockSpec((1, 1), lambda i: (0, 0)),
        compiler_params=pltpu.CompilerParams(dimension_semantics=("arbitrary",)),
    )(*args)
    return out[0, 0]


# ----------------------------- parameters (packed slabs) ----------------------
def init_params(key):
    keys = iter(jax.random.split(key, 64))

    def w(shape, std=0.02):
        return jax.random.normal(next(keys), shape, jnp.float32) * std

    ones = lambda n: jnp.ones((1, n), jnp.float32)
    zeros = lambda n: jnp.zeros((1, n), jnp.float32)
    pad_d = lambda v: jnp.pad(v, ((0, 0), (0, D - v.shape[1])))

    vit_w, vit_b = w((PATCH_DIM, VIT_EMBED)), w((1, VIT_EMBED))
    bert_embed = w((VOCAB, BERT_HIDDEN))
    img = dict(w1=w((VIT_EMBED, D)), b1=w((1, D)), w2=w((D, D)), b2=w((1, D)),
               g=ones(D), be=zeros(D))
    txt = dict(w1=w((BERT_HIDDEN, D)), b1=w((1, D)), w2=w((D, D)), b2=w((1, D)),
               g=ones(D), be=zeros(D))
    ctx = dict(text_context=w((1, CTX_DIM), std=0.35),    # ~ N(0, U(0.1,0.6)) in module
               image_context=w((1, CTX_DIM), std=0.22),
               w1=w((CTX_DIM, 64)), b1=w((1, 64)),
               w2=w((64, 128)), b2=w((1, 128)),
               w3=w((128, D)), b3=w((1, D)), g=ones(D), be=zeros(D))
    layers = []
    for _ in range(NUM_LAYERS):
        layers.append(dict(
            wqkv=w((D, 3 * D)), bqkv=w((1, 3 * D)),       # fused in_proj (q|k|v)
            wo=w((D, D)), bo=w((1, D)),
            g1=ones(D), be1=zeros(D),
            w1=w((D, FFN)), b1=w((1, FFN)),
            w2=w((FFN, D)), b2=w((1, D)),
            g2=ones(D), be2=zeros(D)))
    fus_g, fus_be = ones(D), zeros(D)

    # -------- packed slabs (weights pre-cast to bf16; biases stay f32) -------
    w_small = jnp.concatenate([vit_w, ctx['w1']], axis=0).astype(BF16)     # [64, 64]
    w_proj = jnp.concatenate([img['w1'], img['w2'], txt['w1'], txt['w2'],
                              ctx['w2'], ctx['w3']], axis=0).astype(BF16)  # [576, 128]
    wqkv = jnp.stack([l['wqkv'] for l in layers]).astype(BF16)             # [2, 128, 384]
    wo = jnp.stack([l['wo'] for l in layers]).astype(BF16)                 # [2, 128, 128]
    ffn1 = jnp.stack([l['w1'] for l in layers]).astype(BF16)               # [2, 128, 256]
    ffn2 = jnp.stack([l['w2'] for l in layers]).astype(BF16)               # [2, 256, 128]
    bqkv = jnp.concatenate([l['bqkv'] for l in layers], axis=0)            # [2, 384]
    ffn_b1 = jnp.concatenate([l['b1'] for l in layers], axis=0)            # [2, 256]

    vec_rows = [img['b1'], img['b2'], img['g'], img['be'],
                txt['b1'], txt['b2'], txt['g'], txt['be'],
                ctx['b2'], ctx['b3'], ctx['g'], ctx['be'],
                pad_d(vit_b), pad_d(ctx['b1']),
                fus_g, fus_be]
    for l in layers:
        vec_rows += [l['bo'], l['g1'], l['be1'], l['b2'], l['g2'], l['be2']]
    vec = jnp.concatenate(vec_rows, axis=0)                                # [28, 128]
    vec = jnp.pad(vec, ((0, VEC_ROWS - vec.shape[0]), (0, 0)))             # [32, 128]

    return dict(bert_embed=bert_embed,
                text_context=ctx['text_context'],
                image_context=ctx['image_context'],
                temperature=jnp.full((1, 1), 0.07, jnp.float32),
                w_small=w_small, w_proj=w_proj, wqkv=wqkv, wo=wo,
                ffn1=ffn1, ffn2=ffn2, bqkv=bqkv, ffn_b1=ffn_b1, vec=vec)


# ----------------------------- forward (OneEncoderUP.forward) -----------------
def _select_context(ctx_id, params):
    # torch.where(x == 0, text_context, image_context) -- parameter select (glue)
    x = jnp.full((1, 1), ctx_id, jnp.float32)
    return jnp.where(x == 0.0, params['text_context'], params['image_context'])


def one_encoder_up_forward(params, images, input_ids, attention_mask):
    Bn = images.shape[0]
    p = PATCH

    # Patchify NCHW -> [B*S_IMG, PATCH_DIM]  (layout glue, plain JAX)
    patches = images.reshape(Bn, IMG_C, IMG_H // p, p, IMG_W // p, p)
    patches = patches.transpose(0, 2, 4, 1, 3, 5).reshape(Bn * S_IMG, PATCH_DIM)

    # Surrogate BERT: token embedding lookup + attention-mask zeroing (plain-JAX gather)
    tok = params['bert_embed'][input_ids] * attention_mask[..., None].astype(jnp.float32)
    tok = tok.reshape(Bn * S_TXT, BERT_HIDDEN)

    # Context selection: image_context_id=1 (row 0), text_context_id=0 (row 1)
    ctx_sel = jnp.concatenate([_select_context(1.0, params),
                               _select_context(0.0, params)], axis=0)     # [2, CTX_DIM]

    # Fused encoders + contexts + fusion + symmetric CLIP cross-entropy loss
    return fused_forward(params, patches, tok, ctx_sel)


if __name__ == "__main__":
    key = jax.random.PRNGKey(0)
    pkey, ikey, tkey = jax.random.split(key, 3)
    params = init_params(pkey)
    images = jax.random.normal(ikey, (B, IMG_C, IMG_H, IMG_W), jnp.float32)   # NCHW
    input_ids = jax.random.randint(tkey, (B, S_TXT), 0, VOCAB)
    attention_mask = jnp.ones((B, S_TXT), jnp.int32).at[1, -2:].set(0)

    fwd = jax.jit(one_encoder_up_forward)
    loss = fwd(params, images, input_ids, attention_mask)
    loss = jax.block_until_ready(loss)
    assert bool(jnp.isfinite(loss))
    print("KERNEL_OK")
</pallas_src>

<mosaic_0001>
module attributes {stable_mosaic.version = 11 : i64} {
  func.func @_fused_kernel(%arg0: i32, %arg1: memref<32x48xf32, #tpu.memory_space<vmem>>, %arg2: memref<16x64xf32, #tpu.memory_space<vmem>>, %arg3: memref<2x16xf32, #tpu.memory_space<vmem>>, %arg4: memref<64x64xbf16, #tpu.memory_space<vmem>>, %arg5: memref<576x128xbf16, #tpu.memory_space<vmem>>, %arg6: memref<2x128x384xbf16, #tpu.memory_space<vmem>>, %arg7: memref<2x128x128xbf16, #tpu.memory_space<vmem>>, %arg8: memref<2x128x256xbf16, #tpu.memory_space<vmem>>, %arg9: memref<2x256x128xbf16, #tpu.memory_space<vmem>>, %arg10: memref<2x384xf32, #tpu.memory_space<vmem>>, %arg11: memref<2x256xf32, #tpu.memory_space<vmem>>, %arg12: memref<32x128xf32, #tpu.memory_space<vmem>>, %arg13: memref<1x1xf32, #tpu.memory_space<smem>>, %arg14: memref<1x1xf32, #tpu.memory_space<vmem>>) attributes {dimension_semantics = [#tpu.dimension_semantics<arbitrary>], iteration_bounds = array<i64: 1>, scalar_prefetch = 0 : i64, scratch_operands = 0 : i64, tpu.core_type = #tpu.core_type<tc>, window_params = [{pipeline_mode = #tpu.pipeline_mode<synchronous>, transform_indices = @transform_0, window_bounds = array<i64: 32, 48>}, {pipeline_mode = #tpu.pipeline_mode<synchronous>, transform_indices = @transform_1, window_bounds = array<i64: 16, 64>}, {pipeline_mode = #tpu.pipeline_mode<synchronous>, transform_indices = @transform_2, window_bounds = array<i64: 2, 16>}, {pipeline_mode = #tpu.pipeline_mode<synchronous>, transform_indices = @transform_3, window_bounds = array<i64: 64, 64>}, {pipeline_mode = #tpu.pipeline_mode<synchronous>, transform_indices = @transform_4, window_bounds = array<i64: 576, 128>}, {pipeline_mode = #tpu.pipeline_mode<synchronous>, transform_indices = @transform_5, window_bounds = array<i64: 2, 128, 384>}, {pipeline_mode = #tpu.pipeline_mode<synchronous>, transform_indices = @transform_6, window_bounds = array<i64: 2, 128, 128>}, {pipeline_mode = #tpu.pipeline_mode<synchronous>, transform_indices = @transform_7, window_bounds = array<i64: 2, 128, 256>}, {pipeline_mode = #tpu.pipeline_mode<synchronous>, transform_indices = @transform_8, window_bounds = array<i64: 2, 256, 128>}, {pipeline_mode = #tpu.pipeline_mode<synchronous>, transform_indices = @transform_9, window_bounds = array<i64: 2, 384>}, {pipeline_mode = #tpu.pipeline_mode<synchronous>, transform_indices = @transform_10, window_bounds = array<i64: 2, 256>}, {pipeline_mode = #tpu.pipeline_mode<synchronous>, transform_indices = @transform_11, window_bounds = array<i64: 32, 128>}, {transform_indices = @transform_12, window_bounds = array<i64: 1, 1>}, {pipeline_mode = #tpu.pipeline_mode<synchronous>, transform_indices = @transform_13, window_bounds = array<i64: 1, 1>}]} {
    %c0 = arith.constant 0 : index
    %c0_0 = arith.constant 0 : index
    %0 = vector.load %arg4[%c0, %c0_0] : memref<64x64xbf16, #tpu.memory_space<vmem>>, vector<48x64xbf16>
    %c12 = arith.constant 12 : index
    %c0_1 = arith.constant 0 : index
    %1 = vector.load %arg12[%c12, %c0_1] : memref<32x128xf32, #tpu.memory_space<vmem>>, vector<1x128xf32>
    %2 = vector.extract_strided_slice %1 {offsets = [0, 0], sizes = [1, 64], strides = [1, 1]} : vector<1x128xf32> to vector<1x64xf32>
    %c0_2 = arith.constant 0 : index
    %c0_3 = arith.constant 0 : index
    %3 = vector.load %arg1[%c0_2, %c0_3] : memref<32x48xf32, #tpu.memory_space<vmem>>, vector<32x48xf32>
    %4 = arith.truncf %3 : vector<32x48xf32> to vector<32x48xbf16>
    %cst = arith.constant dense<0.000000e+00> : vector<32x64xf32>
    %5 = tpu.matmul %4, %0, %cst {dimension_numbers = #tpu.dot_dimension_numbers<[1], [0], [0], [1], [0, 0, 1, 1], [], []>} : vector<32x48xbf16>, vector<48x64xbf16>, vector<32x64xf32> -> vector<32x64xf32>
    %6 = vector.broadcast %2 : vector<1x64xf32> to vector<32x64xf32>
    %7 = arith.addf %5, %6 : vector<32x64xf32>
    %c0_4 = arith.constant 0 : index
    %c0_5 = arith.constant 0 : index
    %8 = vector.load %arg5[%c0_4, %c0_5] : memref<576x128xbf16, #tpu.memory_space<vmem>>, vector<64x128xbf16>
    %c0_6 = arith.constant 0 : index
    %c0_7 = arith.constant 0 : index
    %9 = vector.load %arg12[%c0_6, %c0_7] : memref<32x128xf32, #tpu.memory_space<vmem>>, vector<1x128xf32>
    %c64 = arith.constant 64 : index
    %c0_8 = arith.constant 0 : index
    %10 = vector.load %arg5[%c64, %c0_8] : memref<576x128xbf16, #tpu.memory_space<vmem>>, vector<128x128xbf16>
    %c1 = arith.constant 1 : index
    %c0_9 = arith.constant 0 : index
    %11 = vector.load %arg12[%c1, %c0_9] : memref<32x128xf32, #tpu.memory_space<vmem>>, vector<1x128xf32>
    %c2 = arith.constant 2 : index
    %c0_10 = arith.constant 0 : index
    %12 = vector.load %arg12[%c2, %c0_10] : memref<32x128xf32, #tpu.memory_space<vmem>>, vector<1x128xf32>
    %c3 = arith.constant 3 : index
    %c0_11 = arith.constant 0 : index
    %13 = vector.load %arg12[%c3, %c0_11] : memref<32x128xf32, #tpu.memory_space<vmem>>, vector<1x128xf32>
    %14 = arith.truncf %7 : vector<32x64xf32> to vector<32x64xbf16>
    %cst_12 = arith.constant dense<0.000000e+00> : vector<32x128xf32>
    %15 = tpu.matmul %14, %8, %cst_12 {dimension_numbers = #tpu.dot_dimension_numbers<[1], [0], [0], [1], [0, 0, 1, 1], [], []>} : vector<32x64xbf16>, vector<64x128xbf16>, vector<32x128xf32> -> vector<32x128xf32>
    %16 = vector.broadcast %9 : vector<1x128xf32> to vector<32x128xf32>
    %17 = arith.addf %15, %16 : vector<32x128xf32>
    %cst_13 = arith.constant 5.000000e-01 : f32
    %18 = vector.broadcast %cst_13 : f32 to vector<32x128xf32>
    %19 = arith.mulf %18, %17 : vector<32x128xf32>
    %cst_14 = arith.constant 4.471500e-02 : f32
    %20 = vector.broadcast %cst_14 : f32 to vector<32x128xf32>
    %21 = arith.mulf %20, %17 : vector<32x128xf32>
    %22 = arith.mulf %21, %17 : vector<32x128xf32>
    %23 = arith.mulf %22, %17 : vector<32x128xf32>
    %24 = arith.addf %17, %23 : vector<32x128xf32>
    %cst_15 = arith.constant 0.797884583 : f32
    %25 = vector.broadcast %cst_15 : f32 to vector<32x128xf32>
    %26 = arith.mulf %25, %24 : vector<32x128xf32>
    %27 = math.tanh %26 : vector<32x128xf32>
    %cst_16 = arith.constant 1.000000e+00 : f32
    %28 = vector.broadcast %cst_16 : f32 to vector<32x128xf32>
    %29 = arith.addf %28, %27 : vector<32x128xf32>
    %30 = arith.mulf %19, %29 : vector<32x128xf32>
    %31 = arith.truncf %30 : vector<32x128xf32> to vector<32x128xbf16>
    %cst_17 = arith.constant dense<0.000000e+00> : vector<32x128xf32>
    %32 = tpu.matmul %31, %10, %cst_17 {dimension_numbers = #tpu.dot_dimension_numbers<[1], [0], [0], [1], [0, 0, 1, 1], [], []>} : vector<32x128xbf16>, vector<128x128xbf16>, vector<32x128xf32> -> vector<32x128xf32>
    %33 = vector.broadcast %11 : vector<1x128xf32> to vector<32x128xf32>
    %34 = arith.addf %32, %33 : vector<32x128xf32>
    %cst_18 = arith.constant dense<0.000000e+00> : vector<32xf32>
    %35 = vector.multi_reduction <add>, %34, %cst_18 [1] : vector<32x128xf32> to vector<32xf32>
    %36 = vector.shape_cast %35 : vector<32xf32> to vector<32x1xf32>
    %cst_19 = arith.constant 1.280000e+02 : f32
    %37 = vector.broadcast %cst_19 : f32 to vector<32x1xf32>
    %38 = arith.divf %36, %37 : vector<32x1xf32>
    %39 = vector.broadcast %38 : vector<32x1xf32> to vector<32x128xf32>
    %40 = arith.subf %34, %39 : vector<32x128xf32>
    %41 = arith.mulf %40, %40 : vector<32x128xf32>
    %cst_20 = arith.constant dense<0.000000e+00> : vector<32xf32>
    %42 = vector.multi_reduction <add>, %41, %cst_20 [1] : vector<32x128xf32> to vector<32xf32>
    %43 = vector.shape_cast %42 : vector<32xf32> to vector<32x1xf32>
    %cst_21 = arith.constant 1.280000e+02 : f32
    %44 = vector.broadcast %cst_21 : f32 to vector<32x1xf32>
    %45 = arith.divf %43, %44 : vector<32x1xf32>
    %46 = vector.broadcast %38 : vector<32x1xf32> to vector<32x128xf32>
    %47 = arith.subf %34, %46 : vector<32x128xf32>
    %cst_22 = arith.constant 9.99999974E-6 : f32
    %48 = vector.broadcast %cst_22 : f32 to vector<32x1xf32>
    %49 = arith.addf %45, %48 : vector<32x1xf32>
    %50 = math.rsqrt %49 : vector<32x1xf32>
    %51 = vector.broadcast %50 : vector<32x1xf32> to vector<32x128xf32>
    %52 = arith.mulf %47, %51 : vector<32x128xf32>
    %53 = vector.broadcast %12 : vector<1x128xf32> to vector<32x128xf32>
    %54 = arith.mulf %52, %53 : vector<32x128xf32>
    %55 = vector.broadcast %13 : vector<1x128xf32> to vector<32x128xf32>
    %56 = arith.addf %54, %55 : vector<32x128xf32>
    %c0_23 = arith.constant 0 : index
    %c0_24 = arith.constant 0 : index
    %57 = vector.load %arg2[%c0_23, %c0_24] : memref<16x64xf32, #tpu.memory_space<vmem>>, vector<16x64xf32>
    %c192 = arith.constant 192 : index
    %c0_25 = arith.constant 0 : index
    %58 = vector.load %arg5[%c192, %c0_25] : memref<576x128xbf16, #tpu.memory_space<vmem>>, vector<64x128xbf16>
    %c4 = arith.constant 4 : index
    %c0_26 = arith.constant 0 : index
    %59 = vector.load %arg12[%c4, %c0_26] : memref<32x128xf32, #tpu.memory_space<vmem>>, vector<1x128xf32>
    %c256 = arith.constant 256 : index
    %c0_27 = arith.constant 0 : index
    %60 = vector.load %arg5[%c256, %c0_27] : memref<576x128xbf16, #tpu.memory_space<vmem>>, vector<128x128xbf16>
    %c5 = arith.constant 5 : index
    %c0_28 = arith.constant 0 : index
    %61 = vector.load %arg12[%c5, %c0_28] : memref<32x128xf32, #tpu.memory_space<vmem>>, vector<1x128xf32>
    %c6 = arith.constant 6 : index
    %c0_29 = arith.constant 0 : index
    %62 = vector.load %arg12[%c6, %c0_29] : memref<32x128xf32, #tpu.memory_space<vmem>>, vector<1x128xf32>
    %c7 = arith.constant 7 : index
    %c0_30 = arith.constant 0 : index
    %63 = vector.load %arg12[%c7, %c0_30] : memref<32x128xf32, #tpu.memory_space<vmem>>, vector<1x128xf32>
    %64 = arith.truncf %57 : vector<16x64xf32> to vector<16x64xbf16>
    %cst_31 = arith.constant dense<0.000000e+00> : vector<16x128xf32>
    %65 = tpu.matmul %64, %58, %cst_31 {dimension_numbers = #tpu.dot_dimension_numbers<[1], [0], [0], [1], [0, 0, 1, 1], [], []>} : vector<16x64xbf16>, vector<64x128xbf16>, vector<16x128xf32> -> vector<16x128xf32>
    %66 = vector.broadcast %59 : vector<1x128xf32> to vector<16x128xf32>
    %67 = arith.addf %65, %66 : vector<16x128xf32>
    %cst_32 = arith.constant 5.000000e-01 : f32
    %68 = vector.broadcast %cst_32 : f32 to vector<16x128xf32>
    %69 = arith.mulf %68, %67 : vector<16x128xf32>
    %cst_33 = arith.constant 4.471500e-02 : f32
    %70 = vector.broadcast %cst_33 : f32 to vector<16x128xf32>
    %71 = arith.mulf %70, %67 : vector<16x128xf32>
    %72 = arith.mulf %71, %67 : vector<16x128xf32>
    %73 = arith.mulf %72, %67 : vector<16x128xf32>
    %74 = arith.addf %67, %73 : vector<16x128xf32>
    %cst_34 = arith.constant 0.797884583 : f32
    %75 = vector.broadcast %cst_34 : f32 to vector<16x128xf32>
    %76 = arith.mulf %75, %74 : vector<16x128xf32>
    %77 = math.tanh %76 : vector<16x128xf32>
    %cst_35 = arith.constant 1.000000e+00 : f32
    %78 = vector.broadcast %cst_35 : f32 to vector<16x128xf32>
    %79 = arith.addf %78, %77 : vector<16x128xf32>
    %80 = arith.mulf %69, %79 : vector<16x128xf32>
    %81 = arith.truncf %80 : vector<16x128xf32> to vector<16x128xbf16>
    %cst_36 = arith.constant dense<0.000000e+00> : vector<16x128xf32>
    %82 = tpu.matmul %81, %60, %cst_36 {dimension_numbers = #tpu.dot_dimension_numbers<[1], [0], [0], [1], [0, 0, 1, 1], [], []>} : vector<16x128xbf16>, vector<128x128xbf16>, vector<16x128xf32> -> vector<16x128xf32>
    %83 = vector.broadcast %61 : vector<1x128xf32> to vector<16x128xf32>
    %84 = arith.addf %82, %83 : vector<16x128xf32>
    %cst_37 = arith.constant dense<0.000000e+00> : vector<16xf32>
    %85 = vector.multi_reduction <add>, %84, %cst_37 [1] : vector<16x128xf32> to vector<16xf32>
    %86 = vector.shape_cast %85 : vector<16xf32> to vector<16x1xf32>
    %cst_38 = arith.constant 1.280000e+02 : f32
    %87 = vector.broadcast %cst_38 : f32 to vector<16x1xf32>
    %88 = arith.divf %86, %87 : vector<16x1xf32>
    %89 = vector.broadcast %88 : vector<16x1xf32> to vector<16x128xf32>
    %90 = arith.subf %84, %89 : vector<16x128xf32>
    %91 = arith.mulf %90, %90 : vector<16x128xf32>
    %cst_39 = arith.constant dense<0.000000e+00> : vector<16xf32>
    %92 = vector.multi_reduction <add>, %91, %cst_39 [1] : vector<16x128xf32> to vector<16xf32>
    %93 = vector.shape_cast %92 : vector<16xf32> to vector<16x1xf32>
    %cst_40 = arith.constant 1.280000e+02 : f32
    %94 = vector.broadcast %cst_40 : f32 to vector<16x1xf32>
    %95 = arith.divf %93, %94 : vector<16x1xf32>
    %96 = vector.broadcast %88 : vector<16x1xf32> to vector<16x128xf32>
    %97 = arith.subf %84, %96 : vector<16x128xf32>
    %cst_41 = arith.constant 9.99999974E-6 : f32
    %98 = vector.broadcast %cst_41 : f32 to vector<16x1xf32>
    %99 = arith.addf %95, %98 : vector<16x1xf32>
    %100 = math.rsqrt %99 : vector<16x1xf32>
    %101 = vector.broadcast %100 : vector<16x1xf32> to vector<16x128xf32>
    %102 = arith.mulf %97, %101 : vector<16x128xf32>
    %103 = vector.broadcast %62 : vector<1x128xf32> to vector<16x128xf32>
    %104 = arith.mulf %102, %103 : vector<16x128xf32>
    %105 = vector.broadcast %63 : vector<1x128xf32> to vector<16x128xf32>
    %106 = arith.addf %104, %105 : vector<16x128xf32>
    %c48 = arith.constant 48 : index
    %c0_42 = arith.constant 0 : index
    %107 = vector.load %arg4[%c48, %c0_42] : memref<64x64xbf16, #tpu.memory_space<vmem>>, vector<16x64xbf16>
    %c0_43 = arith.constant 0 : index
    %c0_44 = arith.constant 0 : index
    %108 = vector.load %arg3[%c0_43, %c0_44] : memref<2x16xf32, #tpu.memory_space<vmem>>, vector<2x16xf32>
    %109 = arith.truncf %108 : vector<2x16xf32> to vector<2x16xbf16>
    %cst_45 = arith.constant dense<0.000000e+00> : vector<2x64xf32>
    %110 = tpu.matmul %109, %107, %cst_45 {dimension_numbers = #tpu.dot_dimension_numbers<[1], [0], [0], [1], [0, 0, 1, 1], [], []>} : vector<2x16xbf16>, vector<16x64xbf16>, vector<2x64xf32> -> vector<2x64xf32>
    %c13 = arith.constant 13 : index
    %c0_46 = arith.constant 0 : index
    %111 = vector.load %arg12[%c13, %c0_46] : memref<32x128xf32, #tpu.memory_space<vmem>>, vector<1x128xf32>
    %112 = vector.extract_strided_slice %111 {offsets = [0, 0], sizes = [1, 64], strides = [1, 1]} : vector<1x128xf32> to vector<1x64xf32>
    %113 = vector.broadcast %112 : vector<1x64xf32> to vector<2x64xf32>
    %114 = arith.addf %110, %113 : vector<2x64xf32>
    %cst_47 = arith.constant 0.000000e+00 : f32
    %115 = vector.broadcast %cst_47 : f32 to vector<2x64xf32>
    %116 = arith.maximumf %114, %115 : vector<2x64xf32>
    %c384 = arith.constant 384 : index
    %c0_48 = arith.constant 0 : index
    %117 = vector.load %arg5[%c384, %c0_48] : memref<576x128xbf16, #tpu.memory_space<vmem>>, vector<64x128xbf16>
    %118 = arith.truncf %116 : vector<2x64xf32> to vector<2x64xbf16>
    %cst_49 = arith.constant dense<0.000000e+00> : vector<2x128xf32>
    %119 = tpu.matmul %118, %117, %cst_49 {dimension_numbers = #tpu.dot_dimension_numbers<[1], [0], [0], [1], [0, 0, 1, 1], [], []>} : vector<2x64xbf16>, vector<64x128xbf16>, vector<2x128xf32> -> vector<2x128xf32>
    %c8 = arith.constant 8 : index
    %c0_50 = arith.constant 0 : index
    %120 = vector.load %arg12[%c8, %c0_50] : memref<32x128xf32, #tpu.memory_space<vmem>>, vector<1x128xf32>
    %121 = vector.broadcast %120 : vector<1x128xf32> to vector<2x128xf32>
    %122 = arith.addf %119, %121 : vector<2x128xf32>
    %cst_51 = arith.constant 0.000000e+00 : f32
    %123 = vector.broadcast %cst_51 : f32 to vector<2x128xf32>
    %124 = arith.maximumf %122, %123 : vector<2x128xf32>
    %c448 = arith.constant 448 : index
    %c0_52 = arith.constant 0 : index
    %125 = vector.load %arg5[%c448, %c0_52] : memref<576x128xbf16, #tpu.memory_space<vmem>>, vector<128x128xbf16>
    %126 = arith.truncf %124 : vector<2x128xf32> to vector<2x128xbf16>
    %cst_53 = arith.constant dense<0.000000e+00> : vector<2x128xf32>
    %127 = tpu.matmul %126, %125, %cst_53 {dimension_numbers = #tpu.dot_dimension_numbers<[1], [0], [0], [1], [0, 0, 1, 1], [], []>} : vector<2x128xbf16>, vector<128x128xbf16>, vector<2x128xf32> -> vector<2x128xf32>
    %c9 = arith.constant 9 : index
    %c0_54 = arith.constant 0 : index
    %128 = vector.load %arg12[%c9, %c0_54] : memref<32x128xf32, #tpu.memory_space<vmem>>, vector<1x128xf32>
    %129 = vector.broadcast %128 : vector<1x128xf32> to vector<2x128xf32>
    %130 = arith.addf %127, %129 : vector<2x128xf32>
    %c10 = arith.constant 10 : index
    %c0_55 = arith.constant 0 : index
    %131 = vector.load %arg12[%c10, %c0_55] : memref<32x128xf32, #tpu.memory_space<vmem>>, vector<1x128xf32>
    %c11 = arith.constant 11 : index
    %c0_56 = arith.constant 0 : index
    %132 = vector.load %arg12[%c11, %c0_56] : memref<32x128xf32, #tpu.memory_space<vmem>>, vector<1x128xf32>
    %cst_57 = arith.constant dense<0.000000e+00> : vector<2xf32>
    %133 = vector.multi_reduction <add>, %130, %cst_57 [1] : vector<2x128xf32> to vector<2xf32>
    %134 = vector.shape_cast %133 : vector<2xf32> to vector<2x1xf32>
    %cst_58 = arith.constant 1.280000e+02 : f32
    %135 = vector.broadcast %cst_58 : f32 to vector<2x1xf32>
    %136 = arith.divf %134, %135 : vector<2x1xf32>
    %137 = vector.broadcast %136 : vector<2x1xf32> to vector<2x128xf32>
    %138 = arith.subf %130, %137 : vector<2x128xf32>
    %139 = arith.mulf %138, %138 : vector<2x128xf32>
    %cst_59 = arith.constant dense<0.000000e+00> : vector<2xf32>
    %140 = vector.multi_reduction <add>, %139, %cst_59 [1] : vector<2x128xf32> to vector<2xf32>
    %141 = vector.shape_cast %140 : vector<2xf32> to vector<2x1xf32>
    %cst_60 = arith.constant 1.280000e+02 : f32
    %142 = vector.broadcast %cst_60 : f32 to vector<2x1xf32>
    %143 = arith.divf %141, %142 : vector<2x1xf32>
    %144 = vector.broadcast %136 : vector<2x1xf32> to vector<2x128xf32>
    %145 = arith.subf %130, %144 : vector<2x128xf32>
    %cst_61 = arith.constant 9.99999974E-6 : f32
    %146 = vector.broadcast %cst_61 : f32 to vector<2x1xf32>
    %147 = arith.addf %143, %146 : vector<2x1xf32>
    %148 = math.rsqrt %147 : vector<2x1xf32>
    %149 = vector.broadcast %148 : vector<2x1xf32> to vector<2x128xf32>
    %150 = arith.mulf %145, %149 : vector<2x128xf32>
    %151 = vector.broadcast %131 : vector<1x128xf32> to vector<2x128xf32>
    %152 = arith.mulf %150, %151 : vector<2x128xf32>
    %153 = vector.broadcast %132 : vector<1x128xf32> to vector<2x128xf32>
    %154 = arith.addf %152, %153 : vector<2x128xf32>
    %155 = tpu.concatenate %56, %106 in 0 : vector<32x128xf32>, vector<16x128xf32> -> vector<48x128xf32>
    %156 = tpu.iota {dimensions = array<i32: 0>} : vector<48x1xi32>
    %c32_i32 = arith.constant 32 : i32
    %157 = vector.broadcast %c32_i32 : i32 to vector<48x1xi32>
    %158 = arith.cmpi slt, %156, %157 : vector<48x1xi32>
    %159 = vector.extract_strided_slice %154 {offsets = [0, 0], sizes = [1, 128], strides = [1, 1]} : vector<2x128xf32> to vector<1x128xf32>
    %160 = vector.extract_strided_slice %154 {offsets = [1, 0], sizes = [1, 128], strides = [1, 1]} : vector<2x128xf32> to vector<1x128xf32>
    %161 = vector.shape_cast %158 : vector<48x1xi1> to vector<48x1xi1>
    %162 = vector.broadcast %161 : vector<48x1xi1> to vector<48x128xi1>
    %163 = vector.shape_cast %159 : vector<1x128xf32> to vector<1x128xf32>
    %164 = vector.broadcast %163 : vector<1x128xf32> to vector<48x128xf32>
    %165 = vector.shape_cast %160 : vector<1x128xf32> to vector<1x128xf32>
    %166 = vector.broadcast %165 : vector<1x128xf32> to vector<48x128xf32>
    %167 = arith.select %162, %164, %166 : vector<48x128xi1>, vector<48x128xf32>
    %168 = arith.addf %155, %167 : vector<48x128xf32>
    %c14 = arith.constant 14 : index
    %c0_62 = arith.constant 0 : index
    %169 = vector.load %arg12[%c14, %c0_62] : memref<32x128xf32, #tpu.memory_space<vmem>>, vector<1x128xf32>
    %c15 = arith.constant 15 : index
    %c0_63 = arith.constant 0 : index
    %170 = vector.load %arg12[%c15, %c0_63] : memref<32x128xf32, #tpu.memory_space<vmem>>, vector<1x128xf32>
    %cst_64 = arith.constant dense<0.000000e+00> : vector<48xf32>
    %171 = vector.multi_reduction <add>, %168, %cst_64 [1] : vector<48x128xf32> to vector<48xf32>
    %172 = vector.shape_cast %171 : vector<48xf32> to vector<48x1xf32>
    %cst_65 = arith.constant 1.280000e+02 : f32
    %173 = vector.broadcast %cst_65 : f32 to vector<48x1xf32>
    %174 = arith.divf %172, %173 : vector<48x1xf32>
    %175 = vector.broadcast %174 : vector<48x1xf32> to vector<48x128xf32>
    %176 = arith.subf %168, %175 : vector<48x128xf32>
    %177 = arith.mulf %176, %176 : vector<48x128xf32>
    %cst_66 = arith.constant dense<0.000000e+00> : vector<48xf32>
    %178 = vector.multi_reduction <add>, %177, %cst_66 [1] : vector<48x128xf32> to vector<48xf32>
    %179 = vector.shape_cast %178 : vector<48xf32> to vector<48x1xf32>
    %cst_67 = arith.constant 1.280000e+02 : f32
    %180 = vector.broadcast %cst_67 : f32 to vector<48x1xf32>
    %181 = arith.divf %179, %180 : vector<48x1xf32>
    %182 = vector.broadcast %174 : vector<48x1xf32> to vector<48x128xf32>
    %183 = arith.subf %168, %182 : vector<48x128xf32>
    %cst_68 = arith.constant 9.99999974E-6 : f32
    %184 = vector.broadcast %cst_68 : f32 to vector<48x1xf32>
    %185 = arith.addf %181, %184 : vector<48x1xf32>
    %186 = math.rsqrt %185 : vector<48x1xf32>
    %187 = vector.broadcast %186 : vector<48x1xf32> to vector<48x128xf32>
    %188 = arith.mulf %183, %187 : vector<48x128xf32>
    %189 = vector.broadcast %169 : vector<1x128xf32> to vector<48x128xf32>
    %190 = arith.mulf %188, %189 : vector<48x128xf32>
    %191 = vector.broadcast %170 : vector<1x128xf32> to vector<48x128xf32>
    %192 = arith.addf %190, %191 : vector<48x128xf32>
    %193 = tpu.iota {dimensions = array<i32: 0>} : vector<48x48xi32>
    %194 = tpu.iota {dimensions = array<i32: 1>} : vector<48x48xi32>
    %c0_i32 = arith.constant 0 : i32
    %195 = vector.broadcast %c0_i32 : i32 to vector<48x48xi32>
    %c0_i32_69 = arith.constant 0 : i32
    %196 = vector.broadcast %c0_i32_69 : i32 to vector<48x48xi32>
    %197 = arith.cmpi sge, %193, %196 : vector<48x48xi32>
    %c16_i32 = arith.constant 16 : i32
    %198 = vector.broadcast %c16_i32 : i32 to vector<48x48xi32>
    %199 = arith.cmpi slt, %193, %198 : vector<48x48xi32>
    %200 = arith.andi %197, %199 : vector<48x48xi1>
    %c0_i32_70 = arith.constant 0 : i32
    %201 = vector.broadcast %c0_i32_70 : i32 to vector<48x48xi32>
    %202 = arith.select %200, %201, %195 : vector<48x48xi1>, vector<48x48xi32>
    %c16_i32_71 = arith.constant 16 : i32
    %203 = vector.broadcast %c16_i32_71 : i32 to vector<48x48xi32>
    %204 = arith.cmpi sge, %193, %203 : vector<48x48xi32>
    %c32_i32_72 = arith.constant 32 : i32
    %205 = vector.broadcast %c32_i32_72 : i32 to vector<48x48xi32>
    %206 = arith.cmpi slt, %193, %205 : vector<48x48xi32>
    %207 = arith.andi %204, %206 : vector<48x48xi1>
    %c1_i32 = arith.constant 1 : i32
    %208 = vector.broadcast %c1_i32 : i32 to vector<48x48xi32>
    %209 = arith.select %207, %208, %202 : vector<48x48xi1>, vector<48x48xi32>
    %c32_i32_73 = arith.constant 32 : i32
    %210 = vector.broadcast %c32_i32_73 : i32 to vector<48x48xi32>
    %211 = arith.cmpi sge, %193, %210 : vector<48x48xi32>
    %c40_i32 = arith.constant 40 : i32
    %212 = vector.broadcast %c40_i32 : i32 to vector<48x48xi32>
    %213 = arith.cmpi slt, %193, %212 : vector<48x48xi32>
    %214 = arith.andi %211, %213 : vector<48x48xi1>
    %c2_i32 = arith.constant 2 : i32
    %215 = vector.broadcast %c2_i32 : i32 to vector<48x48xi32>
    %216 = arith.select %214, %215, %209 : vector<48x48xi1>, vector<48x48xi32>
    %c40_i32_74 = arith.constant 40 : i32
    %217 = vector.broadcast %c40_i32_74 : i32 to vector<48x48xi32>
    %218 = arith.cmpi sge, %193, %217 : vector<48x48xi32>
    %c48_i32 = arith.constant 48 : i32
    %219 = vector.broadcast %c48_i32 : i32 to vector<48x48xi32>
    %220 = arith.cmpi slt, %193, %219 : vector<48x48xi32>
    %221 = arith.andi %218, %220 : vector<48x48xi1>
    %c3_i32 = arith.constant 3 : i32
    %222 = vector.broadcast %c3_i32 : i32 to vector<48x48xi32>
    %223 = arith.select %221, %222, %216 : vector<48x48xi1>, vector<48x48xi32>
    %c0_i32_75 = arith.constant 0 : i32
    %224 = vector.broadcast %c0_i32_75 : i32 to vector<48x48xi32>
    %c0_i32_76 = arith.constant 0 : i32
    %225 = vector.broadcast %c0_i32_76 : i32 to vector<48x48xi32>
    %226 = arith.cmpi sge, %194, %225 : vector<48x48xi32>
    %c16_i32_77 = arith.constant 16 : i32
    %227 = vector.broadcast %c16_i32_77 : i32 to vector<48x48xi32>
    %228 = arith.cmpi slt, %194, %227 : vector<48x48xi32>
    %229 = arith.andi %226, %228 : vector<48x48xi1>
    %c0_i32_78 = arith.constant 0 : i32
    %230 = vector.broadcast %c0_i32_78 : i32 to vector<48x48xi32>
    %231 = arith.select %229, %230, %224 : vector<48x48xi1>, vector<48x48xi32>
    %c16_i32_79 = arith.constant 16 : i32
    %232 = vector.broadcast %c16_i32_79 : i32 to vector<48x48xi32>
    %233 = arith.cmpi sge, %194, %232 : vector<48x48xi32>
    %c32_i32_80 = arith.constant 32 : i32
    %234 = vector.broadcast %c32_i32_80 : i32 to vector<48x48xi32>
    %235 = arith.cmpi slt, %194, %234 : vector<48x48xi32>
    %236 = arith.andi %233, %235 : vector<48x48xi1>
    %c1_i32_81 = arith.constant 1 : i32
    %237 = vector.broadcast %c1_i32_81 : i32 to vector<48x48xi32>
    %238 = arith.select %236, %237, %231 : vector<48x48xi1>, vector<48x48xi32>
    %c32_i32_82 = arith.constant 32 : i32
    %239 = vector.broadcast %c32_i32_82 : i32 to vector<48x48xi32>
    %240 = arith.cmpi sge, %194, %239 : vector<48x48xi32>
    %c40_i32_83 = arith.constant 40 : i32
    %241 = vector.broadcast %c40_i32_83 : i32 to vector<48x48xi32>
    %242 = arith.cmpi slt, %194, %241 : vector<48x48xi32>
    %243 = arith.andi %240, %242 : vector<48x48xi1>
    %c2_i32_84 = arith.constant 2 : i32
    %244 = vector.broadcast %c2_i32_84 : i32 to vector<48x48xi32>
    %245 = arith.select %243, %244, %238 : vector<48x48xi1>, vector<48x48xi32>
    %c40_i32_85 = arith.constant 40 : i32
    %246 = vector.broadcast %c40_i32_85 : i32 to vector<48x48xi32>
    %247 = arith.cmpi sge, %194, %246 : vector<48x48xi32>
    %c48_i32_86 = arith.constant 48 : i32
    %248 = vector.broadcast %c48_i32_86 : i32 to vector<48x48xi32>
    %249 = arith.cmpi slt, %194, %248 : vector<48x48xi32>
    %250 = arith.andi %247, %249 : vector<48x48xi1>
    %c3_i32_87 = arith.constant 3 : i32
    %251 = vector.broadcast %c3_i32_87 : i32 to vector<48x48xi32>
    %252 = arith.select %250, %251, %245 : vector<48x48xi1>, vector<48x48xi32>
    %253 = arith.cmpi eq, %223, %252 : vector<48x48xi32>
    %cst_88 = arith.constant 0.000000e+00 : f32
    %cst_89 = arith.constant -1.000000e+30 : f32
    %254 = vector.broadcast %cst_88 : f32 to vector<48x48xf32>
    %255 = vector.broadcast %cst_89 : f32 to vector<48x48xf32>
    %256 = arith.select %253, %254, %255 : vector<48x48xi1>, vector<48x48xf32>
    %c16 = arith.constant 16 : index
    %c0_90 = arith.constant 0 : index
    %257 = vector.load %arg12[%c16, %c0_90] : memref<32x128xf32, #tpu.memory_space<vmem>>, vector<1x128xf32>
    %c17 = arith.constant 17 : index
    %c0_91 = arith.constant 0 : index
    %258 = vector.load %arg12[%c17, %c0_91] : memref<32x128xf32, #tpu.memory_space<vmem>>, vector<1x128xf32>
    %c18 = arith.constant 18 : index
    %c0_92 = arith.constant 0 : index
    %259 = vector.load %arg12[%c18, %c0_92] : memref<32x128xf32, #tpu.memory_space<vmem>>, vector<1x128xf32>
    %c19 = arith.constant 19 : index
    %c0_93 = arith.constant 0 : index
    %260 = vector.load %arg12[%c19, %c0_93] : memref<32x128xf32, #tpu.memory_space<vmem>>, vector<1x128xf32>
    %c20 = arith.constant 20 : index
    %c0_94 = arith.constant 0 : index
    %261 = vector.load %arg12[%c20, %c0_94] : memref<32x128xf32, #tpu.memory_space<vmem>>, vector<1x128xf32>
    %c21 = arith.constant 21 : index
    %c0_95 = arith.constant 0 : index
    %262 = vector.load %arg12[%c21, %c0_95] : memref<32x128xf32, #tpu.memory_space<vmem>>, vector<1x128xf32>
    %c0_96 = arith.constant 0 : index
    %c0_97 = arith.constant 0 : index
    %c0_98 = arith.constant 0 : index
    %263 = vector.load %arg6[%c0_96, %c0_97, %c0_98] : memref<2x128x384xbf16, #tpu.memory_space<vmem>>, vector<1x128x384xbf16>
    %264 = vector.shape_cast %263 : vector<1x128x384xbf16> to vector<128x384xbf16>
    %c0_99 = arith.constant 0 : index
    %c0_100 = arith.constant 0 : index
    %c0_101 = arith.constant 0 : index
    %265 = vector.load %arg7[%c0_99, %c0_100, %c0_101] : memref<2x128x128xbf16, #tpu.memory_space<vmem>>, vector<1x128x128xbf16>
    %266 = vector.shape_cast %265 : vector<1x128x128xbf16> to vector<128x128xbf16>
    %c0_102 = arith.constant 0 : index
    %c0_103 = arith.constant 0 : index
    %c0_104 = arith.constant 0 : index
    %267 = vector.load %arg8[%c0_102, %c0_103, %c0_104] : memref<2x128x256xbf16, #tpu.memory_space<vmem>>, vector<1x128x256xbf16>
    %268 = vector.shape_cast %267 : vector<1x128x256xbf16> to vector<128x256xbf16>
    %c0_105 = arith.constant 0 : index
    %c0_106 = arith.constant 0 : index
    %c0_107 = arith.constant 0 : index
    %269 = vector.load %arg9[%c0_105, %c0_106, %c0_107] : memref<2x256x128xbf16, #tpu.memory_space<vmem>>, vector<1x256x128xbf16>
    %270 = vector.shape_cast %269 : vector<1x256x128xbf16> to vector<256x128xbf16>
    %c0_108 = arith.constant 0 : index
    %c0_109 = arith.constant 0 : index
    %271 = vector.load %arg10[%c0_108, %c0_109] : memref<2x384xf32, #tpu.memory_space<vmem>>, vector<1x384xf32>
    %c0_110 = arith.constant 0 : index
    %c0_111 = arith.constant 0 : index
    %272 = vector.load %arg11[%c0_110, %c0_111] : memref<2x256xf32, #tpu.memory_space<vmem>>, vector<1x256xf32>
    %273 = arith.truncf %192 : vector<48x128xf32> to vector<48x128xbf16>
    %cst_112 = arith.constant dense<0.000000e+00> : vector<48x384xf32>
    %274 = tpu.matmul %273, %264, %cst_112 {dimension_numbers = #tpu.dot_dimension_numbers<[1], [0], [0], [1], [0, 0, 1, 1], [], []>} : vector<48x128xbf16>, vector<128x384xbf16>, vector<48x384xf32> -> vector<48x384xf32>
    %275 = vector.broadcast %271 : vector<1x384xf32> to vector<48x384xf32>
    %276 = arith.addf %274, %275 : vector<48x384xf32>
    %cst_113 = arith.constant 0.000000e+00 : f32
    %277 = vector.broadcast %cst_113 : f32 to vector<48x128xf32>
    %278 = vector.extract_strided_slice %276 {offsets = [0, 0], sizes = [48, 32], strides = [1, 1]} : vector<48x384xf32> to vector<48x32xf32>
    %279 = vector.extract_strided_slice %276 {offsets = [0, 128], sizes = [48, 32], strides = [1, 1]} : vector<48x384xf32> to vector<48x32xf32>
    %280 = vector.extract_strided_slice %276 {offsets = [0, 256], sizes = [48, 32], strides = [1, 1]} : vector<48x384xf32> to vector<48x32xf32>
    %281 = arith.truncf %278 : vector<48x32xf32> to vector<48x32xbf16>
    %282 = arith.truncf %279 : vector<48x32xf32> to vector<48x32xbf16>
    %cst_114 = arith.constant dense<0.000000e+00> : vector<48x48xf32>
    %283 = tpu.matmul %281, %282, %cst_114 {dimension_numbers = #tpu.dot_dimension_numbers<[1], [1], [0], [0], [0, 0, 1, 0], [], []>} : vector<48x32xbf16>, vector<48x32xbf16>, vector<48x48xf32> -> vector<48x48xf32>
    %cst_115 = arith.constant 0.176776692 : f32
    %284 = vector.broadcast %cst_115 : f32 to vector<48x48xf32>
    %285 = arith.mulf %283, %284 : vector<48x48xf32>
    %286 = arith.addf %285, %256 : vector<48x48xf32>
    %cst_116 = arith.constant dense<0xFF800000> : vector<48xf32>
    %287 = vector.multi_reduction <maximumf>, %286, %cst_116 [1] : vector<48x48xf32> to vector<48xf32>
    %288 = vector.shape_cast %287 : vector<48xf32> to vector<48x1xf32>
    %289 = vector.broadcast %288 : vector<48x1xf32> to vector<48x48xf32>
    %290 = arith.subf %286, %289 : vector<48x48xf32>
    %291 = math.exp %290 : vector<48x48xf32>
    %cst_117 = arith.constant dense<0.000000e+00> : vector<48xf32>
    %292 = vector.multi_reduction <add>, %291, %cst_117 [1] : vector<48x48xf32> to vector<48xf32>
    %293 = vector.shape_cast %292 : vector<48xf32> to vector<48x1xf32>
    %294 = tpu.reciprocal %293 {approx = true} : vector<48x1xf32> -> vector<48x1xf32>
    %295 = vector.broadcast %294 : vector<48x1xf32> to vector<48x48xf32>
    %296 = arith.mulf %291, %295 : vector<48x48xf32>
    %297 = arith.truncf %296 : vector<48x48xf32> to vector<48x48xbf16>
    %298 = arith.truncf %280 : vector<48x32xf32> to vector<48x32xbf16>
    %cst_118 = arith.constant dense<0.000000e+00> : vector<48x32xf32>
    %299 = tpu.matmul %297, %298, %cst_118 {dimension_numbers = #tpu.dot_dimension_numbers<[1], [0], [0], [1], [0, 0, 1, 1], [], []>} : vector<48x48xbf16>, vector<48x32xbf16>, vector<48x32xf32> -> vector<48x32xf32>
    %300 = vector.extract_strided_slice %266 {offsets = [0, 0], sizes = [32, 128], strides = [1, 1]} : vector<128x128xbf16> to vector<32x128xbf16>
    %301 = arith.truncf %299 : vector<48x32xf32> to vector<48x32xbf16>
    %cst_119 = arith.constant dense<0.000000e+00> : vector<48x128xf32>
    %302 = tpu.matmul %301, %300, %cst_119 {dimension_numbers = #tpu.dot_dimension_numbers<[1], [0], [0], [1], [0, 0, 1, 1], [], []>} : vector<48x32xbf16>, vector<32x128xbf16>, vector<48x128xf32> -> vector<48x128xf32>
    %303 = arith.addf %277, %302 : vector<48x128xf32>
    %304 = vector.extract_strided_slice %276 {offsets = [0, 32], sizes = [48, 32], strides = [1, 1]} : vector<48x384xf32> to vector<48x32xf32>
    %305 = vector.extract_strided_slice %276 {offsets = [0, 160], sizes = [48, 32], strides = [1, 1]} : vector<48x384xf32> to vector<48x32xf32>
    %306 = vector.extract_strided_slice %276 {offsets = [0, 288], sizes = [48, 32], strides = [1, 1]} : vector<48x384xf32> to vector<48x32xf32>
    %307 = arith.truncf %304 : vector<48x32xf32> to vector<48x32xbf16>
    %308 = arith.truncf %305 : vector<48x32xf32> to vector<48x32xbf16>
    %cst_120 = arith.constant dense<0.000000e+00> : vector<48x48xf32>
    %309 = tpu.matmul %307, %308, %cst_120 {dimension_numbers = #tpu.dot_dimension_numbers<[1], [1], [0], [0], [0, 0, 1, 0], [], []>} : vector<48x32xbf16>, vector<48x32xbf16>, vector<48x48xf32> -> vector<48x48xf32>
    %cst_121 = arith.constant 0.176776692 : f32
    %310 = vector.broadcast %cst_121 : f32 to vector<48x48xf32>
    %311 = arith.mulf %309, %310 : vector<48x48xf32>
    %312 = arith.addf %311, %256 : vector<48x48xf32>
    %cst_122 = arith.constant dense<0xFF800000> : vector<48xf32>
    %313 = vector.multi_reduction <maximumf>, %312, %cst_122 [1] : vector<48x48xf32> to vector<48xf32>
    %314 = vector.shape_cast %313 : vector<48xf32> to vector<48x1xf32>
    %315 = vector.broadcast %314 : vector<48x1xf32> to vector<48x48xf32>
    %316 = arith.subf %312, %315 : vector<48x48xf32>
    %317 = math.exp %316 : vector<48x48xf32>
    %cst_123 = arith.constant dense<0.000000e+00> : vector<48xf32>
    %318 = vector.multi_reduction <add>, %317, %cst_123 [1] : vector<48x48xf32> to vector<48xf32>
    %319 = vector.shape_cast %318 : vector<48xf32> to vector<48x1xf32>
    %320 = tpu.reciprocal %319 {approx = true} : vector<48x1xf32> -> vector<48x1xf32>
    %321 = vector.broadcast %320 : vector<48x1xf32> to vector<48x48xf32>
    %322 = arith.mulf %317, %321 : vector<48x48xf32>
    %323 = arith.truncf %322 : vector<48x48xf32> to vector<48x48xbf16>
    %324 = arith.truncf %306 : vector<48x32xf32> to vector<48x32xbf16>
    %cst_124 = arith.constant dense<0.000000e+00> : vector<48x32xf32>
    %325 = tpu.matmul %323, %324, %cst_124 {dimension_numbers = #tpu.dot_dimension_numbers<[1], [0], [0], [1], [0, 0, 1, 1], [], []>} : vector<48x48xbf16>, vector<48x32xbf16>, vector<48x32xf32> -> vector<48x32xf32>
    %326 = vector.extract_strided_slice %266 {offsets = [32, 0], sizes = [32, 128], strides = [1, 1]} : vector<128x128xbf16> to vector<32x128xbf16>
    %327 = arith.truncf %325 : vector<48x32xf32> to vector<48x32xbf16>
    %cst_125 = arith.constant dense<0.000000e+00> : vector<48x128xf32>
    %328 = tpu.matmul %327, %326, %cst_125 {dimension_numbers = #tpu.dot_dimension_numbers<[1], [0], [0], [1], [0, 0, 1, 1], [], []>} : vector<48x32xbf16>, vector<32x128xbf16>, vector<48x128xf32> -> vector<48x128xf32>
    %329 = arith.addf %303, %328 : vector<48x128xf32>
    %330 = vector.extract_strided_slice %276 {offsets = [0, 64], sizes = [48, 32], strides = [1, 1]} : vector<48x384xf32> to vector<48x32xf32>
    %331 = vector.extract_strided_slice %276 {offsets = [0, 192], sizes = [48, 32], strides = [1, 1]} : vector<48x384xf32> to vector<48x32xf32>
    %332 = vector.extract_strided_slice %276 {offsets = [0, 320], sizes = [48, 32], strides = [1, 1]} : vector<48x384xf32> to vector<48x32xf32>
    %333 = arith.truncf %330 : vector<48x32xf32> to vector<48x32xbf16>
    %334 = arith.truncf %331 : vector<48x32xf32> to vector<48x32xbf16>
    %cst_126 = arith.constant dense<0.000000e+00> : vector<48x48xf32>
    %335 = tpu.matmul %333, %334, %cst_126 {dimension_numbers = #tpu.dot_dimension_numbers<[1], [1], [0], [0], [0, 0, 1, 0], [], []>} : vector<48x32xbf16>, vector<48x32xbf16>, vector<48x48xf32> -> vector<48x48xf32>
    %cst_127 = arith.constant 0.176776692 : f32
    %336 = vector.broadcast %cst_127 : f32 to vector<48x48xf32>
    %337 = arith.mulf %335, %336 : vector<48x48xf32>
    %338 = arith.addf %337, %256 : vector<48x48xf32>
    %cst_128 = arith.constant dense<0xFF800000> : vector<48xf32>
    %339 = vector.multi_reduction <maximumf>, %338, %cst_128 [1] : vector<48x48xf32> to vector<48xf32>
    %340 = vector.shape_cast %339 : vector<48xf32> to vector<48x1xf32>
    %341 = vector.broadcast %340 : vector<48x1xf32> to vector<48x48xf32>
    %342 = arith.subf %338, %341 : vector<48x48xf32>
    %343 = math.exp %342 : vector<48x48xf32>
    %cst_129 = arith.constant dense<0.000000e+00> : vector<48xf32>
    %344 = vector.multi_reduction <add>, %343, %cst_129 [1] : vector<48x48xf32> to vector<48xf32>
    %345 = vector.shape_cast %344 : vector<48xf32> to vector<48x1xf32>
    %346 = tpu.reciprocal %345 {approx = true} : vector<48x1xf32> -> vector<48x1xf32>
    %347 = vector.broadcast %346 : vector<48x1xf32> to vector<48x48xf32>
    %348 = arith.mulf %343, %347 : vector<48x48xf32>
    %349 = arith.truncf %348 : vector<48x48xf32> to vector<48x48xbf16>
    %350 = arith.truncf %332 : vector<48x32xf32> to vector<48x32xbf16>
    %cst_130 = arith.constant dense<0.000000e+00> : vector<48x32xf32>
    %351 = tpu.matmul %349, %350, %cst_130 {dimension_numbers = #tpu.dot_dimension_numbers<[1], [0], [0], [1], [0, 0, 1, 1], [], []>} : vector<48x48xbf16>, vector<48x32xbf16>, vector<48x32xf32> -> vector<48x32xf32>
    %352 = vector.extract_strided_slice %266 {offsets = [64, 0], sizes = [32, 128], strides = [1, 1]} : vector<128x128xbf16> to vector<32x128xbf16>
    %353 = arith.truncf %351 : vector<48x32xf32> to vector<48x32xbf16>
    %cst_131 = arith.constant dense<0.000000e+00> : vector<48x128xf32>
    %354 = tpu.matmul %353, %352, %cst_131 {dimension_numbers = #tpu.dot_dimension_numbers<[1], [0], [0], [1], [0, 0, 1, 1], [], []>} : vector<48x32xbf16>, vector<32x128xbf16>, vector<48x128xf32> -> vector<48x128xf32>
    %355 = arith.addf %329, %354 : vector<48x128xf32>
    %356 = vector.extract_strided_slice %276 {offsets = [0, 96], sizes = [48, 32], strides = [1, 1]} : vector<48x384xf32> to vector<48x32xf32>
    %357 = vector.extract_strided_slice %276 {offsets = [0, 224], sizes = [48, 32], strides = [1, 1]} : vector<48x384xf32> to vector<48x32xf32>
    %358 = vector.extract_strided_slice %276 {offsets = [0, 352], sizes = [48, 32], strides = [1, 1]} : vector<48x384xf32> to vector<48x32xf32>
    %359 = arith.truncf %356 : vector<48x32xf32> to vector<48x32xbf16>
    %360 = arith.truncf %357 : vector<48x32xf32> to vector<48x32xbf16>
    %cst_132 = arith.constant dense<0.000000e+00> : vector<48x48xf32>
    %361 = tpu.matmul %359, %360, %cst_132 {dimension_numbers = #tpu.dot_dimension_numbers<[1], [1], [0], [0], [0, 0, 1, 0], [], []>} : vector<48x32xbf16>, vector<48x32xbf16>, vector<48x48xf32> -> vector<48x48xf32>
    %cst_133 = arith.constant 0.176776692 : f32
    %362 = vector.broadcast %cst_133 : f32 to vector<48x48xf32>
    %363 = arith.mulf %361, %362 : vector<48x48xf32>
    %364 = arith.addf %363, %256 : vector<48x48xf32>
    %cst_134 = arith.constant dense<0xFF800000> : vector<48xf32>
    %365 = vector.multi_reduction <maximumf>, %364, %cst_134 [1] : vector<48x48xf32> to vector<48xf32>
    %366 = vector.shape_cast %365 : vector<48xf32> to vector<48x1xf32>
    %367 = vector.broadcast %366 : vector<48x1xf32> to vector<48x48xf32>
    %368 = arith.subf %364, %367 : vector<48x48xf32>
    %369 = math.exp %368 : vector<48x48xf32>
    %cst_135 = arith.constant dense<0.000000e+00> : vector<48xf32>
    %370 = vector.multi_reduction <add>, %369, %cst_135 [1] : vector<48x48xf32> to vector<48xf32>
    %371 = vector.shape_cast %370 : vector<48xf32> to vector<48x1xf32>
    %372 = tpu.reciprocal %371 {approx = true} : vector<48x1xf32> -> vector<48x1xf32>
    %373 = vector.broadcast %372 : vector<48x1xf32> to vector<48x48xf32>
    %374 = arith.mulf %369, %373 : vector<48x48xf32>
    %375 = arith.truncf %374 : vector<48x48xf32> to vector<48x48xbf16>
    %376 = arith.truncf %358 : vector<48x32xf32> to vector<48x32xbf16>
    %cst_136 = arith.constant dense<0.000000e+00> : vector<48x32xf32>
    %377 = tpu.matmul %375, %376, %cst_136 {dimension_numbers = #tpu.dot_dimension_numbers<[1], [0], [0], [1], [0, 0, 1, 1], [], []>} : vector<48x48xbf16>, vector<48x32xbf16>, vector<48x32xf32> -> vector<48x32xf32>
    %378 = vector.extract_strided_slice %266 {offsets = [96, 0], sizes = [32, 128], strides = [1, 1]} : vector<128x128xbf16> to vector<32x128xbf16>
    %379 = arith.truncf %377 : vector<48x32xf32> to vector<48x32xbf16>
    %cst_137 = arith.constant dense<0.000000e+00> : vector<48x128xf32>
    %380 = tpu.matmul %379, %378, %cst_137 {dimension_numbers = #tpu.dot_dimension_numbers<[1], [0], [0], [1], [0, 0, 1, 1], [], []>} : vector<48x32xbf16>, vector<32x128xbf16>, vector<48x128xf32> -> vector<48x128xf32>
    %381 = arith.addf %355, %380 : vector<48x128xf32>
    %382 = vector.broadcast %257 : vector<1x128xf32> to vector<48x128xf32>
    %383 = arith.addf %381, %382 : vector<48x128xf32>
    %384 = arith.addf %192, %383 : vector<48x128xf32>
    %cst_138 = arith.constant dense<0.000000e+00> : vector<48xf32>
    %385 = vector.multi_reduction <add>, %384, %cst_138 [1] : vector<48x128xf32> to vector<48xf32>
    %386 = vector.shape_cast %385 : vector<48xf32> to vector<48x1xf32>
    %cst_139 = arith.constant 1.280000e+02 : f32
    %387 = vector.broadcast %cst_139 : f32 to vector<48x1xf32>
    %388 = arith.divf %386, %387 : vector<48x1xf32>
    %389 = vector.broadcast %388 : vector<48x1xf32> to vector<48x128xf32>
    %390 = arith.subf %384, %389 : vector<48x128xf32>
    %391 = arith.mulf %390, %390 : vector<48x128xf32>
    %cst_140 = arith.constant dense<0.000000e+00> : vector<48xf32>
    %392 = vector.multi_reduction <add>, %391, %cst_140 [1] : vector<48x128xf32> to vector<48xf32>
    %393 = vector.shape_cast %392 : vector<48xf32> to vector<48x1xf32>
    %cst_141 = arith.constant 1.280000e+02 : f32
    %394 = vector.broadcast %cst_141 : f32 to vector<48x1xf32>
    %395 = arith.divf %393, %394 : vector<48x1xf32>
    %396 = vector.broadcast %388 : vector<48x1xf32> to vector<48x128xf32>
    %397 = arith.subf %384, %396 : vector<48x128xf32>
    %cst_142 = arith.constant 9.99999974E-6 : f32
    %398 = vector.broadcast %cst_142 : f32 to vector<48x1xf32>
    %399 = arith.addf %395, %398 : vector<48x1xf32>
    %400 = math.rsqrt %399 : vector<48x1xf32>
    %401 = vector.broadcast %400 : vector<48x1xf32> to vector<48x128xf32>
    %402 = arith.mulf %397, %401 : vector<48x128xf32>
    %403 = vector.broadcast %258 : vector<1x128xf32> to vector<48x128xf32>
    %404 = arith.mulf %402, %403 : vector<48x128xf32>
    %405 = vector.broadcast %259 : vector<1x128xf32> to vector<48x128xf32>
    %406 = arith.addf %404, %405 : vector<48x128xf32>
    %407 = arith.truncf %406 : vector<48x128xf32> to vector<48x128xbf16>
    %cst_143 = arith.constant dense<0.000000e+00> : vector<48x256xf32>
    %408 = tpu.matmul %407, %268, %cst_143 {dimension_numbers = #tpu.dot_dimension_numbers<[1], [0], [0], [1], [0, 0, 1, 1], [], []>} : vector<48x128xbf16>, vector<128x256xbf16>, vector<48x256xf32> -> vector<48x256xf32>
    %409 = vector.broadcast %272 : vector<1x256xf32> to vector<48x256xf32>
    %410 = arith.addf %408, %409 : vector<48x256xf32>
    %cst_144 = arith.constant 0.000000e+00 : f32
    %411 = vector.broadcast %cst_144 : f32 to vector<48x256xf32>
    %412 = arith.maximumf %410, %411 : vector<48x256xf32>
    %413 = arith.truncf %412 : vector<48x256xf32> to vector<48x256xbf16>
    %cst_145 = arith.constant dense<0.000000e+00> : vector<48x128xf32>
    %414 = tpu.matmul %413, %270, %cst_145 {dimension_numbers = #tpu.dot_dimension_numbers<[1], [0], [0], [1], [0, 0, 1, 1], [], []>} : vector<48x256xbf16>, vector<256x128xbf16>, vector<48x128xf32> -> vector<48x128xf32>
    %415 = vector.broadcast %260 : vector<1x128xf32> to vector<48x128xf32>
    %416 = arith.addf %414, %415 : vector<48x128xf32>
    %417 = arith.addf %406, %416 : vector<48x128xf32>
    %cst_146 = arith.constant dense<0.000000e+00> : vector<48xf32>
    %418 = vector.multi_reduction <add>, %417, %cst_146 [1] : vector<48x128xf32> to vector<48xf32>
    %419 = vector.shape_cast %418 : vector<48xf32> to vector<48x1xf32>
    %cst_147 = arith.constant 1.280000e+02 : f32
    %420 = vector.broadcast %cst_147 : f32 to vector<48x1xf32>
    %421 = arith.divf %419, %420 : vector<48x1xf32>
    %422 = vector.broadcast %421 : vector<48x1xf32> to vector<48x128xf32>
    %423 = arith.subf %417, %422 : vector<48x128xf32>
    %424 = arith.mulf %423, %423 : vector<48x128xf32>
    %cst_148 = arith.constant dense<0.000000e+00> : vector<48xf32>
    %425 = vector.multi_reduction <add>, %424, %cst_148 [1] : vector<48x128xf32> to vector<48xf32>
    %426 = vector.shape_cast %425 : vector<48xf32> to vector<48x1xf32>
    %cst_149 = arith.constant 1.280000e+02 : f32
    %427 = vector.broadcast %cst_149 : f32 to vector<48x1xf32>
    %428 = arith.divf %426, %427 : vector<48x1xf32>
    %429 = vector.broadcast %421 : vector<48x1xf32> to vector<48x128xf32>
    %430 = arith.subf %417, %429 : vector<48x128xf32>
    %cst_150 = arith.constant 9.99999974E-6 : f32
    %431 = vector.broadcast %cst_150 : f32 to vector<48x1xf32>
    %432 = arith.addf %428, %431 : vector<48x1xf32>
    %433 = math.rsqrt %432 : vector<48x1xf32>
    %434 = vector.broadcast %433 : vector<48x1xf32> to vector<48x128xf32>
    %435 = arith.mulf %430, %434 : vector<48x128xf32>
    %436 = vector.broadcast %261 : vector<1x128xf32> to vector<48x128xf32>
    %437 = arith.mulf %435, %436 : vector<48x128xf32>
    %438 = vector.broadcast %262 : vector<1x128xf32> to vector<48x128xf32>
    %439 = arith.addf %437, %438 : vector<48x128xf32>
    %c22 = arith.constant 22 : index
    %c0_151 = arith.constant 0 : index
    %440 = vector.load %arg12[%c22, %c0_151] : memref<32x128xf32, #tpu.memory_space<vmem>>, vector<1x128xf32>
    %c23 = arith.constant 23 : index
    %c0_152 = arith.constant 0 : index
    %441 = vector.load %arg12[%c23, %c0_152] : memref<32x128xf32, #tpu.memory_space<vmem>>, vector<1x128xf32>
    %c24 = arith.constant 24 : index
    %c0_153 = arith.constant 0 : index
    %442 = vector.load %arg12[%c24, %c0_153] : memref<32x128xf32, #tpu.memory_space<vmem>>, vector<1x128xf32>
    %c25 = arith.constant 25 : index
    %c0_154 = arith.constant 0 : index
    %443 = vector.load %arg12[%c25, %c0_154] : memref<32x128xf32, #tpu.memory_space<vmem>>, vector<1x128xf32>
    %c26 = arith.constant 26 : index
    %c0_155 = arith.constant 0 : index
    %444 = vector.load %arg12[%c26, %c0_155] : memref<32x128xf32, #tpu.memory_space<vmem>>, vector<1x128xf32>
    %c27 = arith.constant 27 : index
    %c0_156 = arith.constant 0 : index
    %445 = vector.load %arg12[%c27, %c0_156] : memref<32x128xf32, #tpu.memory_space<vmem>>, vector<1x128xf32>
    %c1_157 = arith.constant 1 : index
    %c0_158 = arith.constant 0 : index
    %c0_159 = arith.constant 0 : index
    %446 = vector.load %arg6[%c1_157, %c0_158, %c0_159] : memref<2x128x384xbf16, #tpu.memory_space<vmem>>, vector<1x128x384xbf16>
    %447 = vector.shape_cast %446 : vector<1x128x384xbf16> to vector<128x384xbf16>
    %c1_160 = arith.constant 1 : index
    %c0_161 = arith.constant 0 : index
    %c0_162 = arith.constant 0 : index
    %448 = vector.load %arg7[%c1_160, %c0_161, %c0_162] : memref<2x128x128xbf16, #tpu.memory_space<vmem>>, vector<1x128x128xbf16>
    %449 = vector.shape_cast %448 : vector<1x128x128xbf16> to vector<128x128xbf16>
    %c1_163 = arith.constant 1 : index
    %c0_164 = arith.constant 0 : index
    %c0_165 = arith.constant 0 : index
    %450 = vector.load %arg8[%c1_163, %c0_164, %c0_165] : memref<2x128x256xbf16, #tpu.memory_space<vmem>>, vector<1x128x256xbf16>
    %451 = vector.shape_cast %450 : vector<1x128x256xbf16> to vector<128x256xbf16>
    %c1_166 = arith.constant 1 : index
    %c0_167 = arith.constant 0 : index
    %c0_168 = arith.constant 0 : index
    %452 = vector.load %arg9[%c1_166, %c0_167, %c0_168] : memref<2x256x128xbf16, #tpu.memory_space<vmem>>, vector<1x256x128xbf16>
    %453 = vector.shape_cast %452 : vector<1x256x128xbf16> to vector<256x128xbf16>
    %c1_169 = arith.constant 1 : index
    %c0_170 = arith.constant 0 : index
    %454 = vector.load %arg10[%c1_169, %c0_170] : memref<2x384xf32, #tpu.memory_space<vmem>>, vector<1x384xf32>
    %c1_171 = arith.constant 1 : index
    %c0_172 = arith.constant 0 : index
    %455 = vector.load %arg11[%c1_171, %c0_172] : memref<2x256xf32, #tpu.memory_space<vmem>>, vector<1x256xf32>
    %456 = arith.truncf %439 : vector<48x128xf32> to vector<48x128xbf16>
    %cst_173 = arith.constant dense<0.000000e+00> : vector<48x384xf32>
    %457 = tpu.matmul %456, %447, %cst_173 {dimension_numbers = #tpu.dot_dimension_numbers<[1], [0], [0], [1], [0, 0, 1, 1], [], []>} : vector<48x128xbf16>, vector<128x384xbf16>, vector<48x384xf32> -> vector<48x384xf32>
    %458 = vector.broadcast %454 : vector<1x384xf32> to vector<48x384xf32>
    %459 = arith.addf %457, %458 : vector<48x384xf32>
    %cst_174 = arith.constant 0.000000e+00 : f32
    %460 = vector.broadcast %cst_174 : f32 to vector<48x128xf32>
    %461 = vector.extract_strided_slice %459 {offsets = [0, 0], sizes = [48, 32], strides = [1, 1]} : vector<48x384xf32> to vector<48x32xf32>
    %462 = vector.extract_strided_slice %459 {offsets = [0, 128], sizes = [48, 32], strides = [1, 1]} : vector<48x384xf32> to vector<48x32xf32>
    %463 = vector.extract_strided_slice %459 {offsets = [0, 256], sizes = [48, 32], strides = [1, 1]} : vector<48x384xf32> to vector<48x32xf32>
    %464 = arith.truncf %461 : vector<48x32xf32> to vector<48x32xbf16>
    %465 = arith.truncf %462 : vector<48x32xf32> to vector<48x32xbf16>
    %cst_175 = arith.constant dense<0.000000e+00> : vector<48x48xf32>
    %466 = tpu.matmul %464, %465, %cst_175 {dimension_numbers = #tpu.dot_dimension_numbers<[1], [1], [0], [0], [0, 0, 1, 0], [], []>} : vector<48x32xbf16>, vector<48x32xbf16>, vector<48x48xf32> -> vector<48x48xf32>
    %cst_176 = arith.constant 0.176776692 : f32
    %467 = vector.broadcast %cst_176 : f32 to vector<48x48xf32>
    %468 = arith.mulf %466, %467 : vector<48x48xf32>
    %469 = arith.addf %468, %256 : vector<48x48xf32>
    %cst_177 = arith.constant dense<0xFF800000> : vector<48xf32>
    %470 = vector.multi_reduction <maximumf>, %469, %cst_177 [1] : vector<48x48xf32> to vector<48xf32>
    %471 = vector.shape_cast %470 : vector<48xf32> to vector<48x1xf32>
    %472 = vector.broadcast %471 : vector<48x1xf32> to vector<48x48xf32>
    %473 = arith.subf %469, %472 : vector<48x48xf32>
    %474 = math.exp %473 : vector<48x48xf32>
    %cst_178 = arith.constant dense<0.000000e+00> : vector<48xf32>
    %475 = vector.multi_reduction <add>, %474, %cst_178 [1] : vector<48x48xf32> to vector<48xf32>
    %476 = vector.shape_cast %475 : vector<48xf32> to vector<48x1xf32>
    %477 = tpu.reciprocal %476 {approx = true} : vector<48x1xf32> -> vector<48x1xf32>
    %478 = vector.broadcast %477 : vector<48x1xf32> to vector<48x48xf32>
    %479 = arith.mulf %474, %478 : vector<48x48xf32>
    %480 = arith.truncf %479 : vector<48x48xf32> to vector<48x48xbf16>
    %481 = arith.truncf %463 : vector<48x32xf32> to vector<48x32xbf16>
    %cst_179 = arith.constant dense<0.000000e+00> : vector<48x32xf32>
    %482 = tpu.matmul %480, %481, %cst_179 {dimension_numbers = #tpu.dot_dimension_numbers<[1], [0], [0], [1], [0, 0, 1, 1], [], []>} : vector<48x48xbf16>, vector<48x32xbf16>, vector<48x32xf32> -> vector<48x32xf32>
    %483 = vector.extract_strided_slice %449 {offsets = [0, 0], sizes = [32, 128], strides = [1, 1]} : vector<128x128xbf16> to vector<32x128xbf16>
    %484 = arith.truncf %482 : vector<48x32xf32> to vector<48x32xbf16>
    %cst_180 = arith.constant dense<0.000000e+00> : vector<48x128xf32>
    %485 = tpu.matmul %484, %483, %cst_180 {dimension_numbers = #tpu.dot_dimension_numbers<[1], [0], [0], [1], [0, 0, 1, 1], [], []>} : vector<48x32xbf16>, vector<32x128xbf16>, vector<48x128xf32> -> vector<48x128xf32>
    %486 = arith.addf %460, %485 : vector<48x128xf32>
    %487 = vector.extract_strided_slice %459 {offsets = [0, 32], sizes = [48, 32], strides = [1, 1]} : vector<48x384xf32> to vector<48x32xf32>
    %488 = vector.extract_strided_slice %459 {offsets = [0, 160], sizes = [48, 32], strides = [1, 1]} : vector<48x384xf32> to vector<48x32xf32>
    %489 = vector.extract_strided_slice %459 {offsets = [0, 288], sizes = [48, 32], strides = [1, 1]} : vector<48x384xf32> to vector<48x32xf32>
    %490 = arith.truncf %487 : vector<48x32xf32> to vector<48x32xbf16>
    %491 = arith.truncf %488 : vector<48x32xf32> to vector<48x32xbf16>
    %cst_181 = arith.constant dense<0.000000e+00> : vector<48x48xf32>
    %492 = tpu.matmul %490, %491, %cst_181 {dimension_numbers = #tpu.dot_dimension_numbers<[1], [1], [0], [0], [0, 0, 1, 0], [], []>} : vector<48x32xbf16>, vector<48x32xbf16>, vector<48x48xf32> -> vector<48x48xf32>
    %cst_182 = arith.constant 0.176776692 : f32
    %493 = vector.broadcast %cst_182 : f32 to vector<48x48xf32>
    %494 = arith.mulf %492, %493 : vector<48x48xf32>
    %495 = arith.addf %494, %256 : vector<48x48xf32>
    %cst_183 = arith.constant dense<0xFF800000> : vector<48xf32>
    %496 = vector.multi_reduction <maximumf>, %495, %cst_183 [1] : vector<48x48xf32> to vector<48xf32>
    %497 = vector.shape_cast %496 : vector<48xf32> to vector<48x1xf32>
    %498 = vector.broadcast %497 : vector<48x1xf32> to vector<48x48xf32>
    %499 = arith.subf %495, %498 : vector<48x48xf32>
    %500 = math.exp %499 : vector<48x48xf32>
    %cst_184 = arith.constant dense<0.000000e+00> : vector<48xf32>
    %501 = vector.multi_reduction <add>, %500, %cst_184 [1] : vector<48x48xf32> to vector<48xf32>
    %502 = vector.shape_cast %501 : vector<48xf32> to vector<48x1xf32>
    %503 = tpu.reciprocal %502 {approx = true} : vector<48x1xf32> -> vector<48x1xf32>
    %504 = vector.broadcast %503 : vector<48x1xf32> to vector<48x48xf32>
    %505 = arith.mulf %500, %504 : vector<48x48xf32>
    %506 = arith.truncf %505 : vector<48x48xf32> to vector<48x48xbf16>
    %507 = arith.truncf %489 : vector<48x32xf32> to vector<48x32xbf16>
    %cst_185 = arith.constant dense<0.000000e+00> : vector<48x32xf32>
    %508 = tpu.matmul %506, %507, %cst_185 {dimension_numbers = #tpu.dot_dimension_numbers<[1], [0], [0], [1], [0, 0, 1, 1], [], []>} : vector<48x48xbf16>, vector<48x32xbf16>, vector<48x32xf32> -> vector<48x32xf32>
    %509 = vector.extract_strided_slice %449 {offsets = [32, 0], sizes = [32, 128], strides = [1, 1]} : vector<128x128xbf16> to vector<32x128xbf16>
    %510 = arith.truncf %508 : vector<48x32xf32> to vector<48x32xbf16>
    %cst_186 = arith.constant dense<0.000000e+00> : vector<48x128xf32>
    %511 = tpu.matmul %510, %509, %cst_186 {dimension_numbers = #tpu.dot_dimension_numbers<[1], [0], [0], [1], [0, 0, 1, 1], [], []>} : vector<48x32xbf16>, vector<32x128xbf16>, vector<48x128xf32> -> vector<48x128xf32>
    %512 = arith.addf %486, %511 : vector<48x128xf32>
    %513 = vector.extract_strided_slice %459 {offsets = [0, 64], sizes = [48, 32], strides = [1, 1]} : vector<48x384xf32> to vector<48x32xf32>
    %514 = vector.extract_strided_slice %459 {offsets = [0, 192], sizes = [48, 32], strides = [1, 1]} : vector<48x384xf32> to vector<48x32xf32>
    %515 = vector.extract_strided_slice %459 {offsets = [0, 320], sizes = [48, 32], strides = [1, 1]} : vector<48x384xf32> to vector<48x32xf32>
    %516 = arith.truncf %513 : vector<48x32xf32> to vector<48x32xbf16>
    %517 = arith.truncf %514 : vector<48x32xf32> to vector<48x32xbf16>
    %cst_187 = arith.constant dense<0.000000e+00> : vector<48x48xf32>
    %518 = tpu.matmul %516, %517, %cst_187 {dimension_numbers = #tpu.dot_dimension_numbers<[1], [1], [0], [0], [0, 0, 1, 0], [], []>} : vector<48x32xbf16>, vector<48x32xbf16>, vector<48x48xf32> -> vector<48x48xf32>
    %cst_188 = arith.constant 0.176776692 : f32
    %519 = vector.broadcast %cst_188 : f32 to vector<48x48xf32>
    %520 = arith.mulf %518, %519 : vector<48x48xf32>
    %521 = arith.addf %520, %256 : vector<48x48xf32>
    %cst_189 = arith.constant dense<0xFF800000> : vector<48xf32>
    %522 = vector.multi_reduction <maximumf>, %521, %cst_189 [1] : vector<48x48xf32> to vector<48xf32>
    %523 = vector.shape_cast %522 : vector<48xf32> to vector<48x1xf32>
    %524 = vector.broadcast %523 : vector<48x1xf32> to vector<48x48xf32>
    %525 = arith.subf %521, %524 : vector<48x48xf32>
    %526 = math.exp %525 : vector<48x48xf32>
    %cst_190 = arith.constant dense<0.000000e+00> : vector<48xf32>
    %527 = vector.multi_reduction <add>, %526, %cst_190 [1] : vector<48x48xf32> to vector<48xf32>
    %528 = vector.shape_cast %527 : vector<48xf32> to vector<48x1xf32>
    %529 = tpu.reciprocal %528 {approx = true} : vector<48x1xf32> -> vector<48x1xf32>
    %530 = vector.broadcast %529 : vector<48x1xf32> to vector<48x48xf32>
    %531 = arith.mulf %526, %530 : vector<48x48xf32>
    %532 = arith.truncf %531 : vector<48x48xf32> to vector<48x48xbf16>
    %533 = arith.truncf %515 : vector<48x32xf32> to vector<48x32xbf16>
    %cst_191 = arith.constant dense<0.000000e+00> : vector<48x32xf32>
    %534 = tpu.matmul %532, %533, %cst_191 {dimension_numbers = #tpu.dot_dimension_numbers<[1], [0], [0], [1], [0, 0, 1, 1], [], []>} : vector<48x48xbf16>, vector<48x32xbf16>, vector<48x32xf32> -> vector<48x32xf32>
    %535 = vector.extract_strided_slice %449 {offsets = [64, 0], sizes = [32, 128], strides = [1, 1]} : vector<128x128xbf16> to vector<32x128xbf16>
    %536 = arith.truncf %534 : vector<48x32xf32> to vector<48x32xbf16>
    %cst_192 = arith.constant dense<0.000000e+00> : vector<48x128xf32>
    %537 = tpu.matmul %536, %535, %cst_192 {dimension_numbers = #tpu.dot_dimension_numbers<[1], [0], [0], [1], [0, 0, 1, 1], [], []>} : vector<48x32xbf16>, vector<32x128xbf16>, vector<48x128xf32> -> vector<48x128xf32>
    %538 = arith.addf %512, %537 : vector<48x128xf32>
    %539 = vector.extract_strided_slice %459 {offsets = [0, 96], sizes = [48, 32], strides = [1, 1]} : vector<48x384xf32> to vector<48x32xf32>
    %540 = vector.extract_strided_slice %459 {offsets = [0, 224], sizes = [48, 32], strides = [1, 1]} : vector<48x384xf32> to vector<48x32xf32>
    %541 = vector.extract_strided_slice %459 {offsets = [0, 352], sizes = [48, 32], strides = [1, 1]} : vector<48x384xf32> to vector<48x32xf32>
    %542 = arith.truncf %539 : vector<48x32xf32> to vector<48x32xbf16>
    %543 = arith.truncf %540 : vector<48x32xf32> to vector<48x32xbf16>
    %cst_193 = arith.constant dense<0.000000e+00> : vector<48x48xf32>
    %544 = tpu.matmul %542, %543, %cst_193 {dimension_numbers = #tpu.dot_dimension_numbers<[1], [1], [0], [0], [0, 0, 1, 0], [], []>} : vector<48x32xbf16>, vector<48x32xbf16>, vector<48x48xf32> -> vector<48x48xf32>
    %cst_194 = arith.constant 0.176776692 : f32
    %545 = vector.broadcast %cst_194 : f32 to vector<48x48xf32>
    %546 = arith.mulf %544, %545 : vector<48x48xf32>
    %547 = arith.addf %546, %256 : vector<48x48xf32>
    %cst_195 = arith.constant dense<0xFF800000> : vector<48xf32>
    %548 = vector.multi_reduction <maximumf>, %547, %cst_195 [1] : vector<48x48xf32> to vector<48xf32>
    %549 = vector.shape_cast %548 : vector<48xf32> to vector<48x1xf32>
    %550 = vector.broadcast %549 : vector<48x1xf32> to vector<48x48xf32>
    %551 = arith.subf %547, %550 : vector<48x48xf32>
    %552 = math.exp %551 : vector<48x48xf32>
    %cst_196 = arith.constant dense<0.000000e+00> : vector<48xf32>
    %553 = vector.multi_reduction <add>, %552, %cst_196 [1] : vector<48x48xf32> to vector<48xf32>
    %554 = vector.shape_cast %553 : vector<48xf32> to vector<48x1xf32>
    %555 = tpu.reciprocal %554 {approx = true} : vector<48x1xf32> -> vector<48x1xf32>
    %556 = vector.broadcast %555 : vector<48x1xf32> to vector<48x48xf32>
    %557 = arith.mulf %552, %556 : vector<48x48xf32>
    %558 = arith.truncf %557 : vector<48x48xf32> to vector<48x48xbf16>
    %559 = arith.truncf %541 : vector<48x32xf32> to vector<48x32xbf16>
    %cst_197 = arith.constant dense<0.000000e+00> : vector<48x32xf32>
    %560 = tpu.matmul %558, %559, %cst_197 {dimension_numbers = #tpu.dot_dimension_numbers<[1], [0], [0], [1], [0, 0, 1, 1], [], []>} : vector<48x48xbf16>, vector<48x32xbf16>, vector<48x32xf32> -> vector<48x32xf32>
    %561 = vector.extract_strided_slice %449 {offsets = [96, 0], sizes = [32, 128], strides = [1, 1]} : vector<128x128xbf16> to vector<32x128xbf16>
    %562 = arith.truncf %560 : vector<48x32xf32> to vector<48x32xbf16>
    %cst_198 = arith.constant dense<0.000000e+00> : vector<48x128xf32>
    %563 = tpu.matmul %562, %561, %cst_198 {dimension_numbers = #tpu.dot_dimension_numbers<[1], [0], [0], [1], [0, 0, 1, 1], [], []>} : vector<48x32xbf16>, vector<32x128xbf16>, vector<48x128xf32> -> vector<48x128xf32>
    %564 = arith.addf %538, %563 : vector<48x128xf32>
    %565 = vector.broadcast %440 : vector<1x128xf32> to vector<48x128xf32>
    %566 = arith.addf %564, %565 : vector<48x128xf32>
    %567 = arith.addf %439, %566 : vector<48x128xf32>
    %cst_199 = arith.constant dense<0.000000e+00> : vector<48xf32>
    %568 = vector.multi_reduction <add>, %567, %cst_199 [1] : vector<48x128xf32> to vector<48xf32>
    %569 = vector.shape_cast %568 : vector<48xf32> to vector<48x1xf32>
    %cst_200 = arith.constant 1.280000e+02 : f32
    %570 = vector.broadcast %cst_200 : f32 to vector<48x1xf32>
    %571 = arith.divf %569, %570 : vector<48x1xf32>
    %572 = vector.broadcast %571 : vector<48x1xf32> to vector<48x128xf32>
    %573 = arith.subf %567, %572 : vector<48x128xf32>
    %574 = arith.mulf %573, %573 : vector<48x128xf32>
    %cst_201 = arith.constant dense<0.000000e+00> : vector<48xf32>
    %575 = vector.multi_reduction <add>, %574, %cst_201 [1] : vector<48x128xf32> to vector<48xf32>
    %576 = vector.shape_cast %575 : vector<48xf32> to vector<48x1xf32>
    %cst_202 = arith.constant 1.280000e+02 : f32
    %577 = vector.broadcast %cst_202 : f32 to vector<48x1xf32>
    %578 = arith.divf %576, %577 : vector<48x1xf32>
    %579 = vector.broadcast %571 : vector<48x1xf32> to vector<48x128xf32>
    %580 = arith.subf %567, %579 : vector<48x128xf32>
    %cst_203 = arith.constant 9.99999974E-6 : f32
    %581 = vector.broadcast %cst_203 : f32 to vector<48x1xf32>
    %582 = arith.addf %578, %581 : vector<48x1xf32>
    %583 = math.rsqrt %582 : vector<48x1xf32>
    %584 = vector.broadcast %583 : vector<48x1xf32> to vector<48x128xf32>
    %585 = arith.mulf %580, %584 : vector<48x128xf32>
    %586 = vector.broadcast %441 : vector<1x128xf32> to vector<48x128xf32>
    %587 = arith.mulf %585, %586 : vector<48x128xf32>
    %588 = vector.broadcast %442 : vector<1x128xf32> to vector<48x128xf32>
    %589 = arith.addf %587, %588 : vector<48x128xf32>
    %590 = arith.truncf %589 : vector<48x128xf32> to vector<48x128xbf16>
    %cst_204 = arith.constant dense<0.000000e+00> : vector<48x256xf32>
    %591 = tpu.matmul %590, %451, %cst_204 {dimension_numbers = #tpu.dot_dimension_numbers<[1], [0], [0], [1], [0, 0, 1, 1], [], []>} : vector<48x128xbf16>, vector<128x256xbf16>, vector<48x256xf32> -> vector<48x256xf32>
    %592 = vector.broadcast %455 : vector<1x256xf32> to vector<48x256xf32>
    %593 = arith.addf %591, %592 : vector<48x256xf32>
    %cst_205 = arith.constant 0.000000e+00 : f32
    %594 = vector.broadcast %cst_205 : f32 to vector<48x256xf32>
    %595 = arith.maximumf %593, %594 : vector<48x256xf32>
    %596 = arith.truncf %595 : vector<48x256xf32> to vector<48x256xbf16>
    %cst_206 = arith.constant dense<0.000000e+00> : vector<48x128xf32>
    %597 = tpu.matmul %596, %453, %cst_206 {dimension_numbers = #tpu.dot_dimension_numbers<[1], [0], [0], [1], [0, 0, 1, 1], [], []>} : vector<48x256xbf16>, vector<256x128xbf16>, vector<48x128xf32> -> vector<48x128xf32>
    %598 = vector.broadcast %443 : vector<1x128xf32> to vector<48x128xf32>
    %599 = arith.addf %597, %598 : vector<48x128xf32>
    %600 = arith.addf %589, %599 : vector<48x128xf32>
    %cst_207 = arith.constant dense<0.000000e+00> : vector<48xf32>
    %601 = vector.multi_reduction <add>, %600, %cst_207 [1] : vector<48x128xf32> to vector<48xf32>
    %602 = vector.shape_cast %601 : vector<48xf32> to vector<48x1xf32>
    %cst_208 = arith.constant 1.280000e+02 : f32
    %603 = vector.broadcast %cst_208 : f32 to vector<48x1xf32>
    %604 = arith.divf %602, %603 : vector<48x1xf32>
    %605 = vector.broadcast %604 : vector<48x1xf32> to vector<48x128xf32>
    %606 = arith.subf %600, %605 : vector<48x128xf32>
    %607 = arith.mulf %606, %606 : vector<48x128xf32>
    %cst_209 = arith.constant dense<0.000000e+00> : vector<48xf32>
    %608 = vector.multi_reduction <add>, %607, %cst_209 [1] : vector<48x128xf32> to vector<48xf32>
    %609 = vector.shape_cast %608 : vector<48xf32> to vector<48x1xf32>
    %cst_210 = arith.constant 1.280000e+02 : f32
    %610 = vector.broadcast %cst_210 : f32 to vector<48x1xf32>
    %611 = arith.divf %609, %610 : vector<48x1xf32>
    %612 = vector.broadcast %604 : vector<48x1xf32> to vector<48x128xf32>
    %613 = arith.subf %600, %612 : vector<48x128xf32>
    %cst_211 = arith.constant 9.99999974E-6 : f32
    %614 = vector.broadcast %cst_211 : f32 to vector<48x1xf32>
    %615 = arith.addf %611, %614 : vector<48x1xf32>
    %616 = math.rsqrt %615 : vector<48x1xf32>
    %617 = vector.broadcast %616 : vector<48x1xf32> to vector<48x128xf32>
    %618 = arith.mulf %613, %617 : vector<48x128xf32>
    %619 = vector.broadcast %444 : vector<1x128xf32> to vector<48x128xf32>
    %620 = arith.mulf %618, %619 : vector<48x128xf32>
    %621 = vector.broadcast %445 : vector<1x128xf32> to vector<48x128xf32>
    %622 = arith.addf %620, %621 : vector<48x128xf32>
    %623 = arith.addf %168, %622 : vector<48x128xf32>
    %624 = vector.extract_strided_slice %623 {offsets = [0, 0], sizes = [16, 128], strides = [1, 1]} : vector<48x128xf32> to vector<16x128xf32>
    %cst_212 = arith.constant dense<0.000000e+00> : vector<128xf32>
    %625 = vector.multi_reduction <add>, %624, %cst_212 [0] : vector<16x128xf32> to vector<128xf32>
    %626 = vector.shape_cast %625 : vector<128xf32> to vector<1x128xf32>
    %cst_213 = arith.constant 1.600000e+01 : f32
    %627 = vector.broadcast %cst_213 : f32 to vector<1x128xf32>
    %628 = arith.divf %626, %627 : vector<1x128xf32>
    %629 = vector.extract_strided_slice %623 {offsets = [16, 0], sizes = [16, 128], strides = [1, 1]} : vector<48x128xf32> to vector<16x128xf32>
    %cst_214 = arith.constant dense<0.000000e+00> : vector<128xf32>
    %630 = vector.multi_reduction <add>, %629, %cst_214 [0] : vector<16x128xf32> to vector<128xf32>
    %631 = vector.shape_cast %630 : vector<128xf32> to vector<1x128xf32>
    %cst_215 = arith.constant 1.600000e+01 : f32
    %632 = vector.broadcast %cst_215 : f32 to vector<1x128xf32>
    %633 = arith.divf %631, %632 : vector<1x128xf32>
    %634 = tpu.concatenate %628, %633 in 0 : vector<1x128xf32>, vector<1x128xf32> -> vector<2x128xf32>
    %635 = vector.extract_strided_slice %623 {offsets = [32, 0], sizes = [8, 128], strides = [1, 1]} : vector<48x128xf32> to vector<8x128xf32>
    %cst_216 = arith.constant dense<0.000000e+00> : vector<128xf32>
    %636 = vector.multi_reduction <add>, %635, %cst_216 [0] : vector<8x128xf32> to vector<128xf32>
    %637 = vector.shape_cast %636 : vector<128xf32> to vector<1x128xf32>
    %cst_217 = arith.constant 8.000000e+00 : f32
    %638 = vector.broadcast %cst_217 : f32 to vector<1x128xf32>
    %639 = arith.divf %637, %638 : vector<1x128xf32>
    %640 = vector.extract_strided_slice %623 {offsets = [40, 0], sizes = [8, 128], strides = [1, 1]} : vector<48x128xf32> to vector<8x128xf32>
    %cst_218 = arith.constant dense<0.000000e+00> : vector<128xf32>
    %641 = vector.multi_reduction <add>, %640, %cst_218 [0] : vector<8x128xf32> to vector<128xf32>
    %642 = vector.shape_cast %641 : vector<128xf32> to vector<1x128xf32>
    %cst_219 = arith.constant 8.000000e+00 : f32
    %643 = vector.broadcast %cst_219 : f32 to vector<1x128xf32>
    %644 = arith.divf %642, %643 : vector<1x128xf32>
    %645 = tpu.concatenate %639, %644 in 0 : vector<1x128xf32>, vector<1x128xf32> -> vector<2x128xf32>
    %646 = arith.mulf %634, %634 : vector<2x128xf32>
    %cst_220 = arith.constant dense<0.000000e+00> : vector<2xf32>
    %647 = vector.multi_reduction <add>, %646, %cst_220 [1] : vector<2x128xf32> to vector<2xf32>
    %648 = vector.shape_cast %647 : vector<2xf32> to vector<2x1xf32>
    %cst_221 = arith.constant 1.000000e-24 : f32
    %649 = vector.broadcast %cst_221 : f32 to vector<2x1xf32>
    %650 = arith.maximumf %648, %649 : vector<2x1xf32>
    %651 = math.rsqrt %650 : vector<2x1xf32>
    %652 = vector.broadcast %651 : vector<2x1xf32> to vector<2x128xf32>
    %653 = arith.mulf %634, %652 : vector<2x128xf32>
    %654 = arith.mulf %645, %645 : vector<2x128xf32>
    %cst_222 = arith.constant dense<0.000000e+00> : vector<2xf32>
    %655 = vector.multi_reduction <add>, %654, %cst_222 [1] : vector<2x128xf32> to vector<2xf32>
    %656 = vector.shape_cast %655 : vector<2xf32> to vector<2x1xf32>
    %cst_223 = arith.constant 1.000000e-24 : f32
    %657 = vector.broadcast %cst_223 : f32 to vector<2x1xf32>
    %658 = arith.maximumf %656, %657 : vector<2x1xf32>
    %659 = math.rsqrt %658 : vector<2x1xf32>
    %660 = vector.broadcast %659 : vector<2x1xf32> to vector<2x128xf32>
    %661 = arith.mulf %645, %660 : vector<2x128xf32>
    %cst_224 = arith.constant dense<0.000000e+00> : vector<2x2xf32>
    %662 = tpu.matmul %653, %661, %cst_224 {dimension_numbers = #tpu.dot_dimension_numbers<[1], [1], [0], [0], [0, 0, 1, 0], [], []>} : vector<2x128xf32>, vector<2x128xf32>, vector<2x2xf32> -> vector<2x2xf32>
    %c0_225 = arith.constant 0 : index
    %c0_226 = arith.constant 0 : index
    %663 = memref.load %arg13[%c0_225, %c0_226] : memref<1x1xf32, #tpu.memory_space<smem>>
    %cst_227 = arith.constant 0.00999999977 : f32
    %cst_228 = arith.constant 2.000000e+01 : f32
    %664 = arith.maximumf %cst_227, %663 : f32
    %665 = arith.minimumf %cst_228, %664 : f32
    %666 = vector.broadcast %665 : f32 to vector<1x1xf32>
    %667 = math.exp %666 : vector<1x1xf32>
    %668 = vector.broadcast %667 : vector<1x1xf32> to vector<2x2xf32>
    %669 = arith.mulf %662, %668 : vector<2x2xf32>
    %670 = tpu.iota {dimensions = array<i32: 0>} : vector<2x2xi32>
    %671 = tpu.iota {dimensions = array<i32: 1>} : vector<2x2xi32>
    %672 = arith.cmpi eq, %670, %671 : vector<2x2xi32>
    %cst_229 = arith.constant 0.000000e+00 : f32
    %673 = vector.broadcast %cst_229 : f32 to vector<2x2xf32>
    %674 = arith.select %672, %669, %673 : vector<2x2xi1>, vector<2x2xf32>
    %cst_230 = arith.constant dense<0.000000e+00> : vector<2xf32>
    %675 = vector.multi_reduction <add>, %674, %cst_230 [1] : vector<2x2xf32> to vector<2xf32>
    %676 = vector.shape_cast %675 : vector<2xf32> to vector<2x1xf32>
    %cst_231 = arith.constant dense<0.000000e+00> : vector<2xf32>
    %677 = vector.multi_reduction <add>, %674, %cst_231 [0] : vector<2x2xf32> to vector<2xf32>
    %678 = vector.shape_cast %677 : vector<2xf32> to vector<1x2xf32>
    %cst_232 = arith.constant dense<0xFF800000> : vector<2xf32>
    %679 = vector.multi_reduction <maximumf>, %669, %cst_232 [1] : vector<2x2xf32> to vector<2xf32>
    %680 = vector.shape_cast %679 : vector<2xf32> to vector<2x1xf32>
    %681 = vector.broadcast %680 : vector<2x1xf32> to vector<2x2xf32>
    %682 = arith.subf %669, %681 : vector<2x2xf32>
    %683 = math.exp %682 : vector<2x2xf32>
    %cst_233 = arith.constant dense<0.000000e+00> : vector<2xf32>
    %684 = vector.multi_reduction <add>, %683, %cst_233 [1] : vector<2x2xf32> to vector<2xf32>
    %685 = vector.shape_cast %684 : vector<2xf32> to vector<2x1xf32>
    %686 = math.log %685 : vector<2x1xf32>
    %687 = arith.addf %686, %680 : vector<2x1xf32>
    %cst_234 = arith.constant dense<0xFF800000> : vector<2xf32>
    %688 = vector.multi_reduction <maximumf>, %669, %cst_234 [0] : vector<2x2xf32> to vector<2xf32>
    %689 = vector.shape_cast %688 : vector<2xf32> to vector<1x2xf32>
    %690 = vector.broadcast %689 : vector<1x2xf32> to vector<2x2xf32>
    %691 = arith.subf %669, %690 : vector<2x2xf32>
    %692 = math.exp %691 : vector<2x2xf32>
    %cst_235 = arith.constant dense<0.000000e+00> : vector<2xf32>
    %693 = vector.multi_reduction <add>, %692, %cst_235 [0] : vector<2x2xf32> to vector<2xf32>
    %694 = vector.shape_cast %693 : vector<2xf32> to vector<1x2xf32>
    %695 = math.log %694 : vector<1x2xf32>
    %696 = arith.addf %695, %689 : vector<1x2xf32>
    %697 = arith.subf %687, %676 : vector<2x1xf32>
    %698 = arith.subf %696, %678 : vector<1x2xf32>
    %cst_236 = arith.constant dense<0.000000e+00> : vector<1xf32>
    %699 = vector.multi_reduction <add>, %697, %cst_236 [0] : vector<2x1xf32> to vector<1xf32>
    %700 = vector.shape_cast %699 : vector<1xf32> to vector<1x1xf32>
    %cst_237 = arith.constant dense<0.000000e+00> : vector<1xf32>
    %701 = vector.multi_reduction <add>, %698, %cst_237 [1] : vector<1x2xf32> to vector<1xf32>
    %702 = vector.shape_cast %701 : vector<1xf32> to vector<1x1xf32>
    %703 = arith.addf %700, %702 : vector<1x1xf32>
    %cst_238 = arith.constant 4.000000e+00 : f32
    %704 = vector.broadcast %cst_238 : f32 to vector<1x1xf32>
    %705 = arith.divf %703, %704 : vector<1x1xf32>
    %c0_239 = arith.constant 0 : index
    %c0_240 = arith.constant 0 : index
    %706 = vector.load %arg14[%c0_239, %c0_240] : memref<1x1xf32, #tpu.memory_space<vmem>>, vector<1x1xf32>
    tpu.vector_store %arg14[%c0_239, %c0_240], %705 {strides = array<i32>} : memref<1x1xf32, #tpu.memory_space<vmem>>, vector<1x1xf32>,
    return
  }
  func.func @transform_0(%arg0: i32) -> (i32, i32) {
    %c0_i32 = arith.constant 0 : i32
    %c0_i32_0 = arith.constant 0 : i32
    %c0_i32_1 = arith.constant 0 : i32
    return %c0_i32, %c0_i32_0 : i32, i32
  }
  func.func @transform_1(%arg0: i32) -> (i32, i32) {
    %c0_i32 = arith.constant 0 : i32
    %c0_i32_0 = arith.constant 0 : i32
    %c0_i32_1 = arith.constant 0 : i32
    return %c0_i32, %c0_i32_0 : i32, i32
  }
  func.func @transform_2(%arg0: i32) -> (i32, i32) {
    %c0_i32 = arith.constant 0 : i32
    %c0_i32_0 = arith.constant 0 : i32
    %c0_i32_1 = arith.constant 0 : i32
    return %c0_i32, %c0_i32_0 : i32, i32
  }
  func.func @transform_3(%arg0: i32) -> (i32, i32) {
    %c0_i32 = arith.constant 0 : i32
    %c0_i32_0 = arith.constant 0 : i32
    %c0_i32_1 = arith.constant 0 : i32
    return %c0_i32, %c0_i32_0 : i32, i32
  }
  func.func @transform_4(%arg0: i32) -> (i32, i32) {
    %c0_i32 = arith.constant 0 : i32
    %c0_i32_0 = arith.constant 0 : i32
    %c0_i32_1 = arith.constant 0 : i32
    return %c0_i32, %c0_i32_0 : i32, i32
  }
  func.func @transform_5(%arg0: i32) -> (i32, i32, i32) {
    %c0_i32 = arith.constant 0 : i32
    %c0_i32_0 = arith.constant 0 : i32
    %c0_i32_1 = arith.constant 0 : i32
    %c0_i32_2 = arith.constant 0 : i32
    return %c0_i32, %c0_i32_0, %c0_i32_1 : i32, i32, i32
  }
  func.func @transform_6(%arg0: i32) -> (i32, i32, i32) {
    %c0_i32 = arith.constant 0 : i32
    %c0_i32_0 = arith.constant 0 : i32
    %c0_i32_1 = arith.constant 0 : i32
    %c0_i32_2 = arith.constant 0 : i32
    return %c0_i32, %c0_i32_0, %c0_i32_1 : i32, i32, i32
  }
  func.func @transform_7(%arg0: i32) -> (i32, i32, i32) {
    %c0_i32 = arith.constant 0 : i32
    %c0_i32_0 = arith.constant 0 : i32
    %c0_i32_1 = arith.constant 0 : i32
    %c0_i32_2 = arith.constant 0 : i32
    return %c0_i32, %c0_i32_0, %c0_i32_1 : i32, i32, i32
  }
  func.func @transform_8(%arg0: i32) -> (i32, i32, i32) {
    %c0_i32 = arith.constant 0 : i32
    %c0_i32_0 = arith.constant 0 : i32
    %c0_i32_1 = arith.constant 0 : i32
    %c0_i32_2 = arith.constant 0 : i32
    return %c0_i32, %c0_i32_0, %c0_i32_1 : i32, i32, i32
  }
  func.func @transform_9(%arg0: i32) -> (i32, i32) {
    %c0_i32 = arith.constant 0 : i32
    %c0_i32_0 = arith.constant 0 : i32
    %c0_i32_1 = arith.constant 0 : i32
    return %c0_i32, %c0_i32_0 : i32, i32
  }
  func.func @transform_10(%arg0: i32) -> (i32, i32) {
    %c0_i32 = arith.constant 0 : i32
    %c0_i32_0 = arith.constant 0 : i32
    %c0_i32_1 = arith.constant 0 : i32
    return %c0_i32, %c0_i32_0 : i32, i32
  }
  func.func @transform_11(%arg0: i32) -> (i32, i32) {
    %c0_i32 = arith.constant 0 : i32
    %c0_i32_0 = arith.constant 0 : i32
    %c0_i32_1 = arith.constant 0 : i32
    return %c0_i32, %c0_i32_0 : i32, i32
  }
  func.func @transform_12(%arg0: i32) -> (i32, i32) {
    %c0_i32 = arith.constant 0 : i32
    %c0_i32_0 = arith.constant 0 : i32
    %c0_i32_1 = arith.constant 0 : i32
    return %c0_i32, %c0_i32_0 : i32, i32
  }
  func.func @transform_13(%arg0: i32) -> (i32, i32) {
    %c0_i32 = arith.constant 0 : i32
    %c0_i32_0 = arith.constant 0 : i32
    %c0_i32_1 = arith.constant 0 : i32
    return %c0_i32, %c0_i32_0 : i32, i32
  }
}

</mosaic_0001>

<llo_original>
// kernel: one_encoder_up_forward.1
$region0: #{one_encoder_up_forward.1}
  #allocation0 [shape = 'u32[]', space=smem, size = 0x4, offset = 0x4, fixed_abs, tag = 'smem constant byte address 0x4 - core index']
  #allocation1 [shape = 'u32[144,128]{1,0:T(1,128)}', space=vmem, size = 0x12000, scoped, tag = 'internal scratch']
  #allocation2 [shape = 'f32[1,1]{1,0:T(1,128)S(6)}', space=smem, size = 0x200, scoped, tag = 'scoped memory for one_encoder_up_forward.1']
  %s0 = inlined_call_operand.vmem [shape: f32[32,48], index: 0, kind: input, shape index: {}]
  %s1 = inlined_call_operand.vmem [shape: f32[16,64], index: 1, kind: input, shape index: {}]
  %s2 = inlined_call_operand.vmem [shape: f32[2,16], index: 2, kind: input, shape index: {}]
  %s3 = inlined_call_operand.vmem [shape: bf16[64,64], index: 3, kind: input, shape index: {}]
  %s4 = inlined_call_operand.vmem [shape: bf16[576,128], index: 4, kind: input, shape index: {}]
  %s5 = inlined_call_operand.vmem [shape: bf16[2,128,384], index: 5, kind: input, shape index: {}]
  %s6 = inlined_call_operand.vmem [shape: bf16[2,128,128], index: 6, kind: input, shape index: {}]
  %s7 = inlined_call_operand.vmem [shape: bf16[2,128,256], index: 7, kind: input, shape index: {}]
  %s8 = inlined_call_operand.vmem [shape: bf16[2,256,128], index: 8, kind: input, shape index: {}]
  %s9 = inlined_call_operand.vmem [shape: f32[2,384], index: 9, kind: input, shape index: {}]
  %s10 = inlined_call_operand.vmem [shape: f32[2,256], index: 10, kind: input, shape index: {}]
  %s11 = inlined_call_operand.vmem [shape: f32[32,128], index: 11, kind: input, shape index: {}]
  %s12 = inlined_call_operand.<no memory space> [shape: f32[1,1], index: 12, kind: input, shape index: {}]
  %s13 = inlined_call_operand.hbm [shape: f32[1,1], index: 13, kind: output, shape index: {}]
  %s14 = sld [smem:[#allocation0]]
  $region62: #{one_encoder_up_forward.1} parent=0
    _
  %s16 = ssub.s32 1, %s14
  %s17 = scalar_select 0, %s16, %s14
  %18 = sst [smem:[#allocation2]] %s12
  $region1: #{one_encoder_up_forward.1} parent=0
    #allocation3 [shape = 'u8[512]{0}', space=vmem, size = 0x400, scoped, tag = 'output window, operand 0, single buffered']
    #allocation4 [shape = 's32[1]{0}', space=sflag, size = 0x4, scoped, tag = 'scoped memory for one_encoder_up_forward.1']
    %19 = vsyncpa [#allocation4], 0
    // Predicated region
    $region2: #{one_encoder_up_forward.1} parent=1 // pred_check
      _
    $region3: #{one_encoder_up_forward.1} parent=1 // pred_check_branch
      %21 = sbr.rel (0) target = $region5
    $region4: #{one_encoder_up_forward.1} parent=1 // pred_region
      _
    $region5: #{one_encoder_up_forward.1} parent=1 // pred_fallthru
      _
    // Predicated region
    $region6: #{one_encoder_up_forward.1} parent=1 // pred_check
      _
    $region7: #{one_encoder_up_forward.1} parent=1 // pred_check_branch
      %23 = sbr.rel (0) target = $region9
    $region8: #{one_encoder_up_forward.1} parent=1 // pred_region
      _
    $region9: #{one_encoder_up_forward.1} parent=1 // pred_fallthru
      _
    // Predicated region
    $region10: #{one_encoder_up_forward.1} parent=1 // pred_check
      _
    $region11: #{one_encoder_up_forward.1} parent=1 // pred_check_branch
      %25 = sbr.rel (0) target = $region13
    $region12: #{one_encoder_up_forward.1} parent=1 // pred_region
      _
    $region13: #{one_encoder_up_forward.1} parent=1 // pred_fallthru
      _
    // Predicated region
    $region14: #{one_encoder_up_forward.1} parent=1 // pred_check
      _
    $region15: #{one_encoder_up_forward.1} parent=1 // pred_check_branch
      %27 = sbr.rel (0) target = $region17
    $region16: #{one_encoder_up_forward.1} parent=1 // pred_region
      _
    $region17: #{one_encoder_up_forward.1} parent=1 // pred_fallthru
      _
    // Predicated region
    $region18: #{one_encoder_up_forward.1} parent=1 // pred_check
      _
    $region19: #{one_encoder_up_forward.1} parent=1 // pred_check_branch
      %29 = sbr.rel (0) target = $region21
    $region20: #{one_encoder_up_forward.1} parent=1 // pred_region
      _
    $region21: #{one_encoder_up_forward.1} parent=1 // pred_fallthru
      _
    // Predicated region
    $region22: #{one_encoder_up_forward.1} parent=1 // pred_check
      _
    $region23: #{one_encoder_up_forward.1} parent=1 // pred_check_branch
      %31 = sbr.rel (0) target = $region25
    $region24: #{one_encoder_up_forward.1} parent=1 // pred_region
      _
    $region25: #{one_encoder_up_forward.1} parent=1 // pred_fallthru
      _
    // Predicated region
    $region26: #{one_encoder_up_forward.1} parent=1 // pred_check
      _
    $region27: #{one_encoder_up_forward.1} parent=1 // pred_check_branch
      %33 = sbr.rel (0) target = $region29
    $region28: #{one_encoder_up_forward.1} parent=1 // pred_region
      _
    $region29: #{one_encoder_up_forward.1} parent=1 // pred_fallthru
      _
    // Predicated region
    $region30: #{one_encoder_up_forward.1} parent=1 // pred_check
      _
    $region31: #{one_encoder_up_forward.1} parent=1 // pred_check_branch
      %35 = sbr.rel (0) target = $region33
    $region32: #{one_encoder_up_forward.1} parent=1 // pred_region
      _
    $region33: #{one_encoder_up_forward.1} parent=1 // pred_fallthru
      _
    // Predicated region
    $region34: #{one_encoder_up_forward.1} parent=1 // pred_check
      _
    $region35: #{one_encoder_up_forward.1} parent=1 // pred_check_branch
      %37 = sbr.rel (0) target = $region37
    $region36: #{one_encoder_up_forward.1} parent=1 // pred_region
      _
    $region37: #{one_encoder_up_forward.1} parent=1 // pred_fallthru
      _
    // Predicated region
    $region38: #{one_encoder_up_forward.1} parent=1 // pred_check
      _
    $region39: #{one_encoder_up_forward.1} parent=1 // pred_check_branch
      %39 = sbr.rel (0) target = $region41
    $region40: #{one_encoder_up_forward.1} parent=1 // pred_region
      _
    $region41: #{one_encoder_up_forward.1} parent=1 // pred_fallthru
      _
    // Predicated region
    $region42: #{one_encoder_up_forward.1} parent=1 // pred_check
      _
    $region43: #{one_encoder_up_forward.1} parent=1 // pred_check_branch
      %41 = sbr.rel (0) target = $region45
    $region44: #{one_encoder_up_forward.1} parent=1 // pred_region
      _
    $region45: #{one_encoder_up_forward.1} parent=1 // pred_fallthru
      _
    // Predicated region
    $region46: #{one_encoder_up_forward.1} parent=1 // pred_check
      _
    $region47: #{one_encoder_up_forward.1} parent=1 // pred_check_branch
      %43 = sbr.rel (0) target = $region49
    $region48: #{one_encoder_up_forward.1} parent=1 // pred_region
      _
    $region49: #{one_encoder_up_forward.1} parent=1 // pred_fallthru
      _
    // Predicated region
    $region50: #{one_encoder_up_forward.1} parent=1 // pred_check
      _
    $region51: #{one_encoder_up_forward.1} parent=1 // pred_check_branch
      %45 = sbr.rel (0) target = $region53
    $region52: #{one_encoder_up_forward.1} parent=1 // pred_region
      _
    $region53: #{one_encoder_up_forward.1} parent=1 // pred_fallthru
      _
    %v47 = vld [vmem:[%s3] sm:$0xf]
    %v48 = vld [vmem:[%s3 + $0x4] sm:$0xf]
    %v49 = vld [vmem:[%s3 + $0x8] sm:$0xf]
    %v50 = vld [vmem:[%s3 + $0xc] sm:$0xf]
    %v51 = vld [vmem:[%s3 + $0x10] sm:$0xf]
    %v52 = vld [vmem:[%s3 + $0x14] sm:$0xf]
    %v53 = vld [vmem:[%s11 + $0xc] sm:$0x1]
    %v54 = vld [vmem:[%s0] sm:$0xff]
    %v55 = vld [vmem:[%s0 + $0x8] sm:$0xff]
    %v56 = vld [vmem:[%s0 + $0x10] sm:$0xff]
    %v57 = vld [vmem:[%s0 + $0x18] sm:$0xff]
    %v58 = vpack.c.bf16 %v55, %v54
    %v59 = vpack.c.bf16 %v57, %v56
    %v60 = vlaneseq
    %v61 = vshrl.u32 %v60, 7
    %v62 = vsub.s32 0, %v61
    %v63 = vrot.slane %v53, %v62
    %v70 = vunpack.c.l.b16 %v47
    %v71 = vunpack.c.l.b16 %v48
    %v72 = vunpack.c.l.b16 %v49
    %v73 = vunpack.c.l.b16 %v50
    %v74 = vunpack.c.l.b16 %v51
    %v75 = vunpack.c.l.b16 %v52
    %v76 = vpack.c.b16 %v71, %v70
    %v77 = vpack.c.b16 %v73, %v72
    %v78 = vpack.c.b16 %v75, %v74
    %vm82 = vcmask 392192
    %v84 = vsel %vm82, %v58, 0
    %v87 = vsel %vm82, %v59, 0
    %89 = vmatprep.subr.bf16.mxu0 0
    %90 = vmatpush1.bf16.msra.mxu0 %v76
    %91 = vmatprep.subr.bf16.mxu0 0
    %92 = vmatpush1.bf16.msra.mxu0 %v77
    %93 = vmatprep.subr.bf16.mxu0 0
    %94 = vmatpush1.bf16.msra.mxu0 %v78
    %95 = vmatprep.subr.bf16.mxu0 0
    %96 = vmatpush1.bf16.msra.mxu0 0
    %97 = vmatprep.subr.bf16.mxu0 0
    %98 = vmatpush1.bf16.msra.mxu0 0
    %99 = vmatprep.subr.bf16.mxu0 0
    %100 = vmatpush1.bf16.msra.mxu0 0
    %101 = vmatprep.subr.bf16.mxu0 0
    %102 = vmatpush1.bf16.msra.mxu0 0
    %103 = vmatprep.subr.bf16.mxu0 0
    %104 = vmatpush1.bf16.msra.mxu0 0
    %105 = vmatprep.subr.bf16.mxu0 0
    %106 = vmatpush1.bf16.msra.mxu0 0
    %107 = vmatprep.subr.bf16.mxu0 0
    %108 = vmatpush1.bf16.msra.mxu0 0
    %109 = vmatprep.subr.bf16.mxu0 0
    %110 = vmatpush1.bf16.msra.mxu0 0
    %111 = vmatprep.subr.bf16.mxu0 0
    %112 = vmatpush1.bf16.msra.mxu0 0
    %113 = vmatprep.subr.bf16.mxu0 0
    %114 = vmatpush1.bf16.msra.mxu0 0
    %115 = vmatprep.subr.bf16.mxu0 0
    %116 = vmatpush1.bf16.msra.mxu0 0
    %117 = vmatprep.subr.bf16.mxu0 0
    %118 = vmatpush1.bf16.msra.mxu0 0
    %119 = vmatprep.subr.bf16.mxu0 0
    %120 = vmatpush1.bf16.msra.mxu0 0
    %121 = vmatprep.mubr.bf16.mxu0 0
    %122 = vmatmul.mubr.bf16.gmra.mrb[0].mxu0 %v84
    %v123 = vpop.f32.mrb[0].mxu0
    %v124 = vadd.f32 %v63, %v123
    %v125 = vpop.f32.mrb[0].mxu0
    %v126 = vpop.f32.mrb[0].mxu0
    %v127 = vadd.f32 %v63, %v126
    %v128 = vpop.f32.mrb[0].mxu0
    %129 = vmatprep.mubr.bf16.mxu0 0
    %130 = vmatmul.mubr.bf16.gmra.mrb[0].mxu0 %v87
    %v131 = vpop.f32.mrb[0].mxu0
    %v132 = vadd.f32 %v63, %v131
    %v133 = vpop.f32.mrb[0].mxu0
    %v134 = vpop.f32.mrb[0].mxu0
    %v135 = vadd.f32 %v63, %v134
    %v136 = vpop.f32.mrb[0].mxu0
    %137 = vdwg.mxu0
    %v138 = vld [vmem:[%s4] sm:$0xf]
    %v139 = vld [vmem:[%s4 + $0x4] sm:$0xf]
    %v140 = vld [vmem:[%s4 + $0x8] sm:$0xf]
    %v141 = vld [vmem:[%s4 + $0xc] sm:$0xf]
    %v142 = vld [vmem:[%s4 + $0x10] sm:$0xf]
    %v143 = vld [vmem:[%s4 + $0x14] sm:$0xf]
    %v144 = vld [vmem:[%s4 + $0x18] sm:$0xf]
    %v145 = vld [vmem:[%s4 + $0x1c] sm:$0xf]
    %v146 = vld [vmem:[%s11] sm:$0x1]
    %v147 = vld [vmem:[%s4 + $0x20] sm:$0xf]
    %v148 = vld [vmem:[%s4 + $0x24] sm:$0xf]
    %v149 = vld [vmem:[%s4 + $0x28] sm:$0xf]
    %v150 = vld [vmem:[%s4 + $0x2c] sm:$0xf]
    %v151 = vld [vmem:[%s4 + $0x30] sm:$0xf]
    %v152 = vld [vmem:[%s4 + $0x34] sm:$0xf]
    %v153 = vld [vmem:[%s4 + $0x38] sm:$0xf]
    %v154 = vld [vmem:[%s4 + $0x3c] sm:$0xf]
    %v155 = vld [vmem:[%s4 + $0x40] sm:$0xf]
    %v156 = vld [vmem:[%s4 + $0x44] sm:$0xf]
    %v157 = vld [vmem:[%s4 + $0x48] sm:$0xf]
    %v158 = vld [vmem:[%s4 + $0x4c] sm:$0xf]
    %v159 = vld [vmem:[%s4 + $0x50] sm:$0xf]
    %v160 = vld [vmem:[%s4 + $0x54] sm:$0xf]
    %v161 = vld [vmem:[%s4 + $0x58] sm:$0xf]
    %v162 = vld [vmem:[%s4 + $0x5c] sm:$0xf]
    %v163 = vld [vmem:[%s11 + $0x1] sm:$0x1]
    %v164 = vld [vmem:[%s11 + $0x2] sm:$0x1]
    %v165 = vld [vmem:[%s11 + $0x3] sm:$0x1]
    %v166 = vpack.c.bf16 %v127, %v124
    %v167 = vpack.c.bf16 %v135, %v132
    %v168 = vlaneseq
    %v169 = vshrl.u32 %v168, 7
    %v170 = vsub.s32 0, %v169
    %v171 = vrot.slane %v146, %v170
    %v180 = vunpack.c.l.b16 %v138
    %v181 = vunpack.c.l.b16 %v139
    %v182 = vunpack.c.l.b16 %v140
    %v183 = vunpack.c.l.b16 %v141
    %v184 = vunpack.c.l.b16 %v142
    %v185 = vunpack.c.l.b16 %v143
    %v186 = vunpack.c.l.b16 %v144
    %v187 = vunpack.c.l.b16 %v145
    %v188 = vpack.c.b16 %v181, %v180
    %v189 = vpack.c.b16 %v183, %v182
    %v190 = vpack.c.b16 %v185, %v184
    %v191 = vpack.c.b16 %v187, %v186
    %vm196 = vcmask 523264
    %v198 = vsel %vm196, %v166, 0
    %v201 = vsel %vm196, %v167, 0
    %203 = vmatprep.subr.bf16.mxu0 0
    %204 = vmatpush1.bf16.msra.mxu0 %v188
    %205 = vmatprep.subr.bf16.mxu0 0
    %206 = vmatpush1.bf16.msra.mxu0 %v189
    %207 = vmatprep.subr.bf16.mxu0 0
    %208 = vmatpush1.bf16.msra.mxu0 %v190
    %209 = vmatprep.subr.bf16.mxu0 0
    %210 = vmatpush1.bf16.msra.mxu0 %v191
    %211 = vmatprep.subr.bf16.mxu0 0
    %212 = vmatpush1.bf16.msra.mxu0 0
    %213 = vmatprep.subr.bf16.mxu0 0
    %214 = vmatpush1.bf16.msra.mxu0 0
    %215 = vmatprep.subr.bf16.mxu0 0
    %216 = vmatpush1.bf16.msra.mxu0 0
    %217 = vmatprep.subr.bf16.mxu0 0
    %218 = vmatpush1.bf16.msra.mxu0 0
    %219 = vmatprep.subr.bf16.mxu0 0
    %220 = vmatpush1.bf16.msra.mxu0 0
    %221 = vmatprep.subr.bf16.mxu0 0
    %222 = vmatpush1.bf16.msra.mxu0 0
    %223 = vmatprep.subr.bf16.mxu0 0
    %224 = vmatpush1.bf16.msra.mxu0 0
    %225 = vmatprep.subr.bf16.mxu0 0
    %226 = vmatpush1.bf16.msra.mxu0 0
    %227 = vmatprep.subr.bf16.mxu0 0
    %228 = vmatpush1.bf16.msra.mxu0 0
    %229 = vmatprep.subr.bf16.mxu0 0
    %230 = vmatpush1.bf16.msra.mxu0 0
    %231 = vmatprep.subr.bf16.mxu0 0
    %232 = vmatpush1.bf16.msra.mxu0 0
    %233 = vmatprep.subr.bf16.mxu0 0
    %234 = vmatpush1.bf16.msra.mxu0 0
    %235 = vmatprep.mubr.bf16.mxu0 0
    %236 = vmatmul.mubr.bf16.gmra.mrb[0].mxu0 %v198
    %v237 = vpop.f32.mrb[0].mxu0
    %v238 = vadd.f32 %v171, %v237
    %v239 = vpop.f32.mrb[0].mxu0
    %v240 = vpop.f32.mrb[0].mxu0
    %v241 = vadd.f32 %v171, %v240
    %v242 = vpop.f32.mrb[0].mxu0
    %243 = vmatprep.mubr.bf16.mxu0 0
    %244 = vmatmul.mubr.bf16.gmra.mrb[0].mxu0 %v201
    %v245 = vpop.f32.mrb[0].mxu0
    %v246 = vadd.f32 %v171, %v245
    %v247 = vpop.f32.mrb[0].mxu0
    %v248 = vpop.f32.mrb[0].mxu0
    %v249 = vadd.f32 %v171, %v248
    %v250 = vpop.f32.mrb[0].mxu0
    %251 = vdwg.mxu0
    %v252 = vmul.f32 %v238, 0.5
    %v253 = vmul.f32 %v241, 0.5
    %v254 = vmul.f32 %v246, 0.5
    %v255 = vmul.f32 %v249, 0.5
    %v256 = vmul.f32 %v238, 0.044715
    %v257 = vmul.f32 %v241, 0.044715
    %v258 = vmul.f32 %v246, 0.044715
    %v259 = vmul.f32 %v249, 0.044715
    %v260 = vmul.f32 %v256, %v238
    %v261 = vmul.f32 %v257, %v241
    %v262 = vmul.f32 %v258, %v246
    %v263 = vmul.f32 %v259, %v249
    %v264 = vmul.f32 %v260, %v238
    %v265 = vmul.f32 %v261, %v241
    %v266 = vmul.f32 %v262, %v246
    %v267 = vmul.f32 %v263, %v249
    %v268 = vadd.f32 %v238, %v264
    %v269 = vadd.f32 %v241, %v265
    %v270 = vadd.f32 %v246, %v266
    %v271 = vadd.f32 %v249, %v267
    %v272 = vmul.f32 %v268, 0.7978846
    %v273 = vmul.f32 %v269, 0.7978846
    %v274 = vmul.f32 %v270, 0.7978846
    %v275 = vmul.f32 %v271, 0.7978846
    %v276 = vtanh.pop %v272
    %v277 = vtanh.pop %v273
    %v278 = vtanh.pop %v274
    %v279 = vtanh.pop %v275
    %v280 = vadd.f32 %v276, 1.0
    %v281 = vadd.f32 %v277, 1.0
    %v282 = vadd.f32 %v278, 1.0
    %v283 = vadd.f32 %v279, 1.0
    %v284 = vmul.f32 %v252, %v280
    %v285 = vmul.f32 %v253, %v281
    %v286 = vmul.f32 %v254, %v282
    %v287 = vmul.f32 %v255, %v283
    %v288 = vpack.c.bf16 %v285, %v284
    %v289 = vpack.c.bf16 %v287, %v286
    %v290 = vlaneseq
    %v291 = vshrl.u32 %v290, 7
    %v292 = vsub.s32 0, %v291
    %v293 = vrot.slane %v163, %v292
    %v310 = vunpack.c.l.b16 %v147
    %v311 = vunpack.c.l.b16 %v148
    %v312 = vunpack.c.l.b16 %v149
    %v313 = vunpack.c.l.b16 %v150
    %v314 = vunpack.c.l.b16 %v151
    %v315 = vunpack.c.l.b16 %v152
    %v316 = vunpack.c.l.b16 %v153
    %v317 = vunpack.c.l.b16 %v154
    %v318 = vunpack.c.l.b16 %v155
    %v319 = vunpack.c.l.b16 %v156
    %v320 = vunpack.c.l.b16 %v157
    %v321 = vunpack.c.l.b16 %v158
    %v322 = vunpack.c.l.b16 %v159
    %v323 = vunpack.c.l.b16 %v160
    %v324 = vunpack.c.l.b16 %v161
    %v325 = vunpack.c.l.b16 %v162
    %v326 = vpack.c.b16 %v311, %v310
    %v327 = vpack.c.b16 %v313, %v312
    %v328 = vpack.c.b16 %v315, %v314
    %v329 = vpack.c.b16 %v317, %v316
    %v330 = vpack.c.b16 %v319, %v318
    %v331 = vpack.c.b16 %v321, %v320
    %v332 = vpack.c.b16 %v323, %v322
    %v333 = vpack.c.b16 %v325, %v324
    %342 = vmatprep.subr.bf16.mxu0 0
    %343 = vmatpush1.bf16.msra.mxu0 %v326
    %344 = vmatprep.subr.bf16.mxu0 0
    %345 = vmatpush1.bf16.msra.mxu0 %v327
    %346 = vmatprep.subr.bf16.mxu0 0
    %347 = vmatpush1.bf16.msra.mxu0 %v328
    %348 = vmatprep.subr.bf16.mxu0 0
    %349 = vmatpush1.bf16.msra.mxu0 %v329
    %350 = vmatprep.subr.bf16.mxu0 0
    %351 = vmatpush1.bf16.msra.mxu0 %v330
    %352 = vmatprep.subr.bf16.mxu0 0
    %353 = vmatpush1.bf16.msra.mxu0 %v331
    %354 = vmatprep.subr.bf16.mxu0 0
    %355 = vmatpush1.bf16.msra.mxu0 %v332
    %356 = vmatprep.subr.bf16.mxu0 0
    %357 = vmatpush1.bf16.msra.mxu0 %v333
    %358 = vmatprep.subr.bf16.mxu0 0
    %359 = vmatpush1.bf16.msra.mxu0 0
    %360 = vmatprep.subr.bf16.mxu0 0
    %361 = vmatpush1.bf16.msra.mxu0 0
    %362 = vmatprep.subr.bf16.mxu0 0
    %363 = vmatpush1.bf16.msra.mxu0 0
    %364 = vmatprep.subr.bf16.mxu0 0
    %365 = vmatpush1.bf16.msra.mxu0 0
    %366 = vmatprep.subr.bf16.mxu0 0
    %367 = vmatpush1.bf16.msra.mxu0 0
    %368 = vmatprep.subr.bf16.mxu0 0
    %369 = vmatpush1.bf16.msra.mxu0 0
    %370 = vmatprep.subr.bf16.mxu0 0
    %371 = vmatpush1.bf16.msra.mxu0 0
    %372 = vmatprep.subr.bf16.mxu0 0
    %373 = vmatpush1.bf16.msra.mxu0 0
    %374 = vmatprep.mubr.bf16.mxu0 0
    %375 = vmatmul.mubr.bf16.gmra.mrb[0].mxu0 %v288
    %v376 = vpop.f32.mrb[0].mxu0
    %v377 = vadd.f32 %v293, %v376
    %v378 = vpop.f32.mrb[0].mxu0
    %v379 = vpop.f32.mrb[0].mxu0
    %v380 = vadd.f32 %v293, %v379
    %v381 = vpop.f32.mrb[0].mxu0
    %382 = vmatprep.mubr.bf16.mxu0 0
    %383 = vmatmul.mubr.bf16.gmra.mrb[0].mxu0 %v289
    %v384 = vpop.f32.mrb[0].mxu0
    %v385 = vadd.f32 %v293, %v384
    %v386 = vpop.f32.mrb[0].mxu0
    %v387 = vpop.f32.mrb[0].mxu0
    %v388 = vadd.f32 %v293, %v387
    %v389 = vpop.f32.mrb[0].mxu0
    %390 = vdwg.mxu0
    %391 = vadd.xlane.f32.xlu0 %v377
    %v392 = vpop.xlane.xlu0 %391
    %393 = vadd.xlane.f32.xlu0 %v380
    %v394 = vpop.xlane.xlu0 %393
    %395 = vadd.xlane.f32.xlu0 %v385
    %v396 = vpop.xlane.xlu0 %395
    %397 = vadd.xlane.f32.xlu0 %v388
    %v398 = vpop.xlane.xlu0 %397
    %v399 = vrcp.pop 128.0
    %v400 = vmul.f32 %v392, %v399
    %v401 = vmul.f32 %v394, %v399
    %v402 = vmul.f32 %v396, %v399
    %v403 = vmul.f32 %v398, %v399
    %v404 = vsub.f32 %v377, %v400
    %v405 = vsub.f32 %v380, %v401
    %v406 = vsub.f32 %v385, %v402
    %v407 = vsub.f32 %v388, %v403
    %v408 = vmul.f32 %v404, %v404
    %v409 = vmul.f32 %v405, %v405
    %v410 = vmul.f32 %v406, %v406
    %v411 = vmul.f32 %v407, %v407
    %412 = vadd.xlane.f32.xlu0 %v408
    %v413 = vpop.xlane.xlu0 %412
    %414 = vadd.xlane.f32.xlu0 %v409
    %v415 = vpop.xlane.xlu0 %414
    %416 = vadd.xlane.f32.xlu0 %v410
    %v417 = vpop.xlane.xlu0 %416
    %418 = vadd.xlane.f32.xlu0 %v411
    %v419 = vpop.xlane.xlu0 %418
    %v420 = vmul.f32 %v413, %v399
    %v421 = vmul.f32 %v415, %v399
    %v422 = vmul.f32 %v417, %v399
    %v423 = vmul.f32 %v419, %v399
    %v424 = vadd.f32 %v420, 1e-05
    %v425 = vadd.f32 %v421, 1e-05
    %v426 = vadd.f32 %v422, 1e-05
    %v427 = vadd.f32 %v423, 1e-05
    %v428 = vrsqrt.pop %v424
    %v429 = vrsqrt.pop %v425
    %v430 = vrsqrt.pop %v426
    %v431 = vrsqrt.pop %v427
    %v432 = vmul.f32 %v404, %v428
    %v433 = vmul.f32 %v405, %v429
    %v434 = vmul.f32 %v406, %v430
    %v435 = vmul.f32 %v407, %v431
    %v436 = vlaneseq
    %v437 = vshrl.u32 %v436, 7
    %v438 = vsub.s32 0, %v437
    %v439 = vrot.slane %v164, %v438
    %v440 = vmul.f32 %v432, %v439
    %v441 = vmul.f32 %v433, %v439
    %v442 = vmul.f32 %v434, %v439
    %v443 = vmul.f32 %v435, %v439
    %v444 = vlaneseq
    %v445 = vshrl.u32 %v444, 7
    %v446 = vsub.s32 0, %v445
    %v447 = vrot.slane %v165, %v446
    %v448 = vadd.f32 %v440, %v447
    %v449 = vadd.f32 %v441, %v447
    %v450 = vadd.f32 %v442, %v447
    %v451 = vadd.f32 %v443, %v447
    %v452 = vld [vmem:[%s1] sm:$0xff]
    %v453 = vld [vmem:[%s1 + $0x8] sm:$0xff]
    %v454 = vld [vmem:[%s4 + $0x60] sm:$0xf]
    %v455 = vld [vmem:[%s4 + $0x64] sm:$0xf]
    %v456 = vld [vmem:[%s4 + $0x68] sm:$0xf]
    %v457 = vld [vmem:[%s4 + $0x6c] sm:$0xf]
    %v458 = vld [vmem:[%s4 + $0x70] sm:$0xf]
    %v459 = vld [vmem:[%s4 + $0x74] sm:$0xf]
    %v460 = vld [vmem:[%s4 + $0x78] sm:$0xf]
    %v461 = vld [vmem:[%s4 + $0x7c] sm:$0xf]
    %v462 = vld [vmem:[%s11 + $0x4] sm:$0x1]
    %v463 = vld [vmem:[%s4 + $0x80] sm:$0xf]
    %v464 = vld [vmem:[%s4 + $0x84] sm:$0xf]
    %v465 = vld [vmem:[%s4 + $0x88] sm:$0xf]
    %v466 = vld [vmem:[%s4 + $0x8c] sm:$0xf]
    %v467 = vld [vmem:[%s4 + $0x90] sm:$0xf]
    %v468 = vld [vmem:[%s4 + $0x94] sm:$0xf]
    %v469 = vld [vmem:[%s4 + $0x98] sm:$0xf]
    %v470 = vld [vmem:[%s4 + $0x9c] sm:$0xf]
    %v471 = vld [vmem:[%s4 + $0xa0] sm:$0xf]
    %v472 = vld [vmem:[%s4 + $0xa4] sm:$0xf]
    %v473 = vld [vmem:[%s4 + $0xa8] sm:$0xf]
    %v474 = vld [vmem:[%s4 + $0xac] sm:$0xf]
    %v475 = vld [vmem:[%s4 + $0xb0] sm:$0xf]
    %v476 = vld [vmem:[%s4 + $0xb4] sm:$0xf]
    %v477 = vld [vmem:[%s4 + $0xb8] sm:$0xf]
    %v478 = vld [vmem:[%s4 + $0xbc] sm:$0xf]
    %v479 = vld [vmem:[%s11 + $0x5] sm:$0x1]
    %v480 = vld [vmem:[%s11 + $0x6] sm:$0x1]
    %v481 = vld [vmem:[%s11 + $0x7] sm:$0x1]
    %v482 = vpack.c.bf16 %v453, %v452
    %v483 = vlaneseq
    %v484 = vshrl.u32 %v483, 7
    %v485 = vsub.s32 0, %v484
    %v486 = vrot.slane %v462, %v485
    %v495 = vunpack.c.l.b16 %v454
    %v496 = vunpack.c.l.b16 %v455
    %v497 = vunpack.c.l.b16 %v456
    %v498 = vunpack.c.l.b16 %v457
    %v499 = vunpack.c.l.b16 %v458
    %v500 = vunpack.c.l.b16 %v459
    %v501 = vunpack.c.l.b16 %v460
    %v502 = vunpack.c.l.b16 %v461
    %v503 = vpack.c.b16 %v496, %v495
    %v504 = vpack.c.b16 %v498, %v497
    %v505 = vpack.c.b16 %v500, %v499
    %v506 = vpack.c.b16 %v502, %v501
    %v512 = vsel %vm196, %v482, 0
    %514 = vmatprep.subr.bf16.mxu0 0
    %515 = vmatpush1.bf16.msra.mxu0 %v503
    %516 = vmatprep.subr.bf16.mxu0 0
    %517 = vmatpush1.bf16.msra.mxu0 %v504
    %518 = vmatprep.subr.bf16.mxu0 0
    %519 = vmatpush1.bf16.msra.mxu0 %v505
    %520 = vmatprep.subr.bf16.mxu0 0
    %521 = vmatpush1.bf16.msra.mxu0 %v506
    %522 = vmatprep.subr.bf16.mxu0 0
    %523 = vmatpush1.bf16.msra.mxu0 0
    %524 = vmatprep.subr.bf16.mxu0 0
    %525 = vmatpush1.bf16.msra.mxu0 0
    %526 = vmatprep.subr.bf16.mxu0 0
    %527 = vmatpush1.bf16.msra.mxu0 0
    %528 = vmatprep.subr.bf16.mxu0 0
    %529 = vmatpush1.bf16.msra.mxu0 0
    %530 = vmatprep.subr.bf16.mxu0 0
    %531 = vmatpush1.bf16.msra.mxu0 0
    %532 = vmatprep.subr.bf16.mxu0 0
    %533 = vmatpush1.bf16.msra.mxu0 0
    %534 = vmatprep.subr.bf16.mxu0 0
    %535 = vmatpush1.bf16.msra.mxu0 0
    %536 = vmatprep.subr.bf16.mxu0 0
    %537 = vmatpush1.bf16.msra.mxu0 0
    %538 = vmatprep.subr.bf16.mxu0 0
    %539 = vmatpush1.bf16.msra.mxu0 0
    %540 = vmatprep.subr.bf16.mxu0 0
    %541 = vmatpush1.bf16.msra.mxu0 0
    %542 = vmatprep.subr.bf16.mxu0 0
    %543 = vmatpush1.bf16.msra.mxu0 0
    %544 = vmatprep.subr.bf16.mxu0 0
    %545 = vmatpush1.bf16.msra.mxu0 0
    %546 = vmatprep.mubr.bf16.mxu0 0
    %547 = vmatmul.mubr.bf16.gmra.mrb[0].mxu0 %v512
    %v548 = vpop.f32.mrb[0].mxu0
    %v549 = vadd.f32 %v486, %v548
    %v550 = vpop.f32.mrb[0].mxu0
    %v551 = vpop.f32.mrb[0].mxu0
    %v552 = vadd.f32 %v486, %v551
    %v553 = vpop.f32.mrb[0].mxu0
    %554 = vdwg.mxu0
    %v555 = vmul.f32 %v549, 0.5
    %v556 = vmul.f32 %v552, 0.5
    %v557 = vmul.f32 %v549, 0.044715
    %v558 = vmul.f32 %v552, 0.044715
    %v559 = vmul.f32 %v557, %v549
    %v560 = vmul.f32 %v558, %v552
    %v561 = vmul.f32 %v559, %v549
    %v562 = vmul.f32 %v560, %v552
    %v563 = vadd.f32 %v549, %v561
    %v564 = vadd.f32 %v552, %v562
    %v565 = vmul.f32 %v563, 0.7978846
    %v566 = vmul.f32 %v564, 0.7978846
    %v567 = vtanh.pop %v565
    %v568 = vtanh.pop %v566
    %v569 = vadd.f32 %v567, 1.0
    %v570 = vadd.f32 %v568, 1.0
    %v571 = vmul.f32 %v555, %v569
    %v572 = vmul.f32 %v556, %v570
    %v573 = vpack.c.bf16 %v572, %v571
    %v574 = vlaneseq
    %v575 = vshrl.u32 %v574, 7
    %v576 = vsub.s32 0, %v575
    %v577 = vrot.slane %v479, %v576
    %v594 = vunpack.c.l.b16 %v463
    %v595 = vunpack.c.l.b16 %v464
    %v596 = vunpack.c.l.b16 %v465
    %v597 = vunpack.c.l.b16 %v466
    %v598 = vunpack.c.l.b16 %v467
    %v599 = vunpack.c.l.b16 %v468
    %v600 = vunpack.c.l.b16 %v469
    %v601 = vunpack.c.l.b16 %v470
    %v602 = vunpack.c.l.b16 %v471
    %v603 = vunpack.c.l.b16 %v472
    %v604 = vunpack.c.l.b16 %v473
    %v605 = vunpack.c.l.b16 %v474
    %v606 = vunpack.c.l.b16 %v475
    %v607 = vunpack.c.l.b16 %v476
    %v608 = vunpack.c.l.b16 %v477
    %v609 = vunpack.c.l.b16 %v478
    %v610 = vpack.c.b16 %v595, %v594
    %v611 = vpack.c.b16 %v597, %v596
    %v612 = vpack.c.b16 %v599, %v598
    %v613 = vpack.c.b16 %v601, %v600
    %v614 = vpack.c.b16 %v603, %v602
    %v615 = vpack.c.b16 %v605, %v604
    %v616 = vpack.c.b16 %v607, %v606
    %v617 = vpack.c.b16 %v609, %v608
    %626 = vmatprep.subr.bf16.mxu0 0
    %627 = vmatpush1.bf16.msra.mxu0 %v610
    %628 = vmatprep.subr.bf16.mxu0 0
    %629 = vmatpush1.bf16.msra.mxu0 %v611
    %630 = vmatprep.subr.bf16.mxu0 0
    %631 = vmatpush1.bf16.msra.mxu0 %v612
    %632 = vmatprep.subr.bf16.mxu0 0
    %633 = vmatpush1.bf16.msra.mxu0 %v613
    %634 = vmatprep.subr.bf16.mxu0 0
    %635 = vmatpush1.bf16.msra.mxu0 %v614
    %636 = vmatprep.subr.bf16.mxu0 0
    %637 = vmatpush1.bf16.msra.mxu0 %v615
    %638 = vmatprep.subr.bf16.mxu0 0
    %639 = vmatpush1.bf16.msra.mxu0 %v616
    %640 = vmatprep.subr.bf16.mxu0 0
    %641 = vmatpush1.bf16.msra.mxu0 %v617
    %642 = vmatprep.subr.bf16.mxu0 0
    %643 = vmatpush1.bf16.msra.mxu0 0
    %644 = vmatprep.subr.bf16.mxu0 0
    %645 = vmatpush1.bf16.msra.mxu0 0
    %646 = vmatprep.subr.bf16.mxu0 0
    %647 = vmatpush1.bf16.msra.mxu0 0
    %648 = vmatprep.subr.bf16.mxu0 0
    %649 = vmatpush1.bf16.msra.mxu0 0
    %650 = vmatprep.subr.bf16.mxu0 0
    %651 = vmatpush1.bf16.msra.mxu0 0
    %652 = vmatprep.subr.bf16.mxu0 0
    %653 = vmatpush1.bf16.msra.mxu0 0
    %654 = vmatprep.subr.bf16.mxu0 0
    %655 = vmatpush1.bf16.msra.mxu0 0
    %656 = vmatprep.subr.bf16.mxu0 0
    %657 = vmatpush1.bf16.msra.mxu0 0
    %658 = vmatprep.mubr.bf16.mxu0 0
    %659 = vmatmul.mubr.bf16.gmra.mrb[0].mxu0 %v573
    %v660 = vpop.f32.mrb[0].mxu0
    %v661 = vadd.f32 %v577, %v660
    %v662 = vpop.f32.mrb[0].mxu0
    %v663 = vpop.f32.mrb[0].mxu0
    %v664 = vadd.f32 %v577, %v663
    %v665 = vpop.f32.mrb[0].mxu0
    %666 = vdwg.mxu0
    %667 = vadd.xlane.f32.xlu0 %v661
    %v668 = vpop.xlane.xlu0 %667
    %669 = vadd.xlane.f32.xlu0 %v664
    %v670 = vpop.xlane.xlu0 %669
    %v671 = vmul.f32 %v668, %v399
    %v672 = vmul.f32 %v670, %v399
    %v673 = vsub.f32 %v661, %v671
    %v674 = vsub.f32 %v664, %v672
    %v675 = vmul.f32 %v673, %v673
    %v676 = vmul.f32 %v674, %v674
    %677 = vadd.xlane.f32.xlu0 %v675
    %v678 = vpop.xlane.xlu0 %677
    %679 = vadd.xlane.f32.xlu0 %v676
    %v680 = vpop.xlane.xlu0 %679
    %v681 = vmul.f32 %v678, %v399
    %v682 = vmul.f32 %v680, %v399
    %v683 = vadd.f32 %v681, 1e-05
    %v684 = vadd.f32 %v682, 1e-05
    %v685 = vrsqrt.pop %v683
    %v686 = vrsqrt.pop %v684
    %v687 = vmul.f32 %v673, %v685
    %v688 = vmul.f32 %v674, %v686
    %v689 = vlaneseq
    %v690 = vshrl.u32 %v689, 7
    %v691 = vsub.s32 0, %v690
    %v692 = vrot.slane %v480, %v691
    %v693 = vmul.f32 %v687, %v692
    %v694 = vmul.f32 %v688, %v692
    %v695 = vlaneseq
    %v696 = vshrl.u32 %v695, 7
    %v697 = vsub.s32 0, %v696
    %v698 = vrot.slane %v481, %v697
    %v699 = vadd.f32 %v693, %v698
    %v700 = vadd.f32 %v694, %v698
    %v701 = vld [vmem:[%s3 + $0x18] sm:$0xf]
    %v702 = vld [vmem:[%s3 + $0x1c] sm:$0xf]
    %v703 = vld [vmem:[%s2] sm:$0x3]
    %v704 = vpack.c.bf16 %v703, %v703
    %v705 = vld [vmem:[%s11 + $0xd] sm:$0x1]
    %v706 = vlaneseq
    %v707 = vshrl.u32 %v706, 7
    %v708 = vsub.s32 0, %v707
    %v709 = vrot.slane %v705, %v708
    %v712 = vunpack.c.l.b16 %v701
    %v713 = vunpack.c.l.b16 %v702
    %v714 = vpack.c.b16 %v713, %v712
    %vm716 = vcmask 130048
    %v718 = vsel %vm716, %v704, 0
    %720 = vmatprep.subr.bf16.mxu0 0
    %721 = vmatpush1.bf16.msra.mxu0 %v714
    %722 = vmatprep.subr.bf16.mxu0 0
    %723 = vmatpush1.bf16.msra.mxu0 0
    %724 = vmatprep.subr.bf16.mxu0 0
    %725 = vmatpush1.bf16.msra.mxu0 0
    %726 = vmatprep.subr.bf16.mxu0 0
    %727 = vmatpush1.bf16.msra.mxu0 0
    %728 = vmatprep.subr.bf16.mxu0 0
    %729 = vmatpush1.bf16.msra.mxu0 0
    %730 = vmatprep.subr.bf16.mxu0 0
    %731 = vmatpush1.bf16.msra.mxu0 0
    %732 = vmatprep.subr.bf16.mxu0 0
    %733 = vmatpush1.bf16.msra.mxu0 0
    %734 = vmatprep.subr.bf16.mxu0 0
    %735 = vmatpush1.bf16.msra.mxu0 0
    %736 = vmatprep.subr.bf16.mxu0 0
    %737 = vmatpush1.bf16.msra.mxu0 0
    %738 = vmatprep.subr.bf16.mxu0 0
    %739 = vmatpush1.bf16.msra.mxu0 0
    %740 = vmatprep.subr.bf16.mxu0 0
    %741 = vmatpush1.bf16.msra.mxu0 0
    %742 = vmatprep.subr.bf16.mxu0 0
    %743 = vmatpush1.bf16.msra.mxu0 0
    %744 = vmatprep.subr.bf16.mxu0 0
    %745 = vmatpush1.bf16.msra.mxu0 0
    %746 = vmatprep.subr.bf16.mxu0 0
    %747 = vmatpush1.bf16.msra.mxu0 0
    %748 = vmatprep.subr.bf16.mxu0 0
    %749 = vmatpush1.bf16.msra.mxu0 0
    %750 = vmatprep.subr.bf16.mxu0 0
    %751 = vmatpush1.bf16.msra.mxu0 0
    %752 = vmatprep.mubr.bf16.mxu0 0
    %753 = vmatmul.mubr.bf16.gmra.mrb[0].mxu0 %v718
    %v754 = vpop.f32.mrb[0].mxu0
    %v755 = vadd.f32 %v709, %v754
    %v756 = vpop.f32.mrb[0].mxu0
    %v757 = vpop.f32.mrb[0].mxu0
    %v758 = vpop.f32.mrb[0].mxu0
    %759 = vdwg.mxu0
    %v760 = vmax.f32 %v755, 0.0
    %v761 = vld [vmem:[%s4 + $0xc0] sm:$0xf]
    %v762 = vld [vmem:[%s4 + $0xc4] sm:$0xf]
    %v763 = vld [vmem:[%s4 + $0xc8] sm:$0xf]
    %v764 = vld [vmem:[%s4 + $0xcc] sm:$0xf]
    %v765 = vld [vmem:[%s4 + $0xd0] sm:$0xf]
    %v766 = vld [vmem:[%s4 + $0xd4] sm:$0xf]
    %v767 = vld [vmem:[%s4 + $0xd8] sm:$0xf]
    %v768 = vld [vmem:[%s4 + $0xdc] sm:$0xf]
    %v769 = vpack.c.bf16 %v760, %v760
    %v770 = vld [vmem:[%s11 + $0x8] sm:$0x1]
    %v771 = vlaneseq
    %v772 = vshrl.u32 %v771, 7
    %v773 = vsub.s32 0, %v772
    %v774 = vrot.slane %v770, %v773
    %v783 = vunpack.c.l.b16 %v761
    %v784 = vunpack.c.l.b16 %v762
    %v785 = vunpack.c.l.b16 %v763
    %v786 = vunpack.c.l.b16 %v764
    %v787 = vunpack.c.l.b16 %v765
    %v788 = vunpack.c.l.b16 %v766
    %v789 = vunpack.c.l.b16 %v767
    %v790 = vunpack.c.l.b16 %v768
    %v791 = vpack.c.b16 %v784, %v783
    %v792 = vpack.c.b16 %v786, %v785
    %v793 = vpack.c.b16 %v788, %v787
    %v794 = vpack.c.b16 %v790, %v789
    %v800 = vsel %vm196, %v769, 0
    %802 = vmatprep.subr.bf16.mxu0 0
    %803 = vmatpush1.bf16.msra.mxu0 %v791
    %804 = vmatprep.subr.bf16.mxu0 0
    %805 = vmatpush1.bf16.msra.mxu0 %v792
    %806 = vmatprep.subr.bf16.mxu0 0
    %807 = vmatpush1.bf16.msra.mxu0 %v793
    %808 = vmatprep.subr.bf16.mxu0 0
    %809 = vmatpush1.bf16.msra.mxu0 %v794
    %810 = vmatprep.subr.bf16.mxu0 0
    %811 = vmatpush1.bf16.msra.mxu0 0
    %812 = vmatprep.subr.bf16.mxu0 0
    %813 = vmatpush1.bf16.msra.mxu0 0
    %814 = vmatprep.subr.bf16.mxu0 0
    %815 = vmatpush1.bf16.msra.mxu0 0
    %816 = vmatprep.subr.bf16.mxu0 0
    %817 = vmatpush1.bf16.msra.mxu0 0
    %818 = vmatprep.subr.bf16.mxu0 0
    %819 = vmatpush1.bf16.msra.mxu0 0
    %820 = vmatprep.subr.bf16.mxu0 0
    %821 = vmatpush1.bf16.msra.mxu0 0
    %822 = vmatprep.subr.bf16.mxu0 0
    %823 = vmatpush1.bf16.msra.mxu0 0
    %824 = vmatprep.subr.bf16.mxu0 0
    %825 = vmatpush1.bf16.msra.mxu0 0
    %826 = vmatprep.subr.bf16.mxu0 0
    %827 = vmatpush1.bf16.msra.mxu0 0
    %828 = vmatprep.subr.bf16.mxu0 0
    %829 = vmatpush1.bf16.msra.mxu0 0
    %830 = vmatprep.subr.bf16.mxu0 0
    %831 = vmatpush1.bf16.msra.mxu0 0
    %832 = vmatprep.subr.bf16.mxu0 0
    %833 = vmatpush1.bf16.msra.mxu0 0
    %834 = vmatprep.mubr.bf16.mxu0 0
    %835 = vmatmul.mubr.bf16.gmra.mrb[0].mxu0 %v800
    %v836 = vpop.f32.mrb[0].mxu0
    %v837 = vadd.f32 %v774, %v836
    %v838 = vpop.f32.mrb[0].mxu0
    %v839 = vpop.f32.mrb[0].mxu0
    %v840 = vpop.f32.mrb[0].mxu0
    %841 = vdwg.mxu0
    %v842 = vmax.f32 %v837, 0.0
    %v843 = vld [vmem:[%s4 + $0xe0] sm:$0xf]
    %v844 = vld [vmem:[%s4 + $0xe4] sm:$0xf]
    %v845 = vld [vmem:[%s4 + $0xe8] sm:$0xf]
    %v846 = vld [vmem:[%s4 + $0xec] sm:$0xf]
    %v847 = vld [vmem:[%s4 + $0xf0] sm:$0xf]
    %v848 = vld [vmem:[%s4 + $0xf4] sm:$0xf]
    %v849 = vld [vmem:[%s4 + $0xf8] sm:$0xf]
    %v850 = vld [vmem:[%s4 + $0xfc] sm:$0xf]
    %v851 = vld [vmem:[%s4 + $0x100] sm:$0xf]
    %v852 = vld [vmem:[%s4 + $0x104] sm:$0xf]
    %v853 = vld [vmem:[%s4 + $0x108] sm:$0xf]
    %v854 = vld [vmem:[%s4 + $0x10c] sm:$0xf]
    %v855 = vld [vmem:[%s4 + $0x110] sm:$0xf]
    %v856 = vld [vmem:[%s4 + $0x114] sm:$0xf]
    %v857 = vld [vmem:[%s4 + $0x118] sm:$0xf]
    %v858 = vld [vmem:[%s4 + $0x11c] sm:$0xf]
    %v859 = vpack.c.bf16 %v842, %v842
    %v860 = vld [vmem:[%s11 + $0x9] sm:$0x1]
    %v861 = vlaneseq
    %v862 = vshrl.u32 %v861, 7
    %v863 = vsub.s32 0, %v862
    %v864 = vrot.slane %v860, %v863
    %v881 = vunpack.c.l.b16 %v843
    %v882 = vunpack.c.l.b16 %v844
    %v883 = vunpack.c.l.b16 %v845
    %v884 = vunpack.c.l.b16 %v846
    %v885 = vunpack.c.l.b16 %v847
    %v886 = vunpack.c.l.b16 %v848
    %v887 = vunpack.c.l.b16 %v849
    %v888 = vunpack.c.l.b16 %v850
    %v889 = vunpack.c.l.b16 %v851
    %v890 = vunpack.c.l.b16 %v852
    %v891 = vunpack.c.l.b16 %v853
    %v892 = vunpack.c.l.b16 %v854
    %v893 = vunpack.c.l.b16 %v855
    %v894 = vunpack.c.l.b16 %v856
    %v895 = vunpack.c.l.b16 %v857
    %v896 = vunpack.c.l.b16 %v858
    %v897 = vpack.c.b16 %v882, %v881
    %v898 = vpack.c.b16 %v884, %v883
    %v899 = vpack.c.b16 %v886, %v885
    %v900 = vpack.c.b16 %v888, %v887
    %v901 = vpack.c.b16 %v890, %v889
    %v902 = vpack.c.b16 %v892, %v891
    %v903 = vpack.c.b16 %v894, %v893
    %v904 = vpack.c.b16 %v896, %v895
    %913 = vmatprep.subr.bf16.mxu0 0
    %914 = vmatpush1.bf16.msra.mxu0 %v897
    %915 = vmatprep.subr.bf16.mxu0 0
    %916 = vmatpush1.bf16.msra.mxu0 %v898
    %917 = vmatprep.subr.bf16.mxu0 0
    %918 = vmatpush1.bf16.msra.mxu0 %v899
    %919 = vmatprep.subr.bf16.mxu0 0
    %920 = vmatpush1.bf16.msra.mxu0 %v900
    %921 = vmatprep.subr.bf16.mxu0 0
    %922 = vmatpush1.bf16.msra.mxu0 %v901
    %923 = vmatprep.subr.bf16.mxu0 0
    %924 = vmatpush1.bf16.msra.mxu0 %v902
    %925 = vmatprep.subr.bf16.mxu0 0
    %926 = vmatpush1.bf16.msra.mxu0 %v903
    %927 = vmatprep.subr.bf16.mxu0 0
    %928 = vmatpush1.bf16.msra.mxu0 %v904
    %929 = vmatprep.subr.bf16.mxu0 0
    %930 = vmatpush1.bf16.msra.mxu0 0
    %931 = vmatprep.subr.bf16.mxu0 0
    %932 = vmatpush1.bf16.msra.mxu0 0
    %933 = vmatprep.subr.bf16.mxu0 0
    %934 = vmatpush1.bf16.msra.mxu0 0
    %935 = vmatprep.subr.bf16.mxu0 0
    %936 = vmatpush1.bf16.msra.mxu0 0
    %937 = vmatprep.subr.bf16.mxu0 0
    %938 = vmatpush1.bf16.msra.mxu0 0
    %939 = vmatprep.subr.bf16.mxu0 0
    %940 = vmatpush1.bf16.msra.mxu0 0
    %941 = vmatprep.subr.bf16.mxu0 0
    %942 = vmatpush1.bf16.msra.mxu0 0
    %943 = vmatprep.subr.bf16.mxu0 0
    %944 = vmatpush1.bf16.msra.mxu0 0
    %945 = vmatprep.mubr.bf16.mxu0 0
    %946 = vmatmul.mubr.bf16.gmra.mrb[0].mxu0 %v859
    %v947 = vpop.f32.mrb[0].mxu0
    %v948 = vadd.f32 %v864, %v947
    %v949 = vpop.f32.mrb[0].mxu0
    %v950 = vpop.f32.mrb[0].mxu0
    %v951 = vpop.f32.mrb[0].mxu0
    %952 = vdwg.mxu0
    %v953 = vld [vmem:[%s11 + $0xa] sm:$0x1]
    %v954 = vld [vmem:[%s11 + $0xb] sm:$0x1]
    %vm955 = vcmask 1041408
    %v956 = vsel %vm955, %v948, 0.0
    %957 = vadd.xlane.f32.xlu0 %v956
    %v958 = vpop.xlane.xlu0 %957
    %v959 = vmul.f32 %v958, %v399
    %v960 = vsub.f32 %v948, %v959
    %v961 = vmul.f32 %v960, %v960
    %v962 = vsel %vm955, %v961, 0.0
    %963 = vadd.xlane.f32.xlu0 %v962
    %v964 = vpop.xlane.xlu0 %963
    %v965 = vmul.f32 %v964, %v399
    %v966 = vadd.f32 %v965, 1e-05
    %v967 = vrsqrt.pop %v966
    %v968 = vmul.f32 %v960, %v967
    %v969 = vlaneseq
    %v970 = vshrl.u32 %v969, 7
    %v971 = vsub.s32 0, %v970
    %v972 = vrot.slane %v953, %v971
    %v973 = vmul.f32 %v968, %v972
    %v974 = vlaneseq
    %v975 = vshrl.u32 %v974, 7
    %v976 = vsub.s32 0, %v975
    %v977 = vrot.slane %v954, %v976
    %v978 = vadd.f32 %v973, %v977
    %v979 = vlaneseq
    %v980 = vshrl.u32 %v979, 7
    %v981 = vadd.s32 %v980, 8
    %v982 = vadd.s32 %v980, 16
    %v983 = vadd.s32 %v980, 24
    %v984 = vadd.s32 %v980, 32
    %v985 = vadd.s32 %v980, 40
    %vm986 = vcmp.lt.s32.totalorder %v980, 32
    %vm987 = vcmp.lt.s32.totalorder %v981, 32
    %vm988 = vcmp.lt.s32.totalorder %v982, 32
    %vm989 = vcmp.lt.s32.totalorder %v983, 32
    %vm990 = vcmp.lt.s32.totalorder %v984, 32
    %vm991 = vcmp.lt.s32.totalorder %v985, 32
    %v992 = vsel %vm986, 1, 0
    %v993 = vsel %vm987, 1, 0
    %v994 = vsel %vm988, 1, 0
    %v995 = vsel %vm989, 1, 0
    %v996 = vsel %vm990, 1, 0
    %v997 = vsel %vm991, 1, 0
    %vm998 = vcmp.eq.s32.totalorder %v992, 1
    %vm999 = vcmp.eq.s32.totalorder %v993, 1
    %vm1000 = vcmp.eq.s32.totalorder %v994, 1
    %vm1001 = vcmp.eq.s32.totalorder %v995, 1
    %vm1002 = vcmp.eq.s32.totalorder %v996, 1
    %vm1003 = vcmp.eq.s32.totalorder %v997, 1
    %v1004 = vlaneseq
    %v1005 = vshrl.u32 %v1004, 7
    %v1006 = vsub.s32 0, %v1005
    %v1007 = vrot.slane %v978, %v1006
    %v1008 = vlaneseq
    %v1009 = vshrl.u32 %v1008, 7
    %v1010 = vsub.s32 1, %v1009
    %v1011 = vrot.slane %v978, %v1010
    %v1012 = vsel %vm998, %v1007, %v1011
    %v1013 = vsel %vm999, %v1007, %v1011
    %v1014 = vsel %vm1000, %v1007, %v1011
    %v1015 = vsel %vm1001, %v1007, %v1011
    %v1016 = vsel %vm1002, %v1007, %v1011
    %v1017 = vsel %vm1003, %v1007, %v1011
    %v1018 = vadd.f32 %v448, %v1012
    %v1019 = vadd.f32 %v449, %v1013
    %v1020 = vadd.f32 %v450, %v1014
    %v1021 = vadd.f32 %v451, %v1015
    %v1022 = vadd.f32 %v699, %v1016
    %v1023 = vadd.f32 %v700, %v1017
    %v1024 = vld [vmem:[%s11 + $0xe] sm:$0x1]
    %v1025 = vld [vmem:[%s11 + $0xf] sm:$0x1]
    %1026 = vadd.xlane.f32.xlu0 %v1018
    %v1027 = vpop.xlane.xlu0 %1026
    %1028 = vadd.xlane.f32.xlu0 %v1019
    %v1029 = vpop.xlane.xlu0 %1028
    %1030 = vadd.xlane.f32.xlu0 %v1020
    %v1031 = vpop.xlane.xlu0 %1030
    %1032 = vadd.xlane.f32.xlu0 %v1021
    %v1033 = vpop.xlane.xlu0 %1032
    %1034 = vadd.xlane.f32.xlu0 %v1022
    %v1035 = vpop.xlane.xlu0 %1034
    %1036 = vadd.xlane.f32.xlu0 %v1023
    %v1037 = vpop.xlane.xlu0 %1036
    %v1038 = vmul.f32 %v1027, %v399
    %v1039 = vmul.f32 %v1029, %v399
    %v1040 = vmul.f32 %v1031, %v399
    %v1041 = vmul.f32 %v1033, %v399
    %v1042 = vmul.f32 %v1035, %v399
    %v1043 = vmul.f32 %v1037, %v399
    %v1044 = vsub.f32 %v1018, %v1038
    %v1045 = vsub.f32 %v1019, %v1039
    %v1046 = vsub.f32 %v1020, %v1040
    %v1047 = vsub.f32 %v1021, %v1041
    %v1048 = vsub.f32 %v1022, %v1042
    %v1049 = vsub.f32 %v1023, %v1043
    %v1050 = vmul.f32 %v1044, %v1044
    %v1051 = vmul.f32 %v1045, %v1045
    %v1052 = vmul.f32 %v1046, %v1046
    %v1053 = vmul.f32 %v1047, %v1047
    %v1054 = vmul.f32 %v1048, %v1048
    %v1055 = vmul.f32 %v1049, %v1049
    %1056 = vadd.xlane.f32.xlu0 %v1050
    %v1057 = vpop.xlane.xlu0 %1056
    %1058 = vadd.xlane.f32.xlu0 %v1051
    %v1059 = vpop.xlane.xlu0 %1058
    %1060 = vadd.xlane.f32.xlu0 %v1052
    %v1061 = vpop.xlane.xlu0 %1060
    %1062 = vadd.xlane.f32.xlu0 %v1053
    %v1063 = vpop.xlane.xlu0 %1062
    %1064 = vadd.xlane.f32.xlu0 %v1054
    %v1065 = vpop.xlane.xlu0 %1064
    %1066 = vadd.xlane.f32.xlu0 %v1055
    %v1067 = vpop.xlane.xlu0 %1066
    %v1068 = vmul.f32 %v1057, %v399
    %v1069 = vmul.f32 %v1059, %v399
    %v1070 = vmul.f32 %v1061, %v399
    %v1071 = vmul.f32 %v1063, %v399
    %v1072 = vmul.f32 %v1065, %v399
    %v1073 = vmul.f32 %v1067, %v399
    %v1074 = vadd.f32 %v1068, 1e-05
    %v1075 = vadd.f32 %v1069, 1e-05
    %v1076 = vadd.f32 %v1070, 1e-05
    %v1077 = vadd.f32 %v1071, 1e-05
    %v1078 = vadd.f32 %v1072, 1e-05
    %v1079 = vadd.f32 %v1073, 1e-05
    %v1080 = vrsqrt.pop %v1074
    %v1081 = vrsqrt.pop %v1075
    %v1082 = vrsqrt.pop %v1076
    %v1083 = vrsqrt.pop %v1077
    %v1084 = vrsqrt.pop %v1078
    %v1085 = vrsqrt.pop %v1079
    %v1086 = vmul.f32 %v1044, %v1080
    %v1087 = vmul.f32 %v1045, %v1081
    %v1088 = vmul.f32 %v1046, %v1082
    %v1089 = vmul.f32 %v1047, %v1083
    %v1090 = vmul.f32 %v1048, %v1084
    %v1091 = vmul.f32 %v1049, %v1085
    %v1092 = vlaneseq
    %v1093 = vshrl.u32 %v1092, 7
    %v1094 = vsub.s32 0, %v1093
    %v1095 = vrot.slane %v1024, %v1094
    %v1096 = vmul.f32 %v1086, %v1095
    %v1097 = vmul.f32 %v1087, %v1095
    %v1098 = vmul.f32 %v1088, %v1095
    %v1099 = vmul.f32 %v1089, %v1095
    %v1100 = vmul.f32 %v1090, %v1095
    %v1101 = vmul.f32 %v1091, %v1095
    %v1102 = vlaneseq
    %v1103 = vshrl.u32 %v1102, 7
    %v1104 = vsub.s32 0, %v1103
    %v1105 = vrot.slane %v1025, %v1104
    %v1106 = vadd.f32 %v1096, %v1105
    %v1107 = vadd.f32 %v1097, %v1105
    %v1108 = vadd.f32 %v1098, %v1105
    %v1109 = vadd.f32 %v1099, %v1105
    %v1110 = vadd.f32 %v1100, %v1105
    %v1111 = vadd.f32 %v1101, %v1105
    %v1112 = vlaneseq
    %v1113 = vand.u32 %v1112, 127
    %vm1114 = vcmp.ge.s32.totalorder %v980, 16
    %vm1115 = vcmp.ge.s32.totalorder %v981, 16
    %vm1116 = vcmp.ge.s32.totalorder %v982, 16
    %vm1117 = vcmp.ge.s32.totalorder %v983, 16
    %vm1118 = vcmp.ge.s32.totalorder %v984, 16
    %vm1119 = vcmp.ge.s32.totalorder %v985, 16
    %vm1120 = vmand %vm1114, %vm986
    %vm1121 = vmand %vm1115, %vm987
    %vm1122 = vmand %vm1116, %vm988
    %vm1123 = vmand %vm1117, %vm989
    %vm1124 = vmand %vm1118, %vm990
    %vm1125 = vmand %vm1119, %vm991
    %v1126 = vsel %vm1120, 1, 0
    %v1127 = vsel %vm1121, 1, 0
    %v1128 = vsel %vm1122, 1, 0
    %v1129 = vsel %vm1123, 1, 0
    %v1130 = vsel %vm1124, 1, 0
    %v1131 = vsel %vm1125, 1, 0
    %vm1132 = vcmp.ge.s32.totalorder %v980, 32
    %vm1133 = vcmp.ge.s32.totalorder %v981, 32
    %vm1134 = vcmp.ge.s32.totalorder %v982, 32
    %vm1135 = vcmp.ge.s32.totalorder %v983, 32
    %vm1136 = vcmp.ge.s32.totalorder %v984, 32
    %vm1137 = vcmp.ge.s32.totalorder %v985, 32
    %vm1138 = vcmp.lt.s32.totalorder %v980, 40
    %vm1139 = vcmp.lt.s32.totalorder %v981, 40
    %vm1140 = vcmp.lt.s32.totalorder %v982, 40
    %vm1141 = vcmp.lt.s32.totalorder %v983, 40
    %vm1142 = vcmp.lt.s32.totalorder %v984, 40
    %vm1143 = vcmp.lt.s32.totalorder %v985, 40
    %vm1144 = vmand %vm1132, %vm1138
    %vm1145 = vmand %vm1133, %vm1139
    %vm1146 = vmand %vm1134, %vm1140
    %vm1147 = vmand %vm1135, %vm1141
    %vm1148 = vmand %vm1136, %vm1142
    %vm1149 = vmand %vm1137, %vm1143
    %v1150 = vsel %vm1144, 2, %v1126
    %v1151 = vsel %vm1145, 2, %v1127
    %v1152 = vsel %vm1146, 2, %v1128
    %v1153 = vsel %vm1147, 2, %v1129
    %v1154 = vsel %vm1148, 2, %v1130
    %v1155 = vsel %vm1149, 2, %v1131
    %vm1156 = vcmp.ge.s32.totalorder %v980, 40
    %vm1157 = vcmp.ge.s32.totalorder %v981, 40
    %vm1158 = vcmp.ge.s32.totalorder %v982, 40
    %vm1159 = vcmp.ge.s32.totalorder %v983, 40
    %vm1160 = vcmp.ge.s32.totalorder %v984, 40
    %vm1161 = vcmp.ge.s32.totalorder %v985, 40
    %vm1162 = vcmp.lt.s32.totalorder %v980, 48
    %vm1163 = vcmp.lt.s32.totalorder %v981, 48
    %vm1164 = vcmp.lt.s32.totalorder %v982, 48
    %vm1165 = vcmp.lt.s32.totalorder %v983, 48
    %vm1166 = vcmp.lt.s32.totalorder %v984, 48
    %vm1167 = vcmp.lt.s32.totalorder %v985, 48
    %vm1168 = vmand %vm1156, %vm1162
    %vm1169 = vmand %vm1157, %vm1163
    %vm1170 = vmand %vm1158, %vm1164
    %vm1171 = vmand %vm1159, %vm1165
    %vm1172 = vmand %vm1160, %vm1166
    %vm1173 = vmand %vm1161, %vm1167
    %v1174 = vsel %vm1168, 3, %v1150
    %v1175 = vsel %vm1169, 3, %v1151
    %v1176 = vsel %vm1170, 3, %v1152
    %v1177 = vsel %vm1171, 3, %v1153
    %v1178 = vsel %vm1172, 3, %v1154
    %v1179 = vsel %vm1173, 3, %v1155
    %vm1180 = vcmp.ge.s32.totalorder %v1113, 16
    %vm1181 = vcmp.lt.s32.totalorder %v1113, 32
    %vm1182 = vmand %vm1180, %vm1181
    %v1183 = vsel %vm1182, 1, 0
    %vm1184 = vcmp.ge.s32.totalorder %v1113, 32
    %vm1185 = vcmp.lt.s32.totalorder %v1113, 40
    %vm1186 = vmand %vm1184, %vm1185
    %v1187 = vsel %vm1186, 2, %v1183
    %vm1188 = vcmp.ge.s32.totalorder %v1113, 40
    %vm1189 = vcmp.lt.s32.totalorder %v1113, 48
    %vm1190 = vmand %vm1188, %vm1189
    %v1191 = vsel %vm1190, 3, %v1187
    %vm1192 = vcmp.eq.s32.totalorder %v1174, %v1191
    %vm1193 = vcmp.eq.s32.totalorder %v1175, %v1191
    %vm1194 = vcmp.eq.s32.totalorder %v1176, %v1191
    %vm1195 = vcmp.eq.s32.totalorder %v1177, %v1191
    %vm1196 = vcmp.eq.s32.totalorder %v1178, %v1191
    %vm1197 = vcmp.eq.s32.totalorder %v1179, %v1191
    %v1198 = vsel %vm1192, 0.0, -1e+30
    %v1199 = vsel %vm1193, 0.0, -1e+30
    %v1200 = vsel %vm1194, 0.0, -1e+30
    %v1201 = vsel %vm1195, 0.0, -1e+30
    %v1202 = vsel %vm1196, 0.0, -1e+30
    %v1203 = vsel %vm1197, 0.0, -1e+30
    %v1204 = vld [vmem:[%s11 + $0x10] sm:$0x1]
    %v1205 = vld [vmem:[%s11 + $0x11] sm:$0x1]
    %v1206 = vld [vmem:[%s11 + $0x12] sm:$0x1]
    %v1207 = vld [vmem:[%s11 + $0x13] sm:$0x1]
    %v1208 = vld [vmem:[%s11 + $0x14] sm:$0x1]
    %v1209 = vld [vmem:[%s11 + $0x15] sm:$0x1]
    %v1210 = vld [vmem:[%s5] sm:$0xff]
    %v1211 = vld [vmem:[%s5 + $0x8] sm:$0xf]
    %v1212 = vld [vmem:[%s5 + $0xc] sm:$0xff]
    %v1213 = vld [vmem:[%s5 + $0x14] sm:$0xf]
    %v1214 = vld [vmem:[%s5 + $0x18] sm:$0xff]
    %v1215 = vld [vmem:[%s5 + $0x20] sm:$0xf]
    %v1216 = vld [vmem:[%s5 + $0x24] sm:$0xff]
    %v1217 = vld [vmem:[%s5 + $0x2c] sm:$0xf]
    %v1218 = vld [vmem:[%s5 + $0x30] sm:$0xff]
    %v1219 = vld [vmem:[%s5 + $0x38] sm:$0xf]
    %v1220 = vld [vmem:[%s5 + $0x3c] sm:$0xff]
    %v1221 = vld [vmem:[%s5 + $0x44] sm:$0xf]
    %v1222 = vld [vmem:[%s5 + $0x48] sm:$0xff]
    %v1223 = vld [vmem:[%s5 + $0x50] sm:$0xf]
    %v1224 = vld [vmem:[%s5 + $0x54] sm:$0xff]
    %v1225 = vld [vmem:[%s5 + $0x5c] sm:$0xf]
    %v1226 = vld [vmem:[%s5 + $0x60] sm:$0xff]
    %v1227 = vld [vmem:[%s5 + $0x68] sm:$0xf]
    %v1228 = vld [vmem:[%s5 + $0x6c] sm:$0xff]
    %v1229 = vld [vmem:[%s5 + $0x74] sm:$0xf]
    %v1230 = vld [vmem:[%s5 + $0x78] sm:$0xff]
    %v1231 = vld [vmem:[%s5 + $0x80] sm:$0xf]
    %v1232 = vld [vmem:[%s5 + $0x84] sm:$0xff]
    %v1233 = vld [vmem:[%s5 + $0x8c] sm:$0xf]
    %v1234 = vld [vmem:[%s5 + $0x90] sm:$0xff]
    %v1235 = vld [vmem:[%s5 + $0x98] sm:$0xf]
    %v1236 = vld [vmem:[%s5 + $0x9c] sm:$0xff]
    %v1237 = vld [vmem:[%s5 + $0xa4] sm:$0xf]
    %v1238 = vld [vmem:[%s5 + $0xa8] sm:$0xff]
    %v1239 = vld [vmem:[%s5 + $0xb0] sm:$0xf]
    %v1240 = vld [vmem:[%s5 + $0xb4] sm:$0xff]
    %v1241 = vld [vmem:[%s5 + $0xbc] sm:$0xf]
    %v1242 = vld [vmem:[%s6] sm:$0xf]
    %v1243 = vld [vmem:[%s6 + $0x4] sm:$0xf]
    %v1244 = vld [vmem:[%s6 + $0x8] sm:$0xf]
    %v1245 = vld [vmem:[%s6 + $0xc] sm:$0xf]
    %v1246 = vld [vmem:[%s6 + $0x10] sm:$0xf]
    %v1247 = vld [vmem:[%s6 + $0x14] sm:$0xf]
    %v1248 = vld [vmem:[%s6 + $0x18] sm:$0xf]
    %v1249 = vld [vmem:[%s6 + $0x1c] sm:$0xf]
    %v1250 = vld [vmem:[%s6 + $0x20] sm:$0xf]
    %v1251 = vld [vmem:[%s6 + $0x24] sm:$0xf]
    %v1252 = vld [vmem:[%s6 + $0x28] sm:$0xf]
    %v1253 = vld [vmem:[%s6 + $0x2c] sm:$0xf]
    %v1254 = vld [vmem:[%s6 + $0x30] sm:$0xf]
    %v1255 = vld [vmem:[%s6 + $0x34] sm:$0xf]
    %v1256 = vld [vmem:[%s6 + $0x38] sm:$0xf]
    %v1257 = vld [vmem:[%s6 + $0x3c] sm:$0xf]
    %v1258 = vld [vmem:[%s7] sm:$0xff]
    %v1259 = vld [vmem:[%s7 + $0x8] sm:$0xff]
    %v1260 = vld [vmem:[%s7 + $0x10] sm:$0xff]
    %v1261 = vld [vmem:[%s7 + $0x18] sm:$0xff]
    %v1262 = vld [vmem:[%s7 + $0x20] sm:$0xff]
    %v1263 = vld [vmem:[%s7 + $0x28] sm:$0xff]
    %v1264 = vld [vmem:[%s7 + $0x30] sm:$0xff]
    %v1265 = vld [vmem:[%s7 + $0x38] sm:$0xff]
    %v1266 = vld [vmem:[%s7 + $0x40] sm:$0xff]
    %v1267 = vld [vmem:[%s7 + $0x48] sm:$0xff]
    %v1268 = vld [vmem:[%s7 + $0x50] sm:$0xff]
    %v1269 = vld [vmem:[%s7 + $0x58] sm:$0xff]
    %v1270 = vld [vmem:[%s7 + $0x60] sm:$0xff]
    %v1271 = vld [vmem:[%s7 + $0x68] sm:$0xff]
    %v1272 = vld [vmem:[%s7 + $0x70] sm:$0xff]
    %v1273 = vld [vmem:[%s7 + $0x78] sm:$0xff]
    %v1274 = vld [vmem:[%s8] sm:$0xf]
    %v1275 = vld [vmem:[%s8 + $0x4] sm:$0xf]
    %v1276 = vld [vmem:[%s8 + $0x8] sm:$0xf]
    %v1277 = vld [vmem:[%s8 + $0xc] sm:$0xf]
    %v1278 = vld [vmem:[%s8 + $0x10] sm:$0xf]
    %v1279 = vld [vmem:[%s8 + $0x14] sm:$0xf]
    %v1280 = vld [vmem:[%s8 + $0x18] sm:$0xf]
    %v1281 = vld [vmem:[%s8 + $0x1c] sm:$0xf]
    %v1282 = vld [vmem:[%s8 + $0x20] sm:$0xf]
    %v1283 = vld [vmem:[%s8 + $0x24] sm:$0xf]
    %v1284 = vld [vmem:[%s8 + $0x28] sm:$0xf]
    %v1285 = vld [vmem:[%s8 + $0x2c] sm:$0xf]
    %v1286 = vld [vmem:[%s8 + $0x30] sm:$0xf]
    %v1287 = vld [vmem:[%s8 + $0x34] sm:$0xf]
    %v1288 = vld [vmem:[%s8 + $0x38] sm:$0xf]
    %v1289 = vld [vmem:[%s8 + $0x3c] sm:$0xf]
    %v1290 = vld [vmem:[%s8 + $0x40] sm:$0xf]
    %v1291 = vld [vmem:[%s8 + $0x44] sm:$0xf]
    %v1292 = vld [vmem:[%s8 + $0x48] sm:$0xf]
    %v1293 = vld [vmem:[%s8 + $0x4c] sm:$0xf]
    %v1294 = vld [vmem:[%s8 + $0x50] sm:$0xf]
    %v1295 = vld [vmem:[%s8 + $0x54] sm:$0xf]
    %v1296 = vld [vmem:[%s8 + $0x58] sm:$0xf]
    %v1297 = vld [vmem:[%s8 + $0x5c] sm:$0xf]
    %v1298 = vld [vmem:[%s8 + $0x60] sm:$0xf]
    %v1299 = vld [vmem:[%s8 + $0x64] sm:$0xf]
    %v1300 = vld [vmem:[%s8 + $0x68] sm:$0xf]
    %v1301 = vld [vmem:[%s8 + $0x6c] sm:$0xf]
    %v1302 = vld [vmem:[%s8 + $0x70] sm:$0xf]
    %v1303 = vld [vmem:[%s8 + $0x74] sm:$0xf]
    %v1304 = vld [vmem:[%s8 + $0x78] sm:$0xf]
    %v1305 = vld [vmem:[%s8 + $0x7c] sm:$0xf]
    %v1306 = vld [vmem:[%s9] ss:$2 sm:$0x7]
    %v1307 = vld [vmem:[%s10] ss:$2 sm:$0x3]
    %v1308 = vpack.c.bf16 %v1107, %v1106
    %v1309 = vpack.c.bf16 %v1109, %v1108
    %v1310 = vpack.c.bf16 %v1111, %v1110
    %v1312 = vlaneseq
    %v1313 = vshrl.u32 %v1312, 7
    %v1314 = vsub.s32 0, %v1313
    %v1315 = vrot.slane %v1306, %v1314
    %v1316 = vlaneseq
    %v1317 = vshrl.u32 %v1316, 7
    %v1318 = vsub.s32 1, %v1317
    %v1319 = vrot.slane %v1306, %v1318
    %v1320 = vlaneseq
    %v1321 = vshrl.u32 %v1320, 7
    %v1322 = vsub.s32 2, %v1321
    %v1323 = vrot.slane %v1306, %v1322
    %v1359 = vunpack.c.l.b16 %v1210
    %v1360 = vunpack.c.h.b16 %v1210
    %v1361 = vunpack.c.l.b16 %v1211
    %v1362 = vunpack.c.l.b16 %v1212
    %v1363 = vunpack.c.h.b16 %v1212
    %v1364 = vunpack.c.l.b16 %v1213
    %v1365 = vunpack.c.l.b16 %v1214
    %v1366 = vunpack.c.h.b16 %v1214
    %v1367 = vunpack.c.l.b16 %v1215
    %v1368 = vunpack.c.l.b16 %v1216
    %v1369 = vunpack.c.h.b16 %v1216
    %v1370 = vunpack.c.l.b16 %v1217
    %v1371 = vunpack.c.l.b16 %v1218
    %v1372 = vunpack.c.h.b16 %v1218
    %v1373 = vunpack.c.l.b16 %v1219
    %v1374 = vunpack.c.l.b16 %v1220
    %v1375 = vunpack.c.h.b16 %v1220
    %v1376 = vunpack.c.l.b16 %v1221
    %v1377 = vunpack.c.l.b16 %v1222
    %v1378 = vunpack.c.h.b16 %v1222
    %v1379 = vunpack.c.l.b16 %v1223
    %v1380 = vunpack.c.l.b16 %v1224
    %v1381 = vunpack.c.h.b16 %v1224
    %v1382 = vunpack.c.l.b16 %v1225
    %v1383 = vunpack.c.l.b16 %v1226
    %v1384 = vunpack.c.h.b16 %v1226
    %v1385 = vunpack.c.l.b16 %v1227
    %v1386 = vunpack.c.l.b16 %v1228
    %v1387 = vunpack.c.h.b16 %v1228
    %v1388 = vunpack.c.l.b16 %v1229
    %v1389 = vunpack.c.l.b16 %v1230
    %v1390 = vunpack.c.h.b16 %v1230
    %v1391 = vunpack.c.l.b16 %v1231
    %v1392 = vunpack.c.l.b16 %v1232
    %v1393 = vunpack.c.h.b16 %v1232
    %v1394 = vunpack.c.l.b16 %v1233
    %v1395 = vunpack.c.l.b16 %v1234
    %v1396 = vunpack.c.h.b16 %v1234
    %v1397 = vunpack.c.l.b16 %v1235
    %v1398 = vunpack.c.l.b16 %v1236
    %v1399 = vunpack.c.h.b16 %v1236
    %v1400 = vunpack.c.l.b16 %v1237
    %v1401 = vunpack.c.l.b16 %v1238
    %v1402 = vunpack.c.h.b16 %v1238
    %v1403 = vunpack.c.l.b16 %v1239
    %v1404 = vunpack.c.l.b16 %v1240
    %v1405 = vunpack.c.h.b16 %v1240
    %v1406 = vunpack.c.l.b16 %v1241
    %v1407 = vpack.c.b16 %v1362, %v1359
    %v1408 = vpack.c.b16 %v1363, %v1360
    %v1409 = vpack.c.b16 %v1364, %v1361
    %v1410 = vpack.c.b16 %v1368, %v1365
    %v1411 = vpack.c.b16 %v1369, %v1366
    %v1412 = vpack.c.b16 %v1370, %v1367
    %v1413 = vpack.c.b16 %v1374, %v1371
    %v1414 = vpack.c.b16 %v1375, %v1372
    %v1415 = vpack.c.b16 %v1376, %v1373
    %v1416 = vpack.c.b16 %v1380, %v1377
    %v1417 = vpack.c.b16 %v1381, %v1378
    %v1418 = vpack.c.b16 %v1382, %v1379
    %v1419 = vpack.c.b16 %v1386, %v1383
    %v1420 = vpack.c.b16 %v1387, %v1384
    %v1421 = vpack.c.b16 %v1388, %v1385
    %v1422 = vpack.c.b16 %v1392, %v1389
    %v1423 = vpack.c.b16 %v1393, %v1390
    %v1424 = vpack.c.b16 %v1394, %v1391
    %v1425 = vpack.c.b16 %v1398, %v1395
    %v1426 = vpack.c.b16 %v1399, %v1396
    %v1427 = vpack.c.b16 %v1400, %v1397
    %v1428 = vpack.c.b16 %v1404, %v1401
    %v1429 = vpack.c.b16 %v1405, %v1402
    %v1430 = vpack.c.b16 %v1406, %v1403
    %1455 = vmatprep.subr.bf16.mxu0 %v1408
    %1456 = vmatpush1.bf16.msra.mxu0 %v1407
    %1457 = vmatprep.subr.bf16.mxu0 %v1411
    %1458 = vmatpush1.bf16.msra.mxu0 %v1410
    %1459 = vmatprep.subr.bf16.mxu0 %v1414
    %1460 = vmatpush1.bf16.msra.mxu0 %v1413
    %1461 = vmatprep.subr.bf16.mxu0 %v1417
    %1462 = vmatpush1.bf16.msra.mxu0 %v1416
    %1463 = vmatprep.subr.bf16.mxu0 %v1420
    %1464 = vmatpush1.bf16.msra.mxu0 %v1419
    %1465 = vmatprep.subr.bf16.mxu0 %v1423
    %1466 = vmatpush1.bf16.msra.mxu0 %v1422
    %1467 = vmatprep.subr.bf16.mxu0 %v1426
    %1468 = vmatpush1.bf16.msra.mxu0 %v1425
    %1469 = vmatprep.subr.bf16.mxu0 %v1429
    %1470 = vmatpush1.bf16.msra.mxu0 %v1428
    %1471 = vmatprep.subr.bf16.mxu0 0
    %1472 = vmatpush1.bf16.msra.mxu0 0
    %1473 = vmatprep.subr.bf16.mxu0 0
    %1474 = vmatpush1.bf16.msra.mxu0 0
    %1475 = vmatprep.subr.bf16.mxu0 0
    %1476 = vmatpush1.bf16.msra.mxu0 0
    %1477 = vmatprep.subr.bf16.mxu0 0
    %1478 = vmatpush1.bf16.msra.mxu0 0
    %1479 = vmatprep.subr.bf16.mxu0 0
    %1480 = vmatpush1.bf16.msra.mxu0 0
    %1481 = vmatprep.subr.bf16.mxu0 0
    %1482 = vmatpush1.bf16.msra.mxu0 0
    %1483 = vmatprep.subr.bf16.mxu0 0
    %1484 = vmatpush1.bf16.msra.mxu0 0
    %1485 = vmatprep.subr.bf16.mxu0 0
    %1486 = vmatpush1.bf16.msra.mxu0 0
    %1487 = vmatprep.mubr.bf16.mxu0 0
    %1488 = vmatmul.mubr.bf16.gmra.mrb[0].mxu0 %v1308
    %v1489 = vpop.f32.mrb[0].mxu0
    %v1490 = vadd.f32 %v1315, %v1489
    %v1491 = vpop.f32.mrb[0].mxu0
    %v1492 = vadd.f32 %v1319, %v1491
    %v1493 = vpop.f32.mrb[0].mxu0
    %v1494 = vadd.f32 %v1315, %v1493
    %v1495 = vpop.f32.mrb[0].mxu0
    %v1496 = vadd.f32 %v1319, %v1495
    %1497 = vmatprep.mubr.bf16.mxu0 0
    %1498 = vmatmul.mubr.bf16.gmra.mrb[0].mxu0 %v1309
    %v1499 = vpop.f32.mrb[0].mxu0
    %v1500 = vadd.f32 %v1315, %v1499
    %v1501 = vpop.f32.mrb[0].mxu0
    %v1502 = vadd.f32 %v1319, %v1501
    %v1503 = vpop.f32.mrb[0].mxu0
    %v1504 = vadd.f32 %v1315, %v1503
    %v1505 = vpop.f32.mrb[0].mxu0
    %v1506 = vadd.f32 %v1319, %v1505
    %1507 = vmatprep.mubr.bf16.mxu0 0
    %1508 = vmatmul.mubr.bf16.gmra.mrb[0].mxu0 %v1310
    %v1509 = vpop.f32.mrb[0].mxu0
    %v1510 = vadd.f32 %v1315, %v1509
    %v1511 = vpop.f32.mrb[0].mxu0
    %v1512 = vadd.f32 %v1319, %v1511
    %v1513 = vpop.f32.mrb[0].mxu0
    %v1514 = vadd.f32 %v1315, %v1513
    %v1515 = vpop.f32.mrb[0].mxu0
    %v1516 = vadd.f32 %v1319, %v1515
    %1517 = vdwg.mxu0
    %1518 = vmatprep.subr.bf16.mxu0 0
    %1519 = vmatpush1.bf16.msra.mxu0 %v1409
    %1520 = vmatprep.subr.bf16.mxu0 0
    %1521 = vmatpush1.bf16.msra.mxu0 %v1412
    %1522 = vmatprep.subr.bf16.mxu0 0
    %1523 = vmatpush1.bf16.msra.mxu0 %v1415
    %1524 = vmatprep.subr.bf16.mxu0 0
    %1525 = vmatpush1.bf16.msra.mxu0 %v1418
    %1526 = vmatprep.subr.bf16.mxu0 0
    %1527 = vmatpush1.bf16.msra.mxu0 %v1421
    %1528 = vmatprep.subr.bf16.mxu0 0
    %1529 = vmatpush1.bf16.msra.mxu0 %v1424
    %1530 = vmatprep.subr.bf16.mxu0 0
    %1531 = vmatpush1.bf16.msra.mxu0 %v1427
    %1532 = vmatprep.subr.bf16.mxu0 0
    %1533 = vmatpush1.bf16.msra.mxu0 %v1430
    %1534 = vmatprep.subr.bf16.mxu0 0
    %1535 = vmatpush1.bf16.msra.mxu0 0
    %1536 = vmatprep.subr.bf16.mxu0 0
    %1537 = vmatpush1.bf16.msra.mxu0 0
    %1538 = vmatprep.subr.bf16.mxu0 0
    %1539 = vmatpush1.bf16.msra.mxu0 0
    %1540 = vmatprep.subr.bf16.mxu0 0
    %1541 = vmatpush1.bf16.msra.mxu0 0
    %1542 = vmatprep.subr.bf16.mxu0 0
    %1543 = vmatpush1.bf16.msra.mxu0 0
    %1544 = vmatprep.subr.bf16.mxu0 0
    %1545 = vmatpush1.bf16.msra.mxu0 0
    %1546 = vmatprep.subr.bf16.mxu0 0
    %1547 = vmatpush1.bf16.msra.mxu0 0
    %1548 = vmatprep.subr.bf16.mxu0 0
    %1549 = vmatpush1.bf16.msra.mxu0 0
    %1550 = vmatprep.mubr.bf16.mxu0 0
    %1551 = vmatmul.mubr.bf16.gmra.mrb[0].mxu0 %v1308
    %v1552 = vpop.f32.mrb[0].mxu0
    %v1553 = vadd.f32 %v1323, %v1552
    %v1554 = vpop.f32.mrb[0].mxu0
    %v1555 = vpop.f32.mrb[0].mxu0
    %v1556 = vadd.f32 %v1323, %v1555
    %v1557 = vpop.f32.mrb[0].mxu0
    %1558 = vmatprep.mubr.bf16.mxu0 0
    %1559 = vmatmul.mubr.bf16.gmra.mrb[0].mxu0 %v1309
    %v1560 = vpop.f32.mrb[0].mxu0
    %v1561 = vadd.f32 %v1323, %v1560
    %v1562 = vpop.f32.mrb[0].mxu0
    %v1563 = vpop.f32.mrb[0].mxu0
    %v1564 = vadd.f32 %v1323, %v1563
    %v1565 = vpop.f32.mrb[0].mxu0
    %1566 = vmatprep.mubr.bf16.mxu0 0
    %1567 = vmatmul.mubr.bf16.gmra.mrb[0].mxu0 %v1310
    %v1568 = vpop.f32.mrb[0].mxu0
    %v1569 = vadd.f32 %v1323, %v1568
    %v1570 = vpop.f32.mrb[0].mxu0
    %v1571 = vpop.f32.mrb[0].mxu0
    %v1572 = vadd.f32 %v1323, %v1571
    %v1573 = vpop.f32.mrb[0].mxu0
    %1574 = vdwg.mxu0
    %v1575 = vpack.c.bf16 %v1494, %v1490
    %v1576 = vpack.c.bf16 %v1504, %v1500
    %v1577 = vpack.c.bf16 %v1514, %v1510
    %v1578 = vpack.c.bf16 %v1496, %v1492
    %v1579 = vpack.c.bf16 %v1506, %v1502
    %v1580 = vpack.c.bf16 %v1516, %v1512
    %vm1581 = vcmask 261120
    %v1583 = vsel %vm1581, %v1575, 0
    %v1586 = vsel %vm1581, %v1576, 0
    %v1589 = vsel %vm1581, %v1577, 0
    %v1592 = vsel %vm1581, %v1578, 0
    %v1595 = vsel %vm1581, %v1579, 0
    %v1598 = vsel %vm1581, %v1580, 0
    %1600 = vmatprep.subr.bf16.mxu0 0
    %1601 = vmatpush1.bf16.xpose.msra.mxu0 %v1592
    %1602 = vmatprep.subr.bf16.mxu0 0
    %1603 = vmatpush1.bf16.xpose.msra.mxu0 %v1595
    %1604 = vmatprep.subr.bf16.mxu0 0
    %1605 = vmatpush1.bf16.xpose.msra.mxu0 %v1598
    %1606 = vmatprep.subr.bf16.mxu0 0
    %1607 = vmatpush1.bf16.xpose.msra.mxu0 0
    %1608 = vmatprep.subr.bf16.mxu0 0
    %1609 = vmatpush1.bf16.xpose.msra.mxu0 0
    %1610 = vmatprep.subr.bf16.mxu0 0
    %1611 = vmatpush1.bf16.xpose.msra.mxu0 0
    %1612 = vmatprep.subr.bf16.mxu0 0
    %1613 = vmatpush1.bf16.xpose.msra.mxu0 0
    %1614 = vmatprep.subr.bf16.mxu0 0
    %1615 = vmatpush1.bf16.xpose.msra.mxu0 0
    %1616 = vmatprep.subr.bf16.mxu0 0
    %1617 = vmatpush1.bf16.xpose.msra.mxu0 0
    %1618 = vmatprep.subr.bf16.mxu0 0
    %1619 = vmatpush1.bf16.xpose.msra.mxu0 0
    %1620 = vmatprep.subr.bf16.mxu0 0
    %1621 = vmatpush1.bf16.xpose.msra.mxu0 0
    %1622 = vmatprep.subr.bf16.mxu0 0
    %1623 = vmatpush1.bf16.xpose.msra.mxu0 0
    %1624 = vmatprep.subr.bf16.mxu0 0
    %1625 = vmatpush1.bf16.xpose.msra.mxu0 0
    %1626 = vmatprep.subr.bf16.mxu0 0
    %1627 = vmatpush1.bf16.xpose.msra.mxu0 0
    %1628 = vmatprep.subr.bf16.mxu0 0
    %1629 = vmatpush1.bf16.xpose.msra.mxu0 0
    %1630 = vmatprep.subr.bf16.mxu0 0
    %1631 = vmatpush1.bf16.xpose.msra.mxu0 0
    %1632 = vmatprep.mubr.bf16.mxu0 0
    %1633 = vmatmul.mubr.bf16.gmra.mrb[0].mxu0 %v1583
    %v1634 = vpop.f32.mrb[0].mxu0
    %v1635 = vadd.f32 0.0, %v1634
    %v1636 = vpop.f32.mrb[0].mxu0
    %v1637 = vpop.f32.mrb[0].mxu0
    %v1638 = vadd.f32 0.0, %v1637
    %v1639 = vpop.f32.mrb[0].mxu0
    %1640 = vmatprep.mubr.bf16.mxu0 0
    %1641 = vmatmul.mubr.bf16.gmra.mrb[0].mxu0 %v1586
    %v1642 = vpop.f32.mrb[0].mxu0
    %v1643 = vadd.f32 0.0, %v1642
    %v1644 = vpop.f32.mrb[0].mxu0
    %v1645 = vpop.f32.mrb[0].mxu0
    %v1646 = vadd.f32 0.0, %v1645
    %v1647 = vpop.f32.mrb[0].mxu0
    %1648 = vmatprep.mubr.bf16.mxu0 0
    %1649 = vmatmul.mubr.bf16.gmra.mrb[0].mxu0 %v1589
    %v1650 = vpop.f32.mrb[0].mxu0
    %v1651 = vadd.f32 0.0, %v1650
    %v1652 = vpop.f32.mrb[0].mxu0
    %v1653 = vpop.f32.mrb[0].mxu0
    %v1654 = vadd.f32 0.0, %v1653
    %v1655 = vpop.f32.mrb[0].mxu0
    %1656 = vdwg.mxu0
    %v1657 = vmul.f32 %v1635, 0.17677669
    %v1658 = vmul.f32 %v1638, 0.17677669
    %v1659 = vmul.f32 %v1643, 0.17677669
    %v1660 = vmul.f32 %v1646, 0.17677669
    %v1661 = vmul.f32 %v1651, 0.17677669
    %v1662 = vmul.f32 %v1654, 0.17677669
    %v1663 = vadd.f32 %v1657, %v1198
    %v1664 = vadd.f32 %v1658, %v1199
    %v1665 = vadd.f32 %v1659, %v1200
    %v1666 = vadd.f32 %v1660, %v1201
    %v1667 = vadd.f32 %v1661, %v1202
    %v1668 = vadd.f32 %v1662, %v1203
    %v1669 = vsel %vm82, %v1663, -inf
    %1670 = vmax.xlane.f32.xlu0 %v1669
    %v1671 = vpop.xlane.xlu0 %1670
    %v1672 = vsel %vm82, %v1664, -inf
    %1673 = vmax.xlane.f32.xlu0 %v1672
    %v1674 = vpop.xlane.xlu0 %1673
    %v1675 = vsel %vm82, %v1665, -inf
    %1676 = vmax.xlane.f32.xlu0 %v1675
    %v1677 = vpop.xlane.xlu0 %1676
    %v1678 = vsel %vm82, %v1666, -inf
    %1679 = vmax.xlane.f32.xlu0 %v1678
    %v1680 = vpop.xlane.xlu0 %1679
    %v1681 = vsel %vm82, %v1667, -inf
    %1682 = vmax.xlane.f32.xlu0 %v1681
    %v1683 = vpop.xlane.xlu0 %1682
    %v1684 = vsel %vm82, %v1668, -inf
    %1685 = vmax.xlane.f32.xlu0 %v1684
    %v1686 = vpop.xlane.xlu0 %1685
    %v1687 = vsub.f32 %v1663, %v1671
    %v1688 = vsub.f32 %v1664, %v1674
    %v1689 = vsub.f32 %v1665, %v1677
    %v1690 = vsub.f32 %v1666, %v1680
    %v1691 = vsub.f32 %v1667, %v1683
    %v1692 = vsub.f32 %v1668, %v1686
    %v1693 = vmul.f32 %v1687, 1.442695
    %v1694 = vpow.pop %v1693
    %v1695 = vmul.f32 %v1688, 1.442695
    %v1696 = vpow.pop %v1695
    %v1697 = vmul.f32 %v1689, 1.442695
    %v1698 = vpow.pop %v1697
    %v1699 = vmul.f32 %v1690, 1.442695
    %v1700 = vpow.pop %v1699
    %v1701 = vmul.f32 %v1691, 1.442695
    %v1702 = vpow.pop %v1701
    %v1703 = vmul.f32 %v1692, 1.442695
    %v1704 = vpow.pop %v1703
    %v1705 = vsel %vm82, %v1694, 0.0
    %1706 = vadd.xlane.f32.xlu0 %v1705
    %v1707 = vpop.xlane.xlu0 %1706
    %v1708 = vsel %vm82, %v1696, 0.0
    %1709 = vadd.xlane.f32.xlu0 %v1708
    %v1710 = vpop.xlane.xlu0 %1709
    %v1711 = vsel %vm82, %v1698, 0.0
    %1712 = vadd.xlane.f32.xlu0 %v1711
    %v1713 = vpop.xlane.xlu0 %1712
    %v1714 = vsel %vm82, %v1700, 0.0
    %1715 = vadd.xlane.f32.xlu0 %v1714
    %v1716 = vpop.xlane.xlu0 %1715
    %v1717 = vsel %vm82, %v1702, 0.0
    %1718 = vadd.xlane.f32.xlu0 %v1717
    %v1719 = vpop.xlane.xlu0 %1718
    %v1720 = vsel %vm82, %v1704, 0.0
    %1721 = vadd.xlane.f32.xlu0 %v1720
    %v1722 = vpop.xlane.xlu0 %1721
    %v1723 = vrcp.pop %v1707
    %v1724 = vrcp.pop %v1710
    %v1725 = vrcp.pop %v1713
    %v1726 = vrcp.pop %v1716
    %v1727 = vrcp.pop %v1719
    %v1728 = vrcp.pop %v1722
    %v1729 = vmul.f32 %v1694, %v1723
    %v1730 = vmul.f32 %v1696, %v1724
    %v1731 = vmul.f32 %v1698, %v1725
    %v1732 = vmul.f32 %v1700, %v1726
    %v1733 = vmul.f32 %v1702, %v1727
    %v1734 = vmul.f32 %v1704, %v1728
    %v1735 = vpack.c.bf16 %v1730, %v1729
    %v1736 = vpack.c.bf16 %v1732, %v1731
    %v1737 = vpack.c.bf16 %v1734, %v1733
    %v1738 = vpack.c.bf16 %v1556, %v1553
    %v1739 = vpack.c.bf16 %v1564, %v1561
    %v1740 = vpack.c.bf16 %v1572, %v1569
    %v1742 = vsel %vm82, %v1735, 0
    %v1745 = vsel %vm82, %v1736, 0
    %v1748 = vsel %vm82, %v1737, 0
    %1750 = vmatprep.subr.bf16.mxu0 0
    %1751 = vmatpush1.bf16.msra.mxu0 %v1738
    %1752 = vmatprep.subr.bf16.mxu0 0
    %1753 = vmatpush1.bf16.msra.mxu0 %v1739
    %1754 = vmatprep.subr.bf16.mxu0 0
    %1755 = vmatpush1.bf16.msra.mxu0 %v1740
    %1756 = vmatprep.subr.bf16.mxu0 0
    %1757 = vmatpush1.bf16.msra.mxu0 0
    %1758 = vmatprep.subr.bf16.mxu0 0
    %1759 = vmatpush1.bf16.msra.mxu0 0
    %1760 = vmatprep.subr.bf16.mxu0 0
    %1761 = vmatpush1.bf16.msra.mxu0 0
    %1762 = vmatprep.subr.bf16.mxu0 0
    %1763 = vmatpush1.bf16.msra.mxu0 0
    %1764 = vmatprep.subr.bf16.mxu0 0
    %1765 = vmatpush1.bf16.msra.mxu0 0
    %1766 = vmatprep.subr.bf16.mxu0 0
    %1767 = vmatpush1.bf16.msra.mxu0 0
    %1768 = vmatprep.subr.bf16.mxu0 0
    %1769 = vmatpush1.bf16.msra.mxu0 0
    %1770 = vmatprep.subr.bf16.mxu0 0
    %1771 = vmatpush1.bf16.msra.mxu0 0
    %1772 = vmatprep.subr.bf16.mxu0 0
    %1773 = vmatpush1.bf16.msra.mxu0 0
    %1774 = vmatprep.subr.bf16.mxu0 0
    %1775 = vmatpush1.bf16.msra.mxu0 0
    %1776 = vmatprep.subr.bf16.mxu0 0
    %1777 = vmatpush1.bf16.msra.mxu0 0
    %1778 = vmatprep.subr.bf16.mxu0 0
    %1779 = vmatpush1.bf16.msra.mxu0 0
    %1780 = vmatprep.subr.bf16.mxu0 0
    %1781 = vmatpush1.bf16.msra.mxu0 0
    %1782 = vmatprep.mubr.bf16.mxu0 0
    %1783 = vmatmul.mubr.bf16.gmra.mrb[0].mxu0 %v1742
    %v1784 = vpop.f32.mrb[0].mxu0
    %v1785 = vadd.f32 0.0, %v1784
    %v1786 = vpop.f32.mrb[0].mxu0
    %v1787 = vpop.f32.mrb[0].mxu0
    %v1788 = vadd.f32 0.0, %v1787
    %v1789 = vpop.f32.mrb[0].mxu0
    %1790 = vmatprep.mubr.bf16.mxu0 0
    %1791 = vmatmul.mubr.bf16.gmra.mrb[0].mxu0 %v1745
    %v1792 = vpop.f32.mrb[0].mxu0
    %v1793 = vadd.f32 0.0, %v1792
    %v1794 = vpop.f32.mrb[0].mxu0
    %v1795 = vpop.f32.mrb[0].mxu0
    %v1796 = vadd.f32 0.0, %v1795
    %v1797 = vpop.f32.mrb[0].mxu0
    %1798 = vmatprep.mubr.bf16.mxu0 0
    %1799 = vmatmul.mubr.bf16.gmra.mrb[0].mxu0 %v1748
    %v1800 = vpop.f32.mrb[0].mxu0
    %v1801 = vadd.f32 0.0, %v1800
    %v1802 = vpop.f32.mrb[0].mxu0
    %v1803 = vpop.f32.mrb[0].mxu0
    %v1804 = vadd.f32 0.0, %v1803
    %v1805 = vpop.f32.mrb[0].mxu0
    %1806 = vdwg.mxu0
    %v1807 = vpack.c.bf16 %v1788, %v1785
    %v1808 = vpack.c.bf16 %v1796, %v1793
    %v1809 = vpack.c.bf16 %v1804, %v1801
    %1813 = vrot.lane.b32.xlu0 %v1575, 96
    %v1814 = vpop.permute.xlu0 %1813
    %1815 = vrot.lane.b32.xlu0 %v1576, 96
    %v1816 = vpop.permute.xlu0 %1815
    %1817 = vrot.lane.b32.xlu0 %v1577, 96
    %v1818 = vpop.permute.xlu0 %1817
    %1822 = vrot.lane.b32.xlu0 %v1578, 96
    %v1823 = vpop.permute.xlu0 %1822
    %1824 = vrot.lane.b32.xlu0 %v1579, 96
    %v1825 = vpop.permute.xlu0 %1824
    %1826 = vrot.lane.b32.xlu0 %v1580, 96
    %v1827 = vpop.permute.xlu0 %1826
    %v1829 = vsel %vm1581, %v1814, 0
    %v1832 = vsel %vm1581, %v1816, 0
    %v1835 = vsel %vm1581, %v1818, 0
    %v1838 = vsel %vm1581, %v1823, 0
    %v1841 = vsel %vm1581, %v1825, 0
    %v1844 = vsel %vm1581, %v1827, 0
    %1846 = vmatprep.subr.bf16.mxu0 0
    %1847 = vmatpush1.bf16.xpose.msra.mxu0 %v1838
    %1848 = vmatprep.subr.bf16.mxu0 0
    %1849 = vmatpush1.bf16.xpose.msra.mxu0 %v1841
    %1850 = vmatprep.subr.bf16.mxu0 0
    %1851 = vmatpush1.bf16.xpose.msra.mxu0 %v1844
    %1852 = vmatprep.subr.bf16.mxu0 0
    %1853 = vmatpush1.bf16.xpose.msra.mxu0 0
    %1854 = vmatprep.subr.bf16.mxu0 0
    %1855 = vmatpush1.bf16.xpose.msra.mxu0 0
    %1856 = vmatprep.subr.bf16.mxu0 0
    %1857 = vmatpush1.bf16.xpose.msra.mxu0 0
    %1858 = vmatprep.subr.bf16.mxu0 0
    %1859 = vmatpush1.bf16.xpose.msra.mxu0 0
    %1860 = vmatprep.subr.bf16.mxu0 0
    %1861 = vmatpush1.bf16.xpose.msra.mxu0 0
    %1862 = vmatprep.subr.bf16.mxu0 0
    %1863 = vmatpush1.bf16.xpose.msra.mxu0 0
    %1864 = vmatprep.subr.bf16.mxu0 0
    %1865 = vmatpush1.bf16.xpose.msra.mxu0 0
    %1866 = vmatprep.subr.bf16.mxu0 0
    %1867 = vmatpush1.bf16.xpose.msra.mxu0 0
    %1868 = vmatprep.subr.bf16.mxu0 0
    %1869 = vmatpush1.bf16.xpose.msra.mxu0 0
    %1870 = vmatprep.subr.bf16.mxu0 0
    %1871 = vmatpush1.bf16.xpose.msra.mxu0 0
    %1872 = vmatprep.subr.bf16.mxu0 0
    %1873 = vmatpush1.bf16.xpose.msra.mxu0 0
    %1874 = vmatprep.subr.bf16.mxu0 0
    %1875 = vmatpush1.bf16.xpose.msra.mxu0 0
    %1876 = vmatprep.subr.bf16.mxu0 0
    %1877 = vmatpush1.bf16.xpose.msra.mxu0 0
    %1878 = vmatprep.mubr.bf16.mxu0 0
    %1879 = vmatmul.mubr.bf16.gmra.mrb[0].mxu0 %v1829
    %v1880 = vpop.f32.mrb[0].mxu0
    %v1881 = vadd.f32 0.0, %v1880
    %v1882 = vpop.f32.mrb[0].mxu0
    %v1883 = vpop.f32.mrb[0].mxu0
    %v1884 = vadd.f32 0.0, %v1883
    %v1885 = vpop.f32.mrb[0].mxu0
    %1886 = vmatprep.mubr.bf16.mxu0 0
    %1887 = vmatmul.mubr.bf16.gmra.mrb[0].mxu0 %v1832
    %v1888 = vpop.f32.mrb[0].mxu0
    %v1889 = vadd.f32 0.0, %v1888
    %v1890 = vpop.f32.mrb[0].mxu0
    %v1891 = vpop.f32.mrb[0].mxu0
    %v1892 = vadd.f32 0.0, %v1891
    %v1893 = vpop.f32.mrb[0].mxu0
    %1894 = vmatprep.mubr.bf16.mxu0 0
    %1895 = vmatmul.mubr.bf16.gmra.mrb[0].mxu0 %v1835
    %v1896 = vpop.f32.mrb[0].mxu0
    %v1897 = vadd.f32 0.0, %v1896
    %v1898 = vpop.f32.mrb[0].mxu0
    %v1899 = vpop.f32.mrb[0].mxu0
    %v1900 = vadd.f32 0.0, %v1899
    %v1901 = vpop.f32.mrb[0].mxu0
    %1902 = vdwg.mxu0
    %v1903 = vmul.f32 %v1881, 0.17677669
    %v1904 = vmul.f32 %v1884, 0.17677669
    %v1905 = vmul.f32 %v1889, 0.17677669
    %v1906 = vmul.f32 %v1892, 0.17677669
    %v1907 = vmul.f32 %v1897, 0.17677669
    %v1908 = vmul.f32 %v1900, 0.17677669
    %v1909 = vadd.f32 %v1903, %v1198
    %v1910 = vadd.f32 %v1904, %v1199
    %v1911 = vadd.f32 %v1905, %v1200
    %v1912 = vadd.f32 %v1906, %v1201
    %v1913 = vadd.f32 %v1907, %v1202
    %v1914 = vadd.f32 %v1908, %v1203
    %v1915 = vsel %vm82, %v1909, -inf
    %1916 = vmax.xlane.f32.xlu0 %v1915
    %v1917 = vpop.xlane.xlu0 %1916
    %v1918 = vsel %vm82, %v1910, -inf
    %1919 = vmax.xlane.f32.xlu0 %v1918
    %v1920 = vpop.xlane.xlu0 %1919
    %v1921 = vsel %vm82, %v1911, -inf
    %1922 = vmax.xlane.f32.xlu0 %v1921
    %v1923 = vpop.xlane.xlu0 %1922
    %v1924 = vsel %vm82, %v1912, -inf
    %1925 = vmax.xlane.f32.xlu0 %v1924
    %v1926 = vpop.xlane.xlu0 %1925
    %v1927 = vsel %vm82, %v1913, -inf
    %1928 = vmax.xlane.f32.xlu0 %v1927
    %v1929 = vpop.xlane.xlu0 %1928
    %v1930 = vsel %vm82, %v1914, -inf
    %1931 = vmax.xlane.f32.xlu0 %v1930
    %v1932 = vpop.xlane.xlu0 %1931
    %v1933 = vsub.f32 %v1909, %v1917
    %v1934 = vsub.f32 %v1910, %v1920
    %v1935 = vsub.f32 %v1911, %v1923
    %v1936 = vsub.f32 %v1912, %v1926
    %v1937 = vsub.f32 %v1913, %v1929
    %v1938 = vsub.f32 %v1914, %v1932
    %v1939 = vmul.f32 %v1933, 1.442695
    %v1940 = vpow.pop %v1939
    %v1941 = vmul.f32 %v1934, 1.442695
    %v1942 = vpow.pop %v1941
    %v1943 = vmul.f32 %v1935, 1.442695
    %v1944 = vpow.pop %v1943
    %v1945 = vmul.f32 %v1936, 1.442695
    %v1946 = vpow.pop %v1945
    %v1947 = vmul.f32 %v1937, 1.442695
    %v1948 = vpow.pop %v1947
    %v1949 = vmul.f32 %v1938, 1.442695
    %v1950 = vpow.pop %v1949
    %v1951 = vsel %vm82, %v1940, 0.0
    %1952 = vadd.xlane.f32.xlu0 %v1951
    %v1953 = vpop.xlane.xlu0 %1952
    %v1954 = vsel %vm82, %v1942, 0.0
    %1955 = vadd.xlane.f32.xlu0 %v1954
    %v1956 = vpop.xlane.xlu0 %1955
    %v1957 = vsel %vm82, %v1944, 0.0
    %1958 = vadd.xlane.f32.xlu0 %v1957
    %v1959 = vpop.xlane.xlu0 %1958
    %v1960 = vsel %vm82, %v1946, 0.0
    %1961 = vadd.xlane.f32.xlu0 %v1960
    %v1962 = vpop.xlane.xlu0 %1961
    %v1963 = vsel %vm82, %v1948, 0.0
    %1964 = vadd.xlane.f32.xlu0 %v1963
    %v1965 = vpop.xlane.xlu0 %1964
    %v1966 = vsel %vm82, %v1950, 0.0
    %1967 = vadd.xlane.f32.xlu0 %v1966
    %v1968 = vpop.xlane.xlu0 %1967
    %v1969 = vrcp.pop %v1953
    %v1970 = vrcp.pop %v1956
    %v1971 = vrcp.pop %v1959
    %v1972 = vrcp.pop %v1962
    %v1973 = vrcp.pop %v1965
    %v1974 = vrcp.pop %v1968
    %v1975 = vmul.f32 %v1940, %v1969
    %v1976 = vmul.f32 %v1942, %v1970
    %v1977 = vmul.f32 %v1944, %v1971
    %v1978 = vmul.f32 %v1946, %v1972
    %v1979 = vmul.f32 %v1948, %v1973
    %v1980 = vmul.f32 %v1950, %v1974
    %v1981 = vpack.c.bf16 %v1976, %v1975
    %v1982 = vpack.c.bf16 %v1978, %v1977
    %v1983 = vpack.c.bf16 %v1980, %v1979
    %1987 = vrot.lane.b32.xlu0 %v1738, 96
    %v1988 = vpop.permute.xlu0 %1987
    %1989 = vrot.lane.b32.xlu0 %v1739, 96
    %v1990 = vpop.permute.xlu0 %1989
    %1991 = vrot.lane.b32.xlu0 %v1740, 96
    %v1992 = vpop.permute.xlu0 %1991
    %v1997 = vsel %vm82, %v1981, 0
    %v2000 = vsel %vm82, %v1982, 0
    %v2003 = vsel %vm82, %v1983, 0
    %2005 = vmatprep.subr.bf16.mxu0 0
    %2006 = vmatpush1.bf16.msra.mxu0 %v1988
    %2007 = vmatprep.subr.bf16.mxu0 0
    %2008 = vmatpush1.bf16.msra.mxu0 %v1990
    %2009 = vmatprep.subr.bf16.mxu0 0
    %2010 = vmatpush1.bf16.msra.mxu0 %v1992
    %2011 = vmatprep.subr.bf16.mxu0 0
    %2012 = vmatpush1.bf16.msra.mxu0 0
    %2013 = vmatprep.subr.bf16.mxu0 0
    %2014 = vmatpush1.bf16.msra.mxu0 0
    %2015 = vmatprep.subr.bf16.mxu0 0
    %2016 = vmatpush1.bf16.msra.mxu0 0
    %2017 = vmatprep.subr.bf16.mxu0 0
    %2018 = vmatpush1.bf16.msra.mxu0 0
    %2019 = vmatprep.subr.bf16.mxu0 0
    %2020 = vmatpush1.bf16.msra.mxu0 0
    %2021 = vmatprep.subr.bf16.mxu0 0
    %2022 = vmatpush1.bf16.msra.mxu0 0
    %2023 = vmatprep.subr.bf16.mxu0 0
    %2024 = vmatpush1.bf16.msra.mxu0 0
    %2025 = vmatprep.subr.bf16.mxu0 0
    %2026 = vmatpush1.bf16.msra.mxu0 0
    %2027 = vmatprep.subr.bf16.mxu0 0
    %2028 = vmatpush1.bf16.msra.mxu0 0
    %2029 = vmatprep.subr.bf16.mxu0 0
    %2030 = vmatpush1.bf16.msra.mxu0 0
    %2031 = vmatprep.subr.bf16.mxu0 0
    %2032 = vmatpush1.bf16.msra.mxu0 0
    %2033 = vmatprep.subr.bf16.mxu0 0
    %2034 = vmatpush1.bf16.msra.mxu0 0
    %2035 = vmatprep.subr.bf16.mxu0 0
    %2036 = vmatpush1.bf16.msra.mxu0 0
    %2037 = vmatprep.mubr.bf16.mxu0 0
    %2038 = vmatmul.mubr.bf16.gmra.mrb[0].mxu0 %v1997
    %v2039 = vpop.f32.mrb[0].mxu0
    %v2040 = vadd.f32 0.0, %v2039
    %v2041 = vpop.f32.mrb[0].mxu0
    %v2042 = vpop.f32.mrb[0].mxu0
    %v2043 = vadd.f32 0.0, %v2042
    %v2044 = vpop.f32.mrb[0].mxu0
    %2045 = vmatprep.mubr.bf16.mxu0 0
    %2046 = vmatmul.mubr.bf16.gmra.mrb[0].mxu0 %v2000
    %v2047 = vpop.f32.mrb[0].mxu0
    %v2048 = vadd.f32 0.0, %v2047
    %v2049 = vpop.f32.mrb[0].mxu0
    %v2050 = vpop.f32.mrb[0].mxu0
    %v2051 = vadd.f32 0.0, %v2050
    %v2052 = vpop.f32.mrb[0].mxu0
    %2053 = vmatprep.mubr.bf16.mxu0 0
    %2054 = vmatmul.mubr.bf16.gmra.mrb[0].mxu0 %v2003
    %v2055 = vpop.f32.mrb[0].mxu0
    %v2056 = vadd.f32 0.0, %v2055
    %v2057 = vpop.f32.mrb[0].mxu0
    %v2058 = vpop.f32.mrb[0].mxu0
    %v2059 = vadd.f32 0.0, %v2058
    %v2060 = vpop.f32.mrb[0].mxu0
    %2061 = vdwg.mxu0
    %v2062 = vpack.c.bf16 %v2043, %v2040
    %v2063 = vpack.c.bf16 %v2051, %v2048
    %v2064 = vpack.c.bf16 %v2059, %v2056
    %v2069 = vunpack.c.l.b16 %v1246
    %v2070 = vunpack.c.l.b16 %v1247
    %v2071 = vunpack.c.l.b16 %v1248
    %v2072 = vunpack.c.l.b16 %v1249
    %v2073 = vpack.c.b16 %v2070, %v2069
    %v2074 = vpack.c.b16 %v2072, %v2071
    %v2078 = vsel %vm1581, %v2062, 0
    %v2081 = vsel %vm1581, %v2063, 0
    %v2084 = vsel %vm1581, %v2064, 0
    %2086 = vmatprep.subr.bf16.mxu0 0
    %2087 = vmatpush1.bf16.msra.mxu0 %v2073
    %2088 = vmatprep.subr.bf16.mxu0 0
    %2089 = vmatpush1.bf16.msra.mxu0 %v2074
    %2090 = vmatprep.subr.bf16.mxu0 0
    %2091 = vmatpush1.bf16.msra.mxu0 0
    %2092 = vmatprep.subr.bf16.mxu0 0
    %2093 = vmatpush1.bf16.msra.mxu0 0
    %2094 = vmatprep.subr.bf16.mxu0 0
    %2095 = vmatpush1.bf16.msra.mxu0 0
    %2096 = vmatprep.subr.bf16.mxu0 0
    %2097 = vmatpush1.bf16.msra.mxu0 0
    %2098 = vmatprep.subr.bf16.mxu0 0
    %2099 = vmatpush1.bf16.msra.mxu0 0
    %2100 = vmatprep.subr.bf16.mxu0 0
    %2101 = vmatpush1.bf16.msra.mxu0 0
    %2102 = vmatprep.subr.bf16.mxu0 0
    %2103 = vmatpush1.bf16.msra.mxu0 0
    %2104 = vmatprep.subr.bf16.mxu0 0
    %2105 = vmatpush1.bf16.msra.mxu0 0
    %2106 = vmatprep.subr.bf16.mxu0 0
    %2107 = vmatpush1.bf16.msra.mxu0 0
    %2108 = vmatprep.subr.bf16.mxu0 0
    %2109 = vmatpush1.bf16.msra.mxu0 0
    %2110 = vmatprep.subr.bf16.mxu0 0
    %2111 = vmatpush1.bf16.msra.mxu0 0
    %2112 = vmatprep.subr.bf16.mxu0 0
    %2113 = vmatpush1.bf16.msra.mxu0 0
    %2114 = vmatprep.subr.bf16.mxu0 0
    %2115 = vmatpush1.bf16.msra.mxu0 0
    %2116 = vmatprep.subr.bf16.mxu0 0
    %2117 = vmatpush1.bf16.msra.mxu0 0
    %2118 = vmatprep.mubr.bf16.mxu0 0
    %2119 = vmatmul.mubr.bf16.gmra.mrb[0].mxu0 %v2078
    %v2120 = vpop.f32.mrb[0].mxu0
    %v2121 = vadd.f32 0.0, %v2120
    %v2122 = vpop.f32.mrb[0].mxu0
    %v2123 = vpop.f32.mrb[0].mxu0
    %v2124 = vadd.f32 0.0, %v2123
    %v2125 = vpop.f32.mrb[0].mxu0
    %2126 = vmatprep.mubr.bf16.mxu0 0
    %2127 = vmatmul.mubr.bf16.gmra.mrb[0].mxu0 %v2081
    %v2128 = vpop.f32.mrb[0].mxu0
    %v2129 = vadd.f32 0.0, %v2128
    %v2130 = vpop.f32.mrb[0].mxu0
    %v2131 = vpop.f32.mrb[0].mxu0
    %v2132 = vadd.f32 0.0, %v2131
    %v2133 = vpop.f32.mrb[0].mxu0
    %2134 = vmatprep.mubr.bf16.mxu0 0
    %2135 = vmatmul.mubr.bf16.gmra.mrb[0].mxu0 %v2084
    %v2136 = vpop.f32.mrb[0].mxu0
    %v2137 = vadd.f32 0.0, %v2136
    %v2138 = vpop.f32.mrb[0].mxu0
    %v2139 = vpop.f32.mrb[0].mxu0
    %v2140 = vadd.f32 0.0, %v2139
    %v2141 = vpop.f32.mrb[0].mxu0
    %2142 = vdwg.mxu0
    %v2147 = vunpack.c.l.b16 %v1242
    %v2148 = vunpack.c.l.b16 %v1243
    %v2149 = vunpack.c.l.b16 %v1244
    %v2150 = vunpack.c.l.b16 %v1245
    %v2151 = vpack.c.b16 %v2148, %v2147
    %v2152 = vpack.c.b16 %v2150, %v2149
    %v2156 = vsel %vm1581, %v1807, 0
    %v2159 = vsel %vm1581, %v1808, 0
    %v2162 = vsel %vm1581, %v1809, 0
    %2164 = vmatprep.subr.bf16.mxu0 0
    %2165 = vmatpush1.bf16.msra.mxu0 %v2151
    %2166 = vmatprep.subr.bf16.mxu0 0
    %2167 = vmatpush1.bf16.msra.mxu0 %v2152
    %2168 = vmatprep.subr.bf16.mxu0 0
    %2169 = vmatpush1.bf16.msra.mxu0 0
    %2170 = vmatprep.subr.bf16.mxu0 0
    %2171 = vmatpush1.bf16.msra.mxu0 0
    %2172 = vmatprep.subr.bf16.mxu0 0
    %2173 = vmatpush1.bf16.msra.mxu0 0
    %2174 = vmatprep.subr.bf16.mxu0 0
    %2175 = vmatpush1.bf16.msra.mxu0 0
    %2176 = vmatprep.subr.bf16.mxu0 0
    %2177 = vmatpush1.bf16.msra.mxu0 0
    %2178 = vmatprep.subr.bf16.mxu0 0
    %2179 = vmatpush1.bf16.msra.mxu0 0
    %2180 = vmatprep.subr.bf16.mxu0 0
    %2181 = vmatpush1.bf16.msra.mxu0 0
    %2182 = vmatprep.subr.bf16.mxu0 0
    %2183 = vmatpush1.bf16.msra.mxu0 0
    %2184 = vmatprep.subr.bf16.mxu0 0
    %2185 = vmatpush1.bf16.msra.mxu0 0
    %2186 = vmatprep.subr.bf16.mxu0 0
    %2187 = vmatpush1.bf16.msra.mxu0 0
    %2188 = vmatprep.subr.bf16.mxu0 0
    %2189 = vmatpush1.bf16.msra.mxu0 0
    %2190 = vmatprep.subr.bf16.mxu0 0
    %2191 = vmatpush1.bf16.msra.mxu0 0
    %2192 = vmatprep.subr.bf16.mxu0 0
    %2193 = vmatpush1.bf16.msra.mxu0 0
    %2194 = vmatprep.subr.bf16.mxu0 0
    %2195 = vmatpush1.bf16.msra.mxu0 0
    %2196 = vmatprep.mubr.bf16.mxu0 0
    %2197 = vmatmul.mubr.bf16.gmra.mrb[0].mxu0 %v2156
    %v2198 = vpop.f32.mrb[0].mxu0
    %v2199 = vadd.f32 %v2121, %v2198
    %v2200 = vpop.f32.mrb[0].mxu0
    %v2201 = vpop.f32.mrb[0].mxu0
    %v2202 = vadd.f32 %v2124, %v2201
    %v2203 = vpop.f32.mrb[0].mxu0
    %2204 = vmatprep.mubr.bf16.mxu0 0
    %2205 = vmatmul.mubr.bf16.gmra.mrb[0].mxu0 %v2159
    %v2206 = vpop.f32.mrb[0].mxu0
    %v2207 = vadd.f32 %v2129, %v2206
    %v2208 = vpop.f32.mrb[0].mxu0
    %v2209 = vpop.f32.mrb[0].mxu0
    %v2210 = vadd.f32 %v2132, %v2209
    %v2211 = vpop.f32.mrb[0].mxu0
    %2212 = vmatprep.mubr.bf16.mxu0 0
    %2213 = vmatmul.mubr.bf16.gmra.mrb[0].mxu0 %v2162
    %v2214 = vpop.f32.mrb[0].mxu0
    %v2215 = vadd.f32 %v2137, %v2214
    %v2216 = vpop.f32.mrb[0].mxu0
    %v2217 = vpop.f32.mrb[0].mxu0
    %v2218 = vadd.f32 %v2140, %v2217
    %v2219 = vpop.f32.mrb[0].mxu0
    %2220 = vdwg.mxu0
    %2221 = vrot.lane.b32.xlu0 %v1575, 64
    %v2222 = vpop.permute.xlu0 %2221
    %2223 = vrot.lane.b32.xlu0 %v1576, 64
    %v2224 = vpop.permute.xlu0 %2223
    %2225 = vrot.lane.b32.xlu0 %v1577, 64
    %v2226 = vpop.permute.xlu0 %2225
    %2227 = vrot.lane.b32.xlu0 %v1578, 64
    %v2228 = vpop.permute.xlu0 %2227
    %2229 = vrot.lane.b32.xlu0 %v1579, 64
    %v2230 = vpop.permute.xlu0 %2229
    %2231 = vrot.lane.b32.xlu0 %v1580, 64
    %v2232 = vpop.permute.xlu0 %2231
    %v2234 = vsel %vm1581, %v2222, 0
    %v2237 = vsel %vm1581, %v2224, 0
    %v2240 = vsel %vm1581, %v2226, 0
    %v2243 = vsel %vm1581, %v2228, 0
    %v2246 = vsel %vm1581, %v2230, 0
    %v2249 = vsel %vm1581, %v2232, 0
    %2251 = vmatprep.subr.bf16.mxu0 0
    %2252 = vmatpush1.bf16.xpose.msra.mxu0 %v2243
    %2253 = vmatprep.subr.bf16.mxu0 0
    %2254 = vmatpush1.bf16.xpose.msra.mxu0 %v2246
    %2255 = vmatprep.subr.bf16.mxu0 0
    %2256 = vmatpush1.bf16.xpose.msra.mxu0 %v2249
    %2257 = vmatprep.subr.bf16.mxu0 0
    %2258 = vmatpush1.bf16.xpose.msra.mxu0 0
    %2259 = vmatprep.subr.bf16.mxu0 0
    %2260 = vmatpush1.bf16.xpose.msra.mxu0 0
    %2261 = vmatprep.subr.bf16.mxu0 0
    %2262 = vmatpush1.bf16.xpose.msra.mxu0 0
    %2263 = vmatprep.subr.bf16.mxu0 0
    %2264 = vmatpush1.bf16.xpose.msra.mxu0 0
    %2265 = vmatprep.subr.bf16.mxu0 0
    %2266 = vmatpush1.bf16.xpose.msra.mxu0 0
    %2267 = vmatprep.subr.bf16.mxu0 0
    %2268 = vmatpush1.bf16.xpose.msra.mxu0 0
    %2269 = vmatprep.subr.bf16.mxu0 0
    %2270 = vmatpush1.bf16.xpose.msra.mxu0 0
    %2271 = vmatprep.subr.bf16.mxu0 0
    %2272 = vmatpush1.bf16.xpose.msra.mxu0 0
    %2273 = vmatprep.subr.bf16.mxu0 0
    %2274 = vmatpush1.bf16.xpose.msra.mxu0 0
    %2275 = vmatprep.subr.bf16.mxu0 0
    %2276 = vmatpush1.bf16.xpose.msra.mxu0 0
    %2277 = vmatprep.subr.bf16.mxu0 0
    %2278 = vmatpush1.bf16.xpose.msra.mxu0 0
    %2279 = vmatprep.subr.bf16.mxu0 0
    %2280 = vmatpush1.bf16.xpose.msra.mxu0 0
    %2281 = vmatprep.subr.bf16.mxu0 0
    %2282 = vmatpush1.bf16.xpose.msra.mxu0 0
    %2283 = vmatprep.mubr.bf16.mxu0 0
    %2284 = vmatmul.mubr.bf16.gmra.mrb[0].mxu0 %v2234
    %v2285 = vpop.f32.mrb[0].mxu0
    %v2286 = vadd.f32 0.0, %v2285
    %v2287 = vpop.f32.mrb[0].mxu0
    %v2288 = vpop.f32.mrb[0].mxu0
    %v2289 = vadd.f32 0.0, %v2288
    %v2290 = vpop.f32.mrb[0].mxu0
    %2291 = vmatprep.mubr.bf16.mxu0 0
    %2292 = vmatmul.mubr.bf16.gmra.mrb[0].mxu0 %v2237
    %v2293 = vpop.f32.mrb[0].mxu0
    %v2294 = vadd.f32 0.0, %v2293
    %v2295 = vpop.f32.mrb[0].mxu0
    %v2296 = vpop.f32.mrb[0].mxu0
    %v2297 = vadd.f32 0.0, %v2296
    %v2298 = vpop.f32.mrb[0].mxu0
    %2299 = vmatprep.mubr.bf16.mxu0 0
    %2300 = vmatmul.mubr.bf16.gmra.mrb[0].mxu0 %v2240
    %v2301 = vpop.f32.mrb[0].mxu0
    %v2302 = vadd.f32 0.0, %v2301
    %v2303 = vpop.f32.mrb[0].mxu0
    %v2304 = vpop.f32.mrb[0].mxu0
    %v2305 = vadd.f32 0.0, %v2304
    %v2306 = vpop.f32.mrb[0].mxu0
    %2307 = vdwg.mxu0
    %v2308 = vmul.f32 %v2286, 0.17677669
    %v2309 = vmul.f32 %v2289, 0.17677669
    %v2310 = vmul.f32 %v2294, 0.17677669
    %v2311 = vmul.f32 %v2297, 0.17677669
    %v2312 = vmul.f32 %v2302, 0.17677669
    %v2313 = vmul.f32 %v2305, 0.17677669
    %v2314 = vadd.f32 %v2308, %v1198
    %v2315 = vadd.f32 %v2309, %v1199
    %v2316 = vadd.f32 %v2310, %v1200
    %v2317 = vadd.f32 %v2311, %v1201
    %v2318 = vadd.f32 %v2312, %v1202
    %v2319 = vadd.f32 %v2313, %v1203
    %v2320 = vsel %vm82, %v2314, -inf
    %2321 = vmax.xlane.f32.xlu0 %v2320
    %v2322 = vpop.xlane.xlu0 %2321
    %v2323 = vsel %vm82, %v2315, -inf
    %2324 = vmax.xlane.f32.xlu0 %v2323
    %v2325 = vpop.xlane.xlu0 %2324
    %v2326 = vsel %vm82, %v2316, -inf
    %2327 = vmax.xlane.f32.xlu0 %v2326
    %v2328 = vpop.xlane.xlu0 %2327
    %v2329 = vsel %vm82, %v2317, -inf
    %2330 = vmax.xlane.f32.xlu0 %v2329
    %v2331 = vpop.xlane.xlu0 %2330
    %v2332 = vsel %vm82, %v2318, -inf
    %2333 = vmax.xlane.f32.xlu0 %v2332
    %v2334 = vpop.xlane.xlu0 %2333
    %v2335 = vsel %vm82, %v2319, -inf
    %2336 = vmax.xlane.f32.xlu0 %v2335
    %v2337 = vpop.xlane.xlu0 %2336
    %v2338 = vsub.f32 %v2314, %v2322
    %v2339 = vsub.f32 %v2315, %v2325
    %v2340 = vsub.f32 %v2316, %v2328
    %v2341 = vsub.f32 %v2317, %v2331
    %v2342 = vsub.f32 %v2318, %v2334
    %v2343 = vsub.f32 %v2319, %v2337
    %v2344 = vmul.f32 %v2338, 1.442695
    %v2345 = vpow.pop %v2344
    %v2346 = vmul.f32 %v2339, 1.442695
    %v2347 = vpow.pop %v2346
    %v2348 = vmul.f32 %v2340, 1.442695
    %v2349 = vpow.pop %v2348
    %v2350 = vmul.f32 %v2341, 1.442695
    %v2351 = vpow.pop %v2350
    %v2352 = vmul.f32 %v2342, 1.442695
    %v2353 = vpow.pop %v2352
    %v2354 = vmul.f32 %v2343, 1.442695
    %v2355 = vpow.pop %v2354
    %v2356 = vsel %vm82, %v2345, 0.0
    %2357 = vadd.xlane.f32.xlu0 %v2356
    %v2358 = vpop.xlane.xlu0 %2357
    %v2359 = vsel %vm82, %v2347, 0.0
    %2360 = vadd.xlane.f32.xlu0 %v2359
    %v2361 = vpop.xlane.xlu0 %2360
    %v2362 = vsel %vm82, %v2349, 0.0
    %2363 = vadd.xlane.f32.xlu0 %v2362
    %v2364 = vpop.xlane.xlu0 %2363
    %v2365 = vsel %vm82, %v2351, 0.0
    %2366 = vadd.xlane.f32.xlu0 %v2365
    %v2367 = vpop.xlane.xlu0 %2366
    %v2368 = vsel %vm82, %v2353, 0.0
    %2369 = vadd.xlane.f32.xlu0 %v2368
    %v2370 = vpop.xlane.xlu0 %2369
    %v2371 = vsel %vm82, %v2355, 0.0
    %2372 = vadd.xlane.f32.xlu0 %v2371
    %v2373 = vpop.xlane.xlu0 %2372
    %v2374 = vrcp.pop %v2358
    %v2375 = vrcp.pop %v2361
    %v2376 = vrcp.pop %v2364
    %v2377 = vrcp.pop %v2367
    %v2378 = vrcp.pop %v2370
    %v2379 = vrcp.pop %v2373
    %v2380 = vmul.f32 %v2345, %v2374
    %v2381 = vmul.f32 %v2347, %v2375
    %v2382 = vmul.f32 %v2349, %v2376
    %v2383 = vmul.f32 %v2351, %v2377
    %v2384 = vmul.f32 %v2353, %v2378
    %v2385 = vmul.f32 %v2355, %v2379
    %v2386 = vpack.c.bf16 %v2381, %v2380
    %v2387 = vpack.c.bf16 %v2383, %v2382
    %v2388 = vpack.c.bf16 %v2385, %v2384
    %2389 = vrot.lane.b32.xlu0 %v1738, 64
    %v2390 = vpop.permute.xlu0 %2389
    %2391 = vrot.lane.b32.xlu0 %v1739, 64
    %v2392 = vpop.permute.xlu0 %2391
    %2393 = vrot.lane.b32.xlu0 %v1740, 64
    %v2394 = vpop.permute.xlu0 %2393
    %v2399 = vsel %vm82, %v2386, 0
    %v2402 = vsel %vm82, %v2387, 0
    %v2405 = vsel %vm82, %v2388, 0
    %2407 = vmatprep.subr.bf16.mxu0 0
    %2408 = vmatpush1.bf16.msra.mxu0 %v2390
    %2409 = vmatprep.subr.bf16.mxu0 0
    %2410 = vmatpush1.bf16.msra.mxu0 %v2392
    %2411 = vmatprep.subr.bf16.mxu0 0
    %2412 = vmatpush1.bf16.msra.mxu0 %v2394
    %2413 = vmatprep.subr.bf16.mxu0 0
    %2414 = vmatpush1.bf16.msra.mxu0 0
    %2415 = vmatprep.subr.bf16.mxu0 0
    %2416 = vmatpush1.bf16.msra.mxu0 0
    %2417 = vmatprep.subr.bf16.mxu0 0
    %2418 = vmatpush1.bf16.msra.mxu0 0
    %2419 = vmatprep.subr.bf16.mxu0 0
    %2420 = vmatpush1.bf16.msra.mxu0 0
    %2421 = vmatprep.subr.bf16.mxu0 0
    %2422 = vmatpush1.bf16.msra.mxu0 0
    %2423 = vmatprep.subr.bf16.mxu0 0
    %2424 = vmatpush1.bf16.msra.mxu0 0
    %2425 = vmatprep.subr.bf16.mxu0 0
    %2426 = vmatpush1.bf16.msra.mxu0 0
    %2427 = vmatprep.subr.bf16.mxu0 0
    %2428 = vmatpush1.bf16.msra.mxu0 0
    %2429 = vmatprep.subr.bf16.mxu0 0
    %2430 = vmatpush1.bf16.msra.mxu0 0
    %2431 = vmatprep.subr.bf16.mxu0 0
    %2432 = vmatpush1.bf16.msra.mxu0 0
    %2433 = vmatprep.subr.bf16.mxu0 0
    %2434 = vmatpush1.bf16.msra.mxu0 0
    %2435 = vmatprep.subr.bf16.mxu0 0
    %2436 = vmatpush1.bf16.msra.mxu0 0
    %2437 = vmatprep.subr.bf16.mxu0 0
    %2438 = vmatpush1.bf16.msra.mxu0 0
    %2439 = vmatprep.mubr.bf16.mxu0 0
    %2440 = vmatmul.mubr.bf16.gmra.mrb[0].mxu0 %v2399
    %v2441 = vpop.f32.mrb[0].mxu0
    %v2442 = vadd.f32 0.0, %v2441
    %v2443 = vpop.f32.mrb[0].mxu0
    %v2444 = vpop.f32.mrb[0].mxu0
    %v2445 = vadd.f32 0.0, %v2444
    %v2446 = vpop.f32.mrb[0].mxu0
    %2447 = vmatprep.mubr.bf16.mxu0 0
    %2448 = vmatmul.mubr.bf16.gmra.mrb[0].mxu0 %v2402
    %v2449 = vpop.f32.mrb[0].mxu0
    %v2450 = vadd.f32 0.0, %v2449
    %v2451 = vpop.f32.mrb[0].mxu0
    %v2452 = vpop.f32.mrb[0].mxu0
    %v2453 = vadd.f32 0.0, %v2452
    %v2454 = vpop.f32.mrb[0].mxu0
    %2455 = vmatprep.mubr.bf16.mxu0 0
    %2456 = vmatmul.mubr.bf16.gmra.mrb[0].mxu0 %v2405
    %v2457 = vpop.f32.mrb[0].mxu0
    %v2458 = vadd.f32 0.0, %v2457
    %v2459 = vpop.f32.mrb[0].mxu0
    %v2460 = vpop.f32.mrb[0].mxu0
    %v2461 = vadd.f32 0.0, %v2460
    %v2462 = vpop.f32.mrb[0].mxu0
    %2463 = vdwg.mxu0
    %v2464 = vpack.c.bf16 %v2445, %v2442
    %v2465 = vpack.c.bf16 %v2453, %v2450
    %v2466 = vpack.c.bf16 %v2461, %v2458
    %v2471 = vunpack.c.l.b16 %v1250
    %v2472 = vunpack.c.l.b16 %v1251
    %v2473 = vunpack.c.l.b16 %v1252
    %v2474 = vunpack.c.l.b16 %v1253
    %v2475 = vpack.c.b16 %v2472, %v2471
    %v2476 = vpack.c.b16 %v2474, %v2473
    %v2480 = vsel %vm1581, %v2464, 0
    %v2483 = vsel %vm1581, %v2465, 0
    %v2486 = vsel %vm1581, %v2466, 0
    %2488 = vmatprep.subr.bf16.mxu0 0
    %2489 = vmatpush1.bf16.msra.mxu0 %v2475
    %2490 = vmatprep.subr.bf16.mxu0 0
    %2491 = vmatpush1.bf16.msra.mxu0 %v2476
    %2492 = vmatprep.subr.bf16.mxu0 0
    %2493 = vmatpush1.bf16.msra.mxu0 0
    %2494 = vmatprep.subr.bf16.mxu0 0
    %2495 = vmatpush1.bf16.msra.mxu0 0
    %2496 = vmatprep.subr.bf16.mxu0 0
    %2497 = vmatpush1.bf16.msra.mxu0 0
    %2498 = vmatprep.subr.bf16.mxu0 0
    %2499 = vmatpush1.bf16.msra.mxu0 0
    %2500 = vmatprep.subr.bf16.mxu0 0
    %2501 = vmatpush1.bf16.msra.mxu0 0
    %2502 = vmatprep.subr.bf16.mxu0 0
    %2503 = vmatpush1.bf16.msra.mxu0 0
    %2504 = vmatprep.subr.bf16.mxu0 0
    %2505 = vmatpush1.bf16.msra.mxu0 0
    %2506 = vmatprep.subr.bf16.mxu0 0
    %2507 = vmatpush1.bf16.msra.mxu0 0
    %2508 = vmatprep.subr.bf16.mxu0 0
    %2509 = vmatpush1.bf16.msra.mxu0 0
    %2510 = vmatprep.subr.bf16.mxu0 0
    %2511 = vmatpush1.bf16.msra.mxu0 0
    %2512 = vmatprep.subr.bf16.mxu0 0
    %2513 = vmatpush1.bf16.msra.mxu0 0
    %2514 = vmatprep.subr.bf16.mxu0 0
    %2515 = vmatpush1.bf16.msra.mxu0 0
    %2516 = vmatprep.subr.bf16.mxu0 0
    %2517 = vmatpush1.bf16.msra.mxu0 0
    %2518 = vmatprep.subr.bf16.mxu0 0
    %2519 = vmatpush1.bf16.msra.mxu0 0
    %2520 = vmatprep.mubr.bf16.mxu0 0
    %2521 = vmatmul.mubr.bf16.gmra.mrb[0].mxu0 %v2480
    %v2522 = vpop.f32.mrb[0].mxu0
    %v2523 = vadd.f32 0.0, %v2522
    %v2524 = vpop.f32.mrb[0].mxu0
    %v2525 = vpop.f32.mrb[0].mxu0
    %v2526 = vadd.f32 0.0, %v2525
    %v2527 = vpop.f32.mrb[0].mxu0
    %2528 = vmatprep.mubr.bf16.mxu0 0
    %2529 = vmatmul.mubr.bf16.gmra.mrb[0].mxu0 %v2483
    %v2530 = vpop.f32.mrb[0].mxu0
    %v2531 = vadd.f32 0.0, %v2530
    %v2532 = vpop.f32.mrb[0].mxu0
    %v2533 = vpop.f32.mrb[0].mxu0
    %v2534 = vadd.f32 0.0, %v2533
    %v2535 = vpop.f32.mrb[0].mxu0
    %2536 = vmatprep.mubr.bf16.mxu0 0
    %2537 = vmatmul.mubr.bf16.gmra.mrb[0].mxu0 %v2486
    %v2538 = vpop.f32.mrb[0].mxu0
    %v2539 = vadd.f32 0.0, %v2538
    %v2540 = vpop.f32.mrb[0].mxu0
    %v2541 = vpop.f32.mrb[0].mxu0
    %v2542 = vadd.f32 0.0, %v2541
    %v2543 = vpop.f32.mrb[0].mxu0
    %2544 = vdwg.mxu0
    %v2545 = vadd.f32 %v2199, %v2523
    %v2546 = vadd.f32 %v2202, %v2526
    %v2547 = vadd.f32 %v2207, %v2531
    %v2548 = vadd.f32 %v2210, %v2534
    %v2549 = vadd.f32 %v2215, %v2539
    %v2550 = vadd.f32 %v2218, %v2542
    %2551 = vrot.lane.b32.xlu0 %v1575, 32
    %v2552 = vpop.permute.xlu0 %2551
    %2553 = vrot.lane.b32.xlu0 %v1576, 32
    %v2554 = vpop.permute.xlu0 %2553
    %2555 = vrot.lane.b32.xlu0 %v1577, 32
    %v2556 = vpop.permute.xlu0 %2555
    %2557 = vrot.lane.b32.xlu0 %v1578, 32
    %v2558 = vpop.permute.xlu0 %2557
    %2559 = vrot.lane.b32.xlu0 %v1579, 32
    %v2560 = vpop.permute.xlu0 %2559
    %2561 = vrot.lane.b32.xlu0 %v1580, 32
    %v2562 = vpop.permute.xlu0 %2561
    %v2564 = vsel %vm1581, %v2552, 0
    %v2567 = vsel %vm1581, %v2554, 0
    %v2570 = vsel %vm1581, %v2556, 0
    %v2573 = vsel %vm1581, %v2558, 0
    %v2576 = vsel %vm1581, %v2560, 0
    %v2579 = vsel %vm1581, %v2562, 0
    %2581 = vmatprep.subr.bf16.mxu0 0
    %2582 = vmatpush1.bf16.xpose.msra.mxu0 %v2573
    %2583 = vmatprep.subr.bf16.mxu0 0
    %2584 = vmatpush1.bf16.xpose.msra.mxu0 %v2576
    %2585 = vmatprep.subr.bf16.mxu0 0
    %2586 = vmatpush1.bf16.xpose.msra.mxu0 %v2579
    %2587 = vmatprep.subr.bf16.mxu0 0
    %2588 = vmatpush1.bf16.xpose.msra.mxu0 0
    %2589 = vmatprep.subr.bf16.mxu0 0
    %2590 = vmatpush1.bf16.xpose.msra.mxu0 0
    %2591 = vmatprep.subr.bf16.mxu0 0
    %2592 = vmatpush1.bf16.xpose.msra.mxu0 0
    %2593 = vmatprep.subr.bf16.mxu0 0
    %2594 = vmatpush1.bf16.xpose.msra.mxu0 0
    %2595 = vmatprep.subr.bf16.mxu0 0
    %2596 = vmatpush1.bf16.xpose.msra.mxu0 0
    %2597 = vmatprep.subr.bf16.mxu0 0
    %2598 = vmatpush1.bf16.xpose.msra.mxu0 0
    %2599 = vmatprep.subr.bf16.mxu0 0
    %2600 = vmatpush1.bf16.xpose.msra.mxu0 0
    %2601 = vmatprep.subr.bf16.mxu0 0
    %2602 = vmatpush1.bf16.xpose.msra.mxu0 0
    %2603 = vmatprep.subr.bf16.mxu0 0
    %2604 = vmatpush1.bf16.xpose.msra.mxu0 0
    %2605 = vmatprep.subr.bf16.mxu0 0
    %2606 = vmatpush1.bf16.xpose.msra.mxu0 0
    %2607 = vmatprep.subr.bf16.mxu0 0
    %2608 = vmatpush1.bf16.xpose.msra.mxu0 0
    %2609 = vmatprep.subr.bf16.mxu0 0
    %2610 = vmatpush1.bf16.xpose.msra.mxu0 0
    %2611 = vmatprep.subr.bf16.mxu0 0
    %2612 = vmatpush1.bf16.xpose.msra.mxu0 0
    %2613 = vmatprep.mubr.bf16.mxu0 0
    %2614 = vmatmul.mubr.bf16.gmra.mrb[0].mxu0 %v2564
    %v2615 = vpop.f32.mrb[0].mxu0
    %v2616 = vadd.f32 0.0, %v2615
    %v2617 = vpop.f32.mrb[0].mxu0
    %v2618 = vpop.f32.mrb[0].mxu0
    %v2619 = vadd.f32 0.0, %v2618
    %v2620 = vpop.f32.mrb[0].mxu0
    %2621 = vmatprep.mubr.bf16.mxu0 0
    %2622 = vmatmul.mubr.bf16.gmra.mrb[0].mxu0 %v2567
    %v2623 = vpop.f32.mrb[0].mxu0
    %v2624 = vadd.f32 0.0, %v2623
    %v2625 = vpop.f32.mrb[0].mxu0
    %v2626 = vpop.f32.mrb[0].mxu0
    %v2627 = vadd.f32 0.0, %v2626
    %v2628 = vpop.f32.mrb[0].mxu0
    %2629 = vmatprep.mubr.bf16.mxu0 0
    %2630 = vmatmul.mubr.bf16.gmra.mrb[0].mxu0 %v2570
    %v2631 = vpop.f32.mrb[0].mxu0
    %v2632 = vadd.f32 0.0, %v2631
    %v2633 = vpop.f32.mrb[0].mxu0
    %v2634 = vpop.f32.mrb[0].mxu0
    %v2635 = vadd.f32 0.0, %v2634
    %v2636 = vpop.f32.mrb[0].mxu0
    %2637 = vdwg.mxu0
    %v2638 = vmul.f32 %v2616, 0.17677669
    %v2639 = vmul.f32 %v2619, 0.17677669
    %v2640 = vmul.f32 %v2624, 0.17677669
    %v2641 = vmul.f32 %v2627, 0.17677669
    %v2642 = vmul.f32 %v2632, 0.17677669
    %v2643 = vmul.f32 %v2635, 0.17677669
    %v2644 = vadd.f32 %v2638, %v1198
    %v2645 = vadd.f32 %v2639, %v1199
    %v2646 = vadd.f32 %v2640, %v1200
    %v2647 = vadd.f32 %v2641, %v1201
    %v2648 = vadd.f32 %v2642, %v1202
    %v2649 = vadd.f32 %v2643, %v1203
    %v2650 = vsel %vm82, %v2644, -inf
    %2651 = vmax.xlane.f32.xlu0 %v2650
    %v2652 = vpop.xlane.xlu0 %2651
    %v2653 = vsel %vm82, %v2645, -inf
    %2654 = vmax.xlane.f32.xlu0 %v2653
    %v2655 = vpop.xlane.xlu0 %2654
    %v2656 = vsel %vm82, %v2646, -inf
    %2657 = vmax.xlane.f32.xlu0 %v2656
    %v2658 = vpop.xlane.xlu0 %2657
    %v2659 = vsel %vm82, %v2647, -inf
    %2660 = vmax.xlane.f32.xlu0 %v2659
    %v2661 = vpop.xlane.xlu0 %2660
    %v2662 = vsel %vm82, %v2648, -inf
    %2663 = vmax.xlane.f32.xlu0 %v2662
    %v2664 = vpop.xlane.xlu0 %2663
    %v2665 = vsel %vm82, %v2649, -inf
    %2666 = vmax.xlane.f32.xlu0 %v2665
    %v2667 = vpop.xlane.xlu0 %2666
    %v2668 = vsub.f32 %v2644, %v2652
    %v2669 = vsub.f32 %v2645, %v2655
    %v2670 = vsub.f32 %v2646, %v2658
    %v2671 = vsub.f32 %v2647, %v2661
    %v2672 = vsub.f32 %v2648, %v2664
    %v2673 = vsub.f32 %v2649, %v2667
    %v2674 = vmul.f32 %v2668, 1.442695
    %v2675 = vpow.pop %v2674
    %v2676 = vmul.f32 %v2669, 1.442695
    %v2677 = vpow.pop %v2676
    %v2678 = vmul.f32 %v2670, 1.442695
    %v2679 = vpow.pop %v2678
    %v2680 = vmul.f32 %v2671, 1.442695
    %v2681 = vpow.pop %v2680
    %v2682 = vmul.f32 %v2672, 1.442695
    %v2683 = vpow.pop %v2682
    %v2684 = vmul.f32 %v2673, 1.442695
    %v2685 = vpow.pop %v2684
    %v2686 = vsel %vm82, %v2675, 0.0
    %2687 = vadd.xlane.f32.xlu0 %v2686
    %v2688 = vpop.xlane.xlu0 %2687
    %v2689 = vsel %vm82, %v2677, 0.0
    %2690 = vadd.xlane.f32.xlu0 %v2689
    %v2691 = vpop.xlane.xlu0 %2690
    %v2692 = vsel %vm82, %v2679, 0.0
    %2693 = vadd.xlane.f32.xlu0 %v2692
    %v2694 = vpop.xlane.xlu0 %2693
    %v2695 = vsel %vm82, %v2681, 0.0
    %2696 = vadd.xlane.f32.xlu0 %v2695
    %v2697 = vpop.xlane.xlu0 %2696
    %v2698 = vsel %vm82, %v2683, 0.0
    %2699 = vadd.xlane.f32.xlu0 %v2698
    %v2700 = vpop.xlane.xlu0 %2699
    %v2701 = vsel %vm82, %v2685, 0.0
    %2702 = vadd.xlane.f32.xlu0 %v2701
    %v2703 = vpop.xlane.xlu0 %2702
    %v2704 = vrcp.pop %v2688
    %v2705 = vrcp.pop %v2691
    %v2706 = vrcp.pop %v2694
    %v2707 = vrcp.pop %v2697
    %v2708 = vrcp.pop %v2700
    %v2709 = vrcp.pop %v2703
    %v2710 = vmul.f32 %v2675, %v2704
    %v2711 = vmul.f32 %v2677, %v2705
    %v2712 = vmul.f32 %v2679, %v2706
    %v2713 = vmul.f32 %v2681, %v2707
    %v2714 = vmul.f32 %v2683, %v2708
    %v2715 = vmul.f32 %v2685, %v2709
    %v2716 = vpack.c.bf16 %v2711, %v2710
    %v2717 = vpack.c.bf16 %v2713, %v2712
    %v2718 = vpack.c.bf16 %v2715, %v2714
    %2719 = vrot.lane.b32.xlu0 %v1738, 32
    %v2720 = vpop.permute.xlu0 %2719
    %2721 = vrot.lane.b32.xlu0 %v1739, 32
    %v2722 = vpop.permute.xlu0 %2721
    %2723 = vrot.lane.b32.xlu0 %v1740, 32
    %v2724 = vpop.permute.xlu0 %2723
    %v2729 = vsel %vm82, %v2716, 0
    %v2732 = vsel %vm82, %v2717, 0
    %v2735 = vsel %vm82, %v2718, 0
    %2737 = vmatprep.subr.bf16.mxu0 0
    %2738 = vmatpush1.bf16.msra.mxu0 %v2720
    %2739 = vmatprep.subr.bf16.mxu0 0
    %2740 = vmatpush1.bf16.msra.mxu0 %v2722
    %2741 = vmatprep.subr.bf16.mxu0 0
    %2742 = vmatpush1.bf16.msra.mxu0 %v2724
    %2743 = vmatprep.subr.bf16.mxu0 0
    %2744 = vmatpush1.bf16.msra.mxu0 0
    %2745 = vmatprep.subr.bf16.mxu0 0
    %2746 = vmatpush1.bf16.msra.mxu0 0
    %2747 = vmatprep.subr.bf16.mxu0 0
    %2748 = vmatpush1.bf16.msra.mxu0 0
    %2749 = vmatprep.subr.bf16.mxu0 0
    %2750 = vmatpush1.bf16.msra.mxu0 0
    %2751 = vmatprep.subr.bf16.mxu0 0
    %2752 = vmatpush1.bf16.msra.mxu0 0
    %2753 = vmatprep.subr.bf16.mxu0 0
    %2754 = vmatpush1.bf16.msra.mxu0 0
    %2755 = vmatprep.subr.bf16.mxu0 0
    %2756 = vmatpush1.bf16.msra.mxu0 0
    %2757 = vmatprep.subr.bf16.mxu0 0
    %2758 = vmatpush1.bf16.msra.mxu0 0
    %2759 = vmatprep.subr.bf16.mxu0 0
    %2760 = vmatpush1.bf16.msra.mxu0 0
    %2761 = vmatprep.subr.bf16.mxu0 0
    %2762 = vmatpush1.bf16.msra.mxu0 0
    %2763 = vmatprep.subr.bf16.mxu0 0
    %2764 = vmatpush1.bf16.msra.mxu0 0
    %2765 = vmatprep.subr.bf16.mxu0 0
    %2766 = vmatpush1.bf16.msra.mxu0 0
    %2767 = vmatprep.subr.bf16.mxu0 0
    %2768 = vmatpush1.bf16.msra.mxu0 0
    %2769 = vmatprep.mubr.bf16.mxu0 0
    %2770 = vmatmul.mubr.bf16.gmra.mrb[0].mxu0 %v2729
    %v2771 = vpop.f32.mrb[0].mxu0
    %v2772 = vadd.f32 0.0, %v2771
    %v2773 = vpop.f32.mrb[0].mxu0
    %v2774 = vpop.f32.mrb[0].mxu0
    %v2775 = vadd.f32 0.0, %v2774
    %v2776 = vpop.f32.mrb[0].mxu0
    %2777 = vmatprep.mubr.bf16.mxu0 0
    %2778 = vmatmul.mubr.bf16.gmra.mrb[0].mxu0 %v2732
    %v2779 = vpop.f32.mrb[0].mxu0
    %v2780 = vadd.f32 0.0, %v2779
    %v2781 = vpop.f32.mrb[0].mxu0
    %v2782 = vpop.f32.mrb[0].mxu0
    %v2783 = vadd.f32 0.0, %v2782
    %v2784 = vpop.f32.mrb[0].mxu0
    %2785 = vmatprep.mubr.bf16.mxu0 0
    %2786 = vmatmul.mubr.bf16.gmra.mrb[0].mxu0 %v2735
    %v2787 = vpop.f32.mrb[0].mxu0
    %v2788 = vadd.f32 0.0, %v2787
    %v2789 = vpop.f32.mrb[0].mxu0
    %v2790 = vpop.f32.mrb[0].mxu0
    %v2791 = vadd.f32 0.0, %v2790
    %v2792 = vpop.f32.mrb[0].mxu0
    %2793 = vdwg.mxu0
    %v2794 = vpack.c.bf16 %v2775, %v2772
    %v2795 = vpack.c.bf16 %v2783, %v2780
    %v2796 = vpack.c.bf16 %v2791, %v2788
    %v2801 = vunpack.c.l.b16 %v1254
    %v2802 = vunpack.c.l.b16 %v1255
    %v2803 = vunpack.c.l.b16 %v1256
    %v2804 = vunpack.c.l.b16 %v1257
    %v2805 = vpack.c.b16 %v2802, %v2801
    %v2806 = vpack.c.b16 %v2804, %v2803
    %v2810 = vsel %vm1581, %v2794, 0
    %v2813 = vsel %vm1581, %v2795, 0
    %v2816 = vsel %vm1581, %v2796, 0
    %2818 = vmatprep.subr.bf16.mxu0 0
    %2819 = vmatpush1.bf16.msra.mxu0 %v2805
    %2820 = vmatprep.subr.bf16.mxu0 0
    %2821 = vmatpush1.bf16.msra.mxu0 %v2806
    %2822 = vmatprep.subr.bf16.mxu0 0
    %2823 = vmatpush1.bf16.msra.mxu0 0
    %2824 = vmatprep.subr.bf16.mxu0 0
    %2825 = vmatpush1.bf16.msra.mxu0 0
    %2826 = vmatprep.subr.bf16.mxu0 0
    %2827 = vmatpush1.bf16.msra.mxu0 0
    %2828 = vmatprep.subr.bf16.mxu0 0
    %2829 = vmatpush1.bf16.msra.mxu0 0
    %2830 = vmatprep.subr.bf16.mxu0 0
    %2831 = vmatpush1.bf16.msra.mxu0 0
    %2832 = vmatprep.subr.bf16.mxu0 0
    %2833 = vmatpush1.bf16.msra.mxu0 0
    %2834 = vmatprep.subr.bf16.mxu0 0
    %2835 = vmatpush1.bf16.msra.mxu0 0
    %2836 = vmatprep.subr.bf16.mxu0 0
    %2837 = vmatpush1.bf16.msra.mxu0 0
    %2838 = vmatprep.subr.bf16.mxu0 0
    %2839 = vmatpush1.bf16.msra.mxu0 0
    %2840 = vmatprep.subr.bf16.mxu0 0
    %2841 = vmatpush1.bf16.msra.mxu0 0
    %2842 = vmatprep.subr.bf16.mxu0 0
    %2843 = vmatpush1.bf16.msra.mxu0 0
    %2844 = vmatprep.subr.bf16.mxu0 0
    %2845 = vmatpush1.bf16.msra.mxu0 0
    %2846 = vmatprep.subr.bf16.mxu0 0
    %2847 = vmatpush1.bf16.msra.mxu0 0
    %2848 = vmatprep.subr.bf16.mxu0 0
    %2849 = vmatpush1.bf16.msra.mxu0 0
    %2850 = vmatprep.mubr.bf16.mxu0 0
    %2851 = vmatmul.mubr.bf16.gmra.mrb[0].mxu0 %v2810
    %v2852 = vpop.f32.mrb[0].mxu0
    %v2853 = vadd.f32 0.0, %v2852
    %v2854 = vpop.f32.mrb[0].mxu0
    %v2855 = vpop.f32.mrb[0].mxu0
    %v2856 = vadd.f32 0.0, %v2855
    %v2857 = vpop.f32.mrb[0].mxu0
    %2858 = vmatprep.mubr.bf16.mxu0 0
    %2859 = vmatmul.mubr.bf16.gmra.mrb[0].mxu0 %v2813
    %v2860 = vpop.f32.mrb[0].mxu0
    %v2861 = vadd.f32 0.0, %v2860
    %v2862 = vpop.f32.mrb[0].mxu0
    %v2863 = vpop.f32.mrb[0].mxu0
    %v2864 = vadd.f32 0.0, %v2863
    %v2865 = vpop.f32.mrb[0].mxu0
    %2866 = vmatprep.mubr.bf16.mxu0 0
    %2867 = vmatmul.mubr.bf16.gmra.mrb[0].mxu0 %v2816
    %v2868 = vpop.f32.mrb[0].mxu0
    %v2869 = vadd.f32 0.0, %v2868
    %v2870 = vpop.f32.mrb[0].mxu0
    %v2871 = vpop.f32.mrb[0].mxu0
    %v2872 = vadd.f32 0.0, %v2871
    %v2873 = vpop.f32.mrb[0].mxu0
    %2874 = vdwg.mxu0
    %v2875 = vadd.f32 %v2545, %v2853
    %v2876 = vadd.f32 %v2546, %v2856
    %v2877 = vadd.f32 %v2547, %v2861
    %v2878 = vadd.f32 %v2548, %v2864
    %v2879 = vadd.f32 %v2549, %v2869
    %v2880 = vadd.f32 %v2550, %v2872
    %v2881 = vlaneseq
    %v2882 = vshrl.u32 %v2881, 7
    %v2883 = vsub.s32 0, %v2882
    %v2884 = vrot.slane %v1204, %v2883
    %v2885 = vadd.f32 %v2875, %v2884
    %v2886 = vadd.f32 %v2876, %v2884
    %v2887 = vadd.f32 %v2877, %v2884
    %v2888 = vadd.f32 %v2878, %v2884
    %v2889 = vadd.f32 %v2879, %v2884
    %v2890 = vadd.f32 %v2880, %v2884
    %v2891 = vadd.f32 %v1106, %v2885
    %v2892 = vadd.f32 %v1107, %v2886
    %v2893 = vadd.f32 %v1108, %v2887
    %v2894 = vadd.f32 %v1109, %v2888
    %v2895 = vadd.f32 %v1110, %v2889
    %v2896 = vadd.f32 %v1111, %v2890
    %2897 = vadd.xlane.f32.xlu0 %v2891
    %v2898 = vpop.xlane.xlu0 %2897
    %2899 = vadd.xlane.f32.xlu0 %v2892
    %v2900 = vpop.xlane.xlu0 %2899
    %2901 = vadd.xlane.f32.xlu0 %v2893
    %v2902 = vpop.xlane.xlu0 %2901
    %2903 = vadd.xlane.f32.xlu0 %v2894
    %v2904 = vpop.xlane.xlu0 %2903
    %2905 = vadd.xlane.f32.xlu0 %v2895
    %v2906 = vpop.xlane.xlu0 %2905
    %2907 = vadd.xlane.f32.xlu0 %v2896
    %v2908 = vpop.xlane.xlu0 %2907
    %v2909 = vmul.f32 %v2898, %v399
    %v2910 = vmul.f32 %v2900, %v399
    %v2911 = vmul.f32 %v2902, %v399
    %v2912 = vmul.f32 %v2904, %v399
    %v2913 = vmul.f32 %v2906, %v399
    %v2914 = vmul.f32 %v2908, %v399
    %v2915 = vsub.f32 %v2891, %v2909
    %v2916 = vsub.f32 %v2892, %v2910
    %v2917 = vsub.f32 %v2893, %v2911
    %v2918 = vsub.f32 %v2894, %v2912
    %v2919 = vsub.f32 %v2895, %v2913
    %v2920 = vsub.f32 %v2896, %v2914
    %v2921 = vmul.f32 %v2915, %v2915
    %v2922 = vmul.f32 %v2916, %v2916
    %v2923 = vmul.f32 %v2917, %v2917
    %v2924 = vmul.f32 %v2918, %v2918
    %v2925 = vmul.f32 %v2919, %v2919
    %v2926 = vmul.f32 %v2920, %v2920
    %2927 = vadd.xlane.f32.xlu0 %v2921
    %v2928 = vpop.xlane.xlu0 %2927
    %2929 = vadd.xlane.f32.xlu0 %v2922
    %v2930 = vpop.xlane.xlu0 %2929
    %2931 = vadd.xlane.f32.xlu0 %v2923
    %v2932 = vpop.xlane.xlu0 %2931
    %2933 = vadd.xlane.f32.xlu0 %v2924
    %v2934 = vpop.xlane.xlu0 %2933
    %2935 = vadd.xlane.f32.xlu0 %v2925
    %v2936 = vpop.xlane.xlu0 %2935
    %2937 = vadd.xlane.f32.xlu0 %v2926
    %v2938 = vpop.xlane.xlu0 %2937
    %v2939 = vmul.f32 %v2928, %v399
    %v2940 = vmul.f32 %v2930, %v399
    %v2941 = vmul.f32 %v2932, %v399
    %v2942 = vmul.f32 %v2934, %v399
    %v2943 = vmul.f32 %v2936, %v399
    %v2944 = vmul.f32 %v2938, %v399
    %v2945 = vadd.f32 %v2939, 1e-05
    %v2946 = vadd.f32 %v2940, 1e-05
    %v2947 = vadd.f32 %v2941, 1e-05
    %v2948 = vadd.f32 %v2942, 1e-05
    %v2949 = vadd.f32 %v2943, 1e-05
    %v2950 = vadd.f32 %v2944, 1e-05
    %v2951 = vrsqrt.pop %v2945
    %v2952 = vrsqrt.pop %v2946
    %v2953 = vrsqrt.pop %v2947
    %v2954 = vrsqrt.pop %v2948
    %v2955 = vrsqrt.pop %v2949
    %v2956 = vrsqrt.pop %v2950
    %v2957 = vmul.f32 %v2915, %v2951
    %v2958 = vmul.f32 %v2916, %v2952
    %v2959 = vmul.f32 %v2917, %v2953
    %v2960 = vmul.f32 %v2918, %v2954
    %v2961 = vmul.f32 %v2919, %v2955
    %v2962 = vmul.f32 %v2920, %v2956
    %v2963 = vlaneseq
    %v2964 = vshrl.u32 %v2963, 7
    %v2965 = vsub.s32 0, %v2964
    %v2966 = vrot.slane %v1205, %v2965
    %v2967 = vmul.f32 %v2957, %v2966
    %v2968 = vmul.f32 %v2958, %v2966
    %v2969 = vmul.f32 %v2959, %v2966
    %v2970 = vmul.f32 %v2960, %v2966
    %v2971 = vmul.f32 %v2961, %v2966
    %v2972 = vmul.f32 %v2962, %v2966
    %v2973 = vlaneseq
    %v2974 = vshrl.u32 %v2973, 7
    %v2975 = vsub.s32 0, %v2974
    %v2976 = vrot.slane %v1206, %v2975
    %v2977 = vadd.f32 %v2967, %v2976
    %v2978 = vadd.f32 %v2968, %v2976
    %v2979 = vadd.f32 %v2969, %v2976
    %v2980 = vadd.f32 %v2970, %v2976
    %v2981 = vadd.f32 %v2971, %v2976
    %v2982 = vadd.f32 %v2972, %v2976
    %v2983 = vpack.c.bf16 %v2978, %v2977
    %v2984 = vpack.c.bf16 %v2980, %v2979
    %v2985 = vpack.c.bf16 %v2982, %v2981
    %v2987 = vlaneseq
    %v2988 = vshrl.u32 %v2987, 7
    %v2989 = vsub.s32 0, %v2988
    %v2990 = vrot.slane %v1307, %v2989
    %v2991 = vlaneseq
    %v2992 = vshrl.u32 %v2991, 7
    %v2993 = vsub.s32 1, %v2992
    %v2994 = vrot.slane %v1307, %v2993
    %v3013 = vunpack.c.l.b16 %v1258
    %v3014 = vunpack.c.h.b16 %v1258
    %v3015 = vunpack.c.l.b16 %v1259
    %v3016 = vunpack.c.h.b16 %v1259
    %v3017 = vunpack.c.l.b16 %v1260
    %v3018 = vunpack.c.h.b16 %v1260
    %v3019 = vunpack.c.l.b16 %v1261
    %v3020 = vunpack.c.h.b16 %v1261
    %v3021 = vunpack.c.l.b16 %v1262
    %v3022 = vunpack.c.h.b16 %v1262
    %v3023 = vunpack.c.l.b16 %v1263
    %v3024 = vunpack.c.h.b16 %v1263
    %v3025 = vunpack.c.l.b16 %v1264
    %v3026 = vunpack.c.h.b16 %v1264
    %v3027 = vunpack.c.l.b16 %v1265
    %v3028 = vunpack.c.h.b16 %v1265
    %v3029 = vunpack.c.l.b16 %v1266
    %v3030 = vunpack.c.h.b16 %v1266
    %v3031 = vunpack.c.l.b16 %v1267
    %v3032 = vunpack.c.h.b16 %v1267
    %v3033 = vunpack.c.l.b16 %v1268
    %v3034 = vunpack.c.h.b16 %v1268
    %v3035 = vunpack.c.l.b16 %v1269
    %v3036 = vunpack.c.h.b16 %v1269
    %v3037 = vunpack.c.l.b16 %v1270
    %v3038 = vunpack.c.h.b16 %v1270
    %v3039 = vunpack.c.l.b16 %v1271
    %v3040 = vunpack.c.h.b16 %v1271
    %v3041 = vunpack.c.l.b16 %v1272
    %v3042 = vunpack.c.h.b16 %v1272
    %v3043 = vunpack.c.l.b16 %v1273
    %v3044 = vunpack.c.h.b16 %v1273
    %v3045 = vpack.c.b16 %v3015, %v3013
    %v3046 = vpack.c.b16 %v3016, %v3014
    %v3047 = vpack.c.b16 %v3019, %v3017
    %v3048 = vpack.c.b16 %v3020, %v3018
    %v3049 = vpack.c.b16 %v3023, %v3021
    %v3050 = vpack.c.b16 %v3024, %v3022
    %v3051 = vpack.c.b16 %v3027, %v3025
    %v3052 = vpack.c.b16 %v3028, %v3026
    %v3053 = vpack.c.b16 %v3031, %v3029
    %v3054 = vpack.c.b16 %v3032, %v3030
    %v3055 = vpack.c.b16 %v3035, %v3033
    %v3056 = vpack.c.b16 %v3036, %v3034
    %v3057 = vpack.c.b16 %v3039, %v3037
    %v3058 = vpack.c.b16 %v3040, %v3038
    %v3059 = vpack.c.b16 %v3043, %v3041
    %v3060 = vpack.c.b16 %v3044, %v3042
    %3077 = vmatprep.subr.bf16.mxu0 %v3046
    %3078 = vmatpush1.bf16.msra.mxu0 %v3045
    %3079 = vmatprep.subr.bf16.mxu0 %v3048
    %3080 = vmatpush1.bf16.msra.mxu0 %v3047
    %3081 = vmatprep.subr.bf16.mxu0 %v3050
    %3082 = vmatpush1.bf16.msra.mxu0 %v3049
    %3083 = vmatprep.subr.bf16.mxu0 %v3052
    %3084 = vmatpush1.bf16.msra.mxu0 %v3051
    %3085 = vmatprep.subr.bf16.mxu0 %v3054
    %3086 = vmatpush1.bf16.msra.mxu0 %v3053
    %3087 = vmatprep.subr.bf16.mxu0 %v3056
    %3088 = vmatpush1.bf16.msra.mxu0 %v3055
    %3089 = vmatprep.subr.bf16.mxu0 %v3058
    %3090 = vmatpush1.bf16.msra.mxu0 %v3057
    %3091 = vmatprep.subr.bf16.mxu0 %v3060
    %3092 = vmatpush1.bf16.msra.mxu0 %v3059
    %3093 = vmatprep.subr.bf16.mxu0 0
    %3094 = vmatpush1.bf16.msra.mxu0 0
    %3095 = vmatprep.subr.bf16.mxu0 0
    %3096 = vmatpush1.bf16.msra.mxu0 0
    %3097 = vmatprep.subr.bf16.mxu0 0
    %3098 = vmatpush1.bf16.msra.mxu0 0
    %3099 = vmatprep.subr.bf16.mxu0 0
    %3100 = vmatpush1.bf16.msra.mxu0 0
    %3101 = vmatprep.subr.bf16.mxu0 0
    %3102 = vmatpush1.bf16.msra.mxu0 0
    %3103 = vmatprep.subr.bf16.mxu0 0
    %3104 = vmatpush1.bf16.msra.mxu0 0
    %3105 = vmatprep.subr.bf16.mxu0 0
    %3106 = vmatpush1.bf16.msra.mxu0 0
    %3107 = vmatprep.subr.bf16.mxu0 0
    %3108 = vmatpush1.bf16.msra.mxu0 0
    %3109 = vmatprep.mubr.bf16.mxu0 0
    %3110 = vmatmul.mubr.bf16.gmra.mrb[0].mxu0 %v2983
    %v3111 = vpop.f32.mrb[0].mxu0
    %v3112 = vadd.f32 %v2990, %v3111
    %v3113 = vpop.f32.mrb[0].mxu0
    %v3114 = vadd.f32 %v2994, %v3113
    %v3115 = vpop.f32.mrb[0].mxu0
    %v3116 = vadd.f32 %v2990, %v3115
    %v3117 = vpop.f32.mrb[0].mxu0
    %v3118 = vadd.f32 %v2994, %v3117
    %3119 = vmatprep.mubr.bf16.mxu0 0
    %3120 = vmatmul.mubr.bf16.gmra.mrb[0].mxu0 %v2984
    %v3121 = vpop.f32.mrb[0].mxu0
    %v3122 = vadd.f32 %v2990, %v3121
    %v3123 = vpop.f32.mrb[0].mxu0
    %v3124 = vadd.f32 %v2994, %v3123
    %v3125 = vpop.f32.mrb[0].mxu0
    %v3126 = vadd.f32 %v2990, %v3125
    %v3127 = vpop.f32.mrb[0].mxu0
    %v3128 = vadd.f32 %v2994, %v3127
    %3129 = vmatprep.mubr.bf16.mxu0 0
    %3130 = vmatmul.mubr.bf16.gmra.mrb[0].mxu0 %v2985
    %v3131 = vpop.f32.mrb[0].mxu0
    %v3132 = vadd.f32 %v2990, %v3131
    %v3133 = vpop.f32.mrb[0].mxu0
    %v3134 = vadd.f32 %v2994, %v3133
    %v3135 = vpop.f32.mrb[0].mxu0
    %v3136 = vadd.f32 %v2990, %v3135
    %v3137 = vpop.f32.mrb[0].mxu0
    %v3138 = vadd.f32 %v2994, %v3137
    %3139 = vdwg.mxu0
    %v3140 = vmax.f32 %v3112, 0.0
    %v3141 = vmax.f32 %v3114, 0.0
    %v3142 = vmax.f32 %v3116, 0.0
    %v3143 = vmax.f32 %v3118, 0.0
    %v3144 = vmax.f32 %v3122, 0.0
    %v3145 = vmax.f32 %v3124, 0.0
    %v3146 = vmax.f32 %v3126, 0.0
    %v3147 = vmax.f32 %v3128, 0.0
    %v3148 = vmax.f32 %v3132, 0.0
    %v3149 = vmax.f32 %v3134, 0.0
    %v3150 = vmax.f32 %v3136, 0.0
    %v3151 = vmax.f32 %v3138, 0.0
    %v3152 = vpack.c.bf16 %v3142, %v3140
    %v3153 = vpack.c.bf16 %v3143, %v3141
    %v3154 = vpack.c.bf16 %v3146, %v3144
    %v3155 = vpack.c.bf16 %v3147, %v3145
    %v3156 = vpack.c.bf16 %v3150, %v3148
    %v3157 = vpack.c.bf16 %v3151, %v3149
    %v3158 = vlaneseq
    %v3159 = vshrl.u32 %v3158, 7
    %v3160 = vsub.s32 0, %v3159
    %v3161 = vrot.slane %v1207, %v3160
    %v3194 = vunpack.c.l.b16 %v1274
    %v3195 = vunpack.c.l.b16 %v1275
    %v3196 = vunpack.c.l.b16 %v1276
    %v3197 = vunpack.c.l.b16 %v1277
    %v3198 = vunpack.c.l.b16 %v1278
    %v3199 = vunpack.c.l.b16 %v1279
    %v3200 = vunpack.c.l.b16 %v1280
    %v3201 = vunpack.c.l.b16 %v1281
    %v3202 = vunpack.c.l.b16 %v1282
    %v3203 = vunpack.c.l.b16 %v1283
    %v3204 = vunpack.c.l.b16 %v1284
    %v3205 = vunpack.c.l.b16 %v1285
    %v3206 = vunpack.c.l.b16 %v1286
    %v3207 = vunpack.c.l.b16 %v1287
    %v3208 = vunpack.c.l.b16 %v1288
    %v3209 = vunpack.c.l.b16 %v1289
    %v3210 = vunpack.c.l.b16 %v1290
    %v3211 = vunpack.c.l.b16 %v1291
    %v3212 = vunpack.c.l.b16 %v1292
    %v3213 = vunpack.c.l.b16 %v1293
    %v3214 = vunpack.c.l.b16 %v1294
    %v3215 = vunpack.c.l.b16 %v1295
    %v3216 = vunpack.c.l.b16 %v1296
    %v3217 = vunpack.c.l.b16 %v1297
    %v3218 = vunpack.c.l.b16 %v1298
    %v3219 = vunpack.c.l.b16 %v1299
    %v3220 = vunpack.c.l.b16 %v1300
    %v3221 = vunpack.c.l.b16 %v1301
    %v3222 = vunpack.c.l.b16 %v1302
    %v3223 = vunpack.c.l.b16 %v1303
    %v3224 = vunpack.c.l.b16 %v1304
    %v3225 = vunpack.c.l.b16 %v1305
    %v3226 = vpack.c.b16 %v3195, %v3194
    %v3227 = vpack.c.b16 %v3197, %v3196
    %v3228 = vpack.c.b16 %v3199, %v3198
    %v3229 = vpack.c.b16 %v3201, %v3200
    %v3230 = vpack.c.b16 %v3203, %v3202
    %v3231 = vpack.c.b16 %v3205, %v3204
    %v3232 = vpack.c.b16 %v3207, %v3206
    %v3233 = vpack.c.b16 %v3209, %v3208
    %v3234 = vpack.c.b16 %v3211, %v3210
    %v3235 = vpack.c.b16 %v3213, %v3212
    %v3236 = vpack.c.b16 %v3215, %v3214
    %v3237 = vpack.c.b16 %v3217, %v3216
    %v3238 = vpack.c.b16 %v3219, %v3218
    %v3239 = vpack.c.b16 %v3221, %v3220
    %v3240 = vpack.c.b16 %v3223, %v3222
    %v3241 = vpack.c.b16 %v3225, %v3224
    %3258 = vmatprep.subr.bf16.mxu0 0
    %3259 = vmatpush1.bf16.msra.mxu0 %v3226
    %3260 = vmatprep.subr.bf16.mxu0 0
    %3261 = vmatpush1.bf16.msra.mxu0 %v3227
    %3262 = vmatprep.subr.bf16.mxu0 0
    %3263 = vmatpush1.bf16.msra.mxu0 %v3228
    %3264 = vmatprep.subr.bf16.mxu0 0
    %3265 = vmatpush1.bf16.msra.mxu0 %v3229
    %3266 = vmatprep.subr.bf16.mxu0 0
    %3267 = vmatpush1.bf16.msra.mxu0 %v3230
    %3268 = vmatprep.subr.bf16.mxu0 0
    %3269 = vmatpush1.bf16.msra.mxu0 %v3231
    %3270 = vmatprep.subr.bf16.mxu0 0
    %3271 = vmatpush1.bf16.msra.mxu0 %v3232
    %3272 = vmatprep.subr.bf16.mxu0 0
    %3273 = vmatpush1.bf16.msra.mxu0 %v3233
    %3274 = vmatprep.subr.bf16.mxu0 0
    %3275 = vmatpush1.bf16.msra.mxu0 %v3234
    %3276 = vmatprep.subr.bf16.mxu0 0
    %3277 = vmatpush1.bf16.msra.mxu0 %v3235
    %3278 = vmatprep.subr.bf16.mxu0 0
    %3279 = vmatpush1.bf16.msra.mxu0 %v3236
    %3280 = vmatprep.subr.bf16.mxu0 0
    %3281 = vmatpush1.bf16.msra.mxu0 %v3237
    %3282 = vmatprep.subr.bf16.mxu0 0
    %3283 = vmatpush1.bf16.msra.mxu0 %v3238
    %3284 = vmatprep.subr.bf16.mxu0 0
    %3285 = vmatpush1.bf16.msra.mxu0 %v3239
    %3286 = vmatprep.subr.bf16.mxu0 0
    %3287 = vmatpush1.bf16.msra.mxu0 %v3240
    %3288 = vmatprep.subr.bf16.mxu0 0
    %3289 = vmatpush1.bf16.msra.mxu0 %v3241
    %3290 = vmatprep.mubr.bf16.mxu0 %v3153
    %3291 = vmatmul.mubr.bf16.gmra.mrb[0].mxu0 %v3152
    %v3292 = vpop.f32.mrb[0].mxu0
    %v3293 = vadd.f32 %v3161, %v3292
    %v3294 = vpop.f32.mrb[0].mxu0
    %v3295 = vpop.f32.mrb[0].mxu0
    %v3296 = vadd.f32 %v3161, %v3295
    %v3297 = vpop.f32.mrb[0].mxu0
    %3298 = vmatprep.mubr.bf16.mxu0 %v3155
    %3299 = vmatmul.mubr.bf16.gmra.mrb[0].mxu0 %v3154
    %v3300 = vpop.f32.mrb[0].mxu0
    %v3301 = vadd.f32 %v3161, %v3300
    %v3302 = vpop.f32.mrb[0].mxu0
    %v3303 = vpop.f32.mrb[0].mxu0
    %v3304 = vadd.f32 %v3161, %v3303
    %v3305 = vpop.f32.mrb[0].mxu0
    %3306 = vmatprep.mubr.bf16.mxu0 %v3157
    %3307 = vmatmul.mubr.bf16.gmra.mrb[0].mxu0 %v3156
    %v3308 = vpop.f32.mrb[0].mxu0
    %v3309 = vadd.f32 %v3161, %v3308
    %v3310 = vpop.f32.mrb[0].mxu0
    %v3311 = vpop.f32.mrb[0].mxu0
    %v3312 = vadd.f32 %v3161, %v3311
    %v3313 = vpop.f32.mrb[0].mxu0
    %3314 = vdwg.mxu0
    %v3315 = vadd.f32 %v2977, %v3293
    %v3316 = vadd.f32 %v2978, %v3296
    %v3317 = vadd.f32 %v2979, %v3301
    %v3318 = vadd.f32 %v2980, %v3304
    %v3319 = vadd.f32 %v2981, %v3309
    %v3320 = vadd.f32 %v2982, %v3312
    %3321 = vadd.xlane.f32.xlu0 %v3315
    %v3322 = vpop.xlane.xlu0 %3321
    %3323 = vadd.xlane.f32.xlu0 %v3316
    %v3324 = vpop.xlane.xlu0 %3323
    %3325 = vadd.xlane.f32.xlu0 %v3317
    %v3326 = vpop.xlane.xlu0 %3325
    %3327 = vadd.xlane.f32.xlu0 %v3318
    %v3328 = vpop.xlane.xlu0 %3327
    %3329 = vadd.xlane.f32.xlu0 %v3319
    %v3330 = vpop.xlane.xlu0 %3329
    %3331 = vadd.xlane.f32.xlu0 %v3320
    %v3332 = vpop.xlane.xlu0 %3331
    %v3333 = vmul.f32 %v3322, %v399
    %v3334 = vmul.f32 %v3324, %v399
    %v3335 = vmul.f32 %v3326, %v399
    %v3336 = vmul.f32 %v3328, %v399
    %v3337 = vmul.f32 %v3330, %v399
    %v3338 = vmul.f32 %v3332, %v399
    %v3339 = vsub.f32 %v3315, %v3333
    %v3340 = vsub.f32 %v3316, %v3334
    %v3341 = vsub.f32 %v3317, %v3335
    %v3342 = vsub.f32 %v3318, %v3336
    %v3343 = vsub.f32 %v3319, %v3337
    %v3344 = vsub.f32 %v3320, %v3338
    %v3345 = vmul.f32 %v3339, %v3339
    %v3346 = vmul.f32 %v3340, %v3340
    %v3347 = vmul.f32 %v3341, %v3341
    %v3348 = vmul.f32 %v3342, %v3342
    %v3349 = vmul.f32 %v3343, %v3343
    %v3350 = vmul.f32 %v3344, %v3344
    %3351 = vadd.xlane.f32.xlu0 %v3345
    %v3352 = vpop.xlane.xlu0 %3351
    %3353 = vadd.xlane.f32.xlu0 %v3346
    %v3354 = vpop.xlane.xlu0 %3353
    %3355 = vadd.xlane.f32.xlu0 %v3347
    %v3356 = vpop.xlane.xlu0 %3355
    %3357 = vadd.xlane.f32.xlu0 %v3348
    %v3358 = vpop.xlane.xlu0 %3357
    %3359 = vadd.xlane.f32.xlu0 %v3349
    %v3360 = vpop.xlane.xlu0 %3359
    %3361 = vadd.xlane.f32.xlu0 %v3350
    %v3362 = vpop.xlane.xlu0 %3361
    %v3363 = vmul.f32 %v3352, %v399
    %v3364 = vmul.f32 %v3354, %v399
    %v3365 = vmul.f32 %v3356, %v399
    %v3366 = vmul.f32 %v3358, %v399
    %v3367 = vmul.f32 %v3360, %v399
    %v3368 = vmul.f32 %v3362, %v399
    %v3369 = vadd.f32 %v3363, 1e-05
    %v3370 = vadd.f32 %v3364, 1e-05
    %v3371 = vadd.f32 %v3365, 1e-05
    %v3372 = vadd.f32 %v3366, 1e-05
    %v3373 = vadd.f32 %v3367, 1e-05
    %v3374 = vadd.f32 %v3368, 1e-05
    %v3375 = vrsqrt.pop %v3369
    %v3376 = vrsqrt.pop %v3370
    %v3377 = vrsqrt.pop %v3371
    %v3378 = vrsqrt.pop %v3372
    %v3379 = vrsqrt.pop %v3373
    %v3380 = vrsqrt.pop %v3374
    %v3381 = vmul.f32 %v3339, %v3375
    %v3382 = vmul.f32 %v3340, %v3376
    %v3383 = vmul.f32 %v3341, %v3377
    %v3384 = vmul.f32 %v3342, %v3378
    %v3385 = vmul.f32 %v3343, %v3379
    %v3386 = vmul.f32 %v3344, %v3380
    %v3387 = vlaneseq
    %v3388 = vshrl.u32 %v3387, 7
    %v3389 = vsub.s32 0, %v3388
    %v3390 = vrot.slane %v1208, %v3389
    %v3391 = vmul.f32 %v3381, %v3390
    %v3392 = vmul.f32 %v3382, %v3390
    %v3393 = vmul.f32 %v3383, %v3390
    %v3394 = vmul.f32 %v3384, %v3390
    %v3395 = vmul.f32 %v3385, %v3390
    %v3396 = vmul.f32 %v3386, %v3390
    %v3397 = vlaneseq
    %v3398 = vshrl.u32 %v3397, 7
    %v3399 = vsub.s32 0, %v3398
    %v3400 = vrot.slane %v1209, %v3399
    %v3401 = vadd.f32 %v3391, %v3400
    %v3402 = vadd.f32 %v3392, %v3400
    %v3403 = vadd.f32 %v3393, %v3400
    %v3404 = vadd.f32 %v3394, %v3400
    %v3405 = vadd.f32 %v3395, %v3400
    %v3406 = vadd.f32 %v3396, %v3400
    %v3407 = vld [vmem:[%s11 + $0x16] sm:$0x1]
    %v3408 = vld [vmem:[%s11 + $0x17] sm:$0x1]
    %v3409 = vld [vmem:[%s11 + $0x18] sm:$0x1]
    %v3410 = vld [vmem:[%s11 + $0x19] sm:$0x1]
    %v3411 = vld [vmem:[%s11 + $0x1a] sm:$0x1]
    %v3412 = vld [vmem:[%s11 + $0x1b] sm:$0x1]
    %s3413 = scalar_lea.vmem %s5, 192
    %v3414 = vld [vmem:[%s3413] sm:$0xff]
    %v3415 = vld [vmem:[%s3413 + $0x8] sm:$0xf]
    %v3416 = vld [vmem:[%s3413 + $0xc] sm:$0xff]
    %v3417 = vld [vmem:[%s3413 + $0x14] sm:$0xf]
    %v3418 = vld [vmem:[%s3413 + $0x18] sm:$0xff]
    %v3419 = vld [vmem:[%s3413 + $0x20] sm:$0xf]
    %v3420 = vld [vmem:[%s3413 + $0x24] sm:$0xff]
    %v3421 = vld [vmem:[%s3413 + $0x2c] sm:$0xf]
    %v3422 = vld [vmem:[%s3413 + $0x30] sm:$0xff]
    %v3423 = vld [vmem:[%s3413 + $0x38] sm:$0xf]
    %v3424 = vld [vmem:[%s3413 + $0x3c] sm:$0xff]
    %v3425 = vld [vmem:[%s3413 + $0x44] sm:$0xf]
    %v3426 = vld [vmem:[%s3413 + $0x48] sm:$0xff]
    %v3427 = vld [vmem:[%s3413 + $0x50] sm:$0xf]
    %v3428 = vld [vmem:[%s3413 + $0x54] sm:$0xff]
    %v3429 = vld [vmem:[%s3413 + $0x5c] sm:$0xf]
    %v3430 = vld [vmem:[%s3413 + $0x60] sm:$0xff]
    %v3431 = vld [vmem:[%s3413 + $0x68] sm:$0xf]
    %v3432 = vld [vmem:[%s3413 + $0x6c] sm:$0xff]
    %v3433 = vld [vmem:[%s3413 + $0x74] sm:$0xf]
    %v3434 = vld [vmem:[%s3413 + $0x78] sm:$0xff]
    %v3435 = vld [vmem:[%s3413 + $0x80] sm:$0xf]
    %v3436 = vld [vmem:[%s3413 + $0x84] sm:$0xff]
    %v3437 = vld [vmem:[%s3413 + $0x8c] sm:$0xf]
    %v3438 = vld [vmem:[%s3413 + $0x90] sm:$0xff]
    %v3439 = vld [vmem:[%s3413 + $0x98] sm:$0xf]
    %v3440 = vld [vmem:[%s3413 + $0x9c] sm:$0xff]
    %v3441 = vld [vmem:[%s3413 + $0xa4] sm:$0xf]
    %v3442 = vld [vmem:[%s3413 + $0xa8] sm:$0xff]
    %v3443 = vld [vmem:[%s3413 + $0xb0] sm:$0xf]
    %v3444 = vld [vmem:[%s3413 + $0xb4] sm:$0xff]
    %v3445 = vld [vmem:[%s3413 + $0xbc] sm:$0xf]
    %s3446 = scalar_lea.vmem %s6, 64
    %v3447 = vld [vmem:[%s3446] sm:$0xf]
    %v3448 = vld [vmem:[%s3446 + $0x4] sm:$0xf]
    %v3449 = vld [vmem:[%s3446 + $0x8] sm:$0xf]
    %v3450 = vld [vmem:[%s3446 + $0xc] sm:$0xf]
    %v3451 = vld [vmem:[%s3446 + $0x10] sm:$0xf]
    %v3452 = vld [vmem:[%s3446 + $0x14] sm:$0xf]
    %v3453 = vld [vmem:[%s3446 + $0x18] sm:$0xf]
    %v3454 = vld [vmem:[%s3446 + $0x1c] sm:$0xf]
    %v3455 = vld [vmem:[%s3446 + $0x20] sm:$0xf]
    %v3456 = vld [vmem:[%s3446 + $0x24] sm:$0xf]
    %v3457 = vld [vmem:[%s3446 + $0x28] sm:$0xf]
    %v3458 = vld [vmem:[%s3446 + $0x2c] sm:$0xf]
    %v3459 = vld [vmem:[%s3446 + $0x30] sm:$0xf]
    %v3460 = vld [vmem:[%s3446 + $0x34] sm:$0xf]
    %v3461 = vld [vmem:[%s3446 + $0x38] sm:$0xf]
    %v3462 = vld [vmem:[%s3446 + $0x3c] sm:$0xf]
    %s3463 = scalar_lea.vmem %s7, 128
    %v3464 = vld [vmem:[%s3463] sm:$0xff]
    %v3465 = vld [vmem:[%s3463 + $0x8] sm:$0xff]
    %v3466 = vld [vmem:[%s3463 + $0x10] sm:$0xff]
    %v3467 = vld [vmem:[%s3463 + $0x18] sm:$0xff]
    %v3468 = vld [vmem:[%s3463 + $0x20] sm:$0xff]
    %v3469 = vld [vmem:[%s3463 + $0x28] sm:$0xff]
    %v3470 = vld [vmem:[%s3463 + $0x30] sm:$0xff]
    %v3471 = vld [vmem:[%s3463 + $0x38] sm:$0xff]
    %v3472 = vld [vmem:[%s3463 + $0x40] sm:$0xff]
    %v3473 = vld [vmem:[%s3463 + $0x48] sm:$0xff]
    %v3474 = vld [vmem:[%s3463 + $0x50] sm:$0xff]
    %v3475 = vld [vmem:[%s3463 + $0x58] sm:$0xff]
    %v3476 = vld [vmem:[%s3463 + $0x60] sm:$0xff]
    %v3477 = vld [vmem:[%s3463 + $0x68] sm:$0xff]
    %v3478 = vld [vmem:[%s3463 + $0x70] sm:$0xff]
    %v3479 = vld [vmem:[%s3463 + $0x78] sm:$0xff]
    %s3480 = scalar_lea.vmem %s8, 128
    %v3481 = vld [vmem:[%s3480] sm:$0xf]
    %v3482 = vld [vmem:[%s3480 + $0x4] sm:$0xf]
    %v3483 = vld [vmem:[%s3480 + $0x8] sm:$0xf]
    %v3484 = vld [vmem:[%s3480 + $0xc] sm:$0xf]
    %v3485 = vld [vmem:[%s3480 + $0x10] sm:$0xf]
    %v3486 = vld [vmem:[%s3480 + $0x14] sm:$0xf]
    %v3487 = vld [vmem:[%s3480 + $0x18] sm:$0xf]
    %v3488 = vld [vmem:[%s3480 + $0x1c] sm:$0xf]
    %v3489 = vld [vmem:[%s3480 + $0x20] sm:$0xf]
    %v3490 = vld [vmem:[%s3480 + $0x24] sm:$0xf]
    %v3491 = vld [vmem:[%s3480 + $0x28] sm:$0xf]
    %v3492 = vld [vmem:[%s3480 + $0x2c] sm:$0xf]
    %v3493 = vld [vmem:[%s3480 + $0x30] sm:$0xf]
    %v3494 = vld [vmem:[%s3480 + $0x34] sm:$0xf]
    %v3495 = vld [vmem:[%s3480 + $0x38] sm:$0xf]
    %v3496 = vld [vmem:[%s3480 + $0x3c] sm:$0xf]
    %v3497 = vld [vmem:[%s3480 + $0x40] sm:$0xf]
    %v3498 = vld [vmem:[%s3480 + $0x44] sm:$0xf]
    %v3499 = vld [vmem:[%s3480 + $0x48] sm:$0xf]
    %v3500 = vld [vmem:[%s3480 + $0x4c] sm:$0xf]
    %v3501 = vld [vmem:[%s3480 + $0x50] sm:$0xf]
    %v3502 = vld [vmem:[%s3480 + $0x54] sm:$0xf]
    %v3503 = vld [vmem:[%s3480 + $0x58] sm:$0xf]
    %v3504 = vld [vmem:[%s3480 + $0x5c] sm:$0xf]
    %v3505 = vld [vmem:[%s3480 + $0x60] sm:$0xf]
    %v3506 = vld [vmem:[%s3480 + $0x64] sm:$0xf]
    %v3507 = vld [vmem:[%s3480 + $0x68] sm:$0xf]
    %v3508 = vld [vmem:[%s3480 + $0x6c] sm:$0xf]
    %v3509 = vld [vmem:[%s3480 + $0x70] sm:$0xf]
    %v3510 = vld [vmem:[%s3480 + $0x74] sm:$0xf]
    %v3511 = vld [vmem:[%s3480 + $0x78] sm:$0xf]
    %v3512 = vld [vmem:[%s3480 + $0x7c] sm:$0xf]
    %s3513 = scalar_lea.vmem %s9, 1
    %v3514 = vld [vmem:[%s3513] ss:$2 sm:$0x7]
    %s3515 = scalar_lea.vmem %s10, 1
    %v3516 = vld [vmem:[%s3515] ss:$2 sm:$0x3]
    %v3517 = vpack.c.bf16 %v3402, %v3401
    %v3518 = vpack.c.bf16 %v3404, %v3403
    %v3519 = vpack.c.bf16 %v3406, %v3405
    %v3521 = vlaneseq
    %v3522 = vshrl.u32 %v3521, 7
    %v3523 = vsub.s32 0, %v3522
    %v3524 = vrot.slane %v3514, %v3523
    %v3525 = vlaneseq
    %v3526 = vshrl.u32 %v3525, 7
    %v3527 = vsub.s32 1, %v3526
    %v3528 = vrot.slane %v3514, %v3527
    %v3529 = vlaneseq
    %v3530 = vshrl.u32 %v3529, 7
    %v3531 = vsub.s32 2, %v3530
    %v3532 = vrot.slane %v3514, %v3531
    %v3568 = vunpack.c.l.b16 %v3414
    %v3569 = vunpack.c.h.b16 %v3414
    %v3570 = vunpack.c.l.b16 %v3415
    %v3571 = vunpack.c.l.b16 %v3416
    %v3572 = vunpack.c.h.b16 %v3416
    %v3573 = vunpack.c.l.b16 %v3417
    %v3574 = vunpack.c.l.b16 %v3418
    %v3575 = vunpack.c.h.b16 %v3418
    %v3576 = vunpack.c.l.b16 %v3419
    %v3577 = vunpack.c.l.b16 %v3420
    %v3578 = vunpack.c.h.b16 %v3420
    %v3579 = vunpack.c.l.b16 %v3421
    %v3580 = vunpack.c.l.b16 %v3422
    %v3581 = vunpack.c.h.b16 %v3422
    %v3582 = vunpack.c.l.b16 %v3423
    %v3583 = vunpack.c.l.b16 %v3424
    %v3584 = vunpack.c.h.b16 %v3424
    %v3585 = vunpack.c.l.b16 %v3425
    %v3586 = vunpack.c.l.b16 %v3426
    %v3587 = vunpack.c.h.b16 %v3426
    %v3588 = vunpack.c.l.b16 %v3427
    %v3589 = vunpack.c.l.b16 %v3428
    %v3590 = vunpack.c.h.b16 %v3428
    %v3591 = vunpack.c.l.b16 %v3429
    %v3592 = vunpack.c.l.b16 %v3430
    %v3593 = vunpack.c.h.b16 %v3430
    %v3594 = vunpack.c.l.b16 %v3431
    %v3595 = vunpack.c.l.b16 %v3432
    %v3596 = vunpack.c.h.b16 %v3432
    %v3597 = vunpack.c.l.b16 %v3433
    %v3598 = vunpack.c.l.b16 %v3434
    %v3599 = vunpack.c.h.b16 %v3434
    %v3600 = vunpack.c.l.b16 %v3435
    %v3601 = vunpack.c.l.b16 %v3436
    %v3602 = vunpack.c.h.b16 %v3436
    %v3603 = vunpack.c.l.b16 %v3437
    %v3604 = vunpack.c.l.b16 %v3438
    %v3605 = vunpack.c.h.b16 %v3438
    %v3606 = vunpack.c.l.b16 %v3439
    %v3607 = vunpack.c.l.b16 %v3440
    %v3608 = vunpack.c.h.b16 %v3440
    %v3609 = vunpack.c.l.b16 %v3441
    %v3610 = vunpack.c.l.b16 %v3442
    %v3611 = vunpack.c.h.b16 %v3442
    %v3612 = vunpack.c.l.b16 %v3443
    %v3613 = vunpack.c.l.b16 %v3444
    %v3614 = vunpack.c.h.b16 %v3444
    %v3615 = vunpack.c.l.b16 %v3445
    %v3616 = vpack.c.b16 %v3571, %v3568
    %v3617 = vpack.c.b16 %v3572, %v3569
    %v3618 = vpack.c.b16 %v3573, %v3570
    %v3619 = vpack.c.b16 %v3577, %v3574
    %v3620 = vpack.c.b16 %v3578, %v3575
    %v3621 = vpack.c.b16 %v3579, %v3576
    %v3622 = vpack.c.b16 %v3583, %v3580
    %v3623 = vpack.c.b16 %v3584, %v3581
    %v3624 = vpack.c.b16 %v3585, %v3582
    %v3625 = vpack.c.b16 %v3589, %v3586
    %v3626 = vpack.c.b16 %v3590, %v3587
    %v3627 = vpack.c.b16 %v3591, %v3588
    %v3628 = vpack.c.b16 %v3595, %v3592
    %v3629 = vpack.c.b16 %v3596, %v3593
    %v3630 = vpack.c.b16 %v3597, %v3594
    %v3631 = vpack.c.b16 %v3601, %v3598
    %v3632 = vpack.c.b16 %v3602, %v3599
    %v3633 = vpack.c.b16 %v3603, %v3600
    %v3634 = vpack.c.b16 %v3607, %v3604
    %v3635 = vpack.c.b16 %v3608, %v3605
    %v3636 = vpack.c.b16 %v3609, %v3606
    %v3637 = vpack.c.b16 %v3613, %v3610
    %v3638 = vpack.c.b16 %v3614, %v3611
    %v3639 = vpack.c.b16 %v3615, %v3612
    %3664 = vmatprep.subr.bf16.mxu0 %v3617
    %3665 = vmatpush1.bf16.msra.mxu0 %v3616
    %3666 = vmatprep.subr.bf16.mxu0 %v3620
    %3667 = vmatpush1.bf16.msra.mxu0 %v3619
    %3668 = vmatprep.subr.bf16.mxu0 %v3623
    %3669 = vmatpush1.bf16.msra.mxu0 %v3622
    %3670 = vmatprep.subr.bf16.mxu0 %v3626
    %3671 = vmatpush1.bf16.msra.mxu0 %v3625
    %3672 = vmatprep.subr.bf16.mxu0 %v3629
    %3673 = vmatpush1.bf16.msra.mxu0 %v3628
    %3674 = vmatprep.subr.bf16.mxu0 %v3632
    %3675 = vmatpush1.bf16.msra.mxu0 %v3631
    %3676 = vmatprep.subr.bf16.mxu0 %v3635
    %3677 = vmatpush1.bf16.msra.mxu0 %v3634
    %3678 = vmatprep.subr.bf16.mxu0 %v3638
    %3679 = vmatpush1.bf16.msra.mxu0 %v3637
    %3680 = vmatprep.subr.bf16.mxu0 0
    %3681 = vmatpush1.bf16.msra.mxu0 0
    %3682 = vmatprep.subr.bf16.mxu0 0
    %3683 = vmatpush1.bf16.msra.mxu0 0
    %3684 = vmatprep.subr.bf16.mxu0 0
    %3685 = vmatpush1.bf16.msra.mxu0 0
    %3686 = vmatprep.subr.bf16.mxu0 0
    %3687 = vmatpush1.bf16.msra.mxu0 0
    %3688 = vmatprep.subr.bf16.mxu0 0
    %3689 = vmatpush1.bf16.msra.mxu0 0
    %3690 = vmatprep.subr.bf16.mxu0 0
    %3691 = vmatpush1.bf16.msra.mxu0 0
    %3692 = vmatprep.subr.bf16.mxu0 0
    %3693 = vmatpush1.bf16.msra.mxu0 0
    %3694 = vmatprep.subr.bf16.mxu0 0
    %3695 = vmatpush1.bf16.msra.mxu0 0
    %3696 = vmatprep.mubr.bf16.mxu0 0
    %3697 = vmatmul.mubr.bf16.gmra.mrb[0].mxu0 %v3517
    %v3698 = vpop.f32.mrb[0].mxu0
    %v3699 = vadd.f32 %v3524, %v3698
    %v3700 = vpop.f32.mrb[0].mxu0
    %v3701 = vadd.f32 %v3528, %v3700
    %v3702 = vpop.f32.mrb[0].mxu0
    %v3703 = vadd.f32 %v3524, %v3702
    %v3704 = vpop.f32.mrb[0].mxu0
    %v3705 = vadd.f32 %v3528, %v3704
    %3706 = vmatprep.mubr.bf16.mxu0 0
    %3707 = vmatmul.mubr.bf16.gmra.mrb[0].mxu0 %v3518
    %v3708 = vpop.f32.mrb[0].mxu0
    %v3709 = vadd.f32 %v3524, %v3708
    %v3710 = vpop.f32.mrb[0].mxu0
    %v3711 = vadd.f32 %v3528, %v3710
    %v3712 = vpop.f32.mrb[0].mxu0
    %v3713 = vadd.f32 %v3524, %v3712
    %v3714 = vpop.f32.mrb[0].mxu0
    %v3715 = vadd.f32 %v3528, %v3714
    %3716 = vmatprep.mubr.bf16.mxu0 0
    %3717 = vmatmul.mubr.bf16.gmra.mrb[0].mxu0 %v3519
    %v3718 = vpop.f32.mrb[0].mxu0
    %v3719 = vadd.f32 %v3524, %v3718
    %v3720 = vpop.f32.mrb[0].mxu0
    %v3721 = vadd.f32 %v3528, %v3720
    %v3722 = vpop.f32.mrb[0].mxu0
    %v3723 = vadd.f32 %v3524, %v3722
    %v3724 = vpop.f32.mrb[0].mxu0
    %v3725 = vadd.f32 %v3528, %v3724
    %3726 = vdwg.mxu0
    %3727 = vmatprep.subr.bf16.mxu0 0
    %3728 = vmatpush1.bf16.msra.mxu0 %v3618
    %3729 = vmatprep.subr.bf16.mxu0 0
    %3730 = vmatpush1.bf16.msra.mxu0 %v3621
    %3731 = vmatprep.subr.bf16.mxu0 0
    %3732 = vmatpush1.bf16.msra.mxu0 %v3624
    %3733 = vmatprep.subr.bf16.mxu0 0
    %3734 = vmatpush1.bf16.msra.mxu0 %v3627
    %3735 = vmatprep.subr.bf16.mxu0 0
    %3736 = vmatpush1.bf16.msra.mxu0 %v3630
    %3737 = vmatprep.subr.bf16.mxu0 0
    %3738 = vmatpush1.bf16.msra.mxu0 %v3633
    %3739 = vmatprep.subr.bf16.mxu0 0
    %3740 = vmatpush1.bf16.msra.mxu0 %v3636
    %3741 = vmatprep.subr.bf16.mxu0 0
    %3742 = vmatpush1.bf16.msra.mxu0 %v3639
    %3743 = vmatprep.subr.bf16.mxu0 0
    %3744 = vmatpush1.bf16.msra.mxu0 0
    %3745 = vmatprep.subr.bf16.mxu0 0
    %3746 = vmatpush1.bf16.msra.mxu0 0
    %3747 = vmatprep.subr.bf16.mxu0 0
    %3748 = vmatpush1.bf16.msra.mxu0 0
    %3749 = vmatprep.subr.bf16.mxu0 0
    %3750 = vmatpush1.bf16.msra.mxu0 0
    %3751 = vmatprep.subr.bf16.mxu0 0
    %3752 = vmatpush1.bf16.msra.mxu0 0
    %3753 = vmatprep.subr.bf16.mxu0 0
    %3754 = vmatpush1.bf16.msra.mxu0 0
    %3755 = vmatprep.subr.bf16.mxu0 0
    %3756 = vmatpush1.bf16.msra.mxu0 0
    %3757 = vmatprep.subr.bf16.mxu0 0
    %3758 = vmatpush1.bf16.msra.mxu0 0
    %3759 = vmatprep.mubr.bf16.mxu0 0
    %3760 = vmatmul.mubr.bf16.gmra.mrb[0].mxu0 %v3517
    %v3761 = vpop.f32.mrb[0].mxu0
    %v3762 = vadd.f32 %v3532, %v3761
    %v3763 = vpop.f32.mrb[0].mxu0
    %v3764 = vpop.f32.mrb[0].mxu0
    %v3765 = vadd.f32 %v3532, %v3764
    %v3766 = vpop.f32.mrb[0].mxu0
    %3767 = vmatprep.mubr.bf16.mxu0 0
    %3768 = vmatmul.mubr.bf16.gmra.mrb[0].mxu0 %v3518
    %v3769 = vpop.f32.mrb[0].mxu0
    %v3770 = vadd.f32 %v3532, %v3769
    %v3771 = vpop.f32.mrb[0].mxu0
    %v3772 = vpop.f32.mrb[0].mxu0
    %v3773 = vadd.f32 %v3532, %v3772
    %v3774 = vpop.f32.mrb[0].mxu0
    %3775 = vmatprep.mubr.bf16.mxu0 0
    %3776 = vmatmul.mubr.bf16.gmra.mrb[0].mxu0 %v3519
    %v3777 = vpop.f32.mrb[0].mxu0
    %v3778 = vadd.f32 %v3532, %v3777
    %v3779 = vpop.f32.mrb[0].mxu0
    %v3780 = vpop.f32.mrb[0].mxu0
    %v3781 = vadd.f32 %v3532, %v3780
    %v3782 = vpop.f32.mrb[0].mxu0
    %3783 = vdwg.mxu0
    %v3784 = vpack.c.bf16 %v3703, %v3699
    %v3785 = vpack.c.bf16 %v3713, %v3709
    %v3786 = vpack.c.bf16 %v3723, %v3719
    %v3787 = vpack.c.bf16 %v3705, %v3701
    %v3788 = vpack.c.bf16 %v3715, %v3711
    %v3789 = vpack.c.bf16 %v3725, %v3721
    %v3791 = vsel %vm1581, %v3784, 0
    %v3794 = vsel %vm1581, %v3785, 0
    %v3797 = vsel %vm1581, %v3786, 0
    %v3800 = vsel %vm1581, %v3787, 0
    %v3803 = vsel %vm1581, %v3788, 0
    %v3806 = vsel %vm1581, %v3789, 0
    %3808 = vmatprep.subr.bf16.mxu0 0
    %3809 = vmatpush1.bf16.xpose.msra.mxu0 %v3800
    %3810 = vmatprep.subr.bf16.mxu0 0
    %3811 = vmatpush1.bf16.xpose.msra.mxu0 %v3803
    %3812 = vmatprep.subr.bf16.mxu0 0
    %3813 = vmatpush1.bf16.xpose.msra.mxu0 %v3806
    %3814 = vmatprep.subr.bf16.mxu0 0
    %3815 = vmatpush1.bf16.xpose.msra.mxu0 0
    %3816 = vmatprep.subr.bf16.mxu0 0
    %3817 = vmatpush1.bf16.xpose.msra.mxu0 0
    %3818 = vmatprep.subr.bf16.mxu0 0
    %3819 = vmatpush1.bf16.xpose.msra.mxu0 0
    %3820 = vmatprep.subr.bf16.mxu0 0
    %3821 = vmatpush1.bf16.xpose.msra.mxu0 0
    %3822 = vmatprep.subr.bf16.mxu0 0
    %3823 = vmatpush1.bf16.xpose.msra.mxu0 0
    %3824 = vmatprep.subr.bf16.mxu0 0
    %3825 = vmatpush1.bf16.xpose.msra.mxu0 0
    %3826 = vmatprep.subr.bf16.mxu0 0
    %3827 = vmatpush1.bf16.xpose.msra.mxu0 0
    %3828 = vmatprep.subr.bf16.mxu0 0
    %3829 = vmatpush1.bf16.xpose.msra.mxu0 0
    %3830 = vmatprep.subr.bf16.mxu0 0
    %3831 = vmatpush1.bf16.xpose.msra.mxu0 0
    %3832 = vmatprep.subr.bf16.mxu0 0
    %3833 = vmatpush1.bf16.xpose.msra.mxu0 0
    %3834 = vmatprep.subr.bf16.mxu0 0
    %3835 = vmatpush1.bf16.xpose.msra.mxu0 0
    %3836 = vmatprep.subr.bf16.mxu0 0
    %3837 = vmatpush1.bf16.xpose.msra.mxu0 0
    %3838 = vmatprep.subr.bf16.mxu0 0
    %3839 = vmatpush1.bf16.xpose.msra.mxu0 0
    %3840 = vmatprep.mubr.bf16.mxu0 0
    %3841 = vmatmul.mubr.bf16.gmra.mrb[0].mxu0 %v3791
    %v3842 = vpop.f32.mrb[0].mxu0
    %v3843 = vadd.f32 0.0, %v3842
    %v3844 = vpop.f32.mrb[0].mxu0
    %v3845 = vpop.f32.mrb[0].mxu0
    %v3846 = vadd.f32 0.0, %v3845
    %v3847 = vpop.f32.mrb[0].mxu0
    %3848 = vmatprep.mubr.bf16.mxu0 0
    %3849 = vmatmul.mubr.bf16.gmra.mrb[0].mxu0 %v3794
    %v3850 = vpop.f32.mrb[0].mxu0
    %v3851 = vadd.f32 0.0, %v3850
    %v3852 = vpop.f32.mrb[0].mxu0
    %v3853 = vpop.f32.mrb[0].mxu0
    %v3854 = vadd.f32 0.0, %v3853
    %v3855 = vpop.f32.mrb[0].mxu0
    %3856 = vmatprep.mubr.bf16.mxu0 0
    %3857 = vmatmul.mubr.bf16.gmra.mrb[0].mxu0 %v3797
    %v3858 = vpop.f32.mrb[0].mxu0
    %v3859 = vadd.f32 0.0, %v3858
    %v3860 = vpop.f32.mrb[0].mxu0
    %v3861 = vpop.f32.mrb[0].mxu0
    %v3862 = vadd.f32 0.0, %v3861
    %v3863 = vpop.f32.mrb[0].mxu0
    %3864 = vdwg.mxu0
    %v3865 = vmul.f32 %v3843, 0.17677669
    %v3866 = vmul.f32 %v3846, 0.17677669
    %v3867 = vmul.f32 %v3851, 0.17677669
    %v3868 = vmul.f32 %v3854, 0.17677669
    %v3869 = vmul.f32 %v3859, 0.17677669
    %v3870 = vmul.f32 %v3862, 0.17677669
    %v3871 = vadd.f32 %v3865, %v1198
    %v3872 = vadd.f32 %v3866, %v1199
    %v3873 = vadd.f32 %v3867, %v1200
    %v3874 = vadd.f32 %v3868, %v1201
    %v3875 = vadd.f32 %v3869, %v1202
    %v3876 = vadd.f32 %v3870, %v1203
    %v3877 = vsel %vm82, %v3871, -inf
    %3878 = vmax.xlane.f32.xlu0 %v3877
    %v3879 = vpop.xlane.xlu0 %3878
    %v3880 = vsel %vm82, %v3872, -inf
    %3881 = vmax.xlane.f32.xlu0 %v3880
    %v3882 = vpop.xlane.xlu0 %3881
    %v3883 = vsel %vm82, %v3873, -inf
    %3884 = vmax.xlane.f32.xlu0 %v3883
    %v3885 = vpop.xlane.xlu0 %3884
    %v3886 = vsel %vm82, %v3874, -inf
    %3887 = vmax.xlane.f32.xlu0 %v3886
    %v3888 = vpop.xlane.xlu0 %3887
    %v3889 = vsel %vm82, %v3875, -inf
    %3890 = vmax.xlane.f32.xlu0 %v3889
    %v3891 = vpop.xlane.xlu0 %3890
    %v3892 = vsel %vm82, %v3876, -inf
    %3893 = vmax.xlane.f32.xlu0 %v3892
    %v3894 = vpop.xlane.xlu0 %3893
    %v3895 = vsub.f32 %v3871, %v3879
    %v3896 = vsub.f32 %v3872, %v3882
    %v3897 = vsub.f32 %v3873, %v3885
    %v3898 = vsub.f32 %v3874, %v3888
    %v3899 = vsub.f32 %v3875, %v3891
    %v3900 = vsub.f32 %v3876, %v3894
    %v3901 = vmul.f32 %v3895, 1.442695
    %v3902 = vpow.pop %v3901
    %v3903 = vmul.f32 %v3896, 1.442695
    %v3904 = vpow.pop %v3903
    %v3905 = vmul.f32 %v3897, 1.442695
    %v3906 = vpow.pop %v3905
    %v3907 = vmul.f32 %v3898, 1.442695
    %v3908 = vpow.pop %v3907
    %v3909 = vmul.f32 %v3899, 1.442695
    %v3910 = vpow.pop %v3909
    %v3911 = vmul.f32 %v3900, 1.442695
    %v3912 = vpow.pop %v3911
    %v3913 = vsel %vm82, %v3902, 0.0
    %3914 = vadd.xlane.f32.xlu0 %v3913
    %v3915 = vpop.xlane.xlu0 %3914
    %v3916 = vsel %vm82, %v3904, 0.0
    %3917 = vadd.xlane.f32.xlu0 %v3916
    %v3918 = vpop.xlane.xlu0 %3917
    %v3919 = vsel %vm82, %v3906, 0.0
    %3920 = vadd.xlane.f32.xlu0 %v3919
    %v3921 = vpop.xlane.xlu0 %3920
    %v3922 = vsel %vm82, %v3908, 0.0
    %3923 = vadd.xlane.f32.xlu0 %v3922
    %v3924 = vpop.xlane.xlu0 %3923
    %v3925 = vsel %vm82, %v3910, 0.0
    %3926 = vadd.xlane.f32.xlu0 %v3925
    %v3927 = vpop.xlane.xlu0 %3926
    %v3928 = vsel %vm82, %v3912, 0.0
    %3929 = vadd.xlane.f32.xlu0 %v3928
    %v3930 = vpop.xlane.xlu0 %3929
    %v3931 = vrcp.pop %v3915
    %v3932 = vrcp.pop %v3918
    %v3933 = vrcp.pop %v3921
    %v3934 = vrcp.pop %v3924
    %v3935 = vrcp.pop %v3927
    %v3936 = vrcp.pop %v3930
    %v3937 = vmul.f32 %v3902, %v3931
    %v3938 = vmul.f32 %v3904, %v3932
    %v3939 = vmul.f32 %v3906, %v3933
    %v3940 = vmul.f32 %v3908, %v3934
    %v3941 = vmul.f32 %v3910, %v3935
    %v3942 = vmul.f32 %v3912, %v3936
    %v3943 = vpack.c.bf16 %v3938, %v3937
    %v3944 = vpack.c.bf16 %v3940, %v3939
    %v3945 = vpack.c.bf16 %v3942, %v3941
    %v3946 = vpack.c.bf16 %v3765, %v3762
    %v3947 = vpack.c.bf16 %v3773, %v3770
    %v3948 = vpack.c.bf16 %v3781, %v3778
    %v3950 = vsel %vm82, %v3943, 0
    %v3953 = vsel %vm82, %v3944, 0
    %v3956 = vsel %vm82, %v3945, 0
    %3958 = vmatprep.subr.bf16.mxu0 0
    %3959 = vmatpush1.bf16.msra.mxu0 %v3946
    %3960 = vmatprep.subr.bf16.mxu0 0
    %3961 = vmatpush1.bf16.msra.mxu0 %v3947
    %3962 = vmatprep.subr.bf16.mxu0 0
    %3963 = vmatpush1.bf16.msra.mxu0 %v3948
    %3964 = vmatprep.subr.bf16.mxu0 0
    %3965 = vmatpush1.bf16.msra.mxu0 0
    %3966 = vmatprep.subr.bf16.mxu0 0
    %3967 = vmatpush1.bf16.msra.mxu0 0
    %3968 = vmatprep.subr.bf16.mxu0 0
    %3969 = vmatpush1.bf16.msra.mxu0 0
    %3970 = vmatprep.subr.bf16.mxu0 0
    %3971 = vmatpush1.bf16.msra.mxu0 0
    %3972 = vmatprep.subr.bf16.mxu0 0
    %3973 = vmatpush1.bf16.msra.mxu0 0
    %3974 = vmatprep.subr.bf16.mxu0 0
    %3975 = vmatpush1.bf16.msra.mxu0 0
    %3976 = vmatprep.subr.bf16.mxu0 0
    %3977 = vmatpush1.bf16.msra.mxu0 0
    %3978 = vmatprep.subr.bf16.mxu0 0
    %3979 = vmatpush1.bf16.msra.mxu0 0
    %3980 = vmatprep.subr.bf16.mxu0 0
    %3981 = vmatpush1.bf16.msra.mxu0 0
    %3982 = vmatprep.subr.bf16.mxu0 0
    %3983 = vmatpush1.bf16.msra.mxu0 0
    %3984 = vmatprep.subr.bf16.mxu0 0
    %3985 = vmatpush1.bf16.msra.mxu0 0
    %3986 = vmatprep.subr.bf16.mxu0 0
    %3987 = vmatpush1.bf16.msra.mxu0 0
    %3988 = vmatprep.subr.bf16.mxu0 0
    %3989 = vmatpush1.bf16.msra.mxu0 0
    %3990 = vmatprep.mubr.bf16.mxu0 0
    %3991 = vmatmul.mubr.bf16.gmra.mrb[0].mxu0 %v3950
    %v3992 = vpop.f32.mrb[0].mxu0
    %v3993 = vadd.f32 0.0, %v3992
    %v3994 = vpop.f32.mrb[0].mxu0
    %v3995 = vpop.f32.mrb[0].mxu0
    %v3996 = vadd.f32 0.0, %v3995
    %v3997 = vpop.f32.mrb[0].mxu0
    %3998 = vmatprep.mubr.bf16.mxu0 0
    %3999 = vmatmul.mubr.bf16.gmra.mrb[0].mxu0 %v3953
    %v4000 = vpop.f32.mrb[0].mxu0
    %v4001 = vadd.f32 0.0, %v4000
    %v4002 = vpop.f32.mrb[0].mxu0
    %v4003 = vpop.f32.mrb[0].mxu0
    %v4004 = vadd.f32 0.0, %v4003
    %v4005 = vpop.f32.mrb[0].mxu0
    %4006 = vmatprep.mubr.bf16.mxu0 0
    %4007 = vmatmul.mubr.bf16.gmra.mrb[0].mxu0 %v3956
    %v4008 = vpop.f32.mrb[0].mxu0
    %v4009 = vadd.f32 0.0, %v4008
    %v4010 = vpop.f32.mrb[0].mxu0
    %v4011 = vpop.f32.mrb[0].mxu0
    %v4012 = vadd.f32 0.0, %v4011
    %v4013 = vpop.f32.mrb[0].mxu0
    %4014 = vdwg.mxu0
    %v4015 = vpack.c.bf16 %v3996, %v3993
    %v4016 = vpack.c.bf16 %v4004, %v4001
    %v4017 = vpack.c.bf16 %v4012, %v4009
    %4021 = vrot.lane.b32.xlu0 %v3784, 96
    %v4022 = vpop.permute.xlu0 %4021
    %4023 = vrot.lane.b32.xlu0 %v3785, 96
    %v4024 = vpop.permute.xlu0 %4023
    %4025 = vrot.lane.b32.xlu0 %v3786, 96
    %v4026 = vpop.permute.xlu0 %4025
    %4030 = vrot.lane.b32.xlu0 %v3787, 96
    %v4031 = vpop.permute.xlu0 %4030
    %4032 = vrot.lane.b32.xlu0 %v3788, 96
    %v4033 = vpop.permute.xlu0 %4032
    %4034 = vrot.lane.b32.xlu0 %v3789, 96
    %v4035 = vpop.permute.xlu0 %4034
    %v4037 = vsel %vm1581, %v4022, 0
    %v4040 = vsel %vm1581, %v4024, 0
    %v4043 = vsel %vm1581, %v4026, 0
    %v4046 = vsel %vm1581, %v4031, 0
    %v4049 = vsel %vm1581, %v4033, 0
    %v4052 = vsel %vm1581, %v4035, 0
    %4054 = vmatprep.subr.bf16.mxu0 0
    %4055 = vmatpush1.bf16.xpose.msra.mxu0 %v4046
    %4056 = vmatprep.subr.bf16.mxu0 0
    %4057 = vmatpush1.bf16.xpose.msra.mxu0 %v4049
    %4058 = vmatprep.subr.bf16.mxu0 0
    %4059 = vmatpush1.bf16.xpose.msra.mxu0 %v4052
    %4060 = vmatprep.subr.bf16.mxu0 0
    %4061 = vmatpush1.bf16.xpose.msra.mxu0 0
    %4062 = vmatprep.subr.bf16.mxu0 0
    %4063 = vmatpush1.bf16.xpose.msra.mxu0 0
    %4064 = vmatprep.subr.bf16.mxu0 0
    %4065 = vmatpush1.bf16.xpose.msra.mxu0 0
    %4066 = vmatprep.subr.bf16.mxu0 0
    %4067 = vmatpush1.bf16.xpose.msra.mxu0 0
    %4068 = vmatprep.subr.bf16.mxu0 0
    %4069 = vmatpush1.bf16.xpose.msra.mxu0 0
    %4070 = vmatprep.subr.bf16.mxu0 0
    %4071 = vmatpush1.bf16.xpose.msra.mxu0 0
    %4072 = vmatprep.subr.bf16.mxu0 0
    %4073 = vmatpush1.bf16.xpose.msra.mxu0 0
    %4074 = vmatprep.subr.bf16.mxu0 0
    %4075 = vmatpush1.bf16.xpose.msra.mxu0 0
    %4076 = vmatprep.subr.bf16.mxu0 0
    %4077 = vmatpush1.bf16.xpose.msra.mxu0 0
    %4078 = vmatprep.subr.bf16.mxu0 0
    %4079 = vmatpush1.bf16.xpose.msra.mxu0 0
    %4080 = vmatprep.subr.bf16.mxu0 0
    %4081 = vmatpush1.bf16.xpose.msra.mxu0 0
    %4082 = vmatprep.subr.bf16.mxu0 0
    %4083 = vmatpush1.bf16.xpose.msra.mxu0 0
    %4084 = vmatprep.subr.bf16.mxu0 0
    %4085 = vmatpush1.bf16.xpose.msra.mxu0 0
    %4086 = vmatprep.mubr.bf16.mxu0 0
    %4087 = vmatmul.mubr.bf16.gmra.mrb[0].mxu0 %v4037
    %v4088 = vpop.f32.mrb[0].mxu0
    %v4089 = vadd.f32 0.0, %v4088
    %v4090 = vpop.f32.mrb[0].mxu0
    %v4091 = vpop.f32.mrb[0].mxu0
    %v4092 = vadd.f32 0.0, %v4091
    %v4093 = vpop.f32.mrb[0].mxu0
    %4094 = vmatprep.mubr.bf16.mxu0 0
    %4095 = vmatmul.mubr.bf16.gmra.mrb[0].mxu0 %v4040
    %v4096 = vpop.f32.mrb[0].mxu0
    %v4097 = vadd.f32 0.0, %v4096
    %v4098 = vpop.f32.mrb[0].mxu0
    %v4099 = vpop.f32.mrb[0].mxu0
    %v4100 = vadd.f32 0.0, %v4099
    %v4101 = vpop.f32.mrb[0].mxu0
    %4102 = vmatprep.mubr.bf16.mxu0 0
    %4103 = vmatmul.mubr.bf16.gmra.mrb[0].mxu0 %v4043
    %v4104 = vpop.f32.mrb[0].mxu0
    %v4105 = vadd.f32 0.0, %v4104
    %v4106 = vpop.f32.mrb[0].mxu0
    %v4107 = vpop.f32.mrb[0].mxu0
    %v4108 = vadd.f32 0.0, %v4107
    %v4109 = vpop.f32.mrb[0].mxu0
    %4110 = vdwg.mxu0
    %v4111 = vmul.f32 %v4089, 0.17677669
    %v4112 = vmul.f32 %v4092, 0.17677669
    %v4113 = vmul.f32 %v4097, 0.17677669
    %v4114 = vmul.f32 %v4100, 0.17677669
    %v4115 = vmul.f32 %v4105, 0.17677669
    %v4116 = vmul.f32 %v4108, 0.17677669
    %v4117 = vadd.f32 %v4111, %v1198
    %v4118 = vadd.f32 %v4112, %v1199
    %v4119 = vadd.f32 %v4113, %v1200
    %v4120 = vadd.f32 %v4114, %v1201
    %v4121 = vadd.f32 %v4115, %v1202
    %v4122 = vadd.f32 %v4116, %v1203
    %v4123 = vsel %vm82, %v4117, -inf
    %4124 = vmax.xlane.f32.xlu0 %v4123
    %v4125 = vpop.xlane.xlu0 %4124
    %v4126 = vsel %vm82, %v4118, -inf
    %4127 = vmax.xlane.f32.xlu0 %v4126
    %v4128 = vpop.xlane.xlu0 %4127
    %v4129 = vsel %vm82, %v4119, -inf
    %4130 = vmax.xlane.f32.xlu0 %v4129
    %v4131 = vpop.xlane.xlu0 %4130
    %v4132 = vsel %vm82, %v4120, -inf
    %4133 = vmax.xlane.f32.xlu0 %v4132
    %v4134 = vpop.xlane.xlu0 %4133
    %v4135 = vsel %vm82, %v4121, -inf
    %4136 = vmax.xlane.f32.xlu0 %v4135
    %v4137 = vpop.xlane.xlu0 %4136
    %v4138 = vsel %vm82, %v4122, -inf
    %4139 = vmax.xlane.f32.xlu0 %v4138
    %v4140 = vpop.xlane.xlu0 %4139
    %v4141 = vsub.f32 %v4117, %v4125
    %v4142 = vsub.f32 %v4118, %v4128
    %v4143 = vsub.f32 %v4119, %v4131
    %v4144 = vsub.f32 %v4120, %v4134
    %v4145 = vsub.f32 %v4121, %v4137
    %v4146 = vsub.f32 %v4122, %v4140
    %v4147 = vmul.f32 %v4141, 1.442695
    %v4148 = vpow.pop %v4147
    %v4149 = vmul.f32 %v4142, 1.442695
    %v4150 = vpow.pop %v4149
    %v4151 = vmul.f32 %v4143, 1.442695
    %v4152 = vpow.pop %v4151
    %v4153 = vmul.f32 %v4144, 1.442695
    %v4154 = vpow.pop %v4153
    %v4155 = vmul.f32 %v4145, 1.442695
    %v4156 = vpow.pop %v4155
    %v4157 = vmul.f32 %v4146, 1.442695
    %v4158 = vpow.pop %v4157
    %v4159 = vsel %vm82, %v4148, 0.0
    %4160 = vadd.xlane.f32.xlu0 %v4159
    %v4161 = vpop.xlane.xlu0 %4160
    %v4162 = vsel %vm82, %v4150, 0.0
    %4163 = vadd.xlane.f32.xlu0 %v4162
    %v4164 = vpop.xlane.xlu0 %4163
    %v4165 = vsel %vm82, %v4152, 0.0
    %4166 = vadd.xlane.f32.xlu0 %v4165
    %v4167 = vpop.xlane.xlu0 %4166
    %v4168 = vsel %vm82, %v4154, 0.0
    %4169 = vadd.xlane.f32.xlu0 %v4168
    %v4170 = vpop.xlane.xlu0 %4169
    %v4171 = vsel %vm82, %v4156, 0.0
    %4172 = vadd.xlane.f32.xlu0 %v4171
    %v4173 = vpop.xlane.xlu0 %4172
    %v4174 = vsel %vm82, %v4158, 0.0
    %4175 = vadd.xlane.f32.xlu0 %v4174
    %v4176 = vpop.xlane.xlu0 %4175
    %v4177 = vrcp.pop %v4161
    %v4178 = vrcp.pop %v4164
    %v4179 = vrcp.pop %v4167
    %v4180 = vrcp.pop %v4170
    %v4181 = vrcp.pop %v4173
    %v4182 = vrcp.pop %v4176
    %v4183 = vmul.f32 %v4148, %v4177
    %v4184 = vmul.f32 %v4150, %v4178
    %v4185 = vmul.f32 %v4152, %v4179
    %v4186 = vmul.f32 %v4154, %v4180
    %v4187 = vmul.f32 %v4156, %v4181
    %v4188 = vmul.f32 %v4158, %v4182
    %v4189 = vpack.c.bf16 %v4184, %v4183
    %v4190 = vpack.c.bf16 %v4186, %v4185
    %v4191 = vpack.c.bf16 %v4188, %v4187
    %4195 = vrot.lane.b32.xlu0 %v3946, 96
    %v4196 = vpop.permute.xlu0 %4195
    %4197 = vrot.lane.b32.xlu0 %v3947, 96
    %v4198 = vpop.permute.xlu0 %4197
    %4199 = vrot.lane.b32.xlu0 %v3948, 96
    %v4200 = vpop.permute.xlu0 %4199
    %v4205 = vsel %vm82, %v4189, 0
    %v4208 = vsel %vm82, %v4190, 0
    %v4211 = vsel %vm82, %v4191, 0
    %4213 = vmatprep.subr.bf16.mxu0 0
    %4214 = vmatpush1.bf16.msra.mxu0 %v4196
    %4215 = vmatprep.subr.bf16.mxu0 0
    %4216 = vmatpush1.bf16.msra.mxu0 %v4198
    %4217 = vmatprep.subr.bf16.mxu0 0
    %4218 = vmatpush1.bf16.msra.mxu0 %v4200
    %4219 = vmatprep.subr.bf16.mxu0 0
    %4220 = vmatpush1.bf16.msra.mxu0 0
    %4221 = vmatprep.subr.bf16.mxu0 0
    %4222 = vmatpush1.bf16.msra.mxu0 0
    %4223 = vmatprep.subr.bf16.mxu0 0
    %4224 = vmatpush1.bf16.msra.mxu0 0
    %4225 = vmatprep.subr.bf16.mxu0 0
    %4226 = vmatpush1.bf16.msra.mxu0 0
    %4227 = vmatprep.subr.bf16.mxu0 0
    %4228 = vmatpush1.bf16.msra.mxu0 0
    %4229 = vmatprep.subr.bf16.mxu0 0
    %4230 = vmatpush1.bf16.msra.mxu0 0
    %4231 = vmatprep.subr.bf16.mxu0 0
    %4232 = vmatpush1.bf16.msra.mxu0 0
    %4233 = vmatprep.subr.bf16.mxu0 0
    %4234 = vmatpush1.bf16.msra.mxu0 0
    %4235 = vmatprep.subr.bf16.mxu0 0
    %4236 = vmatpush1.bf16.msra.mxu0 0
    %4237 = vmatprep.subr.bf16.mxu0 0
    %4238 = vmatpush1.bf16.msra.mxu0 0
    %4239 = vmatprep.subr.bf16.mxu0 0
    %4240 = vmatpush1.bf16.msra.mxu0 0
    %4241 = vmatprep.subr.bf16.mxu0 0
    %4242 = vmatpush1.bf16.msra.mxu0 0
    %4243 = vmatprep.subr.bf16.mxu0 0
    %4244 = vmatpush1.bf16.msra.mxu0 0
    %4245 = vmatprep.mubr.bf16.mxu0 0
    %4246 = vmatmul.mubr.bf16.gmra.mrb[0].mxu0 %v4205
    %v4247 = vpop.f32.mrb[0].mxu0
    %v4248 = vadd.f32 0.0, %v4247
    %v4249 = vpop.f32.mrb[0].mxu0
    %v4250 = vpop.f32.mrb[0].mxu0
    %v4251 = vadd.f32 0.0, %v4250
    %v4252 = vpop.f32.mrb[0].mxu0
    %4253 = vmatprep.mubr.bf16.mxu0 0
    %4254 = vmatmul.mubr.bf16.gmra.mrb[0].mxu0 %v4208
    %v4255 = vpop.f32.mrb[0].mxu0
    %v4256 = vadd.f32 0.0, %v4255
    %v4257 = vpop.f32.mrb[0].mxu0
    %v4258 = vpop.f32.mrb[0].mxu0
    %v4259 = vadd.f32 0.0, %v4258
    %v4260 = vpop.f32.mrb[0].mxu0
    %4261 = vmatprep.mubr.bf16.mxu0 0
    %4262 = vmatmul.mubr.bf16.gmra.mrb[0].mxu0 %v4211
    %v4263 = vpop.f32.mrb[0].mxu0
    %v4264 = vadd.f32 0.0, %v4263
    %v4265 = vpop.f32.mrb[0].mxu0
    %v4266 = vpop.f32.mrb[0].mxu0
    %v4267 = vadd.f32 0.0, %v4266
    %v4268 = vpop.f32.mrb[0].mxu0
    %4269 = vdwg.mxu0
    %v4270 = vpack.c.bf16 %v4251, %v4248
    %v4271 = vpack.c.bf16 %v4259, %v4256
    %v4272 = vpack.c.bf16 %v4267, %v4264
    %v4277 = vunpack.c.l.b16 %v3451
    %v4278 = vunpack.c.l.b16 %v3452
    %v4279 = vunpack.c.l.b16 %v3453
    %v4280 = vunpack.c.l.b16 %v3454
    %v4281 = vpack.c.b16 %v4278, %v4277
    %v4282 = vpack.c.b16 %v4280, %v4279
    %v4286 = vsel %vm1581, %v4270, 0
    %v4289 = vsel %vm1581, %v4271, 0
    %v4292 = vsel %vm1581, %v4272, 0
    %4294 = vmatprep.subr.bf16.mxu0 0
    %4295 = vmatpush1.bf16.msra.mxu0 %v4281
    %4296 = vmatprep.subr.bf16.mxu0 0
    %4297 = vmatpush1.bf16.msra.mxu0 %v4282
    %4298 = vmatprep.subr.bf16.mxu0 0
    %4299 = vmatpush1.bf16.msra.mxu0 0
    %4300 = vmatprep.subr.bf16.mxu0 0
    %4301 = vmatpush1.bf16.msra.mxu0 0
    %4302 = vmatprep.subr.bf16.mxu0 0
    %4303 = vmatpush1.bf16.msra.mxu0 0
    %4304 = vmatprep.subr.bf16.mxu0 0
    %4305 = vmatpush1.bf16.msra.mxu0 0
    %4306 = vmatprep.subr.bf16.mxu0 0
    %4307 = vmatpush1.bf16.msra.mxu0 0
    %4308 = vmatprep.subr.bf16.mxu0 0
    %4309 = vmatpush1.bf16.msra.mxu0 0
    %4310 = vmatprep.subr.bf16.mxu0 0
    %4311 = vmatpush1.bf16.msra.mxu0 0
    %4312 = vmatprep.subr.bf16.mxu0 0
    %4313 = vmatpush1.bf16.msra.mxu0 0
    %4314 = vmatprep.subr.bf16.mxu0 0
    %4315 = vmatpush1.bf16.msra.mxu0 0
    %4316 = vmatprep.subr.bf16.mxu0 0
    %4317 = vmatpush1.bf16.msra.mxu0 0
    %4318 = vmatprep.subr.bf16.mxu0 0
    %4319 = vmatpush1.bf16.msra.mxu0 0
    %4320 = vmatprep.subr.bf16.mxu0 0
    %4321 = vmatpush1.bf16.msra.mxu0 0
    %4322 = vmatprep.subr.bf16.mxu0 0
    %4323 = vmatpush1.bf16.msra.mxu0 0
    %4324 = vmatprep.subr.bf16.mxu0 0
    %4325 = vmatpush1.bf16.msra.mxu0 0
    %4326 = vmatprep.mubr.bf16.mxu0 0
    %4327 = vmatmul.mubr.bf16.gmra.mrb[0].mxu0 %v4286
    %v4328 = vpop.f32.mrb[0].mxu0
    %v4329 = vadd.f32 0.0, %v4328
    %v4330 = vpop.f32.mrb[0].mxu0
    %v4331 = vpop.f32.mrb[0].mxu0
    %v4332 = vadd.f32 0.0, %v4331
    %v4333 = vpop.f32.mrb[0].mxu0
    %4334 = vmatprep.mubr.bf16.mxu0 0
    %4335 = vmatmul.mubr.bf16.gmra.mrb[0].mxu0 %v4289
    %v4336 = vpop.f32.mrb[0].mxu0
    %v4337 = vadd.f32 0.0, %v4336
    %v4338 = vpop.f32.mrb[0].mxu0
    %v4339 = vpop.f32.mrb[0].mxu0
    %v4340 = vadd.f32 0.0, %v4339
    %v4341 = vpop.f32.mrb[0].mxu0
    %4342 = vmatprep.mubr.bf16.mxu0 0
    %4343 = vmatmul.mubr.bf16.gmra.mrb[0].mxu0 %v4292
    %v4344 = vpop.f32.mrb[0].mxu0
    %v4345 = vadd.f32 0.0, %v4344
    %v4346 = vpop.f32.mrb[0].mxu0
    %v4347 = vpop.f32.mrb[0].mxu0
    %v4348 = vadd.f32 0.0, %v4347
    %v4349 = vpop.f32.mrb[0].mxu0
    %4350 = vdwg.mxu0
    %v4355 = vunpack.c.l.b16 %v3447
    %v4356 = vunpack.c.l.b16 %v3448
    %v4357 = vunpack.c.l.b16 %v3449
    %v4358 = vunpack.c.l.b16 %v3450
    %v4359 = vpack.c.b16 %v4356, %v4355
    %v4360 = vpack.c.b16 %v4358, %v4357
    %v4364 = vsel %vm1581, %v4015, 0
    %v4367 = vsel %vm1581, %v4016, 0
    %v4370 = vsel %vm1581, %v4017, 0
    %4372 = vmatprep.subr.bf16.mxu0 0
    %4373 = vmatpush1.bf16.msra.mxu0 %v4359
    %4374 = vmatprep.subr.bf16.mxu0 0
    %4375 = vmatpush1.bf16.msra.mxu0 %v4360
    %4376 = vmatprep.subr.bf16.mxu0 0
    %4377 = vmatpush1.bf16.msra.mxu0 0
    %4378 = vmatprep.subr.bf16.mxu0 0
    %4379 = vmatpush1.bf16.msra.mxu0 0
    %4380 = vmatprep.subr.bf16.mxu0 0
    %4381 = vmatpush1.bf16.msra.mxu0 0
    %4382 = vmatprep.subr.bf16.mxu0 0
    %4383 = vmatpush1.bf16.msra.mxu0 0
    %4384 = vmatprep.subr.bf16.mxu0 0
    %4385 = vmatpush1.bf16.msra.mxu0 0
    %4386 = vmatprep.subr.bf16.mxu0 0
    %4387 = vmatpush1.bf16.msra.mxu0 0
    %4388 = vmatprep.subr.bf16.mxu0 0
    %4389 = vmatpush1.bf16.msra.mxu0 0
    %4390 = vmatprep.subr.bf16.mxu0 0
    %4391 = vmatpush1.bf16.msra.mxu0 0
    %4392 = vmatprep.subr.bf16.mxu0 0
    %4393 = vmatpush1.bf16.msra.mxu0 0
    %4394 = vmatprep.subr.bf16.mxu0 0
    %4395 = vmatpush1.bf16.msra.mxu0 0
    %4396 = vmatprep.subr.bf16.mxu0 0
    %4397 = vmatpush1.bf16.msra.mxu0 0
    %4398 = vmatprep.subr.bf16.mxu0 0
    %4399 = vmatpush1.bf16.msra.mxu0 0
    %4400 = vmatprep.subr.bf16.mxu0 0
    %4401 = vmatpush1.bf16.msra.mxu0 0
    %4402 = vmatprep.subr.bf16.mxu0 0
    %4403 = vmatpush1.bf16.msra.mxu0 0
    %4404 = vmatprep.mubr.bf16.mxu0 0
    %4405 = vmatmul.mubr.bf16.gmra.mrb[0].mxu0 %v4364
    %v4406 = vpop.f32.mrb[0].mxu0
    %v4407 = vadd.f32 %v4329, %v4406
    %v4408 = vpop.f32.mrb[0].mxu0
    %v4409 = vpop.f32.mrb[0].mxu0
    %v4410 = vadd.f32 %v4332, %v4409
    %v4411 = vpop.f32.mrb[0].mxu0
    %4412 = vmatprep.mubr.bf16.mxu0 0
    %4413 = vmatmul.mubr.bf16.gmra.mrb[0].mxu0 %v4367
    %v4414 = vpop.f32.mrb[0].mxu0
    %v4415 = vadd.f32 %v4337, %v4414
    %v4416 = vpop.f32.mrb[0].mxu0
    %v4417 = vpop.f32.mrb[0].mxu0
    %v4418 = vadd.f32 %v4340, %v4417
    %v4419 = vpop.f32.mrb[0].mxu0
    %4420 = vmatprep.mubr.bf16.mxu0 0
    %4421 = vmatmul.mubr.bf16.gmra.mrb[0].mxu0 %v4370
    %v4422 = vpop.f32.mrb[0].mxu0
    %v4423 = vadd.f32 %v4345, %v4422
    %v4424 = vpop.f32.mrb[0].mxu0
    %v4425 = vpop.f32.mrb[0].mxu0
    %v4426 = vadd.f32 %v4348, %v4425
    %v4427 = vpop.f32.mrb[0].mxu0
    %4428 = vdwg.mxu0
    %4429 = vrot.lane.b32.xlu0 %v3784, 64
    %v4430 = vpop.permute.xlu0 %4429
    %4431 = vrot.lane.b32.xlu0 %v3785, 64
    %v4432 = vpop.permute.xlu0 %4431
    %4433 = vrot.lane.b32.xlu0 %v3786, 64
    %v4434 = vpop.permute.xlu0 %4433
    %4435 = vrot.lane.b32.xlu0 %v3787, 64
    %v4436 = vpop.permute.xlu0 %4435
    %4437 = vrot.lane.b32.xlu0 %v3788, 64
    %v4438 = vpop.permute.xlu0 %4437
    %4439 = vrot.lane.b32.xlu0 %v3789, 64
    %v4440 = vpop.permute.xlu0 %4439
    %v4442 = vsel %vm1581, %v4430, 0
    %v4445 = vsel %vm1581, %v4432, 0
    %v4448 = vsel %vm1581, %v4434, 0
    %v4451 = vsel %vm1581, %v4436, 0
    %v4454 = vsel %vm1581, %v4438, 0
    %v4457 = vsel %vm1581, %v4440, 0
    %4459 = vmatprep.subr.bf16.mxu0 0
    %4460 = vmatpush1.bf16.xpose.msra.mxu0 %v4451
    %4461 = vmatprep.subr.bf16.mxu0 0
    %4462 = vmatpush1.bf16.xpose.msra.mxu0 %v4454
    %4463 = vmatprep.subr.bf16.mxu0 0
    %4464 = vmatpush1.bf16.xpose.msra.mxu0 %v4457
    %4465 = vmatprep.subr.bf16.mxu0 0
    %4466 = vmatpush1.bf16.xpose.msra.mxu0 0
    %4467 = vmatprep.subr.bf16.mxu0 0
    %4468 = vmatpush1.bf16.xpose.msra.mxu0 0
    %4469 = vmatprep.subr.bf16.mxu0 0
    %4470 = vmatpush1.bf16.xpose.msra.mxu0 0
    %4471 = vmatprep.subr.bf16.mxu0 0
    %4472 = vmatpush1.bf16.xpose.msra.mxu0 0
    %4473 = vmatprep.subr.bf16.mxu0 0
    %4474 = vmatpush1.bf16.xpose.msra.mxu0 0
    %4475 = vmatprep.subr.bf16.mxu0 0
    %4476 = vmatpush1.bf16.xpose.msra.mxu0 0
    %4477 = vmatprep.subr.bf16.mxu0 0
    %4478 = vmatpush1.bf16.xpose.msra.mxu0 0
    %4479 = vmatprep.subr.bf16.mxu0 0
    %4480 = vmatpush1.bf16.xpose.msra.mxu0 0
    %4481 = vmatprep.subr.bf16.mxu0 0
    %4482 = vmatpush1.bf16.xpose.msra.mxu0 0
    %4483 = vmatprep.subr.bf16.mxu0 0
    %4484 = vmatpush1.bf16.xpose.msra.mxu0 0
    %4485 = vmatprep.subr.bf16.mxu0 0
    %4486 = vmatpush1.bf16.xpose.msra.mxu0 0
    %4487 = vmatprep.subr.bf16.mxu0 0
    %4488 = vmatpush1.bf16.xpose.msra.mxu0 0
    %4489 = vmatprep.subr.bf16.mxu0 0
    %4490 = vmatpush1.bf16.xpose.msra.mxu0 0
    %4491 = vmatprep.mubr.bf16.mxu0 0
    %4492 = vmatmul.mubr.bf16.gmra.mrb[0].mxu0 %v4442
    %v4493 = vpop.f32.mrb[0].mxu0
    %v4494 = vadd.f32 0.0, %v4493
    %v4495 = vpop.f32.mrb[0].mxu0
    %v4496 = vpop.f32.mrb[0].mxu0
    %v4497 = vadd.f32 0.0, %v4496
    %v4498 = vpop.f32.mrb[0].mxu0
    %4499 = vmatprep.mubr.bf16.mxu0 0
    %4500 = vmatmul.mubr.bf16.gmra.mrb[0].mxu0 %v4445
    %v4501 = vpop.f32.mrb[0].mxu0
    %v4502 = vadd.f32 0.0, %v4501
    %v4503 = vpop.f32.mrb[0].mxu0
    %v4504 = vpop.f32.mrb[0].mxu0
    %v4505 = vadd.f32 0.0, %v4504
    %v4506 = vpop.f32.mrb[0].mxu0
    %4507 = vmatprep.mubr.bf16.mxu0 0
    %4508 = vmatmul.mubr.bf16.gmra.mrb[0].mxu0 %v4448
    %v4509 = vpop.f32.mrb[0].mxu0
    %v4510 = vadd.f32 0.0, %v4509
    %v4511 = vpop.f32.mrb[0].mxu0
    %v4512 = vpop.f32.mrb[0].mxu0
    %v4513 = vadd.f32 0.0, %v4512
    %v4514 = vpop.f32.mrb[0].mxu0
    %4515 = vdwg.mxu0
    %v4516 = vmul.f32 %v4494, 0.17677669
    %v4517 = vmul.f32 %v4497, 0.17677669
    %v4518 = vmul.f32 %v4502, 0.17677669
    %v4519 = vmul.f32 %v4505, 0.17677669
    %v4520 = vmul.f32 %v4510, 0.17677669
    %v4521 = vmul.f32 %v4513, 0.17677669
    %v4522 = vadd.f32 %v4516, %v1198
    %v4523 = vadd.f32 %v4517, %v1199
    %v4524 = vadd.f32 %v4518, %v1200
    %v4525 = vadd.f32 %v4519, %v1201
    %v4526 = vadd.f32 %v4520, %v1202
    %v4527 = vadd.f32 %v4521, %v1203
    %v4528 = vsel %vm82, %v4522, -inf
    %4529 = vmax.xlane.f32.xlu0 %v4528
    %v4530 = vpop.xlane.xlu0 %4529
    %v4531 = vsel %vm82, %v4523, -inf
    %4532 = vmax.xlane.f32.xlu0 %v4531
    %v4533 = vpop.xlane.xlu0 %4532
    %v4534 = vsel %vm82, %v4524, -inf
    %4535 = vmax.xlane.f32.xlu0 %v4534
    %v4536 = vpop.xlane.xlu0 %4535
    %v4537 = vsel %vm82, %v4525, -inf
    %4538 = vmax.xlane.f32.xlu0 %v4537
    %v4539 = vpop.xlane.xlu0 %4538
    %v4540 = vsel %vm82, %v4526, -inf
    %4541 = vmax.xlane.f32.xlu0 %v4540
    %v4542 = vpop.xlane.xlu0 %4541
    %v4543 = vsel %vm82, %v4527, -inf
    %4544 = vmax.xlane.f32.xlu0 %v4543
    %v4545 = vpop.xlane.xlu0 %4544
    %v4546 = vsub.f32 %v4522, %v4530
    %v4547 = vsub.f32 %v4523, %v4533
    %v4548 = vsub.f32 %v4524, %v4536
    %v4549 = vsub.f32 %v4525, %v4539
    %v4550 = vsub.f32 %v4526, %v4542
    %v4551 = vsub.f32 %v4527, %v4545
    %v4552 = vmul.f32 %v4546, 1.442695
    %v4553 = vpow.pop %v4552
    %v4554 = vmul.f32 %v4547, 1.442695
    %v4555 = vpow.pop %v4554
    %v4556 = vmul.f32 %v4548, 1.442695
    %v4557 = vpow.pop %v4556
    %v4558 = vmul.f32 %v4549, 1.442695
    %v4559 = vpow.pop %v4558
    %v4560 = vmul.f32 %v4550, 1.442695
    %v4561 = vpow.pop %v4560
    %v4562 = vmul.f32 %v4551, 1.442695
    %v4563 = vpow.pop %v4562
    %v4564 = vsel %vm82, %v4553, 0.0
    %4565 = vadd.xlane.f32.xlu0 %v4564
    %v4566 = vpop.xlane.xlu0 %4565
    %v4567 = vsel %vm82, %v4555, 0.0
    %4568 = vadd.xlane.f32.xlu0 %v4567
    %v4569 = vpop.xlane.xlu0 %4568
    %v4570 = vsel %vm82, %v4557, 0.0
    %4571 = vadd.xlane.f32.xlu0 %v4570
    %v4572 = vpop.xlane.xlu0 %4571
    %v4573 = vsel %vm82, %v4559, 0.0
    %4574 = vadd.xlane.f32.xlu0 %v4573
    %v4575 = vpop.xlane.xlu0 %4574
    %v4576 = vsel %vm82, %v4561, 0.0
    %4577 = vadd.xlane.f32.xlu0 %v4576
    %v4578 = vpop.xlane.xlu0 %4577
    %v4579 = vsel %vm82, %v4563, 0.0
    %4580 = vadd.xlane.f32.xlu0 %v4579
    %v4581 = vpop.xlane.xlu0 %4580
    %v4582 = vrcp.pop %v4566
    %v4583 = vrcp.pop %v4569
    %v4584 = vrcp.pop %v4572
    %v4585 = vrcp.pop %v4575
    %v4586 = vrcp.pop %v4578
    %v4587 = vrcp.pop %v4581
    %v4588 = vmul.f32 %v4553, %v4582
    %v4589 = vmul.f32 %v4555, %v4583
    %v4590 = vmul.f32 %v4557, %v4584
    %v4591 = vmul.f32 %v4559, %v4585
    %v4592 = vmul.f32 %v4561, %v4586
    %v4593 = vmul.f32 %v4563, %v4587
    %v4594 = vpack.c.bf16 %v4589, %v4588
    %v4595 = vpack.c.bf16 %v4591, %v4590
    %v4596 = vpack.c.bf16 %v4593, %v4592
    %4597 = vrot.lane.b32.xlu0 %v3946, 64
    %v4598 = vpop.permute.xlu0 %4597
    %4599 = vrot.lane.b32.xlu0 %v3947, 64
    %v4600 = vpop.permute.xlu0 %4599
    %4601 = vrot.lane.b32.xlu0 %v3948, 64
    %v4602 = vpop.permute.xlu0 %4601
    %v4607 = vsel %vm82, %v4594, 0
    %v4610 = vsel %vm82, %v4595, 0
    %v4613 = vsel %vm82, %v4596, 0
    %4615 = vmatprep.subr.bf16.mxu0 0
    %4616 = vmatpush1.bf16.msra.mxu0 %v4598
    %4617 = vmatprep.subr.bf16.mxu0 0
    %4618 = vmatpush1.bf16.msra.mxu0 %v4600
    %4619 = vmatprep.subr.bf16.mxu0 0
    %4620 = vmatpush1.bf16.msra.mxu0 %v4602
    %4621 = vmatprep.subr.bf16.mxu0 0
    %4622 = vmatpush1.bf16.msra.mxu0 0
    %4623 = vmatprep.subr.bf16.mxu0 0
    %4624 = vmatpush1.bf16.msra.mxu0 0
    %4625 = vmatprep.subr.bf16.mxu0 0
    %4626 = vmatpush1.bf16.msra.mxu0 0
    %4627 = vmatprep.subr.bf16.mxu0 0
    %4628 = vmatpush1.bf16.msra.mxu0 0
    %4629 = vmatprep.subr.bf16.mxu0 0
    %4630 = vmatpush1.bf16.msra.mxu0 0
    %4631 = vmatprep.subr.bf16.mxu0 0
    %4632 = vmatpush1.bf16.msra.mxu0 0
    %4633 = vmatprep.subr.bf16.mxu0 0
    %4634 = vmatpush1.bf16.msra.mxu0 0
    %4635 = vmatprep.subr.bf16.mxu0 0
    %4636 = vmatpush1.bf16.msra.mxu0 0
    %4637 = vmatprep.subr.bf16.mxu0 0
    %4638 = vmatpush1.bf16.msra.mxu0 0
    %4639 = vmatprep.subr.bf16.mxu0 0
    %4640 = vmatpush1.bf16.msra.mxu0 0
    %4641 = vmatprep.subr.bf16.mxu0 0
    %4642 = vmatpush1.bf16.msra.mxu0 0
    %4643 = vmatprep.subr.bf16.mxu0 0
    %4644 = vmatpush1.bf16.msra.mxu0 0
    %4645 = vmatprep.subr.bf16.mxu0 0
    %4646 = vmatpush1.bf16.msra.mxu0 0
    %4647 = vmatprep.mubr.bf16.mxu0 0
    %4648 = vmatmul.mubr.bf16.gmra.mrb[0].mxu0 %v4607
    %v4649 = vpop.f32.mrb[0].mxu0
    %v4650 = vadd.f32 0.0, %v4649
    %v4651 = vpop.f32.mrb[0].mxu0
    %v4652 = vpop.f32.mrb[0].mxu0
    %v4653 = vadd.f32 0.0, %v4652
    %v4654 = vpop.f32.mrb[0].mxu0
    %4655 = vmatprep.mubr.bf16.mxu0 0
    %4656 = vmatmul.mubr.bf16.gmra.mrb[0].mxu0 %v4610
    %v4657 = vpop.f32.mrb[0].mxu0
    %v4658 = vadd.f32 0.0, %v4657
    %v4659 = vpop.f32.mrb[0].mxu0
    %v4660 = vpop.f32.mrb[0].mxu0
    %v4661 = vadd.f32 0.0, %v4660
    %v4662 = vpop.f32.mrb[0].mxu0
    %4663 = vmatprep.mubr.bf16.mxu0 0
    %4664 = vmatmul.mubr.bf16.gmra.mrb[0].mxu0 %v4613
    %v4665 = vpop.f32.mrb[0].mxu0
    %v4666 = vadd.f32 0.0, %v4665
    %v4667 = vpop.f32.mrb[0].mxu0
    %v4668 = vpop.f32.mrb[0].mxu0
    %v4669 = vadd.f32 0.0, %v4668
    %v4670 = vpop.f32.mrb[0].mxu0
    %4671 = vdwg.mxu0
    %v4672 = vpack.c.bf16 %v4653, %v4650
    %v4673 = vpack.c.bf16 %v4661, %v4658
    %v4674 = vpack.c.bf16 %v4669, %v4666
    %v4679 = vunpack.c.l.b16 %v3455
    %v4680 = vunpack.c.l.b16 %v3456
    %v4681 = vunpack.c.l.b16 %v3457
    %v4682 = vunpack.c.l.b16 %v3458
    %v4683 = vpack.c.b16 %v4680, %v4679
    %v4684 = vpack.c.b16 %v4682, %v4681
    %v4688 = vsel %vm1581, %v4672, 0
    %v4691 = vsel %vm1581, %v4673, 0
    %v4694 = vsel %vm1581, %v4674, 0
    %4696 = vmatprep.subr.bf16.mxu0 0
    %4697 = vmatpush1.bf16.msra.mxu0 %v4683
    %4698 = vmatprep.subr.bf16.mxu0 0
    %4699 = vmatpush1.bf16.msra.mxu0 %v4684
    %4700 = vmatprep.subr.bf16.mxu0 0
    %4701 = vmatpush1.bf16.msra.mxu0 0
    %4702 = vmatprep.subr.bf16.mxu0 0
    %4703 = vmatpush1.bf16.msra.mxu0 0
    %4704 = vmatprep.subr.bf16.mxu0 0
    %4705 = vmatpush1.bf16.msra.mxu0 0
    %4706 = vmatprep.subr.bf16.mxu0 0
    %4707 = vmatpush1.bf16.msra.mxu0 0
    %4708 = vmatprep.subr.bf16.mxu0 0
    %4709 = vmatpush1.bf16.msra.mxu0 0
    %4710 = vmatprep.subr.bf16.mxu0 0
    %4711 = vmatpush1.bf16.msra.mxu0 0
    %4712 = vmatprep.subr.bf16.mxu0 0
    %4713 = vmatpush1.bf16.msra.mxu0 0
    %4714 = vmatprep.subr.bf16.mxu0 0
    %4715 = vmatpush1.bf16.msra.mxu0 0
    %4716 = vmatprep.subr.bf16.mxu0 0
    %4717 = vmatpush1.bf16.msra.mxu0 0
    %4718 = vmatprep.subr.bf16.mxu0 0
    %4719 = vmatpush1.bf16.msra.mxu0 0
    %4720 = vmatprep.subr.bf16.mxu0 0
    %4721 = vmatpush1.bf16.msra.mxu0 0
    %4722 = vmatprep.subr.bf16.mxu0 0
    %4723 = vmatpush1.bf16.msra.mxu0 0
    %4724 = vmatprep.subr.bf16.mxu0 0
    %4725 = vmatpush1.bf16.msra.mxu0 0
    %4726 = vmatprep.subr.bf16.mxu0 0
    %4727 = vmatpush1.bf16.msra.mxu0 0
    %4728 = vmatprep.mubr.bf16.mxu0 0
    %4729 = vmatmul.mubr.bf16.gmra.mrb[0].mxu0 %v4688
    %v4730 = vpop.f32.mrb[0].mxu0
    %v4731 = vadd.f32 0.0, %v4730
    %v4732 = vpop.f32.mrb[0].mxu0
    %v4733 = vpop.f32.mrb[0].mxu0
    %v4734 = vadd.f32 0.0, %v4733
    %v4735 = vpop.f32.mrb[0].mxu0
    %4736 = vmatprep.mubr.bf16.mxu0 0
    %4737 = vmatmul.mubr.bf16.gmra.mrb[0].mxu0 %v4691
    %v4738 = vpop.f32.mrb[0].mxu0
    %v4739 = vadd.f32 0.0, %v4738
    %v4740 = vpop.f32.mrb[0].mxu0
    %v4741 = vpop.f32.mrb[0].mxu0
    %v4742 = vadd.f32 0.0, %v4741
    %v4743 = vpop.f32.mrb[0].mxu0
    %4744 = vmatprep.mubr.bf16.mxu0 0
    %4745 = vmatmul.mubr.bf16.gmra.mrb[0].mxu0 %v4694
    %v4746 = vpop.f32.mrb[0].mxu0
    %v4747 = vadd.f32 0.0, %v4746
    %v4748 = vpop.f32.mrb[0].mxu0
    %v4749 = vpop.f32.mrb[0].mxu0
    %v4750 = vadd.f32 0.0, %v4749
    %v4751 = vpop.f32.mrb[0].mxu0
    %4752 = vdwg.mxu0
    %v4753 = vadd.f32 %v4407, %v4731
    %v4754 = vadd.f32 %v4410, %v4734
    %v4755 = vadd.f32 %v4415, %v4739
    %v4756 = vadd.f32 %v4418, %v4742
    %v4757 = vadd.f32 %v4423, %v4747
    %v4758 = vadd.f32 %v4426, %v4750
    %4759 = vrot.lane.b32.xlu0 %v3784, 32
    %v4760 = vpop.permute.xlu0 %4759
    %4761 = vrot.lane.b32.xlu0 %v3785, 32
    %v4762 = vpop.permute.xlu0 %4761
    %4763 = vrot.lane.b32.xlu0 %v3786, 32
    %v4764 = vpop.permute.xlu0 %4763
    %4765 = vrot.lane.b32.xlu0 %v3787, 32
    %v4766 = vpop.permute.xlu0 %4765
    %4767 = vrot.lane.b32.xlu0 %v3788, 32
    %v4768 = vpop.permute.xlu0 %4767
    %4769 = vrot.lane.b32.xlu0 %v3789, 32
    %v4770 = vpop.permute.xlu0 %4769
    %v4772 = vsel %vm1581, %v4760, 0
    %v4775 = vsel %vm1581, %v4762, 0
    %v4778 = vsel %vm1581, %v4764, 0
    %v4781 = vsel %vm1581, %v4766, 0
    %v4784 = vsel %vm1581, %v4768, 0
    %v4787 = vsel %vm1581, %v4770, 0
    %4789 = vmatprep.subr.bf16.mxu0 0
    %4790 = vmatpush1.bf16.xpose.msra.mxu0 %v4781
    %4791 = vmatprep.subr.bf16.mxu0 0
    %4792 = vmatpush1.bf16.xpose.msra.mxu0 %v4784
    %4793 = vmatprep.subr.bf16.mxu0 0
    %4794 = vmatpush1.bf16.xpose.msra.mxu0 %v4787
    %4795 = vmatprep.subr.bf16.mxu0 0
    %4796 = vmatpush1.bf16.xpose.msra.mxu0 0
    %4797 = vmatprep.subr.bf16.mxu0 0
    %4798 = vmatpush1.bf16.xpose.msra.mxu0 0
    %4799 = vmatprep.subr.bf16.mxu0 0
    %4800 = vmatpush1.bf16.xpose.msra.mxu0 0
    %4801 = vmatprep.subr.bf16.mxu0 0
    %4802 = vmatpush1.bf16.xpose.msra.mxu0 0
    %4803 = vmatprep.subr.bf16.mxu0 0
    %4804 = vmatpush1.bf16.xpose.msra.mxu0 0
    %4805 = vmatprep.subr.bf16.mxu0 0
    %4806 = vmatpush1.bf16.xpose.msra.mxu0 0
    %4807 = vmatprep.subr.bf16.mxu0 0
    %4808 = vmatpush1.bf16.xpose.msra.mxu0 0
    %4809 = vmatprep.subr.bf16.mxu0 0
    %4810 = vmatpush1.bf16.xpose.msra.mxu0 0
    %4811 = vmatprep.subr.bf16.mxu0 0
    %4812 = vmatpush1.bf16.xpose.msra.mxu0 0
    %4813 = vmatprep.subr.bf16.mxu0 0
    %4814 = vmatpush1.bf16.xpose.msra.mxu0 0
    %4815 = vmatprep.subr.bf16.mxu0 0
    %4816 = vmatpush1.bf16.xpose.msra.mxu0 0
    %4817 = vmatprep.subr.bf16.mxu0 0
    %4818 = vmatpush1.bf16.xpose.msra.mxu0 0
    %4819 = vmatprep.subr.bf16.mxu0 0
    %4820 = vmatpush1.bf16.xpose.msra.mxu0 0
    %4821 = vmatprep.mubr.bf16.mxu0 0
    %4822 = vmatmul.mubr.bf16.gmra.mrb[0].mxu0 %v4772
    %v4823 = vpop.f32.mrb[0].mxu0
    %v4824 = vadd.f32 0.0, %v4823
    %v4825 = vpop.f32.mrb[0].mxu0
    %v4826 = vpop.f32.mrb[0].mxu0
    %v4827 = vadd.f32 0.0, %v4826
    %v4828 = vpop.f32.mrb[0].mxu0
    %4829 = vmatprep.mubr.bf16.mxu0 0
    %4830 = vmatmul.mubr.bf16.gmra.mrb[0].mxu0 %v4775
    %v4831 = vpop.f32.mrb[0].mxu0
    %v4832 = vadd.f32 0.0, %v4831
    %v4833 = vpop.f32.mrb[0].mxu0
    %v4834 = vpop.f32.mrb[0].mxu0
    %v4835 = vadd.f32 0.0, %v4834
    %v4836 = vpop.f32.mrb[0].mxu0
    %4837 = vmatprep.mubr.bf16.mxu0 0
    %4838 = vmatmul.mubr.bf16.gmra.mrb[0].mxu0 %v4778
    %v4839 = vpop.f32.mrb[0].mxu0
    %v4840 = vadd.f32 0.0, %v4839
    %v4841 = vpop.f32.mrb[0].mxu0
    %v4842 = vpop.f32.mrb[0].mxu0
    %v4843 = vadd.f32 0.0, %v4842
    %v4844 = vpop.f32.mrb[0].mxu0
    %4845 = vdwg.mxu0
    %v4846 = vmul.f32 %v4824, 0.17677669
    %v4847 = vmul.f32 %v4827, 0.17677669
    %v4848 = vmul.f32 %v4832, 0.17677669
    %v4849 = vmul.f32 %v4835, 0.17677669
    %v4850 = vmul.f32 %v4840, 0.17677669
    %v4851 = vmul.f32 %v4843, 0.17677669
    %v4852 = vadd.f32 %v4846, %v1198
    %v4853 = vadd.f32 %v4847, %v1199
    %v4854 = vadd.f32 %v4848, %v1200
    %v4855 = vadd.f32 %v4849, %v1201
    %v4856 = vadd.f32 %v4850, %v1202
    %v4857 = vadd.f32 %v4851, %v1203
    %v4858 = vsel %vm82, %v4852, -inf
    %4859 = vmax.xlane.f32.xlu0 %v4858
    %v4860 = vpop.xlane.xlu0 %4859
    %v4861 = vsel %vm82, %v4853, -inf
    %4862 = vmax.xlane.f32.xlu0 %v4861
    %v4863 = vpop.xlane.xlu0 %4862
    %v4864 = vsel %vm82, %v4854, -inf
    %4865 = vmax.xlane.f32.xlu0 %v4864
    %v4866 = vpop.xlane.xlu0 %4865
    %v4867 = vsel %vm82, %v4855, -inf
    %4868 = vmax.xlane.f32.xlu0 %v4867
    %v4869 = vpop.xlane.xlu0 %4868
    %v4870 = vsel %vm82, %v4856, -inf
    %4871 = vmax.xlane.f32.xlu0 %v4870
    %v4872 = vpop.xlane.xlu0 %4871
    %v4873 = vsel %vm82, %v4857, -inf
    %4874 = vmax.xlane.f32.xlu0 %v4873
    %v4875 = vpop.xlane.xlu0 %4874
    %v4876 = vsub.f32 %v4852, %v4860
    %v4877 = vsub.f32 %v4853, %v4863
    %v4878 = vsub.f32 %v4854, %v4866
    %v4879 = vsub.f32 %v4855, %v4869
    %v4880 = vsub.f32 %v4856, %v4872
    %v4881 = vsub.f32 %v4857, %v4875
    %v4882 = vmul.f32 %v4876, 1.442695
    %v4883 = vpow.pop %v4882
    %v4884 = vmul.f32 %v4877, 1.442695
    %v4885 = vpow.pop %v4884
    %v4886 = vmul.f32 %v4878, 1.442695
    %v4887 = vpow.pop %v4886
    %v4888 = vmul.f32 %v4879, 1.442695
    %v4889 = vpow.pop %v4888
    %v4890 = vmul.f32 %v4880, 1.442695
    %v4891 = vpow.pop %v4890
    %v4892 = vmul.f32 %v4881, 1.442695
    %v4893 = vpow.pop %v4892
    %v4894 = vsel %vm82, %v4883, 0.0
    %4895 = vadd.xlane.f32.xlu0 %v4894
    %v4896 = vpop.xlane.xlu0 %4895
    %v4897 = vsel %vm82, %v4885, 0.0
    %4898 = vadd.xlane.f32.xlu0 %v4897
    %v4899 = vpop.xlane.xlu0 %4898
    %v4900 = vsel %vm82, %v4887, 0.0
    %4901 = vadd.xlane.f32.xlu0 %v4900
    %v4902 = vpop.xlane.xlu0 %4901
    %v4903 = vsel %vm82, %v4889, 0.0
    %4904 = vadd.xlane.f32.xlu0 %v4903
    %v4905 = vpop.xlane.xlu0 %4904
    %v4906 = vsel %vm82, %v4891, 0.0
    %4907 = vadd.xlane.f32.xlu0 %v4906
    %v4908 = vpop.xlane.xlu0 %4907
    %v4909 = vsel %vm82, %v4893, 0.0
    %4910 = vadd.xlane.f32.xlu0 %v4909
    %v4911 = vpop.xlane.xlu0 %4910
    %v4912 = vrcp.pop %v4896
    %v4913 = vrcp.pop %v4899
    %v4914 = vrcp.pop %v4902
    %v4915 = vrcp.pop %v4905
    %v4916 = vrcp.pop %v4908
    %v4917 = vrcp.pop %v4911
    %v4918 = vmul.f32 %v4883, %v4912
    %v4919 = vmul.f32 %v4885, %v4913
    %v4920 = vmul.f32 %v4887, %v4914
    %v4921 = vmul.f32 %v4889, %v4915
    %v4922 = vmul.f32 %v4891, %v4916
    %v4923 = vmul.f32 %v4893, %v4917
    %v4924 = vpack.c.bf16 %v4919, %v4918
    %v4925 = vpack.c.bf16 %v4921, %v4920
    %v4926 = vpack.c.bf16 %v4923, %v4922
    %4927 = vrot.lane.b32.xlu0 %v3946, 32
    %v4928 = vpop.permute.xlu0 %4927
    %4929 = vrot.lane.b32.xlu0 %v3947, 32
    %v4930 = vpop.permute.xlu0 %4929
    %4931 = vrot.lane.b32.xlu0 %v3948, 32
    %v4932 = vpop.permute.xlu0 %4931
    %v4937 = vsel %vm82, %v4924, 0
    %v4940 = vsel %vm82, %v4925, 0
    %v4943 = vsel %vm82, %v4926, 0
    %4945 = vmatprep.subr.bf16.mxu0 0
    %4946 = vmatpush1.bf16.msra.mxu0 %v4928
    %4947 = vmatprep.subr.bf16.mxu0 0
    %4948 = vmatpush1.bf16.msra.mxu0 %v4930
    %4949 = vmatprep.subr.bf16.mxu0 0
    %4950 = vmatpush1.bf16.msra.mxu0 %v4932
    %4951 = vmatprep.subr.bf16.mxu0 0
    %4952 = vmatpush1.bf16.msra.mxu0 0
    %4953 = vmatprep.subr.bf16.mxu0 0
    %4954 = vmatpush1.bf16.msra.mxu0 0
    %4955 = vmatprep.subr.bf16.mxu0 0
    %4956 = vmatpush1.bf16.msra.mxu0 0
    %4957 = vmatprep.subr.bf16.mxu0 0
    %4958 = vmatpush1.bf16.msra.mxu0 0
    %4959 = vmatprep.subr.bf16.mxu0 0
    %4960 = vmatpush1.bf16.msra.mxu0 0
    %4961 = vmatprep.subr.bf16.mxu0 0
    %4962 = vmatpush1.bf16.msra.mxu0 0
    %4963 = vmatprep.subr.bf16.mxu0 0
    %4964 = vmatpush1.bf16.msra.mxu0 0
    %4965 = vmatprep.subr.bf16.mxu0 0
    %4966 = vmatpush1.bf16.msra.mxu0 0
    %4967 = vmatprep.subr.bf16.mxu0 0
    %4968 = vmatpush1.bf16.msra.mxu0 0
    %4969 = vmatprep.subr.bf16.mxu0 0
    %4970 = vmatpush1.bf16.msra.mxu0 0
    %4971 = vmatprep.subr.bf16.mxu0 0
    %4972 = vmatpush1.bf16.msra.mxu0 0
    %4973 = vmatprep.subr.bf16.mxu0 0
    %4974 = vmatpush1.bf16.msra.mxu0 0
    %4975 = vmatprep.subr.bf16.mxu0 0
    %4976 = vmatpush1.bf16.msra.mxu0 0
    %4977 = vmatprep.mubr.bf16.mxu0 0
    %4978 = vmatmul.mubr.bf16.gmra.mrb[0].mxu0 %v4937
    %v4979 = vpop.f32.mrb[0].mxu0
    %v4980 = vadd.f32 0.0, %v4979
    %v4981 = vpop.f32.mrb[0].mxu0
    %v4982 = vpop.f32.mrb[0].mxu0
    %v4983 = vadd.f32 0.0, %v4982
    %v4984 = vpop.f32.mrb[0].mxu0
    %4985 = vmatprep.mubr.bf16.mxu0 0
    %4986 = vmatmul.mubr.bf16.gmra.mrb[0].mxu0 %v4940
    %v4987 = vpop.f32.mrb[0].mxu0
    %v4988 = vadd.f32 0.0, %v4987
    %v4989 = vpop.f32.mrb[0].mxu0
    %v4990 = vpop.f32.mrb[0].mxu0
    %v4991 = vadd.f32 0.0, %v4990
    %v4992 = vpop.f32.mrb[0].mxu0
    %4993 = vmatprep.mubr.bf16.mxu0 0
    %4994 = vmatmul.mubr.bf16.gmra.mrb[0].mxu0 %v4943
    %v4995 = vpop.f32.mrb[0].mxu0
    %v4996 = vadd.f32 0.0, %v4995
    %v4997 = vpop.f32.mrb[0].mxu0
    %v4998 = vpop.f32.mrb[0].mxu0
    %v4999 = vadd.f32 0.0, %v4998
    %v5000 = vpop.f32.mrb[0].mxu0
    %5001 = vdwg.mxu0
    %v5002 = vpack.c.bf16 %v4983, %v4980
    %v5003 = vpack.c.bf16 %v4991, %v4988
    %v5004 = vpack.c.bf16 %v4999, %v4996
    %v5009 = vunpack.c.l.b16 %v3459
    %v5010 = vunpack.c.l.b16 %v3460
    %v5011 = vunpack.c.l.b16 %v3461
    %v5012 = vunpack.c.l.b16 %v3462
    %v5013 = vpack.c.b16 %v5010, %v5009
    %v5014 = vpack.c.b16 %v5012, %v5011
    %v5018 = vsel %vm1581, %v5002, 0
    %v5021 = vsel %vm1581, %v5003, 0
    %v5024 = vsel %vm1581, %v5004, 0
    %5026 = vmatprep.subr.bf16.mxu0 0
    %5027 = vmatpush1.bf16.msra.mxu0 %v5013
    %5028 = vmatprep.subr.bf16.mxu0 0
    %5029 = vmatpush1.bf16.msra.mxu0 %v5014
    %5030 = vmatprep.subr.bf16.mxu0 0
    %5031 = vmatpush1.bf16.msra.mxu0 0
    %5032 = vmatprep.subr.bf16.mxu0 0
    %5033 = vmatpush1.bf16.msra.mxu0 0
    %5034 = vmatprep.subr.bf16.mxu0 0
    %5035 = vmatpush1.bf16.msra.mxu0 0
    %5036 = vmatprep.subr.bf16.mxu0 0
    %5037 = vmatpush1.bf16.msra.mxu0 0
    %5038 = vmatprep.subr.bf16.mxu0 0
    %5039 = vmatpush1.bf16.msra.mxu0 0
    %5040 = vmatprep.subr.bf16.mxu0 0
    %5041 = vmatpush1.bf16.msra.mxu0 0
    %5042 = vmatprep.subr.bf16.mxu0 0
    %5043 = vmatpush1.bf16.msra.mxu0 0
    %5044 = vmatprep.subr.bf16.mxu0 0
    %5045 = vmatpush1.bf16.msra.mxu0 0
    %5046 = vmatprep.subr.bf16.mxu0 0
    %5047 = vmatpush1.bf16.msra.mxu0 0
    %5048 = vmatprep.subr.bf16.mxu0 0
    %5049 = vmatpush1.bf16.msra.mxu0 0
    %5050 = vmatprep.subr.bf16.mxu0 0
    %5051 = vmatpush1.bf16.msra.mxu0 0
    %5052 = vmatprep.subr.bf16.mxu0 0
    %5053 = vmatpush1.bf16.msra.mxu0 0
    %5054 = vmatprep.subr.bf16.mxu0 0
    %5055 = vmatpush1.bf16.msra.mxu0 0
    %5056 = vmatprep.subr.bf16.mxu0 0
    %5057 = vmatpush1.bf16.msra.mxu0 0
    %5058 = vmatprep.mubr.bf16.mxu0 0
    %5059 = vmatmul.mubr.bf16.gmra.mrb[0].mxu0 %v5018
    %v5060 = vpop.f32.mrb[0].mxu0
    %v5061 = vadd.f32 0.0, %v5060
    %v5062 = vpop.f32.mrb[0].mxu0
    %v5063 = vpop.f32.mrb[0].mxu0
    %v5064 = vadd.f32 0.0, %v5063
    %v5065 = vpop.f32.mrb[0].mxu0
    %5066 = vmatprep.mubr.bf16.mxu0 0
    %5067 = vmatmul.mubr.bf16.gmra.mrb[0].mxu0 %v5021
    %v5068 = vpop.f32.mrb[0].mxu0
    %v5069 = vadd.f32 0.0, %v5068
    %v5070 = vpop.f32.mrb[0].mxu0
    %v5071 = vpop.f32.mrb[0].mxu0
    %v5072 = vadd.f32 0.0, %v5071
    %v5073 = vpop.f32.mrb[0].mxu0
    %5074 = vmatprep.mubr.bf16.mxu0 0
    %5075 = vmatmul.mubr.bf16.gmra.mrb[0].mxu0 %v5024
    %v5076 = vpop.f32.mrb[0].mxu0
    %v5077 = vadd.f32 0.0, %v5076
    %v5078 = vpop.f32.mrb[0].mxu0
    %v5079 = vpop.f32.mrb[0].mxu0
    %v5080 = vadd.f32 0.0, %v5079
    %v5081 = vpop.f32.mrb[0].mxu0
    %5082 = vdwg.mxu0
    %v5083 = vadd.f32 %v4753, %v5061
    %v5084 = vadd.f32 %v4754, %v5064
    %v5085 = vadd.f32 %v4755, %v5069
    %v5086 = vadd.f32 %v4756, %v5072
    %v5087 = vadd.f32 %v4757, %v5077
    %v5088 = vadd.f32 %v4758, %v5080
    %v5089 = vlaneseq
    %v5090 = vshrl.u32 %v5089, 7
    %v5091 = vsub.s32 0, %v5090
    %v5092 = vrot.slane %v3407, %v5091
    %v5093 = vadd.f32 %v5083, %v5092
    %v5094 = vadd.f32 %v5084, %v5092
    %v5095 = vadd.f32 %v5085, %v5092
    %v5096 = vadd.f32 %v5086, %v5092
    %v5097 = vadd.f32 %v5087, %v5092
    %v5098 = vadd.f32 %v5088, %v5092
    %v5099 = vadd.f32 %v3401, %v5093
    %v5100 = vadd.f32 %v3402, %v5094
    %v5101 = vadd.f32 %v3403, %v5095
    %v5102 = vadd.f32 %v3404, %v5096
    %v5103 = vadd.f32 %v3405, %v5097
    %v5104 = vadd.f32 %v3406, %v5098
    %5105 = vadd.xlane.f32.xlu0 %v5099
    %v5106 = vpop.xlane.xlu0 %5105
    %5107 = vadd.xlane.f32.xlu0 %v5100
    %v5108 = vpop.xlane.xlu0 %5107
    %5109 = vadd.xlane.f32.xlu0 %v5101
    %v5110 = vpop.xlane.xlu0 %5109
    %5111 = vadd.xlane.f32.xlu0 %v5102
    %v5112 = vpop.xlane.xlu0 %5111
    %5113 = vadd.xlane.f32.xlu0 %v5103
    %v5114 = vpop.xlane.xlu0 %5113
    %5115 = vadd.xlane.f32.xlu0 %v5104
    %v5116 = vpop.xlane.xlu0 %5115
    %v5117 = vmul.f32 %v5106, %v399
    %v5118 = vmul.f32 %v5108, %v399
    %v5119 = vmul.f32 %v5110, %v399
    %v5120 = vmul.f32 %v5112, %v399
    %v5121 = vmul.f32 %v5114, %v399
    %v5122 = vmul.f32 %v5116, %v399
    %v5123 = vsub.f32 %v5099, %v5117
    %v5124 = vsub.f32 %v5100, %v5118
    %v5125 = vsub.f32 %v5101, %v5119
    %v5126 = vsub.f32 %v5102, %v5120
    %v5127 = vsub.f32 %v5103, %v5121
    %v5128 = vsub.f32 %v5104, %v5122
    %v5129 = vmul.f32 %v5123, %v5123
    %v5130 = vmul.f32 %v5124, %v5124
    %v5131 = vmul.f32 %v5125, %v5125
    %v5132 = vmul.f32 %v5126, %v5126
    %v5133 = vmul.f32 %v5127, %v5127
    %v5134 = vmul.f32 %v5128, %v5128
    %5135 = vadd.xlane.f32.xlu0 %v5129
    %v5136 = vpop.xlane.xlu0 %5135
    %5137 = vadd.xlane.f32.xlu0 %v5130
    %v5138 = vpop.xlane.xlu0 %5137
    %5139 = vadd.xlane.f32.xlu0 %v5131
    %v5140 = vpop.xlane.xlu0 %5139
    %5141 = vadd.xlane.f32.xlu0 %v5132
    %v5142 = vpop.xlane.xlu0 %5141
    %5143 = vadd.xlane.f32.xlu0 %v5133
    %v5144 = vpop.xlane.xlu0 %5143
    %5145 = vadd.xlane.f32.xlu0 %v5134
    %v5146 = vpop.xlane.xlu0 %5145
    %v5147 = vmul.f32 %v5136, %v399
    %v5148 = vmul.f32 %v5138, %v399
    %v5149 = vmul.f32 %v5140, %v399
    %v5150 = vmul.f32 %v5142, %v399
    %v5151 = vmul.f32 %v5144, %v399
    %v5152 = vmul.f32 %v5146, %v399
    %v5153 = vadd.f32 %v5147, 1e-05
    %v5154 = vadd.f32 %v5148, 1e-05
    %v5155 = vadd.f32 %v5149, 1e-05
    %v5156 = vadd.f32 %v5150, 1e-05
    %v5157 = vadd.f32 %v5151, 1e-05
    %v5158 = vadd.f32 %v5152, 1e-05
    %v5159 = vrsqrt.pop %v5153
    %v5160 = vrsqrt.pop %v5154
    %v5161 = vrsqrt.pop %v5155
    %v5162 = vrsqrt.pop %v5156
    %v5163 = vrsqrt.pop %v5157
    %v5164 = vrsqrt.pop %v5158
    %v5165 = vmul.f32 %v5123, %v5159
    %v5166 = vmul.f32 %v5124, %v5160
    %v5167 = vmul.f32 %v5125, %v5161
    %v5168 = vmul.f32 %v5126, %v5162
    %v5169 = vmul.f32 %v5127, %v5163
    %v5170 = vmul.f32 %v5128, %v5164
    %v5171 = vlaneseq
    %v5172 = vshrl.u32 %v5171, 7
    %v5173 = vsub.s32 0, %v5172
    %v5174 = vrot.slane %v3408, %v5173
    %v5175 = vmul.f32 %v5165, %v5174
    %v5176 = vmul.f32 %v5166, %v5174
    %v5177 = vmul.f32 %v5167, %v5174
    %v5178 = vmul.f32 %v5168, %v5174
    %v5179 = vmul.f32 %v5169, %v5174
    %v5180 = vmul.f32 %v5170, %v5174
    %v5181 = vlaneseq
    %v5182 = vshrl.u32 %v5181, 7
    %v5183 = vsub.s32 0, %v5182
    %v5184 = vrot.slane %v3409, %v5183
    %v5185 = vadd.f32 %v5175, %v5184
    %v5186 = vadd.f32 %v5176, %v5184
    %v5187 = vadd.f32 %v5177, %v5184
    %v5188 = vadd.f32 %v5178, %v5184
    %v5189 = vadd.f32 %v5179, %v5184
    %v5190 = vadd.f32 %v5180, %v5184
    %v5191 = vpack.c.bf16 %v5186, %v5185
    %v5192 = vpack.c.bf16 %v5188, %v5187
    %v5193 = vpack.c.bf16 %v5190, %v5189
    %v5195 = vlaneseq
    %v5196 = vshrl.u32 %v5195, 7
    %v5197 = vsub.s32 0, %v5196
    %v5198 = vrot.slane %v3516, %v5197
    %v5199 = vlaneseq
    %v5200 = vshrl.u32 %v5199, 7
    %v5201 = vsub.s32 1, %v5200
    %v5202 = vrot.slane %v3516, %v5201
    %v5221 = vunpack.c.l.b16 %v3464
    %v5222 = vunpack.c.h.b16 %v3464
    %v5223 = vunpack.c.l.b16 %v3465
    %v5224 = vunpack.c.h.b16 %v3465
    %v5225 = vunpack.c.l.b16 %v3466
    %v5226 = vunpack.c.h.b16 %v3466
    %v5227 = vunpack.c.l.b16 %v3467
    %v5228 = vunpack.c.h.b16 %v3467
    %v5229 = vunpack.c.l.b16 %v3468
    %v5230 = vunpack.c.h.b16 %v3468
    %v5231 = vunpack.c.l.b16 %v3469
    %v5232 = vunpack.c.h.b16 %v3469
    %v5233 = vunpack.c.l.b16 %v3470
    %v5234 = vunpack.c.h.b16 %v3470
    %v5235 = vunpack.c.l.b16 %v3471
    %v5236 = vunpack.c.h.b16 %v3471
    %v5237 = vunpack.c.l.b16 %v3472
    %v5238 = vunpack.c.h.b16 %v3472
    %v5239 = vunpack.c.l.b16 %v3473
    %v5240 = vunpack.c.h.b16 %v3473
    %v5241 = vunpack.c.l.b16 %v3474
    %v5242 = vunpack.c.h.b16 %v3474
    %v5243 = vunpack.c.l.b16 %v3475
    %v5244 = vunpack.c.h.b16 %v3475
    %v5245 = vunpack.c.l.b16 %v3476
    %v5246 = vunpack.c.h.b16 %v3476
    %v5247 = vunpack.c.l.b16 %v3477
    %v5248 = vunpack.c.h.b16 %v3477
    %v5249 = vunpack.c.l.b16 %v3478
    %v5250 = vunpack.c.h.b16 %v3478
    %v5251 = vunpack.c.l.b16 %v3479
    %v5252 = vunpack.c.h.b16 %v3479
    %v5253 = vpack.c.b16 %v5223, %v5221
    %v5254 = vpack.c.b16 %v5224, %v5222
    %v5255 = vpack.c.b16 %v5227, %v5225
    %v5256 = vpack.c.b16 %v5228, %v5226
    %v5257 = vpack.c.b16 %v5231, %v5229
    %v5258 = vpack.c.b16 %v5232, %v5230
    %v5259 = vpack.c.b16 %v5235, %v5233
    %v5260 = vpack.c.b16 %v5236, %v5234
    %v5261 = vpack.c.b16 %v5239, %v5237
    %v5262 = vpack.c.b16 %v5240, %v5238
    %v5263 = vpack.c.b16 %v5243, %v5241
    %v5264 = vpack.c.b16 %v5244, %v5242
    %v5265 = vpack.c.b16 %v5247, %v5245
    %v5266 = vpack.c.b16 %v5248, %v5246
    %v5267 = vpack.c.b16 %v5251, %v5249
    %v5268 = vpack.c.b16 %v5252, %v5250
    %5285 = vmatprep.subr.bf16.mxu0 %v5254
    %5286 = vmatpush1.bf16.msra.mxu0 %v5253
    %5287 = vmatprep.subr.bf16.mxu0 %v5256
    %5288 = vmatpush1.bf16.msra.mxu0 %v5255
    %5289 = vmatprep.subr.bf16.mxu0 %v5258
    %5290 = vmatpush1.bf16.msra.mxu0 %v5257
    %5291 = vmatprep.subr.bf16.mxu0 %v5260
    %5292 = vmatpush1.bf16.msra.mxu0 %v5259
    %5293 = vmatprep.subr.bf16.mxu0 %v5262
    %5294 = vmatpush1.bf16.msra.mxu0 %v5261
    %5295 = vmatprep.subr.bf16.mxu0 %v5264
    %5296 = vmatpush1.bf16.msra.mxu0 %v5263
    %5297 = vmatprep.subr.bf16.mxu0 %v5266
    %5298 = vmatpush1.bf16.msra.mxu0 %v5265
    %5299 = vmatprep.subr.bf16.mxu0 %v5268
    %5300 = vmatpush1.bf16.msra.mxu0 %v5267
    %5301 = vmatprep.subr.bf16.mxu0 0
    %5302 = vmatpush1.bf16.msra.mxu0 0
    %5303 = vmatprep.subr.bf16.mxu0 0
    %5304 = vmatpush1.bf16.msra.mxu0 0
    %5305 = vmatprep.subr.bf16.mxu0 0
    %5306 = vmatpush1.bf16.msra.mxu0 0
    %5307 = vmatprep.subr.bf16.mxu0 0
    %5308 = vmatpush1.bf16.msra.mxu0 0
    %5309 = vmatprep.subr.bf16.mxu0 0
    %5310 = vmatpush1.bf16.msra.mxu0 0
    %5311 = vmatprep.subr.bf16.mxu0 0
    %5312 = vmatpush1.bf16.msra.mxu0 0
    %5313 = vmatprep.subr.bf16.mxu0 0
    %5314 = vmatpush1.bf16.msra.mxu0 0
    %5315 = vmatprep.subr.bf16.mxu0 0
    %5316 = vmatpush1.bf16.msra.mxu0 0
    %5317 = vmatprep.mubr.bf16.mxu0 0
    %5318 = vmatmul.mubr.bf16.gmra.mrb[0].mxu0 %v5191
    %v5319 = vpop.f32.mrb[0].mxu0
    %v5320 = vadd.f32 %v5198, %v5319
    %v5321 = vpop.f32.mrb[0].mxu0
    %v5322 = vadd.f32 %v5202, %v5321
    %v5323 = vpop.f32.mrb[0].mxu0
    %v5324 = vadd.f32 %v5198, %v5323
    %v5325 = vpop.f32.mrb[0].mxu0
    %v5326 = vadd.f32 %v5202, %v5325
    %5327 = vmatprep.mubr.bf16.mxu0 0
    %5328 = vmatmul.mubr.bf16.gmra.mrb[0].mxu0 %v5192
    %v5329 = vpop.f32.mrb[0].mxu0
    %v5330 = vadd.f32 %v5198, %v5329
    %v5331 = vpop.f32.mrb[0].mxu0
    %v5332 = vadd.f32 %v5202, %v5331
    %v5333 = vpop.f32.mrb[0].mxu0
    %v5334 = vadd.f32 %v5198, %v5333
    %v5335 = vpop.f32.mrb[0].mxu0
    %v5336 = vadd.f32 %v5202, %v5335
    %5337 = vmatprep.mubr.bf16.mxu0 0
    %5338 = vmatmul.mubr.bf16.gmra.mrb[0].mxu0 %v5193
    %v5339 = vpop.f32.mrb[0].mxu0
    %v5340 = vadd.f32 %v5198, %v5339
    %v5341 = vpop.f32.mrb[0].mxu0
    %v5342 = vadd.f32 %v5202, %v5341
    %v5343 = vpop.f32.mrb[0].mxu0
    %v5344 = vadd.f32 %v5198, %v5343
    %v5345 = vpop.f32.mrb[0].mxu0
    %v5346 = vadd.f32 %v5202, %v5345
    %5347 = vdwg.mxu0
    %v5348 = vmax.f32 %v5320, 0.0
    %v5349 = vmax.f32 %v5322, 0.0
    %v5350 = vmax.f32 %v5324, 0.0
    %v5351 = vmax.f32 %v5326, 0.0
    %v5352 = vmax.f32 %v5330, 0.0
    %v5353 = vmax.f32 %v5332, 0.0
    %v5354 = vmax.f32 %v5334, 0.0
    %v5355 = vmax.f32 %v5336, 0.0
    %v5356 = vmax.f32 %v5340, 0.0
    %v5357 = vmax.f32 %v5342, 0.0
    %v5358 = vmax.f32 %v5344, 0.0
    %v5359 = vmax.f32 %v5346, 0.0
    %v5360 = vpack.c.bf16 %v5350, %v5348
    %v5361 = vpack.c.bf16 %v5351, %v5349
    %v5362 = vpack.c.bf16 %v5354, %v5352
    %v5363 = vpack.c.bf16 %v5355, %v5353
    %v5364 = vpack.c.bf16 %v5358, %v5356
    %v5365 = vpack.c.bf16 %v5359, %v5357
    %v5366 = vlaneseq
    %v5367 = vshrl.u32 %v5366, 7
    %v5368 = vsub.s32 0, %v5367
    %v5369 = vrot.slane %v3410, %v5368
    %v5402 = vunpack.c.l.b16 %v3481
    %v5403 = vunpack.c.l.b16 %v3482
    %v5404 = vunpack.c.l.b16 %v3483
    %v5405 = vunpack.c.l.b16 %v3484
    %v5406 = vunpack.c.l.b16 %v3485
    %v5407 = vunpack.c.l.b16 %v3486
    %v5408 = vunpack.c.l.b16 %v3487
    %v5409 = vunpack.c.l.b16 %v3488
    %v5410 = vunpack.c.l.b16 %v3489
    %v5411 = vunpack.c.l.b16 %v3490
    %v5412 = vunpack.c.l.b16 %v3491
    %v5413 = vunpack.c.l.b16 %v3492
    %v5414 = vunpack.c.l.b16 %v3493
    %v5415 = vunpack.c.l.b16 %v3494
    %v5416 = vunpack.c.l.b16 %v3495
    %v5417 = vunpack.c.l.b16 %v3496
    %v5418 = vunpack.c.l.b16 %v3497
    %v5419 = vunpack.c.l.b16 %v3498
    %v5420 = vunpack.c.l.b16 %v3499
    %v5421 = vunpack.c.l.b16 %v3500
    %v5422 = vunpack.c.l.b16 %v3501
    %v5423 = vunpack.c.l.b16 %v3502
    %v5424 = vunpack.c.l.b16 %v3503
    %v5425 = vunpack.c.l.b16 %v3504
    %v5426 = vunpack.c.l.b16 %v3505
    %v5427 = vunpack.c.l.b16 %v3506
    %v5428 = vunpack.c.l.b16 %v3507
    %v5429 = vunpack.c.l.b16 %v3508
    %v5430 = vunpack.c.l.b16 %v3509
    %v5431 = vunpack.c.l.b16 %v3510
    %v5432 = vunpack.c.l.b16 %v3511
    %v5433 = vunpack.c.l.b16 %v3512
    %v5434 = vpack.c.b16 %v5403, %v5402
    %v5435 = vpack.c.b16 %v5405, %v5404
    %v5436 = vpack.c.b16 %v5407, %v5406
    %v5437 = vpack.c.b16 %v5409, %v5408
    %v5438 = vpack.c.b16 %v5411, %v5410
    %v5439 = vpack.c.b16 %v5413, %v5412
    %v5440 = vpack.c.b16 %v5415, %v5414
    %v5441 = vpack.c.b16 %v5417, %v5416
    %v5442 = vpack.c.b16 %v5419, %v5418
    %v5443 = vpack.c.b16 %v5421, %v5420
    %v5444 = vpack.c.b16 %v5423, %v5422
    %v5445 = vpack.c.b16 %v5425, %v5424
    %v5446 = vpack.c.b16 %v5427, %v5426
    %v5447 = vpack.c.b16 %v5429, %v5428
    %v5448 = vpack.c.b16 %v5431, %v5430
    %v5449 = vpack.c.b16 %v5433, %v5432
    %5466 = vmatprep.subr.bf16.mxu0 0
    %5467 = vmatpush1.bf16.msra.mxu0 %v5434
    %5468 = vmatprep.subr.bf16.mxu0 0
    %5469 = vmatpush1.bf16.msra.mxu0 %v5435
    %5470 = vmatprep.subr.bf16.mxu0 0
    %5471 = vmatpush1.bf16.msra.mxu0 %v5436
    %5472 = vmatprep.subr.bf16.mxu0 0
    %5473 = vmatpush1.bf16.msra.mxu0 %v5437
    %5474 = vmatprep.subr.bf16.mxu0 0
    %5475 = vmatpush1.bf16.msra.mxu0 %v5438
    %5476 = vmatprep.subr.bf16.mxu0 0
    %5477 = vmatpush1.bf16.msra.mxu0 %v5439
    %5478 = vmatprep.subr.bf16.mxu0 0
    %5479 = vmatpush1.bf16.msra.mxu0 %v5440
    %5480 = vmatprep.subr.bf16.mxu0 0
    %5481 = vmatpush1.bf16.msra.mxu0 %v5441
    %5482 = vmatprep.subr.bf16.mxu0 0
    %5483 = vmatpush1.bf16.msra.mxu0 %v5442
    %5484 = vmatprep.subr.bf16.mxu0 0
    %5485 = vmatpush1.bf16.msra.mxu0 %v5443
    %5486 = vmatprep.subr.bf16.mxu0 0
    %5487 = vmatpush1.bf16.msra.mxu0 %v5444
    %5488 = vmatprep.subr.bf16.mxu0 0
    %5489 = vmatpush1.bf16.msra.mxu0 %v5445
    %5490 = vmatprep.subr.bf16.mxu0 0
    %5491 = vmatpush1.bf16.msra.mxu0 %v5446
    %5492 = vmatprep.subr.bf16.mxu0 0
    %5493 = vmatpush1.bf16.msra.mxu0 %v5447
    %5494 = vmatprep.subr.bf16.mxu0 0
    %5495 = vmatpush1.bf16.msra.mxu0 %v5448
    %5496 = vmatprep.subr.bf16.mxu0 0
    %5497 = vmatpush1.bf16.msra.mxu0 %v5449
    %5498 = vmatprep.mubr.bf16.mxu0 %v5361
    %5499 = vmatmul.mubr.bf16.gmra.mrb[0].mxu0 %v5360
    %v5500 = vpop.f32.mrb[0].mxu0
    %v5501 = vadd.f32 %v5369, %v5500
    %v5502 = vpop.f32.mrb[0].mxu0
    %v5503 = vpop.f32.mrb[0].mxu0
    %v5504 = vadd.f32 %v5369, %v5503
    %v5505 = vpop.f32.mrb[0].mxu0
    %5506 = vmatprep.mubr.bf16.mxu0 %v5363
    %5507 = vmatmul.mubr.bf16.gmra.mrb[0].mxu0 %v5362
    %v5508 = vpop.f32.mrb[0].mxu0
    %v5509 = vadd.f32 %v5369, %v5508
    %v5510 = vpop.f32.mrb[0].mxu0
    %v5511 = vpop.f32.mrb[0].mxu0
    %v5512 = vadd.f32 %v5369, %v5511
    %v5513 = vpop.f32.mrb[0].mxu0
    %5514 = vmatprep.mubr.bf16.mxu0 %v5365
    %5515 = vmatmul.mubr.bf16.gmra.mrb[0].mxu0 %v5364
    %v5516 = vpop.f32.mrb[0].mxu0
    %v5517 = vadd.f32 %v5369, %v5516
    %v5518 = vpop.f32.mrb[0].mxu0
    %v5519 = vpop.f32.mrb[0].mxu0
    %v5520 = vadd.f32 %v5369, %v5519
    %v5521 = vpop.f32.mrb[0].mxu0
    %5522 = vdwg.mxu0
    %v5523 = vadd.f32 %v5185, %v5501
    %v5524 = vadd.f32 %v5186, %v5504
    %v5525 = vadd.f32 %v5187, %v5509
    %v5526 = vadd.f32 %v5188, %v5512
    %v5527 = vadd.f32 %v5189, %v5517
    %v5528 = vadd.f32 %v5190, %v5520
    %5529 = vadd.xlane.f32.xlu0 %v5523
    %v5530 = vpop.xlane.xlu0 %5529
    %5531 = vadd.xlane.f32.xlu0 %v5524
    %v5532 = vpop.xlane.xlu0 %5531
    %5533 = vadd.xlane.f32.xlu0 %v5525
    %v5534 = vpop.xlane.xlu0 %5533
    %5535 = vadd.xlane.f32.xlu0 %v5526
    %v5536 = vpop.xlane.xlu0 %5535
    %5537 = vadd.xlane.f32.xlu0 %v5527
    %v5538 = vpop.xlane.xlu0 %5537
    %5539 = vadd.xlane.f32.xlu0 %v5528
    %v5540 = vpop.xlane.xlu0 %5539
    %v5541 = vmul.f32 %v5530, %v399
    %v5542 = vmul.f32 %v5532, %v399
    %v5543 = vmul.f32 %v5534, %v399
    %v5544 = vmul.f32 %v5536, %v399
    %v5545 = vmul.f32 %v5538, %v399
    %v5546 = vmul.f32 %v5540, %v399
    %v5547 = vsub.f32 %v5523, %v5541
    %v5548 = vsub.f32 %v5524, %v5542
    %v5549 = vsub.f32 %v5525, %v5543
    %v5550 = vsub.f32 %v5526, %v5544
    %v5551 = vsub.f32 %v5527, %v5545
    %v5552 = vsub.f32 %v5528, %v5546
    %v5553 = vmul.f32 %v5547, %v5547
    %v5554 = vmul.f32 %v5548, %v5548
    %v5555 = vmul.f32 %v5549, %v5549
    %v5556 = vmul.f32 %v5550, %v5550
    %v5557 = vmul.f32 %v5551, %v5551
    %v5558 = vmul.f32 %v5552, %v5552
    %5559 = vadd.xlane.f32.xlu0 %v5553
    %v5560 = vpop.xlane.xlu0 %5559
    %5561 = vadd.xlane.f32.xlu0 %v5554
    %v5562 = vpop.xlane.xlu0 %5561
    %5563 = vadd.xlane.f32.xlu0 %v5555
    %v5564 = vpop.xlane.xlu0 %5563
    %5565 = vadd.xlane.f32.xlu0 %v5556
    %v5566 = vpop.xlane.xlu0 %5565
    %5567 = vadd.xlane.f32.xlu0 %v5557
    %v5568 = vpop.xlane.xlu0 %5567
    %5569 = vadd.xlane.f32.xlu0 %v5558
    %v5570 = vpop.xlane.xlu0 %5569
    %v5571 = vmul.f32 %v5560, %v399
    %v5572 = vmul.f32 %v5562, %v399
    %v5573 = vmul.f32 %v5564, %v399
    %v5574 = vmul.f32 %v5566, %v399
    %v5575 = vmul.f32 %v5568, %v399
    %v5576 = vmul.f32 %v5570, %v399
    %v5577 = vadd.f32 %v5571, 1e-05
    %v5578 = vadd.f32 %v5572, 1e-05
    %v5579 = vadd.f32 %v5573, 1e-05
    %v5580 = vadd.f32 %v5574, 1e-05
    %v5581 = vadd.f32 %v5575, 1e-05
    %v5582 = vadd.f32 %v5576, 1e-05
    %v5583 = vrsqrt.pop %v5577
    %v5584 = vrsqrt.pop %v5578
    %v5585 = vrsqrt.pop %v5579
    %v5586 = vrsqrt.pop %v5580
    %v5587 = vrsqrt.pop %v5581
    %v5588 = vrsqrt.pop %v5582
    %v5589 = vmul.f32 %v5547, %v5583
    %v5590 = vmul.f32 %v5548, %v5584
    %v5591 = vmul.f32 %v5549, %v5585
    %v5592 = vmul.f32 %v5550, %v5586
    %v5593 = vmul.f32 %v5551, %v5587
    %v5594 = vmul.f32 %v5552, %v5588
    %v5595 = vlaneseq
    %v5596 = vshrl.u32 %v5595, 7
    %v5597 = vsub.s32 0, %v5596
    %v5598 = vrot.slane %v3411, %v5597
    %v5599 = vmul.f32 %v5589, %v5598
    %v5600 = vmul.f32 %v5590, %v5598
    %v5601 = vmul.f32 %v5591, %v5598
    %v5602 = vmul.f32 %v5592, %v5598
    %v5603 = vmul.f32 %v5593, %v5598
    %v5604 = vmul.f32 %v5594, %v5598
    %v5605 = vlaneseq
    %v5606 = vshrl.u32 %v5605, 7
    %v5607 = vsub.s32 0, %v5606
    %v5608 = vrot.slane %v3412, %v5607
    %v5609 = vadd.f32 %v5599, %v5608
    %v5610 = vadd.f32 %v5600, %v5608
    %v5611 = vadd.f32 %v5601, %v5608
    %v5612 = vadd.f32 %v5602, %v5608
    %v5613 = vadd.f32 %v5603, %v5608
    %v5614 = vadd.f32 %v5604, %v5608
    %v5615 = vadd.f32 %v1018, %v5609
    %v5616 = vadd.f32 %v1019, %v5610
    %v5617 = vadd.f32 %v1020, %v5611
    %v5618 = vadd.f32 %v1021, %v5612
    %v5619 = vadd.f32 %v1022, %v5613
    %v5620 = vadd.f32 %v1023, %v5614
    %v5621 = vadd.f32 %v5615, %v5616
    %v5622 = vrot.slane %v5621, 4
    %v5623 = vadd.f32 %v5621, %v5622
    %v5624 = vrot.slane %v5623, 2
    %v5625 = vadd.f32 %v5623, %v5624
    %v5626 = vrot.slane %v5625, 1
    %v5627 = vadd.f32 %v5625, %v5626
    %v5628 = vrcp.pop 16.0
    %v5629 = vmul.f32 %v5627, %v5628
    %v5630 = vadd.f32 %v5617, %v5618
    %v5631 = vrot.slane %v5630, 4
    %v5632 = vadd.f32 %v5630, %v5631
    %v5633 = vrot.slane %v5632, 2
    %v5634 = vadd.f32 %v5632, %v5633
    %v5635 = vrot.slane %v5634, 1
    %v5636 = vadd.f32 %v5634, %v5635
    %v5637 = vmul.f32 %v5636, %v5628
    %vm5638 = vcmask 1040384
    %v5639 = vsel %vm5638, %v5629, %v5637
    %v5640 = vrot.slane %v5619, 4
    %v5641 = vadd.f32 %v5619, %v5640
    %v5642 = vrot.slane %v5641, 2
    %v5643 = vadd.f32 %v5641, %v5642
    %v5644 = vrot.slane %v5643, 1
    %v5645 = vadd.f32 %v5643, %v5644
    %v5646 = vrcp.pop 8.0
    %v5647 = vmul.f32 %v5645, %v5646
    %v5648 = vrot.slane %v5620, 4
    %v5649 = vadd.f32 %v5620, %v5648
    %v5650 = vrot.slane %v5649, 2
    %v5651 = vadd.f32 %v5649, %v5650
    %v5652 = vrot.slane %v5651, 1
    %v5653 = vadd.f32 %v5651, %v5652
    %v5654 = vmul.f32 %v5653, %v5646
    %v5655 = vsel %vm5638, %v5647, %v5654
    %v5656 = vmul.f32 %v5639, %v5639
    %v5657 = vsel %vm955, %v5656, 0.0
    %5658 = vadd.xlane.f32.xlu0 %v5657
    %v5659 = vpop.xlane.xlu0 %5658
    %v5660 = vmax.f32 %v5659, 1e-24
    %v5661 = vrsqrt.pop %v5660
    %v5662 = vmul.f32 %v5639, %v5661
    %v5663 = vmul.f32 %v5655, %v5655
    %v5664 = vsel %vm955, %v5663, 0.0
    %5665 = vadd.xlane.f32.xlu0 %v5664
    %v5666 = vpop.xlane.xlu0 %5665
    %v5667 = vmax.f32 %v5666, 1e-24
    %v5668 = vrsqrt.pop %v5667
    %v5669 = vmul.f32 %v5655, %v5668
    %5670 = vmatprep.subr.mxu0 0.0
    %5671 = vmatpush1.xpose.msra.mxu0 %v5669
    %5672 = vmatprep.subr.mxu0 0.0
    %5673 = vmatpush1.xpose.msra.mxu0 0.0
    %5674 = vmatprep.subr.mxu0 0.0
    %5675 = vmatpush1.xpose.msra.mxu0 0.0
    %5676 = vmatprep.subr.mxu0 0.0
    %5677 = vmatpush1.xpose.msra.mxu0 0.0
    %5678 = vmatprep.subr.mxu0 0.0
    %5679 = vmatpush1.xpose.msra.mxu0 0.0
    %5680 = vmatprep.subr.mxu0 0.0
    %5681 = vmatpush1.xpose.msra.mxu0 0.0
    %5682 = vmatprep.subr.mxu0 0.0
    %5683 = vmatpush1.xpose.msra.mxu0 0.0
    %5684 = vmatprep.subr.mxu0 0.0
    %5685 = vmatpush1.xpose.msra.mxu0 0.0
    %5686 = vmatprep.subr.mxu0 0.0
    %5687 = vmatpush1.xpose.msra.mxu0 0.0
    %5688 = vmatprep.subr.mxu0 0.0
    %5689 = vmatpush1.xpose.msra.mxu0 0.0
    %5690 = vmatprep.subr.mxu0 0.0
    %5691 = vmatpush1.xpose.msra.mxu0 0.0
    %5692 = vmatprep.subr.mxu0 0.0
    %5693 = vmatpush1.xpose.msra.mxu0 0.0
    %5694 = vmatprep.subr.mxu0 0.0
    %5695 = vmatpush1.xpose.msra.mxu0 0.0
    %5696 = vmatprep.subr.mxu0 0.0
    %5697 = vmatpush1.xpose.msra.mxu0 0.0
    %5698 = vmatprep.subr.mxu0 0.0
    %5699 = vmatpush1.xpose.msra.mxu0 0.0
    %5700 = vmatprep.subr.mxu0 0.0
    %5701 = vmatpush1.xpose.msra.mxu0 0.0
    %5702 = vmatprep.subr.mxu0 0.0
    %5703 = vmatpush1.xpose.msra.mxu0 0.0
    %5704 = vmatprep.subr.mxu0 0.0
    %5705 = vmatpush1.xpose.msra.mxu0 0.0
    %5706 = vmatprep.subr.mxu0 0.0
    %5707 = vmatpush1.xpose.msra.mxu0 0.0
    %5708 = vmatprep.subr.mxu0 0.0
    %5709 = vmatpush1.xpose.msra.mxu0 0.0
    %5710 = vmatprep.subr.mxu0 0.0
    %5711 = vmatpush1.xpose.msra.mxu0 0.0
    %5712 = vmatprep.subr.mxu0 0.0
    %5713 = vmatpush1.xpose.msra.mxu0 0.0
    %5714 = vmatprep.subr.mxu0 0.0
    %5715 = vmatpush1.xpose.msra.mxu0 0.0
    %5716 = vmatprep.subr.mxu0 0.0
    %5717 = vmatpush1.xpose.msra.mxu0 0.0
    %5718 = vmatprep.subr.mxu0 0.0
    %5719 = vmatpush1.xpose.msra.mxu0 0.0
    %5720 = vmatprep.subr.mxu0 0.0
    %5721 = vmatpush1.xpose.msra.mxu0 0.0
    %5722 = vmatprep.subr.mxu0 0.0
    %5723 = vmatpush1.xpose.msra.mxu0 0.0
    %5724 = vmatprep.subr.mxu0 0.0
    %5725 = vmatpush1.xpose.msra.mxu0 0.0
    %5726 = vmatprep.subr.mxu0 0.0
    %5727 = vmatpush1.xpose.msra.mxu0 0.0
    %5728 = vmatprep.subr.mxu0 0.0
    %5729 = vmatpush1.xpose.msra.mxu0 0.0
    %5730 = vmatprep.subr.mxu0 0.0
    %5731 = vmatpush1.xpose.msra.mxu0 0.0
    %5732 = vmatprep.subr.mxu0 0.0
    %5733 = vmatpush1.xpose.msra.mxu0 0.0
    %5734 = vmatprep.mubr.f32.mxu0 0.0
    %5735 = vmatmul.mubr.f32.gmra.mrb[0].mxu0 %v5662
    %v5736 = vpop.f32.mrb[0].mxu0
    %v5737 = vadd.f32 0.0, %v5736
    %v5738 = vpop.f32.mrb[0].mxu0
    %5739 = vdwg.mxu0
    %s5740 = sld [smem:[#allocation2]]
    %s5741 = smax.f32 %s5740, 0.01
    %s5742 = smin.f32 %s5741, 20.0
    %v5743 = vstv %s5742
    %v5744 = vmul.f32 %v5743, 1.442695
    %v5745 = vpow.pop %v5744
    %v5746 = vmul.f32 %v5737, %v5745
    %vm5747 = vcmp.eq.s32.totalorder %v980, %v1113
    %v5748 = vsel %vm5747, %v5746, 0.0
    %vm5749 = vcmask 9216
    %v5750 = vsel %vm5749, %v5748, 0.0
    %5751 = vadd.xlane.f32.xlu0 %v5750
    %v5752 = vpop.xlane.xlu0 %5751
    %v5753 = vrot.slane %v5750, 4
    %v5754 = vadd.f32 %v5750, %v5753
    %v5755 = vrot.slane %v5754, 2
    %v5756 = vadd.f32 %v5754, %v5755
    %v5757 = vrot.slane %v5756, 1
    %v5758 = vadd.f32 %v5756, %v5757
    %v5759 = vsel %vm5749, %v5746, -inf
    %5760 = vmax.xlane.f32.xlu0 %v5759
    %v5761 = vpop.xlane.xlu0 %5760
    %v5762 = vsub.f32 %v5746, %v5761
    %v5763 = vmul.f32 %v5762, 1.442695
    %v5764 = vpow.pop %v5763
    %v5765 = vsel %vm5749, %v5764, 0.0
    %5766 = vadd.xlane.f32.xlu0 %v5765
    %v5767 = vpop.xlane.xlu0 %5766
    %v5768 = vlog2.pop %v5767
    %v5769 = vmul.f32 %v5768, 0.6931472
    %v5770 = vadd.f32 %v5769, %v5761
    %v5771 = vrot.slane %v5759, 4
    %v5772 = vmax.f32 %v5759, %v5771
    %v5773 = vrot.slane %v5772, 2
    %v5774 = vmax.f32 %v5772, %v5773
    %v5775 = vrot.slane %v5774, 1
    %v5776 = vmax.f32 %v5774, %v5775
    %v5777 = vsub.f32 %v5746, %v5776
    %v5778 = vmul.f32 %v5777, 1.442695
    %v5779 = vpow.pop %v5778
    %v5780 = vsel %vm5749, %v5779, 0.0
    %v5781 = vrot.slane %v5780, 4
    %v5782 = vadd.f32 %v5780, %v5781
    %v5783 = vrot.slane %v5782, 2
    %v5784 = vadd.f32 %v5782, %v5783
    %v5785 = vrot.slane %v5784, 1
    %v5786 = vadd.f32 %v5784, %v5785
    %v5787 = vlog2.pop %v5786
    %v5788 = vmul.f32 %v5787, 0.6931472
    %v5789 = vadd.f32 %v5788, %v5776
    %v5790 = vsub.f32 %v5770, %v5752
    %v5791 = vsub.f32 %v5789, %v5758
    %v5792 = vsel %vm955, %v5790, 0.0
    %v5793 = vrot.slane %v5792, 4
    %v5794 = vadd.f32 %v5792, %v5793
    %v5795 = vrot.slane %v5794, 2
    %v5796 = vadd.f32 %v5794, %v5795
    %v5797 = vrot.slane %v5796, 1
    %v5798 = vadd.f32 %v5796, %v5797
    %vm5799 = vcmask 15360
    %v5800 = vsel %vm5799, %v5791, 0.0
    %5801 = vadd.xlane.f32.xlu0 %v5800
    %v5802 = vpop.xlane.xlu0 %5801
    %v5803 = vadd.f32 %v5798, %v5802
    %v5804 = vrcp.pop 4.0
    %v5805 = vmul.f32 %v5803, %v5804
    %vm5806 = vcmask 0
    %5807 = vst.msk [vmem:[#allocation3] sm:$0x1] %vm5806, %v5805
    // Predicated region
    $region54: #{one_encoder_up_forward.1} parent=1 // pred_check
      _
    $region55: #{one_encoder_up_forward.1} parent=1 // pred_check_branch
      %5809 = sbr.rel (0) target = $region57
    $region56: #{one_encoder_up_forward.1} parent=1 // pred_region
      %s5811 = ssub.s32 16, 16
      %5812 = vsyncadd [#allocation4], %s5811
      %s5814 = sshll.u32 [#allocation3], 4
      %s5815 = int_to_ptr.vmem [resolvable:$true] %s5814
      %5817 = dma.vmem_to_hbm [thread:$0]  %s5815, 16, %s13, [#allocation4]
    $region57: #{one_encoder_up_forward.1} parent=1 // pred_fallthru
      _
    // Predicated region
    $region58: #{one_encoder_up_forward.1} parent=1 // pred_check
      _
    $region59: #{one_encoder_up_forward.1} parent=1 // pred_check_branch
      %5819 = sbr.rel (0) target = $region61
    $region60: #{one_encoder_up_forward.1} parent=1 // pred_region
      %5820 = dma.done [#allocation4], 16
    $region61: #{one_encoder_up_forward.1} parent=1 // pred_fallthru
      _
    %5821 = vsyncpa [#allocation4], 1

</llo_original>
